<compile_context>
chip_gen: v5e
topology: v5e:2x2
jax: 0.10.0
libtpu: 0.0.40
codegen_flags: <defaults>
</compile_context>

<pallas_src>
import functools

import jax
import jax.numpy as jnp
from jax.experimental import pallas as pl
from jax.experimental.pallas import tpu as pltpu


# --------------------------------------------------------------------------------------
# Kernels
# --------------------------------------------------------------------------------------
def _order0_kernel(x_ref, w_ref, b_ref, out_ref, *, apply_act):
    """acc = X_0 @ W_0 (plus bias + ReLU iff this is the whole layer, K == 1)."""
    acc = jnp.dot(x_ref[...], w_ref[...], preferred_element_type=jnp.float32)
    if apply_act:
        acc = jnp.maximum(acc + b_ref[...], 0.0)
    out_ref[...] = acc


def _cheb_order_kernel(a_ref, xc_ref, xr_ref, xm2_ref, c_ref, w_ref, b_ref, acc_ref,
                       xi_ref, out_ref, *, first, last):
    """One Chebyshev order.  Grid = (row tiles, contraction tiles).

    Produces X_i (f32) and the updated running accumulator (relu(acc + b) on the
    last order).  xi_ref doubles as the h = A_hat @ X_{i-1} accumulator across the
    contraction sweep: its output block index is constant over ci, so the block is
    VMEM-resident for the whole sweep and written back to HBM once per row tile.
    """
    ci = pl.program_id(1)
    n_col = pl.num_programs(1)

    @pl.when(ci == 0)
    def _zero_h():
        xi_ref[...] = jnp.zeros_like(xi_ref)

    # h[row tile] += A_hat[row tile, col tile] @ X_{i-1}[col tile]
    # A_hat stays in its streamed dtype (bf16): only the tiny (tc, Din) X slice is
    # cast so the MXU runs a native bf16 x bf16 -> f32 matmul (no f32 up-cast of
    # the big A tile on the VPU).
    xi_ref[...] += jnp.dot(a_ref[...], xc_ref[...].astype(a_ref.dtype),
                           preferred_element_type=jnp.float32)

    @pl.when(ci == n_col - 1)
    def _finalize_row_tile():
        h = xi_ref[...]
        c = c_ref[...]                       # (tm, 1) = 2/lambda_max - 1
        if first:                            # X_1 = -h + (rn - 1) X_0
            x_new = -h + c * xr_ref[...]
        else:                                # X_i = -2h + 2(rn-1) X_{i-1} - X_{i-2}
            x_new = -2.0 * h + 2.0 * (c * xr_ref[...]) - xm2_ref[...]
        xi_ref[...] = x_new

        acc = acc_ref[...] + jnp.dot(x_new, w_ref[...],
                                     preferred_element_type=jnp.float32)
        if last:                             # bias + ReLU only on the last order
            out_ref[...] = jnp.maximum(acc + b_ref[...], 0.0)
        else:
            out_ref[...] = acc


# --------------------------------------------------------------------------------------
# Wrapper helpers
# --------------------------------------------------------------------------------------
def _round_up(x, m):
    return (x + m - 1) // m * m


def _choose_tiles(n):
    """Return (n_pad, row_tile tm, contraction_tile tc).

    * n_pad is a multiple of 256 (tight padding for mid-size graphs, whose A_hat
      traffic grows quadratically in n_pad/n); we only round to 1024 when that
      adds <10% traffic, which unlocks the full 512x1024 (~1 MiB bf16) A tile.
    * tm / tc are the largest multiples of 128 dividing n_pad, capped at 512/1024,
      so one A tile amortizes the ~0.35 us per-grid-step overhead while staying
      tiny versus VMEM.
    """
    n = max(int(n), 1)
    n_small = _round_up(n, 256)
    n_big = _round_up(n, 1024)
    n_pad = n_big if n_big * n_big <= 1.1 * n_small * n_small else n_small

    def _largest_tile(cap):
        best = 128                      # 128 always divides n_pad (multiple of 256)
        t = 256
        while t <= min(cap, n_pad):
            if n_pad % t == 0:
                best = t
            t += 128
        return best

    return n_pad, _largest_tile(512), _largest_tile(1024)


def _vmem_limit_bytes():
    """~3/4 of this generation's physical VMEM (v5e/v6e: 128 MiB -> 96 MiB,
    v7x: 64 MiB -> 48 MiB), leaving headroom for Mosaic internal scratch."""
    default = 64 * 1024 * 1024
    try:
        cap = int(getattr(pltpu.get_tpu_info(), "vmem_capacity_bytes", default))
    except Exception:
        cap = default
    return (cap * 3) // 4


# --------------------------------------------------------------------------------------
# Forward pass
# --------------------------------------------------------------------------------------
def cheb_conv(adj_t, feat, weight_t, bias, *, k, lambda_max=None,
              adj_dtype=jnp.bfloat16):
    """ChebConv forward (activation = ReLU, bias = True).

    adj_t     : (N, N) f32 dense transposed adjacency, adj_t[v, u] = #edges u -> v
                (so DGL's update_all(copy_u, sum) == adj_t @ h).
    feat      : (N, Din) f32 node features.
    weight_t  : (K*Din, Dout) f32  == nn.Linear(K*Din, Dout).weight.T
    bias      : (Dout,) f32        == nn.Linear(...).bias
    k         : Chebyshev filter size K (>= 1).
    lambda_max: None (-> default 2.0), scalar, or per-node array.
    adj_dtype : dtype the normalized adjacency is streamed in (bf16 halves HBM traffic).
    Returns (N, Dout) f32.
    """
    n, in_feats = feat.shape
    out_feats = weight_t.shape[1]
    assert weight_t.shape[0] == k * in_feats and k >= 1

    # ---- one-time pre-pass: fold the degree & lambda_max normalization into the
    # adjacency so the in-kernel Laplacian step is a single matmul:
    #     A_hat[v,u] = (2/lambda_max[v]) * d[v]^-1/2 * A_t[v,u] * d[u]^-1/2
    in_deg = jnp.sum(adj_t, axis=1, keepdims=True)
    d_invsqrt = jnp.power(jnp.maximum(in_deg, 1.0), -0.5)
    lam = 2.0 if lambda_max is None else lambda_max
    lam = jnp.broadcast_to(jnp.asarray(lam, jnp.float32).reshape(-1), (n,)).reshape(n, 1)
    re_norm = 2.0 / lam
    a_hat = (re_norm * d_invsqrt) * adj_t * d_invsqrt.T
    c = re_norm - 1.0

    # ---- pad to TPU-friendly shapes (lane-dense Dout, (8,128)-aligned tiles)
    n_pad, tm, tc = _choose_tiles(n)
    din = _round_up(in_feats, 8)
    dout = _round_up(out_feats, 128)
    n_rows, n_cols = n_pad // tm, n_pad // tc

    # TODO(synk): int8 (v5e/v6e) / fp8-e4m3 (v7x) quantized A_hat streaming would
    # halve HBM traffic again on this bandwidth-bound kernel.
    a_hat_p = (jnp.zeros((n_pad, n_pad), jnp.float32)
               .at[:n, :n].set(a_hat).astype(adj_dtype))
    feat_p = jnp.zeros((n_pad, din), jnp.float32).at[:n, :in_feats].set(feat)
    # Padded rows get c = 0 (not 2/lambda_max - 1); harmless because the padded
    # adjacency / feature rows are all zero and those rows are sliced off at the end.
    c_p = jnp.zeros((n_pad, 1), jnp.float32).at[:n, :].set(c)
    w_p = (jnp.zeros((k, din, dout), jnp.float32)
           .at[:, :in_feats, :out_feats].set(weight_t.reshape(k, in_feats, out_feats)))
    b_p = jnp.zeros((1, dout), jnp.float32).at[0, :out_feats].set(bias.reshape(-1))

    vmem_limit = _vmem_limit_bytes()

    # ---- order 0: acc = X_0 @ W_0  (plus bias + ReLU if K == 1)
    acc = pl.pallas_call(
        functools.partial(_order0_kernel, apply_act=(k == 1)),
        out_shape=jax.ShapeDtypeStruct((n_pad, dout), jnp.float32),
        grid_spec=pltpu.PrefetchScalarGridSpec(
            num_scalar_prefetch=0,
            grid=(n_rows,),
            in_specs=[pl.BlockSpec((tm, din), lambda ri: (ri, 0)),
                      pl.BlockSpec((din, dout), lambda ri: (0, 0)),
                      pl.BlockSpec((1, dout), lambda ri: (0, 0))],
            out_specs=pl.BlockSpec((tm, dout), lambda ri: (ri, 0))),
        compiler_params=pltpu.CompilerParams(
            dimension_semantics=("parallel",),
            vmem_limit_bytes=vmem_limit),
    )(feat_p, w_p[0], b_p)

    if k == 1:
        return acc[:n, :out_feats]

    # ---- orders 1 .. K-1: one pallas_call per order.  Within an order the row
    # tiles are independent -> row axis "parallel" (megacore); the recursion state
    # and the accumulator live in HBM, so there is no full-N VMEM scratch.
    x_m2, x_m1 = feat_p, feat_p       # X_{i-2} (unused on the first order), X_0
    for i in range(1, k):
        first, last = (i == 1), (i == k - 1)
        x_i, acc = pl.pallas_call(
            functools.partial(_cheb_order_kernel, first=first, last=last),
            out_shape=(jax.ShapeDtypeStruct((n_pad, din), jnp.float32),
                       jax.ShapeDtypeStruct((n_pad, dout), jnp.float32)),
            grid_spec=pltpu.PrefetchScalarGridSpec(
                num_scalar_prefetch=0,
                grid=(n_rows, n_cols),
                in_specs=[
                    pl.BlockSpec((tm, tc), lambda ri, ci: (ri, ci)),    # A_hat (streamed, bf16)
                    pl.BlockSpec((tc, din), lambda ri, ci: (ci, 0)),    # X_{i-1}, contraction slice
                    pl.BlockSpec((tm, din), lambda ri, ci: (ri, 0)),    # X_{i-1}, row slice
                    pl.BlockSpec((tm, din), lambda ri, ci: (ri, 0)),    # X_{i-2}, row slice
                    pl.BlockSpec((tm, 1), lambda ri, ci: (ri, 0)),      # c = 2/lambda_max - 1
                    pl.BlockSpec((din, dout), lambda ri, ci: (0, 0)),   # W_i
                    pl.BlockSpec((1, dout), lambda ri, ci: (0, 0)),     # bias
                    pl.BlockSpec((tm, dout), lambda ri, ci: (ri, 0)),   # running acc (aliased)
                ],
                out_specs=(pl.BlockSpec((tm, din), lambda ri, ci: (ri, 0)),     # X_i
                           pl.BlockSpec((tm, dout), lambda ri, ci: (ri, 0)))),  # new acc / final
            input_output_aliases={7: 1},      # accumulate acc in place in HBM
            compiler_params=pltpu.CompilerParams(
                dimension_semantics=("parallel", "arbitrary"),
                vmem_limit_bytes=vmem_limit),
        )(a_hat_p, x_m1, x_m1, x_m2, c_p, w_p[i], b_p, acc)
        x_m2, x_m1 = x_m1, x_i

    return acc[:n, :out_feats]


# --------------------------------------------------------------------------------------
# Pure-JAX references (for sanity checks)
# --------------------------------------------------------------------------------------
def _reference_folded(a_hat, feat, c, weight_t, bias, *, k):
    """Mirror of the kernel math: bf16-rounded A_hat, X cast to bf16 for the
    Laplacian matmul, everything else f32."""
    hp = jax.lax.Precision.HIGHEST
    din = feat.shape[1]

    def lap(x):
        return jnp.dot(a_hat, x.astype(jnp.bfloat16).astype(jnp.float32), precision=hp)

    acc = jnp.dot(feat, weight_t[:din], precision=hp)
    if k > 1:
        h = lap(feat)
        x1 = -h + c * feat
        acc = acc + jnp.dot(x1, weight_t[din:2 * din], precision=hp)
        xm2, xm1 = feat, x1
        for i in range(2, k):
            h = lap(xm1)
            xi = -2.0 * h + 2.0 * (c * xm1) - xm2
            acc = acc + jnp.dot(xi, weight_t[i * din:(i + 1) * din], precision=hp)
            xm2, xm1 = xm1, xi
    return jnp.maximum(acc + bias.reshape(1, -1), 0.0)


def _reference_dgl(adj_t, feat, weight_t, bias, *, k, lambda_max=None):
    """Straight f32 mirror of the DGL/PyTorch forward (no folding, no bf16)."""
    hp = jax.lax.Precision.HIGHEST
    n = feat.shape[0]
    in_deg = jnp.sum(adj_t, axis=1, keepdims=True)
    d_invsqrt = jnp.power(jnp.maximum(in_deg, 1.0), -0.5)
    lam = 2.0 if lambda_max is None else lambda_max
    lam = jnp.broadcast_to(jnp.asarray(lam, jnp.float32).reshape(-1), (n,)).reshape(n, 1)
    re_norm = 2.0 / lam

    def unn_lap(x):
        return jnp.dot(adj_t, x * d_invsqrt, precision=hp) * d_invsqrt

    x0 = feat
    xt = [x0]
    if k > 1:
        h = unn_lap(x0)
        x1 = -re_norm * h + x0 * (re_norm - 1.0)
        xt.append(x1)
        for _ in range(2, k):
            h = unn_lap(x1)
            xi = -2.0 * re_norm * h + x1 * 2.0 * (re_norm - 1.0) - x0
            xt.append(xi)
            x1, x0 = xi, x1
    X = jnp.concatenate(xt, axis=1)
    return jnp.maximum(jnp.dot(X, weight_t, precision=hp) + bias.reshape(1, -1), 0.0)


# --------------------------------------------------------------------------------------
# Demo / self-check
# --------------------------------------------------------------------------------------
if __name__ == "__main__":
    key = jax.random.PRNGKey(0)
    k_feat, k_src, k_dst, k_w, k_b = jax.random.split(key, 5)

    N, IN_FEATS, OUT_FEATS, K, E = 600, 16, 32, 3, 3000
    LAMBDA_MAX = 1.5   # non-default so the (2/lambda_max - 1) path is exercised

    feat = jax.random.normal(k_feat, (N, IN_FEATS), dtype=jnp.float32)
    src = jax.random.randint(k_src, (E,), 0, N)
    dst = jax.random.randint(k_dst, (E,), 0, N)
    # A[u, v] = #edges u->v ; pass A^T so DGL's copy_u/sum message passing == adj_t @ h.
    adj = jnp.zeros((N, N), jnp.float32).at[src, dst].add(1.0)
    adj_t = adj.T

    # nn.Linear(K*Din, Dout) parameters (weight stored transposed).
    bound = (K * IN_FEATS) ** -0.5
    weight_t = jax.random.uniform(k_w, (K * IN_FEATS, OUT_FEATS),
                                  minval=-bound, maxval=bound, dtype=jnp.float32)
    bias = jax.random.uniform(k_b, (OUT_FEATS,),
                              minval=-bound, maxval=bound, dtype=jnp.float32)

    conv = jax.jit(functools.partial(cheb_conv, k=K, lambda_max=LAMBDA_MAX))
    out = jax.block_until_ready(conv(adj_t, feat, weight_t, bias))
    assert out.shape == (N, OUT_FEATS)

    # Check 1: kernel vs. a reference doing the identical (folded, bf16-rounded) math.
    in_deg = jnp.sum(adj_t, axis=1, keepdims=True)
    d_invsqrt = jnp.power(jnp.maximum(in_deg, 1.0), -0.5)
    re_norm = jnp.full((N, 1), 2.0 / LAMBDA_MAX, jnp.float32)
    a_hat_bf = ((re_norm * d_invsqrt) * adj_t * d_invsqrt.T
                ).astype(jnp.bfloat16).astype(jnp.float32)
    c = re_norm - 1.0
    ref_folded = _reference_folded(a_hat_bf, feat, c, weight_t, bias, k=K)
    err1 = float(jnp.max(jnp.abs(out - ref_folded)))
    assert jnp.allclose(out, ref_folded, atol=2e-3, rtol=2e-3), f"folded-ref max diff {err1}"

    # Check 2: kernel vs. the straight f32 DGL-style forward (loose tolerance: the
    # adjacency and the X operand of the Laplacian matmul are bf16 inside the kernel).
    ref_dgl = _reference_dgl(adj_t, feat, weight_t, bias, k=K, lambda_max=LAMBDA_MAX)
    err2 = float(jnp.max(jnp.abs(out - ref_dgl)))
    assert jnp.allclose(out, ref_dgl, atol=8e-2, rtol=3e-2), f"dgl-ref max diff {err2}"

    print("KERNEL_OK")
</pallas_src>

<mosaic_0001>
module attributes {stable_mosaic.version = 11 : i64} {
  func.func @_order0_kernel(%arg0: i32, %arg1: memref<384x16xf32, #tpu.memory_space<vmem>>, %arg2: memref<16x128xf32, #tpu.memory_space<vmem>>, %arg3: memref<1x128xf32, #tpu.memory_space<vmem>>, %arg4: memref<384x128xf32, #tpu.memory_space<vmem>>) attributes {dimension_semantics = [#tpu.dimension_semantics<parallel>], iteration_bounds = array<i64: 2>, scalar_prefetch = 0 : i64, scratch_operands = 0 : i64, tpu.core_type = #tpu.core_type<tc>, window_params = [{transform_indices = @transform_0, window_bounds = array<i64: 384, 16>}, {pipeline_mode = #tpu.pipeline_mode<synchronous>, transform_indices = @transform_1, window_bounds = array<i64: 16, 128>}, {pipeline_mode = #tpu.pipeline_mode<synchronous>, transform_indices = @transform_2, window_bounds = array<i64: 1, 128>}, {transform_indices = @transform_3, window_bounds = array<i64: 384, 128>}]} {
    %c0 = arith.constant 0 : index
    %c0_0 = arith.constant 0 : index
    %0 = vector.load %arg1[%c0, %c0_0] : memref<384x16xf32, #tpu.memory_space<vmem>>, vector<384x16xf32>
    %c0_1 = arith.constant 0 : index
    %c0_2 = arith.constant 0 : index
    %1 = vector.load %arg2[%c0_1, %c0_2] : memref<16x128xf32, #tpu.memory_space<vmem>>, vector<16x128xf32>
    %cst = arith.constant dense<0.000000e+00> : vector<384x128xf32>
    %2 = tpu.matmul %0, %1, %cst {dimension_numbers = #tpu.dot_dimension_numbers<[1], [0], [0], [1], [0, 0, 1, 1], [], []>} : vector<384x16xf32>, vector<16x128xf32>, vector<384x128xf32> -> vector<384x128xf32>
    %c0_3 = arith.constant 0 : index
    %c0_4 = arith.constant 0 : index
    %3 = vector.load %arg4[%c0_3, %c0_4] : memref<384x128xf32, #tpu.memory_space<vmem>>, vector<384x128xf32>
    tpu.vector_store %arg4[%c0_3, %c0_4], %2 {strides = array<i32>} : memref<384x128xf32, #tpu.memory_space<vmem>>, vector<384x128xf32>,
    return
  }
  func.func @transform_0(%arg0: i32) -> (i32, i32) {
    %c0_i32 = arith.constant 0 : i32
    %c0_i32_0 = arith.constant 0 : i32
    return %arg0, %c0_i32 : i32, i32
  }
  func.func @transform_1(%arg0: i32) -> (i32, i32) {
    %c0_i32 = arith.constant 0 : i32
    %c0_i32_0 = arith.constant 0 : i32
    %c0_i32_1 = arith.constant 0 : i32
    return %c0_i32, %c0_i32_0 : i32, i32
  }
  func.func @transform_2(%arg0: i32) -> (i32, i32) {
    %c0_i32 = arith.constant 0 : i32
    %c0_i32_0 = arith.constant 0 : i32
    %c0_i32_1 = arith.constant 0 : i32
    return %c0_i32, %c0_i32_0 : i32, i32
  }
  func.func @transform_3(%arg0: i32) -> (i32, i32) {
    %c0_i32 = arith.constant 0 : i32
    %c0_i32_0 = arith.constant 0 : i32
    return %arg0, %c0_i32 : i32, i32
  }
}

module attributes {stable_mosaic.version = 11 : i64} {
  func.func @_cheb_order_kernel(%arg0: i32, %arg1: i32, %arg2: memref<384x768xbf16, #tpu.memory_space<vmem>>, %arg3: memref<768x16xf32, #tpu.memory_space<vmem>>, %arg4: memref<384x16xf32, #tpu.memory_space<vmem>>, %arg5: memref<384x16xf32, #tpu.memory_space<vmem>>, %arg6: memref<384x1xf32, #tpu.memory_space<vmem>>, %arg7: memref<16x128xf32, #tpu.memory_space<vmem>>, %arg8: memref<1x128xf32, #tpu.memory_space<vmem>>, %arg9: memref<384x128xf32, #tpu.memory_space<vmem>>, %arg10: memref<384x16xf32, #tpu.memory_space<vmem>>, %arg11: memref<384x128xf32, #tpu.memory_space<vmem>>) attributes {dimension_semantics = [#tpu.dimension_semantics<parallel>, #tpu.dimension_semantics<arbitrary>], iteration_bounds = array<i64: 2, 1>, scalar_prefetch = 0 : i64, scratch_operands = 0 : i64, tpu.core_type = #tpu.core_type<tc>, window_params = [{transform_indices = @transform_0, window_bounds = array<i64: 384, 768>}, {transform_indices = @transform_1, window_bounds = array<i64: 768, 16>}, {transform_indices = @transform_2, window_bounds = array<i64: 384, 16>}, {transform_indices = @transform_3, window_bounds = array<i64: 384, 16>}, {transform_indices = @transform_4, window_bounds = array<i64: 384, 1>}, {pipeline_mode = #tpu.pipeline_mode<synchronous>, transform_indices = @transform_5, window_bounds = array<i64: 16, 128>}, {pipeline_mode = #tpu.pipeline_mode<synchronous>, transform_indices = @transform_6, window_bounds = array<i64: 1, 128>}, {transform_indices = @transform_7, window_bounds = array<i64: 384, 128>}, {transform_indices = @transform_8, window_bounds = array<i64: 384, 16>}, {transform_indices = @transform_9, window_bounds = array<i64: 384, 128>}]} {
    %c0_i32 = arith.constant 0 : i32
    %0 = arith.cmpi eq, %arg1, %c0_i32 : i32
    %1 = arith.extui %0 : i1 to i32
    %c0_i32_0 = arith.constant 0 : i32
    %2 = arith.cmpi ne, %1, %c0_i32_0 : i32
    scf.if %2 {
      %cst_10 = arith.constant 0.000000e+00 : f32
      %13 = vector.broadcast %cst_10 : f32 to vector<384x16xf32>
      %c0_11 = arith.constant 0 : index
      %c0_12 = arith.constant 0 : index
      %14 = vector.load %arg10[%c0_11, %c0_12] : memref<384x16xf32, #tpu.memory_space<vmem>>, vector<384x16xf32>
      tpu.vector_store %arg10[%c0_11, %c0_12], %13 {strides = array<i32>} : memref<384x16xf32, #tpu.memory_space<vmem>>, vector<384x16xf32>,
    } else {
    }
    %c0 = arith.constant 0 : index
    %c0_1 = arith.constant 0 : index
    %3 = vector.load %arg10[%c0, %c0_1] : memref<384x16xf32, #tpu.memory_space<vmem>>, vector<384x16xf32>
    %c0_2 = arith.constant 0 : index
    %c0_3 = arith.constant 0 : index
    %4 = vector.load %arg2[%c0_2, %c0_3] : memref<384x768xbf16, #tpu.memory_space<vmem>>, vector<384x768xbf16>
    %c0_4 = arith.constant 0 : index
    %c0_5 = arith.constant 0 : index
    %5 = vector.load %arg3[%c0_4, %c0_5] : memref<768x16xf32, #tpu.memory_space<vmem>>, vector<768x16xf32>
    %6 = arith.truncf %5 : vector<768x16xf32> to vector<768x16xbf16>
    %cst = arith.constant dense<0.000000e+00> : vector<384x16xf32>
    %7 = tpu.matmul %4, %6, %cst {dimension_numbers = #tpu.dot_dimension_numbers<[1], [0], [0], [1], [0, 0, 1, 1], [], []>} : vector<384x768xbf16>, vector<768x16xbf16>, vector<384x16xf32> -> vector<384x16xf32>
    %8 = arith.addf %3, %7 : vector<384x16xf32>
    %c0_6 = arith.constant 0 : index
    %c0_7 = arith.constant 0 : index
    %9 = vector.load %arg10[%c0_6, %c0_7] : memref<384x16xf32, #tpu.memory_space<vmem>>, vector<384x16xf32>
    tpu.vector_store %arg10[%c0_6, %c0_7], %8 {strides = array<i32>} : memref<384x16xf32, #tpu.memory_space<vmem>>, vector<384x16xf32>,
    %c0_i32_8 = arith.constant 0 : i32
    %10 = arith.cmpi eq, %arg1, %c0_i32_8 : i32
    %11 = arith.extui %10 : i1 to i32
    %c0_i32_9 = arith.constant 0 : i32
    %12 = arith.cmpi ne, %11, %c0_i32_9 : i32
    scf.if %12 {
      %c0_10 = arith.constant 0 : index
      %c0_11 = arith.constant 0 : index
      %13 = vector.load %arg10[%c0_10, %c0_11] : memref<384x16xf32, #tpu.memory_space<vmem>>, vector<384x16xf32>
      %c0_12 = arith.constant 0 : index
      %c0_13 = arith.constant 0 : index
      %14 = vector.load %arg6[%c0_12, %c0_13] : memref<384x1xf32, #tpu.memory_space<vmem>>, vector<384x1xf32>
      %cst_14 = arith.constant 0.000000e+00 : f32
      %15 = vector.broadcast %cst_14 : f32 to vector<384x16xf32>
      %16 = arith.subf %15, %13 : vector<384x16xf32>
      %c0_15 = arith.constant 0 : index
      %c0_16 = arith.constant 0 : index
      %17 = vector.load %arg4[%c0_15, %c0_16] : memref<384x16xf32, #tpu.memory_space<vmem>>, vector<384x16xf32>
      %18 = vector.broadcast %14 : vector<384x1xf32> to vector<384x16xf32>
      %19 = arith.mulf %18, %17 : vector<384x16xf32>
      %20 = arith.addf %16, %19 : vector<384x16xf32>
      %c0_17 = arith.constant 0 : index
      %c0_18 = arith.constant 0 : index
      %21 = vector.load %arg10[%c0_17, %c0_18] : memref<384x16xf32, #tpu.memory_space<vmem>>, vector<384x16xf32>
      tpu.vector_store %arg10[%c0_17, %c0_18], %20 {strides = array<i32>} : memref<384x16xf32, #tpu.memory_space<vmem>>, vector<384x16xf32>,
      %c0_19 = arith.constant 0 : index
      %c0_20 = arith.constant 0 : index
      %22 = vector.load %arg9[%c0_19, %c0_20] : memref<384x128xf32, #tpu.memory_space<vmem>>, vector<384x128xf32>
      %c0_21 = arith.constant 0 : index
      %c0_22 = arith.constant 0 : index
      %23 = vector.load %arg7[%c0_21, %c0_22] : memref<16x128xf32, #tpu.memory_space<vmem>>, vector<16x128xf32>
      %cst_23 = arith.constant dense<0.000000e+00> : vector<384x128xf32>
      %24 = tpu.matmul %20, %23, %cst_23 {dimension_numbers = #tpu.dot_dimension_numbers<[1], [0], [0], [1], [0, 0, 1, 1], [], []>} : vector<384x16xf32>, vector<16x128xf32>, vector<384x128xf32> -> vector<384x128xf32>
      %25 = arith.addf %22, %24 : vector<384x128xf32>
      %c0_24 = arith.constant 0 : index
      %c0_25 = arith.constant 0 : index
      %26 = vector.load %arg11[%c0_24, %c0_25] : memref<384x128xf32, #tpu.memory_space<vmem>>, vector<384x128xf32>
      tpu.vector_store %arg11[%c0_24, %c0_25], %25 {strides = array<i32>} : memref<384x128xf32, #tpu.memory_space<vmem>>, vector<384x128xf32>,
    } else {
    }
    return
  }
  func.func @transform_0(%arg0: i32, %arg1: i32) -> (i32, i32) {
    %c0_i32 = arith.constant 0 : i32
    return %arg0, %arg1 : i32, i32
  }
  func.func @transform_1(%arg0: i32, %arg1: i32) -> (i32, i32) {
    %c0_i32 = arith.constant 0 : i32
    %c0_i32_0 = arith.constant 0 : i32
    return %arg1, %c0_i32 : i32, i32
  }
  func.func @transform_2(%arg0: i32, %arg1: i32) -> (i32, i32) {
    %c0_i32 = arith.constant 0 : i32
    %c0_i32_0 = arith.constant 0 : i32
    return %arg0, %c0_i32 : i32, i32
  }
  func.func @transform_3(%arg0: i32, %arg1: i32) -> (i32, i32) {
    %c0_i32 = arith.constant 0 : i32
    %c0_i32_0 = arith.constant 0 : i32
    return %arg0, %c0_i32 : i32, i32
  }
  func.func @transform_4(%arg0: i32, %arg1: i32) -> (i32, i32) {
    %c0_i32 = arith.constant 0 : i32
    %c0_i32_0 = arith.constant 0 : i32
    return %arg0, %c0_i32 : i32, i32
  }
  func.func @transform_5(%arg0: i32, %arg1: i32) -> (i32, i32) {
    %c0_i32 = arith.constant 0 : i32
    %c0_i32_0 = arith.constant 0 : i32
    %c0_i32_1 = arith.constant 0 : i32
    return %c0_i32, %c0_i32_0 : i32, i32
  }
  func.func @transform_6(%arg0: i32, %arg1: i32) -> (i32, i32) {
    %c0_i32 = arith.constant 0 : i32
    %c0_i32_0 = arith.constant 0 : i32
    %c0_i32_1 = arith.constant 0 : i32
    return %c0_i32, %c0_i32_0 : i32, i32
  }
  func.func @transform_7(%arg0: i32, %arg1: i32) -> (i32, i32) {
    %c0_i32 = arith.constant 0 : i32
    %c0_i32_0 = arith.constant 0 : i32
    return %arg0, %c0_i32 : i32, i32
  }
  func.func @transform_8(%arg0: i32, %arg1: i32) -> (i32, i32) {
    %c0_i32 = arith.constant 0 : i32
    %c0_i32_0 = arith.constant 0 : i32
    return %arg0, %c0_i32 : i32, i32
  }
  func.func @transform_9(%arg0: i32, %arg1: i32) -> (i32, i32) {
    %c0_i32 = arith.constant 0 : i32
    %c0_i32_0 = arith.constant 0 : i32
    return %arg0, %c0_i32 : i32, i32
  }
}

module attributes {stable_mosaic.version = 11 : i64} {
  func.func @_cheb_order_kernel(%arg0: i32, %arg1: i32, %arg2: memref<384x768xbf16, #tpu.memory_space<vmem>>, %arg3: memref<768x16xf32, #tpu.memory_space<vmem>>, %arg4: memref<384x16xf32, #tpu.memory_space<vmem>>, %arg5: memref<384x16xf32, #tpu.memory_space<vmem>>, %arg6: memref<384x1xf32, #tpu.memory_space<vmem>>, %arg7: memref<16x128xf32, #tpu.memory_space<vmem>>, %arg8: memref<1x128xf32, #tpu.memory_space<vmem>>, %arg9: memref<384x128xf32, #tpu.memory_space<vmem>>, %arg10: memref<384x16xf32, #tpu.memory_space<vmem>>, %arg11: memref<384x128xf32, #tpu.memory_space<vmem>>) attributes {dimension_semantics = [#tpu.dimension_semantics<parallel>, #tpu.dimension_semantics<arbitrary>], iteration_bounds = array<i64: 2, 1>, scalar_prefetch = 0 : i64, scratch_operands = 0 : i64, tpu.core_type = #tpu.core_type<tc>, window_params = [{transform_indices = @transform_0, window_bounds = array<i64: 384, 768>}, {transform_indices = @transform_1, window_bounds = array<i64: 768, 16>}, {transform_indices = @transform_2, window_bounds = array<i64: 384, 16>}, {transform_indices = @transform_3, window_bounds = array<i64: 384, 16>}, {transform_indices = @transform_4, window_bounds = array<i64: 384, 1>}, {pipeline_mode = #tpu.pipeline_mode<synchronous>, transform_indices = @transform_5, window_bounds = array<i64: 16, 128>}, {pipeline_mode = #tpu.pipeline_mode<synchronous>, transform_indices = @transform_6, window_bounds = array<i64: 1, 128>}, {transform_indices = @transform_7, window_bounds = array<i64: 384, 128>}, {transform_indices = @transform_8, window_bounds = array<i64: 384, 16>}, {transform_indices = @transform_9, window_bounds = array<i64: 384, 128>}]} {
    %c0_i32 = arith.constant 0 : i32
    %0 = arith.cmpi eq, %arg1, %c0_i32 : i32
    %1 = arith.extui %0 : i1 to i32
    %c0_i32_0 = arith.constant 0 : i32
    %2 = arith.cmpi ne, %1, %c0_i32_0 : i32
    scf.if %2 {
      %cst_10 = arith.constant 0.000000e+00 : f32
      %13 = vector.broadcast %cst_10 : f32 to vector<384x16xf32>
      %c0_11 = arith.constant 0 : index
      %c0_12 = arith.constant 0 : index
      %14 = vector.load %arg10[%c0_11, %c0_12] : memref<384x16xf32, #tpu.memory_space<vmem>>, vector<384x16xf32>
      tpu.vector_store %arg10[%c0_11, %c0_12], %13 {strides = array<i32>} : memref<384x16xf32, #tpu.memory_space<vmem>>, vector<384x16xf32>,
    } else {
    }
    %c0 = arith.constant 0 : index
    %c0_1 = arith.constant 0 : index
    %3 = vector.load %arg10[%c0, %c0_1] : memref<384x16xf32, #tpu.memory_space<vmem>>, vector<384x16xf32>
    %c0_2 = arith.constant 0 : index
    %c0_3 = arith.constant 0 : index
    %4 = vector.load %arg2[%c0_2, %c0_3] : memref<384x768xbf16, #tpu.memory_space<vmem>>, vector<384x768xbf16>
    %c0_4 = arith.constant 0 : index
    %c0_5 = arith.constant 0 : index
    %5 = vector.load %arg3[%c0_4, %c0_5] : memref<768x16xf32, #tpu.memory_space<vmem>>, vector<768x16xf32>
    %6 = arith.truncf %5 : vector<768x16xf32> to vector<768x16xbf16>
    %cst = arith.constant dense<0.000000e+00> : vector<384x16xf32>
    %7 = tpu.matmul %4, %6, %cst {dimension_numbers = #tpu.dot_dimension_numbers<[1], [0], [0], [1], [0, 0, 1, 1], [], []>} : vector<384x768xbf16>, vector<768x16xbf16>, vector<384x16xf32> -> vector<384x16xf32>
    %8 = arith.addf %3, %7 : vector<384x16xf32>
    %c0_6 = arith.constant 0 : index
    %c0_7 = arith.constant 0 : index
    %9 = vector.load %arg10[%c0_6, %c0_7] : memref<384x16xf32, #tpu.memory_space<vmem>>, vector<384x16xf32>
    tpu.vector_store %arg10[%c0_6, %c0_7], %8 {strides = array<i32>} : memref<384x16xf32, #tpu.memory_space<vmem>>, vector<384x16xf32>,
    %c0_i32_8 = arith.constant 0 : i32
    %10 = arith.cmpi eq, %arg1, %c0_i32_8 : i32
    %11 = arith.extui %10 : i1 to i32
    %c0_i32_9 = arith.constant 0 : i32
    %12 = arith.cmpi ne, %11, %c0_i32_9 : i32
    scf.if %12 {
      %c0_10 = arith.constant 0 : index
      %c0_11 = arith.constant 0 : index
      %13 = vector.load %arg10[%c0_10, %c0_11] : memref<384x16xf32, #tpu.memory_space<vmem>>, vector<384x16xf32>
      %c0_12 = arith.constant 0 : index
      %c0_13 = arith.constant 0 : index
      %14 = vector.load %arg6[%c0_12, %c0_13] : memref<384x1xf32, #tpu.memory_space<vmem>>, vector<384x1xf32>
      %cst_14 = arith.constant -2.000000e+00 : f32
      %15 = vector.broadcast %cst_14 : f32 to vector<384x16xf32>
      %16 = arith.mulf %15, %13 : vector<384x16xf32>
      %c0_15 = arith.constant 0 : index
      %c0_16 = arith.constant 0 : index
      %17 = vector.load %arg4[%c0_15, %c0_16] : memref<384x16xf32, #tpu.memory_space<vmem>>, vector<384x16xf32>
      %18 = vector.broadcast %14 : vector<384x1xf32> to vector<384x16xf32>
      %19 = arith.mulf %18, %17 : vector<384x16xf32>
      %cst_17 = arith.constant 2.000000e+00 : f32
      %20 = vector.broadcast %cst_17 : f32 to vector<384x16xf32>
      %21 = arith.mulf %20, %19 : vector<384x16xf32>
      %22 = arith.addf %16, %21 : vector<384x16xf32>
      %c0_18 = arith.constant 0 : index
      %c0_19 = arith.constant 0 : index
      %23 = vector.load %arg5[%c0_18, %c0_19] : memref<384x16xf32, #tpu.memory_space<vmem>>, vector<384x16xf32>
      %24 = arith.subf %22, %23 : vector<384x16xf32>
      %c0_20 = arith.constant 0 : index
      %c0_21 = arith.constant 0 : index
      %25 = vector.load %arg10[%c0_20, %c0_21] : memref<384x16xf32, #tpu.memory_space<vmem>>, vector<384x16xf32>
      tpu.vector_store %arg10[%c0_20, %c0_21], %24 {strides = array<i32>} : memref<384x16xf32, #tpu.memory_space<vmem>>, vector<384x16xf32>,
      %c0_22 = arith.constant 0 : index
      %c0_23 = arith.constant 0 : index
      %26 = vector.load %arg9[%c0_22, %c0_23] : memref<384x128xf32, #tpu.memory_space<vmem>>, vector<384x128xf32>
      %c0_24 = arith.constant 0 : index
      %c0_25 = arith.constant 0 : index
      %27 = vector.load %arg7[%c0_24, %c0_25] : memref<16x128xf32, #tpu.memory_space<vmem>>, vector<16x128xf32>
      %cst_26 = arith.constant dense<0.000000e+00> : vector<384x128xf32>
      %28 = tpu.matmul %24, %27, %cst_26 {dimension_numbers = #tpu.dot_dimension_numbers<[1], [0], [0], [1], [0, 0, 1, 1], [], []>} : vector<384x16xf32>, vector<16x128xf32>, vector<384x128xf32> -> vector<384x128xf32>
      %29 = arith.addf %26, %28 : vector<384x128xf32>
      %c0_27 = arith.constant 0 : index
      %c0_28 = arith.constant 0 : index
      %30 = vector.load %arg8[%c0_27, %c0_28] : memref<1x128xf32, #tpu.memory_space<vmem>>, vector<1x128xf32>
      %31 = vector.broadcast %30 : vector<1x128xf32> to vector<384x128xf32>
      %32 = arith.addf %29, %31 : vector<384x128xf32>
      %cst_29 = arith.constant 0.000000e+00 : f32
      %33 = vector.broadcast %cst_29 : f32 to vector<384x128xf32>
      %34 = arith.maximumf %32, %33 : vector<384x128xf32>
      %c0_30 = arith.constant 0 : index
      %c0_31 = arith.constant 0 : index
      %35 = vector.load %arg11[%c0_30, %c0_31] : memref<384x128xf32, #tpu.memory_space<vmem>>, vector<384x128xf32>
      tpu.vector_store %arg11[%c0_30, %c0_31], %34 {strides = array<i32>} : memref<384x128xf32, #tpu.memory_space<vmem>>, vector<384x128xf32>,
    } else {
    }
    return
  }
  func.func @transform_0(%arg0: i32, %arg1: i32) -> (i32, i32) {
    %c0_i32 = arith.constant 0 : i32
    return %arg0, %arg1 : i32, i32
  }
  func.func @transform_1(%arg0: i32, %arg1: i32) -> (i32, i32) {
    %c0_i32 = arith.constant 0 : i32
    %c0_i32_0 = arith.constant 0 : i32
    return %arg1, %c0_i32 : i32, i32
  }
  func.func @transform_2(%arg0: i32, %arg1: i32) -> (i32, i32) {
    %c0_i32 = arith.constant 0 : i32
    %c0_i32_0 = arith.constant 0 : i32
    return %arg0, %c0_i32 : i32, i32
  }
  func.func @transform_3(%arg0: i32, %arg1: i32) -> (i32, i32) {
    %c0_i32 = arith.constant 0 : i32
    %c0_i32_0 = arith.constant 0 : i32
    return %arg0, %c0_i32 : i32, i32
  }
  func.func @transform_4(%arg0: i32, %arg1: i32) -> (i32, i32) {
    %c0_i32 = arith.constant 0 : i32
    %c0_i32_0 = arith.constant 0 : i32
    return %arg0, %c0_i32 : i32, i32
  }
  func.func @transform_5(%arg0: i32, %arg1: i32) -> (i32, i32) {
    %c0_i32 = arith.constant 0 : i32
    %c0_i32_0 = arith.constant 0 : i32
    %c0_i32_1 = arith.constant 0 : i32
    return %c0_i32, %c0_i32_0 : i32, i32
  }
  func.func @transform_6(%arg0: i32, %arg1: i32) -> (i32, i32) {
    %c0_i32 = arith.constant 0 : i32
    %c0_i32_0 = arith.constant 0 : i32
    %c0_i32_1 = arith.constant 0 : i32
    return %c0_i32, %c0_i32_0 : i32, i32
  }
  func.func @transform_7(%arg0: i32, %arg1: i32) -> (i32, i32) {
    %c0_i32 = arith.constant 0 : i32
    %c0_i32_0 = arith.constant 0 : i32
    return %arg0, %c0_i32 : i32, i32
  }
  func.func @transform_8(%arg0: i32, %arg1: i32) -> (i32, i32) {
    %c0_i32 = arith.constant 0 : i32
    %c0_i32_0 = arith.constant 0 : i32
    return %arg0, %c0_i32 : i32, i32
  }
  func.func @transform_9(%arg0: i32, %arg1: i32) -> (i32, i32) {
    %c0_i32 = arith.constant 0 : i32
    %c0_i32_0 = arith.constant 0 : i32
    return %arg0, %c0_i32 : i32, i32
  }
}

</mosaic_0001>

<llo_original>
// kernel: cheb_conv.3
$region0: #{cheb_conv.3}
  #allocation0 [shape = 'u32[]', space=smem, size = 0x4, offset = 0x4, fixed_abs, tag = 'smem constant byte address 0x4 - core index']
  #allocation1 [shape = 'u32[72,128]{1,0:T(1,128)}', space=vmem, size = 0x9000, scoped, tag = 'internal scratch']
  %s0 = inlined_call_operand.vmem [shape: f32[768,16], index: 0, kind: input, shape index: {}]
  %s1 = inlined_call_operand.vmem [shape: f32[16,128], index: 1, kind: input, shape index: {}]
  %s2 = inlined_call_operand.vmem [shape: f32[1,128], index: 2, kind: input, shape index: {}]
  %s3 = inlined_call_operand.vmem [shape: f32[768,128], index: 3, kind: output, shape index: {}]
  %s4 = sld [smem:[#allocation0]]
  $region45: #{cheb_conv.3} parent=0
    _
  %s6 = ssub.s32 1, %s4
  %s7 = scalar_select 0, %s6, %s4
  loop: start=0, step=1, limit=4
  $region2: #{cheb_conv.3} parent=0 // loop_pre_header
    _
  $region3: #{cheb_conv.3} parent=0 // loop_header
    %s9 = sphi 0, %s13
    %p10 = scmp.ge.s32.totalorder %s9, 4
    %s19 = sphi 0, %s21
    %s22 = sphi 0, %s19
    %s23 = sphi 0, %s22
    %s39 = sphi 0, %s23
    %s43 = sphi 0, %s43
    %s45 = sphi 0, %s43
    %s46 = sphi 0, %s45
    %s60 = sphi 0, %s46
    %s64 = sphi 0, %s64
    %s66 = sphi 0, %s64
    %s67 = sphi 0, %s66
    %s81 = sphi 0, %s67
    %s87 = sphi 0, %s89
    %s90 = sphi 0, %s87
    %s91 = sphi 0, %s90
    %s107 = sphi 0, %s91
  $region4: #{cheb_conv.3} parent=0 // loop_header_branch
    %12 = sbr.rel (%p10) target = $region8
  $region5: #{cheb_conv.3} parent=0 // loop_body
    %s14 = ssub.s32 %s9, 1
    %s15 = ssub.s32 %s9, 2
    %s16 = sadd.s32 %s9, 1
    %s17 = ssub.s32 %s9, %s16
    %p18 = scmp.eq.s32.totalorder %s17, 0
    %s20 = sadd.s32 %s19, 1
    %s21 = scalar_select %p18, %s19, %s20
    %p24 = pneg %p18
    %p25 = scmp.eq.s32.totalorder %s9, 1
    %p26 = por %p24, %p25
    %p27 = scmp.ne.s32.totalorder %s19, %s22
    %p28 = scmp.eq.s32.totalorder %s9, 0
    %p29 = por %p27, %p28
    %p30 = scmp.ne.s32.totalorder %s19, %s22
    %p31 = scmp.eq.s32.totalorder %s14, 1
    %p32 = por %p30, %p31
    %p33 = scmp.ne.s32.totalorder %s22, %s23
    %p34 = scmp.eq.s32.totalorder %s14, 0
    %p35 = por %p33, %p34
    %p36 = scmp.ne.s32.totalorder %s22, %s23
    %p37 = scmp.eq.s32.totalorder %s15, 1
    %p38 = por %p36, %p37
    %p40 = scmp.ne.s32.totalorder %s23, %s39
    %p41 = scmp.eq.s32.totalorder %s15, 0
    %p42 = por %p40, %p41
    %s44 = sadd.s32 %s43, 1
    %p47 = scmp.eq.s32.totalorder %s9, 1
    %p48 = scmp.ne.s32.totalorder %s43, %s45
    %p49 = scmp.eq.s32.totalorder %s9, 0
    %p50 = por %p48, %p49
    %p51 = scmp.ne.s32.totalorder %s43, %s45
    %p52 = scmp.eq.s32.totalorder %s14, 1
    %p53 = por %p51, %p52
    %p54 = scmp.ne.s32.totalorder %s45, %s46
    %p55 = scmp.eq.s32.totalorder %s14, 0
    %p56 = por %p54, %p55
    %p57 = scmp.ne.s32.totalorder %s45, %s46
    %p58 = scmp.eq.s32.totalorder %s15, 1
    %p59 = por %p57, %p58
    %p61 = scmp.ne.s32.totalorder %s46, %s60
    %p62 = scmp.eq.s32.totalorder %s15, 0
    %p63 = por %p61, %p62
    %s65 = sadd.s32 %s64, 1
    %p68 = scmp.eq.s32.totalorder %s9, 1
    %p69 = scmp.ne.s32.totalorder %s64, %s66
    %p70 = scmp.eq.s32.totalorder %s9, 0
    %p71 = por %p69, %p70
    %p72 = scmp.ne.s32.totalorder %s64, %s66
    %p73 = scmp.eq.s32.totalorder %s14, 1
    %p74 = por %p72, %p73
    %p75 = scmp.ne.s32.totalorder %s66, %s67
    %p76 = scmp.eq.s32.totalorder %s14, 0
    %p77 = por %p75, %p76
    %p78 = scmp.ne.s32.totalorder %s66, %s67
    %p79 = scmp.eq.s32.totalorder %s15, 1
    %p80 = por %p78, %p79
    %p82 = scmp.ne.s32.totalorder %s67, %s81
    %p83 = scmp.eq.s32.totalorder %s15, 0
    %p84 = por %p82, %p83
    %s85 = ssub.s32 %s9, %s16
    %p86 = scmp.eq.s32.totalorder %s85, 0
    %s88 = sadd.s32 %s87, 1
    %s89 = scalar_select %p86, %s87, %s88
    %p92 = pneg %p86
    %p93 = scmp.eq.s32.totalorder %s9, 1
    %p94 = por %p92, %p93
    %p95 = scmp.ne.s32.totalorder %s87, %s90
    %p96 = scmp.eq.s32.totalorder %s9, 0
    %p97 = por %p95, %p96
    %p98 = scmp.ne.s32.totalorder %s87, %s90
    %p99 = scmp.eq.s32.totalorder %s14, 1
    %p100 = por %p98, %p99
    %p101 = scmp.ne.s32.totalorder %s90, %s91
    %p102 = scmp.eq.s32.totalorder %s14, 0
    %p103 = por %p101, %p102
    %p104 = scmp.ne.s32.totalorder %s90, %s91
    %p105 = scmp.eq.s32.totalorder %s15, 1
    %p106 = por %p104, %p105
    %p108 = scmp.ne.s32.totalorder %s91, %s107
    %p109 = scmp.eq.s32.totalorder %s15, 0
    %p110 = por %p108, %p109
    %p111 = scmp.le.s32.totalorder 1, %s9
    %p112 = scmp.lt.s32.totalorder %s9, 3
    %p113 = pnand %p111, %p112
    %p114 = pneg %p113
    // Predicated region
    $region9: #{cheb_conv.3} parent=5 // pred_check
      _
    $region10: #{cheb_conv.3} parent=5 // pred_check_branch
      %116 = sbr.rel (%p113) target = $region12
    $region11: #{cheb_conv.3} parent=5 // pred_region
      %s117 = ssub.s32 %s9, 1
      // Predicated region
      $region13: #{cheb_conv.3} parent=11 // pred_check
        %p118 = pneg %p56
      $region14: #{cheb_conv.3} parent=11 // pred_check_branch
        %120 = sbr.rel (%p118) target = $region16
      $region15: #{cheb_conv.3} parent=11 // pred_region
        _
      $region16: #{cheb_conv.3} parent=11 // pred_fallthru
        _
      // Predicated region
      $region17: #{cheb_conv.3} parent=11 // pred_check
        %p121 = pneg %p77
      $region18: #{cheb_conv.3} parent=11 // pred_check_branch
        %123 = sbr.rel (%p121) target = $region20
      $region19: #{cheb_conv.3} parent=11 // pred_region
        _
      $region20: #{cheb_conv.3} parent=11 // pred_fallthru
        _
    $region12: #{cheb_conv.3} parent=5 // pred_fallthru
      _
    %p124 = scmp.lt.s32.totalorder %s9, 2
    // Predicated region
    $region21: #{cheb_conv.3} parent=5 // pred_check
      %p125 = pneg %p124
    $region22: #{cheb_conv.3} parent=5 // pred_check_branch
      %127 = sbr.rel (%p125) target = $region24
    $region23: #{cheb_conv.3} parent=5 // pred_region
      // Predicated region
      $region25: #{cheb_conv.3} parent=23 // pred_check
        %p128 = pneg %p29
      $region26: #{cheb_conv.3} parent=23 // pred_check_branch
        %130 = sbr.rel (%p128) target = $region28
      $region27: #{cheb_conv.3} parent=23 // pred_region
        %s131 = smul.u32 48, %s9
        %p132 = scmp.lt.s32.totalorder %s131, 95
        %s133 = scalar_select %p132, %s131, 95
        %s134 = smul.addr %s133, 8
        %s135 = scalar_lea.vmem %s0, %s134
        %s136 = smul.u32 48, %s9
      $region28: #{cheb_conv.3} parent=23 // pred_fallthru
        _
    $region24: #{cheb_conv.3} parent=5 // pred_fallthru
      _
    %p137 = scmp.le.s32.totalorder 1, %s9
    %p138 = scmp.lt.s32.totalorder %s9, 3
    %p139 = pnand %p137, %p138
    %p140 = pneg %p139
    // Predicated region
    $region29: #{cheb_conv.3} parent=5 // pred_check
      _
    $region30: #{cheb_conv.3} parent=5 // pred_check_branch
      %142 = sbr.rel (%p139) target = $region32
    $region31: #{cheb_conv.3} parent=5 // pred_region
      %s143 = ssub.s32 %s9, 1
      %s144 = smul.u32 48, %s14
      %p145 = scmp.lt.s32.totalorder %s144, 95
      %s146 = scalar_select %p145, %s144, 95
      %s147 = smul.addr %s146, 8
      %s148 = scalar_lea.vmem %s0, %s147
      %p149 = pneg %p35
      %p150 = pneg %p32
      %p151 = pneg %p56
      %p152 = pneg %p53
      %p153 = pneg %p77
      %p154 = pneg %p74
      %p155 = pneg %p103
      %p156 = pneg %p100
      %s157 = smul.u32 48, %s14
      %p158 = scmp.lt.s32.totalorder %s157, 95
      %s159 = scalar_select %p158, %s157, 95
      %s160 = smul.addr %s159, 8
      %s161 = scalar_lea.vmem %s3, %s160
      %s162 = smul.u32 48, %s14
      %p163 = scmp.lt.s32.totalorder %s162, 95
      %s164 = scalar_select %p163, %s162, 95
      %s165 = smul.addr %s164, 8
      %s166 = scalar_lea.vmem %s0, %s165
      %s167 = smul.u32 48, %s14
      %s168 = smul.u32 48, %s14
      %p169 = scmp.lt.s32.totalorder %s168, 95
      %s170 = scalar_select %p169, %s168, 95
      %s171 = smul.addr %s170, 8
      %s172 = scalar_lea.vmem %s3, %s171
      %s173 = smul.u32 48, %s14
      %v174 = vld [vmem:[%s166] sm:$0xff]
      %v175 = vld [vmem:[%s166 + $0x8] sm:$0xff]
      %v176 = vld [vmem:[%s166 + $0x10] sm:$0xff]
      %v177 = vld [vmem:[%s166 + $0x18] sm:$0xff]
      %v178 = vld [vmem:[%s166 + $0x20] sm:$0xff]
      %v179 = vld [vmem:[%s166 + $0x28] sm:$0xff]
      %v180 = vld [vmem:[%s166 + $0x30] sm:$0xff]
      %v181 = vld [vmem:[%s166 + $0x38] sm:$0xff]
      %v182 = vld [vmem:[%s166 + $0x40] sm:$0xff]
      %v183 = vld [vmem:[%s166 + $0x48] sm:$0xff]
      %v184 = vld [vmem:[%s166 + $0x50] sm:$0xff]
      %v185 = vld [vmem:[%s166 + $0x58] sm:$0xff]
      %v186 = vld [vmem:[%s166 + $0x60] sm:$0xff]
      %v187 = vld [vmem:[%s166 + $0x68] sm:$0xff]
      %v188 = vld [vmem:[%s166 + $0x70] sm:$0xff]
      %v189 = vld [vmem:[%s166 + $0x78] sm:$0xff]
      %v190 = vld [vmem:[%s166 + $0x80] sm:$0xff]
      %v191 = vld [vmem:[%s166 + $0x88] sm:$0xff]
      %v192 = vld [vmem:[%s166 + $0x90] sm:$0xff]
      %v193 = vld [vmem:[%s166 + $0x98] sm:$0xff]
      %v194 = vld [vmem:[%s166 + $0xa0] sm:$0xff]
      %v195 = vld [vmem:[%s166 + $0xa8] sm:$0xff]
      %v196 = vld [vmem:[%s166 + $0xb0] sm:$0xff]
      %v197 = vld [vmem:[%s166 + $0xb8] sm:$0xff]
      %v198 = vld [vmem:[%s166 + $0xc0] sm:$0xff]
      %v199 = vld [vmem:[%s166 + $0xc8] sm:$0xff]
      %v200 = vld [vmem:[%s166 + $0xd0] sm:$0xff]
      %v201 = vld [vmem:[%s166 + $0xd8] sm:$0xff]
      %v202 = vld [vmem:[%s166 + $0xe0] sm:$0xff]
      %v203 = vld [vmem:[%s166 + $0xe8] sm:$0xff]
      %v204 = vld [vmem:[%s166 + $0xf0] sm:$0xff]
      %v205 = vld [vmem:[%s166 + $0xf8] sm:$0xff]
      %v206 = vld [vmem:[%s166 + $0x100] sm:$0xff]
      %v207 = vld [vmem:[%s166 + $0x108] sm:$0xff]
      %v208 = vld [vmem:[%s166 + $0x110] sm:$0xff]
      %v209 = vld [vmem:[%s166 + $0x118] sm:$0xff]
      %v210 = vld [vmem:[%s166 + $0x120] sm:$0xff]
      %v211 = vld [vmem:[%s166 + $0x128] sm:$0xff]
      %v212 = vld [vmem:[%s166 + $0x130] sm:$0xff]
      %v213 = vld [vmem:[%s166 + $0x138] sm:$0xff]
      %v214 = vld [vmem:[%s166 + $0x140] sm:$0xff]
      %v215 = vld [vmem:[%s166 + $0x148] sm:$0xff]
      %v216 = vld [vmem:[%s166 + $0x150] sm:$0xff]
      %v217 = vld [vmem:[%s166 + $0x158] sm:$0xff]
      %v218 = vld [vmem:[%s166 + $0x160] sm:$0xff]
      %v219 = vld [vmem:[%s166 + $0x168] sm:$0xff]
      %v220 = vld [vmem:[%s166 + $0x170] sm:$0xff]
      %v221 = vld [vmem:[%s166 + $0x178] sm:$0xff]
      %v222 = vld [vmem:[%s1] sm:$0xff]
      %v223 = vld [vmem:[%s1 + $0x8] sm:$0xff]
      %vm224 = vcmask 130048
      %v226 = vsel %vm224, %v174, 0
      %v229 = vsel %vm224, %v175, 0
      %v232 = vsel %vm224, %v176, 0
      %v235 = vsel %vm224, %v177, 0
      %v238 = vsel %vm224, %v178, 0
      %v241 = vsel %vm224, %v179, 0
      %v244 = vsel %vm224, %v180, 0
      %v247 = vsel %vm224, %v181, 0
      %v250 = vsel %vm224, %v182, 0
      %v253 = vsel %vm224, %v183, 0
      %v256 = vsel %vm224, %v184, 0
      %v259 = vsel %vm224, %v185, 0
      %v262 = vsel %vm224, %v186, 0
      %v265 = vsel %vm224, %v187, 0
      %v268 = vsel %vm224, %v188, 0
      %v271 = vsel %vm224, %v189, 0
      %v274 = vsel %vm224, %v190, 0
      %v277 = vsel %vm224, %v191, 0
      %v280 = vsel %vm224, %v192, 0
      %v283 = vsel %vm224, %v193, 0
      %v286 = vsel %vm224, %v194, 0
      %v289 = vsel %vm224, %v195, 0
      %v292 = vsel %vm224, %v196, 0
      %v295 = vsel %vm224, %v197, 0
      %v298 = vsel %vm224, %v198, 0
      %v301 = vsel %vm224, %v199, 0
      %v304 = vsel %vm224, %v200, 0
      %v307 = vsel %vm224, %v201, 0
      %v310 = vsel %vm224, %v202, 0
      %v313 = vsel %vm224, %v203, 0
      %v316 = vsel %vm224, %v204, 0
      %v319 = vsel %vm224, %v205, 0
      %v322 = vsel %vm224, %v206, 0
      %v325 = vsel %vm224, %v207, 0
      %v328 = vsel %vm224, %v208, 0
      %v331 = vsel %vm224, %v209, 0
      %v334 = vsel %vm224, %v210, 0
      %v337 = vsel %vm224, %v211, 0
      %v340 = vsel %vm224, %v212, 0
      %v343 = vsel %vm224, %v213, 0
      %v346 = vsel %vm224, %v214, 0
      %v349 = vsel %vm224, %v215, 0
      %v352 = vsel %vm224, %v216, 0
      %v355 = vsel %vm224, %v217, 0
      %v358 = vsel %vm224, %v218, 0
      %v361 = vsel %vm224, %v219, 0
      %v364 = vsel %vm224, %v220, 0
      %v367 = vsel %vm224, %v221, 0
      %369 = vmatpush.msra.mxu0 0.0
      %370 = vmatpush.msra.mxu0 0.0
      %371 = vmatpush.msra.mxu0 0.0
      %372 = vmatpush.msra.mxu0 0.0
      %373 = vmatpush.msra.mxu0 0.0
      %374 = vmatpush.msra.mxu0 0.0
      %375 = vmatpush.msra.mxu0 0.0
      %376 = vmatpush.msra.mxu0 0.0
      %377 = vmatpush.msra.mxu0 0.0
      %378 = vmatpush.msra.mxu0 0.0
      %379 = vmatpush.msra.mxu0 0.0
      %380 = vmatpush.msra.mxu0 0.0
      %381 = vmatpush.msra.mxu0 0.0
      %382 = vmatpush.msra.mxu0 0.0
      %383 = vmatpush.msra.mxu0 %v223
      %384 = vmatpush.msra.mxu0 %v222
      %385 = vmatmul.f32.gmra.mxu0 %v226
      %v386 = vpop.f32.mrf.mxu0
      %v387 = vadd.f32 0.0, %v386
      %388 = vmatmul.f32.gmra.mxu0 %v229
      %v389 = vpop.f32.mrf.mxu0
      %v390 = vadd.f32 0.0, %v389
      %391 = vmatmul.f32.gmra.mxu0 %v232
      %v392 = vpop.f32.mrf.mxu0
      %v393 = vadd.f32 0.0, %v392
      %394 = vmatmul.f32.gmra.mxu0 %v235
      %v395 = vpop.f32.mrf.mxu0
      %v396 = vadd.f32 0.0, %v395
      %397 = vmatmul.f32.gmra.mxu0 %v238
      %v398 = vpop.f32.mrf.mxu0
      %v399 = vadd.f32 0.0, %v398
      %400 = vmatmul.f32.gmra.mxu0 %v241
      %v401 = vpop.f32.mrf.mxu0
      %v402 = vadd.f32 0.0, %v401
      %403 = vmatmul.f32.gmra.mxu0 %v244
      %v404 = vpop.f32.mrf.mxu0
      %v405 = vadd.f32 0.0, %v404
      %406 = vmatmul.f32.gmra.mxu0 %v247
      %v407 = vpop.f32.mrf.mxu0
      %v408 = vadd.f32 0.0, %v407
      %409 = vmatmul.f32.gmra.mxu0 %v250
      %v410 = vpop.f32.mrf.mxu0
      %v411 = vadd.f32 0.0, %v410
      %412 = vmatmul.f32.gmra.mxu0 %v253
      %v413 = vpop.f32.mrf.mxu0
      %v414 = vadd.f32 0.0, %v413
      %415 = vmatmul.f32.gmra.mxu0 %v256
      %v416 = vpop.f32.mrf.mxu0
      %v417 = vadd.f32 0.0, %v416
      %418 = vmatmul.f32.gmra.mxu0 %v259
      %v419 = vpop.f32.mrf.mxu0
      %v420 = vadd.f32 0.0, %v419
      %421 = vmatmul.f32.gmra.mxu0 %v262
      %v422 = vpop.f32.mrf.mxu0
      %v423 = vadd.f32 0.0, %v422
      %424 = vmatmul.f32.gmra.mxu0 %v265
      %v425 = vpop.f32.mrf.mxu0
      %v426 = vadd.f32 0.0, %v425
      %427 = vmatmul.f32.gmra.mxu0 %v268
      %v428 = vpop.f32.mrf.mxu0
      %v429 = vadd.f32 0.0, %v428
      %430 = vmatmul.f32.gmra.mxu0 %v271
      %v431 = vpop.f32.mrf.mxu0
      %v432 = vadd.f32 0.0, %v431
      %433 = vmatmul.f32.gmra.mxu0 %v274
      %v434 = vpop.f32.mrf.mxu0
      %v435 = vadd.f32 0.0, %v434
      %436 = vmatmul.f32.gmra.mxu0 %v277
      %v437 = vpop.f32.mrf.mxu0
      %v438 = vadd.f32 0.0, %v437
      %439 = vmatmul.f32.gmra.mxu0 %v280
      %v440 = vpop.f32.mrf.mxu0
      %v441 = vadd.f32 0.0, %v440
      %442 = vmatmul.f32.gmra.mxu0 %v283
      %v443 = vpop.f32.mrf.mxu0
      %v444 = vadd.f32 0.0, %v443
      %445 = vmatmul.f32.gmra.mxu0 %v286
      %v446 = vpop.f32.mrf.mxu0
      %v447 = vadd.f32 0.0, %v446
      %448 = vmatmul.f32.gmra.mxu0 %v289
      %v449 = vpop.f32.mrf.mxu0
      %v450 = vadd.f32 0.0, %v449
      %451 = vmatmul.f32.gmra.mxu0 %v292
      %v452 = vpop.f32.mrf.mxu0
      %v453 = vadd.f32 0.0, %v452
      %454 = vmatmul.f32.gmra.mxu0 %v295
      %v455 = vpop.f32.mrf.mxu0
      %v456 = vadd.f32 0.0, %v455
      %457 = vmatmul.f32.gmra.mxu0 %v298
      %v458 = vpop.f32.mrf.mxu0
      %v459 = vadd.f32 0.0, %v458
      %460 = vmatmul.f32.gmra.mxu0 %v301
      %v461 = vpop.f32.mrf.mxu0
      %v462 = vadd.f32 0.0, %v461
      %463 = vmatmul.f32.gmra.mxu0 %v304
      %v464 = vpop.f32.mrf.mxu0
      %v465 = vadd.f32 0.0, %v464
      %466 = vmatmul.f32.gmra.mxu0 %v307
      %v467 = vpop.f32.mrf.mxu0
      %v468 = vadd.f32 0.0, %v467
      %469 = vmatmul.f32.gmra.mxu0 %v310
      %v470 = vpop.f32.mrf.mxu0
      %v471 = vadd.f32 0.0, %v470
      %472 = vmatmul.f32.gmra.mxu0 %v313
      %v473 = vpop.f32.mrf.mxu0
      %v474 = vadd.f32 0.0, %v473
      %475 = vmatmul.f32.gmra.mxu0 %v316
      %v476 = vpop.f32.mrf.mxu0
      %v477 = vadd.f32 0.0, %v476
      %478 = vmatmul.f32.gmra.mxu0 %v319
      %v479 = vpop.f32.mrf.mxu0
      %v480 = vadd.f32 0.0, %v479
      %481 = vmatmul.f32.gmra.mxu0 %v322
      %v482 = vpop.f32.mrf.mxu0
      %v483 = vadd.f32 0.0, %v482
      %484 = vmatmul.f32.gmra.mxu0 %v325
      %v485 = vpop.f32.mrf.mxu0
      %v486 = vadd.f32 0.0, %v485
      %487 = vmatmul.f32.gmra.mxu0 %v328
      %v488 = vpop.f32.mrf.mxu0
      %v489 = vadd.f32 0.0, %v488
      %490 = vmatmul.f32.gmra.mxu0 %v331
      %v491 = vpop.f32.mrf.mxu0
      %v492 = vadd.f32 0.0, %v491
      %493 = vmatmul.f32.gmra.mxu0 %v334
      %v494 = vpop.f32.mrf.mxu0
      %v495 = vadd.f32 0.0, %v494
      %496 = vmatmul.f32.gmra.mxu0 %v337
      %v497 = vpop.f32.mrf.mxu0
      %v498 = vadd.f32 0.0, %v497
      %499 = vmatmul.f32.gmra.mxu0 %v340
      %v500 = vpop.f32.mrf.mxu0
      %v501 = vadd.f32 0.0, %v500
      %502 = vmatmul.f32.gmra.mxu0 %v343
      %v503 = vpop.f32.mrf.mxu0
      %v504 = vadd.f32 0.0, %v503
      %505 = vmatmul.f32.gmra.mxu0 %v346
      %v506 = vpop.f32.mrf.mxu0
      %v507 = vadd.f32 0.0, %v506
      %508 = vmatmul.f32.gmra.mxu0 %v349
      %v509 = vpop.f32.mrf.mxu0
      %v510 = vadd.f32 0.0, %v509
      %511 = vmatmul.f32.gmra.mxu0 %v352
      %v512 = vpop.f32.mrf.mxu0
      %v513 = vadd.f32 0.0, %v512
      %514 = vmatmul.f32.gmra.mxu0 %v355
      %v515 = vpop.f32.mrf.mxu0
      %v516 = vadd.f32 0.0, %v515
      %517 = vmatmul.f32.gmra.mxu0 %v358
      %v518 = vpop.f32.mrf.mxu0
      %v519 = vadd.f32 0.0, %v518
      %520 = vmatmul.f32.gmra.mxu0 %v361
      %v521 = vpop.f32.mrf.mxu0
      %v522 = vadd.f32 0.0, %v521
      %523 = vmatmul.f32.gmra.mxu0 %v364
      %v524 = vpop.f32.mrf.mxu0
      %v525 = vadd.f32 0.0, %v524
      %526 = vmatmul.f32.gmra.mxu0 %v367
      %v527 = vpop.f32.mrf.mxu0
      %v528 = vadd.f32 0.0, %v527
      %529 = vdwg.mxu0
      %530 = vst [vmem:[%s172] sm:$0xff] %v387
      %531 = vst [vmem:[%s172 + $0x8] sm:$0xff] %v390
      %532 = vst [vmem:[%s172 + $0x10] sm:$0xff] %v393
      %533 = vst [vmem:[%s172 + $0x18] sm:$0xff] %v396
      %534 = vst [vmem:[%s172 + $0x20] sm:$0xff] %v399
      %535 = vst [vmem:[%s172 + $0x28] sm:$0xff] %v402
      %536 = vst [vmem:[%s172 + $0x30] sm:$0xff] %v405
      %537 = vst [vmem:[%s172 + $0x38] sm:$0xff] %v408
      %538 = vst [vmem:[%s172 + $0x40] sm:$0xff] %v411
      %539 = vst [vmem:[%s172 + $0x48] sm:$0xff] %v414
      %540 = vst [vmem:[%s172 + $0x50] sm:$0xff] %v417
      %541 = vst [vmem:[%s172 + $0x58] sm:$0xff] %v420
      %542 = vst [vmem:[%s172 + $0x60] sm:$0xff] %v423
      %543 = vst [vmem:[%s172 + $0x68] sm:$0xff] %v426
      %544 = vst [vmem:[%s172 + $0x70] sm:$0xff] %v429
      %545 = vst [vmem:[%s172 + $0x78] sm:$0xff] %v432
      %546 = vst [vmem:[%s172 + $0x80] sm:$0xff] %v435
      %547 = vst [vmem:[%s172 + $0x88] sm:$0xff] %v438
      %548 = vst [vmem:[%s172 + $0x90] sm:$0xff] %v441
      %549 = vst [vmem:[%s172 + $0x98] sm:$0xff] %v444
      %550 = vst [vmem:[%s172 + $0xa0] sm:$0xff] %v447
      %551 = vst [vmem:[%s172 + $0xa8] sm:$0xff] %v450
      %552 = vst [vmem:[%s172 + $0xb0] sm:$0xff] %v453
      %553 = vst [vmem:[%s172 + $0xb8] sm:$0xff] %v456
      %554 = vst [vmem:[%s172 + $0xc0] sm:$0xff] %v459
      %555 = vst [vmem:[%s172 + $0xc8] sm:$0xff] %v462
      %556 = vst [vmem:[%s172 + $0xd0] sm:$0xff] %v465
      %557 = vst [vmem:[%s172 + $0xd8] sm:$0xff] %v468
      %558 = vst [vmem:[%s172 + $0xe0] sm:$0xff] %v471
      %559 = vst [vmem:[%s172 + $0xe8] sm:$0xff] %v474
      %560 = vst [vmem:[%s172 + $0xf0] sm:$0xff] %v477
      %561 = vst [vmem:[%s172 + $0xf8] sm:$0xff] %v480
      %562 = vst [vmem:[%s172 + $0x100] sm:$0xff] %v483
      %563 = vst [vmem:[%s172 + $0x108] sm:$0xff] %v486
      %564 = vst [vmem:[%s172 + $0x110] sm:$0xff] %v489
      %565 = vst [vmem:[%s172 + $0x118] sm:$0xff] %v492
      %566 = vst [vmem:[%s172 + $0x120] sm:$0xff] %v495
      %567 = vst [vmem:[%s172 + $0x128] sm:$0xff] %v498
      %568 = vst [vmem:[%s172 + $0x130] sm:$0xff] %v501
      %569 = vst [vmem:[%s172 + $0x138] sm:$0xff] %v504
      %570 = vst [vmem:[%s172 + $0x140] sm:$0xff] %v507
      %571 = vst [vmem:[%s172 + $0x148] sm:$0xff] %v510
      %572 = vst [vmem:[%s172 + $0x150] sm:$0xff] %v513
      %573 = vst [vmem:[%s172 + $0x158] sm:$0xff] %v516
      %574 = vst [vmem:[%s172 + $0x160] sm:$0xff] %v519
      %575 = vst [vmem:[%s172 + $0x168] sm:$0xff] %v522
      %576 = vst [vmem:[%s172 + $0x170] sm:$0xff] %v525
      %577 = vst [vmem:[%s172 + $0x178] sm:$0xff] %v528
      %s578 = smul.u32 48, %s14
      %p579 = scmp.lt.s32.totalorder %s578, 95
      %s580 = scalar_select %p579, %s578, 95
      %s581 = smul.addr %s580, 8
      %s582 = scalar_lea.vmem %s3, %s581
      // Predicated region
      $region33: #{cheb_conv.3} parent=31 // pred_check
        %p583 = pneg %p100
      $region34: #{cheb_conv.3} parent=31 // pred_check_branch
        %585 = sbr.rel (%p583) target = $region36
      $region35: #{cheb_conv.3} parent=31 // pred_region
        %s586 = smul.u32 48, %s14
      $region36: #{cheb_conv.3} parent=31 // pred_fallthru
        _
    $region32: #{cheb_conv.3} parent=5 // pred_fallthru
      _
    %p587 = scmp.le.s32.totalorder 2, %s9
    // Predicated region
    $region37: #{cheb_conv.3} parent=5 // pred_check
      %p588 = pneg %p587
    $region38: #{cheb_conv.3} parent=5 // pred_check_branch
      %590 = sbr.rel (%p588) target = $region40
    $region39: #{cheb_conv.3} parent=5 // pred_region
      %s591 = ssub.s32 %s9, 2
      // Predicated region
      $region41: #{cheb_conv.3} parent=39 // pred_check
        %p592 = pneg %p106
      $region42: #{cheb_conv.3} parent=39 // pred_check_branch
        %594 = sbr.rel (%p592) target = $region44
      $region43: #{cheb_conv.3} parent=39 // pred_region
        %s595 = smul.u32 48, %s15
        %p596 = scmp.lt.s32.totalorder %s595, 95
        %s597 = scalar_select %p596, %s595, 95
        %s598 = smul.addr %s597, 8
        %s599 = scalar_lea.vmem %s3, %s598
      $region44: #{cheb_conv.3} parent=39 // pred_fallthru
        _
    $region40: #{cheb_conv.3} parent=5 // pred_fallthru
      _
  $region6: #{cheb_conv.3} parent=0 // loop_footer
    %s13 = sadd.s32 1, %s9
  $region7: #{cheb_conv.3} parent=0 // loop_footer_branch
    %8 = sbr.rel target = $region3
  $region8: #{cheb_conv.3} parent=0 // loop_exit
    _

// kernel: cheb_conv.4
$region0: #{cheb_conv.4}
  #allocation0 [shape = 'u32[]', space=smem, size = 0x4, offset = 0x4, fixed_abs, tag = 'smem constant byte address 0x4 - core index']
  #allocation1 [shape = 'u32[72,128]{1,0:T(1,128)}', space=vmem, size = 0x9000, scoped, tag = 'internal scratch']
  %s0 = inlined_call_operand.vmem [shape: bf16[768,768], index: 0, kind: input, shape index: {}]
  %s1 = inlined_call_operand.vmem [shape: f32[768,16], index: 1, kind: input, shape index: {}, may-alias: {1,2,3}]
  %s2 = inlined_call_operand.vmem [shape: f32[768,16], index: 2, kind: input, shape index: {}, may-alias: {1,2,3}]
  %s3 = inlined_call_operand.vmem [shape: f32[768,16], index: 3, kind: input, shape index: {}, may-alias: {1,2,3}]
  %s4 = inlined_call_operand.vmem [shape: f32[768,1], index: 4, kind: input, shape index: {}]
  %s5 = inlined_call_operand.vmem [shape: f32[16,128], index: 5, kind: input, shape index: {}]
  %s6 = inlined_call_operand.vmem [shape: f32[1,128], index: 6, kind: input, shape index: {}]
  %s7 = inlined_call_operand.vmem [shape: f32[768,128], index: 7, kind: input, shape index: {}, may-alias: {7,9}]
  %s8 = inlined_call_operand.vmem [shape: f32[768,16], index: 8, kind: output, shape index: {0}]
  %s9 = inlined_call_operand.vmem [shape: f32[768,128], index: 9, kind: output, shape index: {1}, may-alias: {7,9}]
  %10 = xla_tuple %s8, %s9
  %s11 = sld [smem:[#allocation0]]
  $region81: #{cheb_conv.4} parent=0
    _
  %s13 = ssub.s32 1, %s11
  %s14 = scalar_select 0, %s13, %s11
  loop: start=0, step=1, limit=4
  $region2: #{cheb_conv.4} parent=0 // loop_pre_header
    _
  $region3: #{cheb_conv.4} parent=0 // loop_header
    %s16 = sphi 0, %s20
    %p17 = scmp.ge.s32.totalorder %s16, 4
    %s23 = sphi 0, %s35
    %s24 = sphi 0, %s31
    %s25 = sphi 0, %s23
    %s26 = sphi 0, %s24
    %s27 = sphi 0, %s25
    %s28 = sphi 0, %s26
    %s40 = sphi 0, %s42
    %s43 = sphi 0, %s40
    %s44 = sphi 0, %s43
    %s60 = sphi 0, %s44
    %s66 = sphi 0, %s68
    %s69 = sphi 0, %s66
    %s70 = sphi 0, %s69
    %s86 = sphi 0, %s70
    %s92 = sphi 0, %s94
    %s95 = sphi 0, %s92
    %s96 = sphi 0, %s95
    %s112 = sphi 0, %s96
    %s118 = sphi 0, %s120
    %s121 = sphi 0, %s118
    %s122 = sphi 0, %s121
    %s138 = sphi 0, %s122
    %s144 = sphi 0, %s146
    %s147 = sphi 0, %s144
    %s148 = sphi 0, %s147
    %s164 = sphi 0, %s148
    %s168 = sphi 0, %s168
    %s170 = sphi 0, %s168
    %s171 = sphi 0, %s170
    %s185 = sphi 0, %s171
    %s189 = sphi 0, %s189
    %s191 = sphi 0, %s189
    %s192 = sphi 0, %s191
    %s206 = sphi 0, %s192
    %s212 = sphi 0, %s214
    %s215 = sphi 0, %s212
    %s216 = sphi 0, %s215
    %s232 = sphi 0, %s216
    %s238 = sphi 0, %s240
    %s241 = sphi 0, %s238
    %s242 = sphi 0, %s241
    %s258 = sphi 0, %s242
    %s264 = sphi 0, %s266
    %s267 = sphi 0, %s264
    %s268 = sphi 0, %s267
    %s284 = sphi 0, %s268
  $region4: #{cheb_conv.4} parent=0 // loop_header_branch
    %19 = sbr.rel (%p17) target = $region8
  $region5: #{cheb_conv.4} parent=0 // loop_body
    %s21 = ssub.s32 %s16, 1
    %s22 = ssub.s32 %s16, 2
    %s29 = sadd.s32 1, %s24
    %p30 = scmp.ge.s32.totalorder %s29, 1
    %s31 = scalar_select %p30, 0, %s29
    %s32 = sadd.s32 1, %s23
    %s33 = scalar_select %p30, %s32, %s23
    %p34 = scmp.ge.s32.totalorder %s33, 2
    %s35 = scalar_select %p34, 0, %s33
    %s36 = ssub.s32 %s23, %s35
    %s37 = ssub.s32 %s24, %s31
    %s38 = sor.u32 %s36, %s37
    %p39 = scmp.eq.s32.totalorder %s38, 0
    %s41 = sadd.s32 %s40, 1
    %s42 = scalar_select %p39, %s40, %s41
    %p45 = pneg %p39
    %p46 = scmp.eq.s32.totalorder %s16, 1
    %p47 = por %p45, %p46
    %p48 = scmp.ne.s32.totalorder %s40, %s43
    %p49 = scmp.eq.s32.totalorder %s16, 0
    %p50 = por %p48, %p49
    %p51 = scmp.ne.s32.totalorder %s40, %s43
    %p52 = scmp.eq.s32.totalorder %s21, 1
    %p53 = por %p51, %p52
    %p54 = scmp.ne.s32.totalorder %s43, %s44
    %p55 = scmp.eq.s32.totalorder %s21, 0
    %p56 = por %p54, %p55
    %p57 = scmp.ne.s32.totalorder %s43, %s44
    %p58 = scmp.eq.s32.totalorder %s22, 1
    %p59 = por %p57, %p58
    %p61 = scmp.ne.s32.totalorder %s44, %s60
    %p62 = scmp.eq.s32.totalorder %s22, 0
    %p63 = por %p61, %p62
    %s64 = ssub.s32 %s24, %s31
    %p65 = scmp.eq.s32.totalorder %s64, 0
    %s67 = sadd.s32 %s66, 1
    %s68 = scalar_select %p65, %s66, %s67
    %p71 = pneg %p65
    %p72 = scmp.eq.s32.totalorder %s16, 1
    %p73 = por %p71, %p72
    %p74 = scmp.ne.s32.totalorder %s66, %s69
    %p75 = scmp.eq.s32.totalorder %s16, 0
    %p76 = por %p74, %p75
    %p77 = scmp.ne.s32.totalorder %s66, %s69
    %p78 = scmp.eq.s32.totalorder %s21, 1
    %p79 = por %p77, %p78
    %p80 = scmp.ne.s32.totalorder %s69, %s70
    %p81 = scmp.eq.s32.totalorder %s21, 0
    %p82 = por %p80, %p81
    %p83 = scmp.ne.s32.totalorder %s69, %s70
    %p84 = scmp.eq.s32.totalorder %s22, 1
    %p85 = por %p83, %p84
    %p87 = scmp.ne.s32.totalorder %s70, %s86
    %p88 = scmp.eq.s32.totalorder %s22, 0
    %p89 = por %p87, %p88
    %s90 = ssub.s32 %s23, %s35
    %p91 = scmp.eq.s32.totalorder %s90, 0
    %s93 = sadd.s32 %s92, 1
    %s94 = scalar_select %p91, %s92, %s93
    %p97 = pneg %p91
    %p98 = scmp.eq.s32.totalorder %s16, 1
    %p99 = por %p97, %p98
    %p100 = scmp.ne.s32.totalorder %s92, %s95
    %p101 = scmp.eq.s32.totalorder %s16, 0
    %p102 = por %p100, %p101
    %p103 = scmp.ne.s32.totalorder %s92, %s95
    %p104 = scmp.eq.s32.totalorder %s21, 1
    %p105 = por %p103, %p104
    %p106 = scmp.ne.s32.totalorder %s95, %s96
    %p107 = scmp.eq.s32.totalorder %s21, 0
    %p108 = por %p106, %p107
    %p109 = scmp.ne.s32.totalorder %s95, %s96
    %p110 = scmp.eq.s32.totalorder %s22, 1
    %p111 = por %p109, %p110
    %p113 = scmp.ne.s32.totalorder %s96, %s112
    %p114 = scmp.eq.s32.totalorder %s22, 0
    %p115 = por %p113, %p114
    %s116 = ssub.s32 %s23, %s35
    %p117 = scmp.eq.s32.totalorder %s116, 0
    %s119 = sadd.s32 %s118, 1
    %s120 = scalar_select %p117, %s118, %s119
    %p123 = pneg %p117
    %p124 = scmp.eq.s32.totalorder %s16, 1
    %p125 = por %p123, %p124
    %p126 = scmp.ne.s32.totalorder %s118, %s121
    %p127 = scmp.eq.s32.totalorder %s16, 0
    %p128 = por %p126, %p127
    %p129 = scmp.ne.s32.totalorder %s118, %s121
    %p130 = scmp.eq.s32.totalorder %s21, 1
    %p131 = por %p129, %p130
    %p132 = scmp.ne.s32.totalorder %s121, %s122
    %p133 = scmp.eq.s32.totalorder %s21, 0
    %p134 = por %p132, %p133
    %p135 = scmp.ne.s32.totalorder %s121, %s122
    %p136 = scmp.eq.s32.totalorder %s22, 1
    %p137 = por %p135, %p136
    %p139 = scmp.ne.s32.totalorder %s122, %s138
    %p140 = scmp.eq.s32.totalorder %s22, 0
    %p141 = por %p139, %p140
    %s142 = ssub.s32 %s23, %s35
    %p143 = scmp.eq.s32.totalorder %s142, 0
    %s145 = sadd.s32 %s144, 1
    %s146 = scalar_select %p143, %s144, %s145
    %p149 = pneg %p143
    %p150 = scmp.eq.s32.totalorder %s16, 1
    %p151 = por %p149, %p150
    %p152 = scmp.ne.s32.totalorder %s144, %s147
    %p153 = scmp.eq.s32.totalorder %s16, 0
    %p154 = por %p152, %p153
    %p155 = scmp.ne.s32.totalorder %s144, %s147
    %p156 = scmp.eq.s32.totalorder %s21, 1
    %p157 = por %p155, %p156
    %p158 = scmp.ne.s32.totalorder %s147, %s148
    %p159 = scmp.eq.s32.totalorder %s21, 0
    %p160 = por %p158, %p159
    %p161 = scmp.ne.s32.totalorder %s147, %s148
    %p162 = scmp.eq.s32.totalorder %s22, 1
    %p163 = por %p161, %p162
    %p165 = scmp.ne.s32.totalorder %s148, %s164
    %p166 = scmp.eq.s32.totalorder %s22, 0
    %p167 = por %p165, %p166
    %s169 = sadd.s32 %s168, 1
    %p172 = scmp.eq.s32.totalorder %s16, 1
    %p173 = scmp.ne.s32.totalorder %s168, %s170
    %p174 = scmp.eq.s32.totalorder %s16, 0
    %p175 = por %p173, %p174
    %p176 = scmp.ne.s32.totalorder %s168, %s170
    %p177 = scmp.eq.s32.totalorder %s21, 1
    %p178 = por %p176, %p177
    %p179 = scmp.ne.s32.totalorder %s170, %s171
    %p180 = scmp.eq.s32.totalorder %s21, 0
    %p181 = por %p179, %p180
    %p182 = scmp.ne.s32.totalorder %s170, %s171
    %p183 = scmp.eq.s32.totalorder %s22, 1
    %p184 = por %p182, %p183
    %p186 = scmp.ne.s32.totalorder %s171, %s185
    %p187 = scmp.eq.s32.totalorder %s22, 0
    %p188 = por %p186, %p187
    %s190 = sadd.s32 %s189, 1
    %p193 = scmp.eq.s32.totalorder %s16, 1
    %p194 = scmp.ne.s32.totalorder %s189, %s191
    %p195 = scmp.eq.s32.totalorder %s16, 0
    %p196 = por %p194, %p195
    %p197 = scmp.ne.s32.totalorder %s189, %s191
    %p198 = scmp.eq.s32.totalorder %s21, 1
    %p199 = por %p197, %p198
    %p200 = scmp.ne.s32.totalorder %s191, %s192
    %p201 = scmp.eq.s32.totalorder %s21, 0
    %p202 = por %p200, %p201
    %p203 = scmp.ne.s32.totalorder %s191, %s192
    %p204 = scmp.eq.s32.totalorder %s22, 1
    %p205 = por %p203, %p204
    %p207 = scmp.ne.s32.totalorder %s192, %s206
    %p208 = scmp.eq.s32.totalorder %s22, 0
    %p209 = por %p207, %p208
    %s210 = ssub.s32 %s23, %s35
    %p211 = scmp.eq.s32.totalorder %s210, 0
    %s213 = sadd.s32 %s212, 1
    %s214 = scalar_select %p211, %s212, %s213
    %p217 = pneg %p211
    %p218 = scmp.eq.s32.totalorder %s16, 1
    %p219 = por %p217, %p218
    %p220 = scmp.ne.s32.totalorder %s212, %s215
    %p221 = scmp.eq.s32.totalorder %s16, 0
    %p222 = por %p220, %p221
    %p223 = scmp.ne.s32.totalorder %s212, %s215
    %p224 = scmp.eq.s32.totalorder %s21, 1
    %p225 = por %p223, %p224
    %p226 = scmp.ne.s32.totalorder %s215, %s216
    %p227 = scmp.eq.s32.totalorder %s21, 0
    %p228 = por %p226, %p227
    %p229 = scmp.ne.s32.totalorder %s215, %s216
    %p230 = scmp.eq.s32.totalorder %s22, 1
    %p231 = por %p229, %p230
    %p233 = scmp.ne.s32.totalorder %s216, %s232
    %p234 = scmp.eq.s32.totalorder %s22, 0
    %p235 = por %p233, %p234
    %s236 = ssub.s32 %s23, %s35
    %p237 = scmp.eq.s32.totalorder %s236, 0
    %s239 = sadd.s32 %s238, 1
    %s240 = scalar_select %p237, %s238, %s239
    %p243 = pneg %p237
    %p244 = scmp.eq.s32.totalorder %s16, 1
    %p245 = por %p243, %p244
    %p246 = scmp.ne.s32.totalorder %s238, %s241
    %p247 = scmp.eq.s32.totalorder %s16, 0
    %p248 = por %p246, %p247
    %p249 = scmp.ne.s32.totalorder %s238, %s241
    %p250 = scmp.eq.s32.totalorder %s21, 1
    %p251 = por %p249, %p250
    %p252 = scmp.ne.s32.totalorder %s241, %s242
    %p253 = scmp.eq.s32.totalorder %s21, 0
    %p254 = por %p252, %p253
    %p255 = scmp.ne.s32.totalorder %s241, %s242
    %p256 = scmp.eq.s32.totalorder %s22, 1
    %p257 = por %p255, %p256
    %p259 = scmp.ne.s32.totalorder %s242, %s258
    %p260 = scmp.eq.s32.totalorder %s22, 0
    %p261 = por %p259, %p260
    %s262 = ssub.s32 %s23, %s35
    %p263 = scmp.eq.s32.totalorder %s262, 0
    %s265 = sadd.s32 %s264, 1
    %s266 = scalar_select %p263, %s264, %s265
    %p269 = pneg %p263
    %p270 = scmp.eq.s32.totalorder %s16, 1
    %p271 = por %p269, %p270
    %p272 = scmp.ne.s32.totalorder %s264, %s267
    %p273 = scmp.eq.s32.totalorder %s16, 0
    %p274 = por %p272, %p273
    %p275 = scmp.ne.s32.totalorder %s264, %s267
    %p276 = scmp.eq.s32.totalorder %s21, 1
    %p277 = por %p275, %p276
    %p278 = scmp.ne.s32.totalorder %s267, %s268
    %p279 = scmp.eq.s32.totalorder %s21, 0
    %p280 = por %p278, %p279
    %p281 = scmp.ne.s32.totalorder %s267, %s268
    %p282 = scmp.eq.s32.totalorder %s22, 1
    %p283 = por %p281, %p282
    %p285 = scmp.ne.s32.totalorder %s268, %s284
    %p286 = scmp.eq.s32.totalorder %s22, 0
    %p287 = por %p285, %p286
    %p288 = scmp.le.s32.totalorder 1, %s16
    %p289 = scmp.lt.s32.totalorder %s16, 3
    %p290 = pnand %p288, %p289
    %p291 = pneg %p290
    // Predicated region
    $region9: #{cheb_conv.4} parent=5 // pred_check
      _
    $region10: #{cheb_conv.4} parent=5 // pred_check_branch
      %293 = sbr.rel (%p290) target = $region12
    $region11: #{cheb_conv.4} parent=5 // pred_region
      %s294 = ssub.s32 %s16, 1
      // Predicated region
      $region13: #{cheb_conv.4} parent=11 // pred_check
        %p295 = pneg %p82
      $region14: #{cheb_conv.4} parent=11 // pred_check_branch
        %297 = sbr.rel (%p295) target = $region16
      $region15: #{cheb_conv.4} parent=11 // pred_region
        %s298 = smul.u32 96, %s26
        %p299 = scmp.lt.s32.totalorder %s298, 95
        %s300 = scalar_select %p299, %s298, 95
        %s301 = smul.addr %s300, 8
        %s302 = scalar_lea.vmem %s1, %s301
        %s303 = smul.u32 96, %s26
      $region16: #{cheb_conv.4} parent=11 // pred_fallthru
        _
      // Predicated region
      $region17: #{cheb_conv.4} parent=11 // pred_check
        %p304 = pneg %p181
      $region18: #{cheb_conv.4} parent=11 // pred_check_branch
        %306 = sbr.rel (%p304) target = $region20
      $region19: #{cheb_conv.4} parent=11 // pred_region
        _
      $region20: #{cheb_conv.4} parent=11 // pred_fallthru
        _
      // Predicated region
      $region21: #{cheb_conv.4} parent=11 // pred_check
        %p307 = pneg %p202
      $region22: #{cheb_conv.4} parent=11 // pred_check_branch
        %309 = sbr.rel (%p307) target = $region24
      $region23: #{cheb_conv.4} parent=11 // pred_region
        _
      $region24: #{cheb_conv.4} parent=11 // pred_fallthru
        _
    $region12: #{cheb_conv.4} parent=5 // pred_fallthru
      _
    %p310 = scmp.lt.s32.totalorder %s16, 2
    // Predicated region
    $region25: #{cheb_conv.4} parent=5 // pred_check
      %p311 = pneg %p310
    $region26: #{cheb_conv.4} parent=5 // pred_check_branch
      %313 = sbr.rel (%p311) target = $region28
    $region27: #{cheb_conv.4} parent=5 // pred_region
      // Predicated region
      $region29: #{cheb_conv.4} parent=27 // pred_check
        %p314 = pneg %p50
      $region30: #{cheb_conv.4} parent=27 // pred_check_branch
        %316 = sbr.rel (%p314) target = $region32
      $region31: #{cheb_conv.4} parent=27 // pred_region
        %s317 = smul.u32 48, %s23
        %s318 = smul.u32 6, %s24
        %p319 = scmp.lt.s32.totalorder %s317, 95
        %s320 = scalar_select %p319, %s317, 95
        %p321 = scmp.lt.s32.totalorder %s318, 5
        %s322 = scalar_select %p321, %s318, 5
        %s323 = smul.addr %s320, 6
        %s324 = sadd.s32 %s322, %s323
        %s325 = smul.addr %s324, 4
        %s326 = scalar_lea.vmem %s0, %s325
        %s327 = smul.u32 48, %s23
        %s328 = smul.u32 6, %s24
      $region32: #{cheb_conv.4} parent=27 // pred_fallthru
        _
      // Predicated region
      $region33: #{cheb_conv.4} parent=27 // pred_check
        %p329 = pneg %p102
      $region34: #{cheb_conv.4} parent=27 // pred_check_branch
        %331 = sbr.rel (%p329) target = $region36
      $region35: #{cheb_conv.4} parent=27 // pred_region
        %s332 = smul.u32 48, %s23
        %p333 = scmp.lt.s32.totalorder %s332, 95
        %s334 = scalar_select %p333, %s332, 95
        %s335 = smul.addr %s334, 8
        %s336 = scalar_lea.vmem %s2, %s335
        %s337 = smul.u32 48, %s23
      $region36: #{cheb_conv.4} parent=27 // pred_fallthru
        _
      // Predicated region
      $region37: #{cheb_conv.4} parent=27 // pred_check
        %p338 = pneg %p128
      $region38: #{cheb_conv.4} parent=27 // pred_check_branch
        %340 = sbr.rel (%p338) target = $region40
      $region39: #{cheb_conv.4} parent=27 // pred_region
        %s341 = smul.u32 48, %s23
        %p342 = scmp.lt.s32.totalorder %s341, 95
        %s343 = scalar_select %p342, %s341, 95
        %s344 = smul.addr %s343, 8
        %s345 = scalar_lea.vmem %s3, %s344
        %s346 = smul.u32 48, %s23
      $region40: #{cheb_conv.4} parent=27 // pred_fallthru
        _
      // Predicated region
      $region41: #{cheb_conv.4} parent=27 // pred_check
        %p347 = pneg %p154
      $region42: #{cheb_conv.4} parent=27 // pred_check_branch
        %349 = sbr.rel (%p347) target = $region44
      $region43: #{cheb_conv.4} parent=27 // pred_region
        %s350 = smul.u32 48, %s23
        %p351 = scmp.lt.s32.totalorder %s350, 95
        %s352 = scalar_select %p351, %s350, 95
        %s353 = smul.addr %s352, 8
        %s354 = scalar_lea.vmem %s4, %s353
        %s355 = smul.u32 48, %s23
      $region44: #{cheb_conv.4} parent=27 // pred_fallthru
        _
      // Predicated region
      $region45: #{cheb_conv.4} parent=27 // pred_check
        %p356 = pneg %p222
      $region46: #{cheb_conv.4} parent=27 // pred_check_branch
        %358 = sbr.rel (%p356) target = $region48
      $region47: #{cheb_conv.4} parent=27 // pred_region
        %s359 = smul.u32 48, %s23
        %p360 = scmp.lt.s32.totalorder %s359, 95
        %s361 = scalar_select %p360, %s359, 95
        %s362 = smul.addr %s361, 8
        %s363 = scalar_lea.vmem %s7, %s362
        %s364 = smul.u32 48, %s23
      $region48: #{cheb_conv.4} parent=27 // pred_fallthru
        _
    $region28: #{cheb_conv.4} parent=5 // pred_fallthru
      _
    %p365 = scmp.le.s32.totalorder 1, %s16
    %p366 = scmp.lt.s32.totalorder %s16, 3
    %p367 = pnand %p365, %p366
    %p368 = pneg %p367
    // Predicated region
    $region49: #{cheb_conv.4} parent=5 // pred_check
      _
    $region50: #{cheb_conv.4} parent=5 // pred_check_branch
      %370 = sbr.rel (%p367) target = $region52
    $region51: #{cheb_conv.4} parent=5 // pred_region
      %s371 = ssub.s32 %s16, 1
      %s372 = smul.u32 48, %s25
      %s373 = smul.u32 6, %s26
      %p374 = scmp.lt.s32.totalorder %s372, 95
      %s375 = scalar_select %p374, %s372, 95
      %p376 = scmp.lt.s32.totalorder %s373, 5
      %s377 = scalar_select %p376, %s373, 5
      %s378 = smul.addr %s375, 6
      %s379 = sadd.s32 %s377, %s378
      %s380 = smul.addr %s379, 4
      %s381 = scalar_lea.vmem %s0, %s380
      %p382 = pneg %p56
      %p383 = pneg %p53
      %s384 = smul.u32 96, %s26
      %p385 = scmp.lt.s32.totalorder %s384, 95
      %s386 = scalar_select %p385, %s384, 95
      %s387 = smul.addr %s386, 8
      %s388 = scalar_lea.vmem %s1, %s387
      %p389 = pneg %p82
      %p390 = pneg %p79
      %s391 = smul.u32 48, %s25
      %p392 = scmp.lt.s32.totalorder %s391, 95
      %s393 = scalar_select %p392, %s391, 95
      %s394 = smul.addr %s393, 8
      %s395 = scalar_lea.vmem %s2, %s394
      %p396 = pneg %p108
      %p397 = pneg %p105
      %s398 = smul.u32 48, %s25
      %p399 = scmp.lt.s32.totalorder %s398, 95
      %s400 = scalar_select %p399, %s398, 95
      %s401 = smul.addr %s400, 8
      %s402 = scalar_lea.vmem %s3, %s401
      %p403 = pneg %p134
      %p404 = pneg %p131
      %s405 = smul.u32 48, %s25
      %p406 = scmp.lt.s32.totalorder %s405, 95
      %s407 = scalar_select %p406, %s405, 95
      %s408 = smul.addr %s407, 8
      %s409 = scalar_lea.vmem %s4, %s408
      %p410 = pneg %p160
      %p411 = pneg %p157
      %p412 = pneg %p181
      %p413 = pneg %p178
      %p414 = pneg %p202
      %p415 = pneg %p199
      %s416 = smul.u32 48, %s25
      %p417 = scmp.lt.s32.totalorder %s416, 95
      %s418 = scalar_select %p417, %s416, 95
      %s419 = smul.addr %s418, 8
      %s420 = scalar_lea.vmem %s7, %s419
      %p421 = pneg %p228
      %p422 = pneg %p225
      %p423 = pneg %p254
      %p424 = pneg %p251
      %s425 = smul.u32 48, %s25
      %p426 = scmp.lt.s32.totalorder %s425, 95
      %s427 = scalar_select %p426, %s425, 95
      %s428 = smul.addr %s427, 8
      %s429 = scalar_lea.vmem %s8, %s428
      %p430 = pneg %p280
      %p431 = pneg %p277
      %s432 = smul.u32 48, %s25
      %p433 = scmp.lt.s32.totalorder %s432, 95
      %s434 = scalar_select %p433, %s432, 95
      %s435 = smul.addr %s434, 8
      %s436 = scalar_lea.vmem %s9, %s435
      %s437 = smul.u32 48, %s25
      %s438 = smul.u32 6, %s26
      %p439 = scmp.lt.s32.totalorder %s437, 95
      %s440 = scalar_select %p439, %s437, 95
      %p441 = scmp.lt.s32.totalorder %s438, 5
      %s442 = scalar_select %p441, %s438, 5
      %s443 = smul.addr %s440, 6
      %s444 = sadd.s32 %s442, %s443
      %s445 = smul.addr %s444, 4
      %s446 = scalar_lea.vmem %s0, %s445
      %s447 = smul.u32 48, %s25
      %s448 = smul.u32 6, %s26
      %s449 = smul.u32 96, %s26
      %p450 = scmp.lt.s32.totalorder %s449, 95
      %s451 = scalar_select %p450, %s449, 95
      %s452 = smul.addr %s451, 8
      %s453 = scalar_lea.vmem %s1, %s452
      %s454 = smul.u32 96, %s26
      %s455 = smul.u32 48, %s25
      %p456 = scmp.lt.s32.totalorder %s455, 95
      %s457 = scalar_select %p456, %s455, 95
      %s458 = smul.addr %s457, 8
      %s459 = scalar_lea.vmem %s2, %s458
      %s460 = smul.u32 48, %s25
      %s461 = smul.u32 48, %s25
      %p462 = scmp.lt.s32.totalorder %s461, 95
      %s463 = scalar_select %p462, %s461, 95
      %s464 = smul.addr %s463, 8
      %s465 = scalar_lea.vmem %s3, %s464
      %s466 = smul.u32 48, %s25
      %s467 = smul.u32 48, %s25
      %p468 = scmp.lt.s32.totalorder %s467, 95
      %s469 = scalar_select %p468, %s467, 95
      %s470 = smul.addr %s469, 8
      %s471 = scalar_lea.vmem %s4, %s470
      %s472 = smul.u32 48, %s25
      %s473 = smul.u32 48, %s25
      %p474 = scmp.lt.s32.totalorder %s473, 95
      %s475 = scalar_select %p474, %s473, 95
      %s476 = smul.addr %s475, 8
      %s477 = scalar_lea.vmem %s7, %s476
      %s478 = smul.u32 48, %s25
      %s479 = smul.u32 48, %s25
      %p480 = scmp.lt.s32.totalorder %s479, 95
      %s481 = scalar_select %p480, %s479, 95
      %s482 = smul.addr %s481, 8
      %s483 = scalar_lea.vmem %s8, %s482
      %s484 = smul.u32 48, %s25
      %s485 = smul.u32 48, %s25
      %p486 = scmp.lt.s32.totalorder %s485, 95
      %s487 = scalar_select %p486, %s485, 95
      %s488 = smul.addr %s487, 8
      %s489 = scalar_lea.vmem %s9, %s488
      %s490 = smul.u32 48, %s25
      %p491 = scmp.eq.s32.totalorder %s26, 0
      // Predicated region
      $region53: #{cheb_conv.4} parent=51 // pred_check
        %p492 = pneg %p491
      $region54: #{cheb_conv.4} parent=51 // pred_check_branch
        %494 = sbr.rel (%p492) target = $region56
      $region55: #{cheb_conv.4} parent=51 // pred_region
        %vm495 = vcmask 130048
        %496 = vst.msk [vmem:[%s483] sm:$0xff] %vm495, 0.0
        %497 = vst.msk [vmem:[%s483 + $0x8] sm:$0xff] %vm495, 0.0
        %498 = vst.msk [vmem:[%s483 + $0x10] sm:$0xff] %vm495, 0.0
        %499 = vst.msk [vmem:[%s483 + $0x18] sm:$0xff] %vm495, 0.0
        %500 = vst.msk [vmem:[%s483 + $0x20] sm:$0xff] %vm495, 0.0
        %501 = vst.msk [vmem:[%s483 + $0x28] sm:$0xff] %vm495, 0.0
        %502 = vst.msk [vmem:[%s483 + $0x30] sm:$0xff] %vm495, 0.0
        %503 = vst.msk [vmem:[%s483 + $0x38] sm:$0xff] %vm495, 0.0
        %504 = vst.msk [vmem:[%s483 + $0x40] sm:$0xff] %vm495, 0.0
        %505 = vst.msk [vmem:[%s483 + $0x48] sm:$0xff] %vm495, 0.0
        %506 = vst.msk [vmem:[%s483 + $0x50] sm:$0xff] %vm495, 0.0
        %507 = vst.msk [vmem:[%s483 + $0x58] sm:$0xff] %vm495, 0.0
        %508 = vst.msk [vmem:[%s483 + $0x60] sm:$0xff] %vm495, 0.0
        %509 = vst.msk [vmem:[%s483 + $0x68] sm:$0xff] %vm495, 0.0
        %510 = vst.msk [vmem:[%s483 + $0x70] sm:$0xff] %vm495, 0.0
        %511 = vst.msk [vmem:[%s483 + $0x78] sm:$0xff] %vm495, 0.0
        %512 = vst.msk [vmem:[%s483 + $0x80] sm:$0xff] %vm495, 0.0
        %513 = vst.msk [vmem:[%s483 + $0x88] sm:$0xff] %vm495, 0.0
        %514 = vst.msk [vmem:[%s483 + $0x90] sm:$0xff] %vm495, 0.0
        %515 = vst.msk [vmem:[%s483 + $0x98] sm:$0xff] %vm495, 0.0
        %516 = vst.msk [vmem:[%s483 + $0xa0] sm:$0xff] %vm495, 0.0
        %517 = vst.msk [vmem:[%s483 + $0xa8] sm:$0xff] %vm495, 0.0
        %518 = vst.msk [vmem:[%s483 + $0xb0] sm:$0xff] %vm495, 0.0
        %519 = vst.msk [vmem:[%s483 + $0xb8] sm:$0xff] %vm495, 0.0
        %520 = vst.msk [vmem:[%s483 + $0xc0] sm:$0xff] %vm495, 0.0
        %521 = vst.msk [vmem:[%s483 + $0xc8] sm:$0xff] %vm495, 0.0
        %522 = vst.msk [vmem:[%s483 + $0xd0] sm:$0xff] %vm495, 0.0
        %523 = vst.msk [vmem:[%s483 + $0xd8] sm:$0xff] %vm495, 0.0
        %524 = vst.msk [vmem:[%s483 + $0xe0] sm:$0xff] %vm495, 0.0
        %525 = vst.msk [vmem:[%s483 + $0xe8] sm:$0xff] %vm495, 0.0
        %526 = vst.msk [vmem:[%s483 + $0xf0] sm:$0xff] %vm495, 0.0
        %527 = vst.msk [vmem:[%s483 + $0xf8] sm:$0xff] %vm495, 0.0
        %528 = vst.msk [vmem:[%s483 + $0x100] sm:$0xff] %vm495, 0.0
        %529 = vst.msk [vmem:[%s483 + $0x108] sm:$0xff] %vm495, 0.0
        %530 = vst.msk [vmem:[%s483 + $0x110] sm:$0xff] %vm495, 0.0
        %531 = vst.msk [vmem:[%s483 + $0x118] sm:$0xff] %vm495, 0.0
        %532 = vst.msk [vmem:[%s483 + $0x120] sm:$0xff] %vm495, 0.0
        %533 = vst.msk [vmem:[%s483 + $0x128] sm:$0xff] %vm495, 0.0
        %534 = vst.msk [vmem:[%s483 + $0x130] sm:$0xff] %vm495, 0.0
        %535 = vst.msk [vmem:[%s483 + $0x138] sm:$0xff] %vm495, 0.0
        %536 = vst.msk [vmem:[%s483 + $0x140] sm:$0xff] %vm495, 0.0
        %537 = vst.msk [vmem:[%s483 + $0x148] sm:$0xff] %vm495, 0.0
        %538 = vst.msk [vmem:[%s483 + $0x150] sm:$0xff] %vm495, 0.0
        %539 = vst.msk [vmem:[%s483 + $0x158] sm:$0xff] %vm495, 0.0
        %540 = vst.msk [vmem:[%s483 + $0x160] sm:$0xff] %vm495, 0.0
        %541 = vst.msk [vmem:[%s483 + $0x168] sm:$0xff] %vm495, 0.0
        %542 = vst.msk [vmem:[%s483 + $0x170] sm:$0xff] %vm495, 0.0
        %543 = vst.msk [vmem:[%s483 + $0x178] sm:$0xff] %vm495, 0.0
      $region56: #{cheb_conv.4} parent=51 // pred_fallthru
        _
      %v544 = vld [vmem:[%s483] sm:$0xff]
      %v545 = vld [vmem:[%s483 + $0x8] sm:$0xff]
      %v546 = vld [vmem:[%s483 + $0x10] sm:$0xff]
      %v547 = vld [vmem:[%s483 + $0x18] sm:$0xff]
      %v548 = vld [vmem:[%s483 + $0x20] sm:$0xff]
      %v549 = vld [vmem:[%s483 + $0x28] sm:$0xff]
      %v550 = vld [vmem:[%s483 + $0x30] sm:$0xff]
      %v551 = vld [vmem:[%s483 + $0x38] sm:$0xff]
      %v552 = vld [vmem:[%s483 + $0x40] sm:$0xff]
      %v553 = vld [vmem:[%s483 + $0x48] sm:$0xff]
      %v554 = vld [vmem:[%s483 + $0x50] sm:$0xff]
      %v555 = vld [vmem:[%s483 + $0x58] sm:$0xff]
      %v556 = vld [vmem:[%s483 + $0x60] sm:$0xff]
      %v557 = vld [vmem:[%s483 + $0x68] sm:$0xff]
      %v558 = vld [vmem:[%s483 + $0x70] sm:$0xff]
      %v559 = vld [vmem:[%s483 + $0x78] sm:$0xff]
      %v560 = vld [vmem:[%s483 + $0x80] sm:$0xff]
      %v561 = vld [vmem:[%s483 + $0x88] sm:$0xff]
      %v562 = vld [vmem:[%s483 + $0x90] sm:$0xff]
      %v563 = vld [vmem:[%s483 + $0x98] sm:$0xff]
      %v564 = vld [vmem:[%s483 + $0xa0] sm:$0xff]
      %v565 = vld [vmem:[%s483 + $0xa8] sm:$0xff]
      %v566 = vld [vmem:[%s483 + $0xb0] sm:$0xff]
      %v567 = vld [vmem:[%s483 + $0xb8] sm:$0xff]
      %v568 = vld [vmem:[%s483 + $0xc0] sm:$0xff]
      %v569 = vld [vmem:[%s483 + $0xc8] sm:$0xff]
      %v570 = vld [vmem:[%s483 + $0xd0] sm:$0xff]
      %v571 = vld [vmem:[%s483 + $0xd8] sm:$0xff]
      %v572 = vld [vmem:[%s483 + $0xe0] sm:$0xff]
      %v573 = vld [vmem:[%s483 + $0xe8] sm:$0xff]
      %v574 = vld [vmem:[%s483 + $0xf0] sm:$0xff]
      %v575 = vld [vmem:[%s483 + $0xf8] sm:$0xff]
      %v576 = vld [vmem:[%s483 + $0x100] sm:$0xff]
      %v577 = vld [vmem:[%s483 + $0x108] sm:$0xff]
      %v578 = vld [vmem:[%s483 + $0x110] sm:$0xff]
      %v579 = vld [vmem:[%s483 + $0x118] sm:$0xff]
      %v580 = vld [vmem:[%s483 + $0x120] sm:$0xff]
      %v581 = vld [vmem:[%s483 + $0x128] sm:$0xff]
      %v582 = vld [vmem:[%s483 + $0x130] sm:$0xff]
      %v583 = vld [vmem:[%s483 + $0x138] sm:$0xff]
      %v584 = vld [vmem:[%s483 + $0x140] sm:$0xff]
      %v585 = vld [vmem:[%s483 + $0x148] sm:$0xff]
      %v586 = vld [vmem:[%s483 + $0x150] sm:$0xff]
      %v587 = vld [vmem:[%s483 + $0x158] sm:$0xff]
      %v588 = vld [vmem:[%s483 + $0x160] sm:$0xff]
      %v589 = vld [vmem:[%s483 + $0x168] sm:$0xff]
      %v590 = vld [vmem:[%s483 + $0x170] sm:$0xff]
      %v591 = vld [vmem:[%s483 + $0x178] sm:$0xff]
      %v592 = vld [vmem:[%s446] sm:$0xff]
      %v593 = vld [vmem:[%s446 + $0x8] sm:$0xff]
      %v594 = vld [vmem:[%s446 + $0x10] sm:$0xff]
      %v595 = vld [vmem:[%s446 + $0x18] sm:$0xff]
      %v596 = vld [vmem:[%s446 + $0x20] sm:$0xff]
      %v597 = vld [vmem:[%s446 + $0x28] sm:$0xff]
      %v598 = vld [vmem:[%s446 + $0x30] sm:$0xff]
      %v599 = vld [vmem:[%s446 + $0x38] sm:$0xff]
      %v600 = vld [vmem:[%s446 + $0x40] sm:$0xff]
      %v601 = vld [vmem:[%s446 + $0x48] sm:$0xff]
      %v602 = vld [vmem:[%s446 + $0x50] sm:$0xff]
      %v603 = vld [vmem:[%s446 + $0x58] sm:$0xff]
      %v604 = vld [vmem:[%s446 + $0x60] sm:$0xff]
      %v605 = vld [vmem:[%s446 + $0x68] sm:$0xff]
      %v606 = vld [vmem:[%s446 + $0x70] sm:$0xff]
      %v607 = vld [vmem:[%s446 + $0x78] sm:$0xff]
      %v608 = vld [vmem:[%s446 + $0x80] sm:$0xff]
      %v609 = vld [vmem:[%s446 + $0x88] sm:$0xff]
      %v610 = vld [vmem:[%s446 + $0x90] sm:$0xff]
      %v611 = vld [vmem:[%s446 + $0x98] sm:$0xff]
      %v612 = vld [vmem:[%s446 + $0xa0] sm:$0xff]
      %v613 = vld [vmem:[%s446 + $0xa8] sm:$0xff]
      %v614 = vld [vmem:[%s446 + $0xb0] sm:$0xff]
      %v615 = vld [vmem:[%s446 + $0xb8] sm:$0xff]
      %v616 = vld [vmem:[%s446 + $0xc0] sm:$0xff]
      %v617 = vld [vmem:[%s446 + $0xc8] sm:$0xff]
      %v618 = vld [vmem:[%s446 + $0xd0] sm:$0xff]
      %v619 = vld [vmem:[%s446 + $0xd8] sm:$0xff]
      %v620 = vld [vmem:[%s446 + $0xe0] sm:$0xff]
      %v621 = vld [vmem:[%s446 + $0xe8] sm:$0xff]
      %v622 = vld [vmem:[%s446 + $0xf0] sm:$0xff]
      %v623 = vld [vmem:[%s446 + $0xf8] sm:$0xff]
      %v624 = vld [vmem:[%s446 + $0x100] sm:$0xff]
      %v625 = vld [vmem:[%s446 + $0x108] sm:$0xff]
      %v626 = vld [vmem:[%s446 + $0x110] sm:$0xff]
      %v627 = vld [vmem:[%s446 + $0x118] sm:$0xff]
      %v628 = vld [vmem:[%s446 + $0x120] sm:$0xff]
      %v629 = vld [vmem:[%s446 + $0x128] sm:$0xff]
      %v630 = vld [vmem:[%s446 + $0x130] sm:$0xff]
      %v631 = vld [vmem:[%s446 + $0x138] sm:$0xff]
      %v632 = vld [vmem:[%s446 + $0x140] sm:$0xff]
      %v633 = vld [vmem:[%s446 + $0x148] sm:$0xff]
      %v634 = vld [vmem:[%s446 + $0x150] sm:$0xff]
      %v635 = vld [vmem:[%s446 + $0x158] sm:$0xff]
      %v636 = vld [vmem:[%s446 + $0x160] sm:$0xff]
      %v637 = vld [vmem:[%s446 + $0x168] sm:$0xff]
      %v638 = vld [vmem:[%s446 + $0x170] sm:$0xff]
      %v639 = vld [vmem:[%s446 + $0x178] sm:$0xff]
      %v640 = vld [vmem:[%s446 + $0x180] sm:$0xff]
      %v641 = vld [vmem:[%s446 + $0x188] sm:$0xff]
      %v642 = vld [vmem:[%s446 + $0x190] sm:$0xff]
      %v643 = vld [vmem:[%s446 + $0x198] sm:$0xff]
      %v644 = vld [vmem:[%s446 + $0x1a0] sm:$0xff]
      %v645 = vld [vmem:[%s446 + $0x1a8] sm:$0xff]
      %v646 = vld [vmem:[%s446 + $0x1b0] sm:$0xff]
      %v647 = vld [vmem:[%s446 + $0x1b8] sm:$0xff]
      %v648 = vld [vmem:[%s446 + $0x1c0] sm:$0xff]
      %v649 = vld [vmem:[%s446 + $0x1c8] sm:$0xff]
      %v650 = vld [vmem:[%s446 + $0x1d0] sm:$0xff]
      %v651 = vld [vmem:[%s446 + $0x1d8] sm:$0xff]
      %v652 = vld [vmem:[%s446 + $0x1e0] sm:$0xff]
      %v653 = vld [vmem:[%s446 + $0x1e8] sm:$0xff]
      %v654 = vld [vmem:[%s446 + $0x1f0] sm:$0xff]
      %v655 = vld [vmem:[%s446 + $0x1f8] sm:$0xff]
      %v656 = vld [vmem:[%s446 + $0x200] sm:$0xff]
      %v657 = vld [vmem:[%s446 + $0x208] sm:$0xff]
      %v658 = vld [vmem:[%s446 + $0x210] sm:$0xff]
      %v659 = vld [vmem:[%s446 + $0x218] sm:$0xff]
      %v660 = vld [vmem:[%s446 + $0x220] sm:$0xff]
      %v661 = vld [vmem:[%s446 + $0x228] sm:$0xff]
      %v662 = vld [vmem:[%s446 + $0x230] sm:$0xff]
      %v663 = vld [vmem:[%s446 + $0x238] sm:$0xff]
      %v664 = vld [vmem:[%s446 + $0x240] sm:$0xff]
      %v665 = vld [vmem:[%s446 + $0x248] sm:$0xff]
      %v666 = vld [vmem:[%s446 + $0x250] sm:$0xff]
      %v667 = vld [vmem:[%s446 + $0x258] sm:$0xff]
      %v668 = vld [vmem:[%s446 + $0x260] sm:$0xff]
      %v669 = vld [vmem:[%s446 + $0x268] sm:$0xff]
      %v670 = vld [vmem:[%s446 + $0x270] sm:$0xff]
      %v671 = vld [vmem:[%s446 + $0x278] sm:$0xff]
      %v672 = vld [vmem:[%s446 + $0x280] sm:$0xff]
      %v673 = vld [vmem:[%s446 + $0x288] sm:$0xff]
      %v674 = vld [vmem:[%s446 + $0x290] sm:$0xff]
      %v675 = vld [vmem:[%s446 + $0x298] sm:$0xff]
      %v676 = vld [vmem:[%s446 + $0x2a0] sm:$0xff]
      %v677 = vld [vmem:[%s446 + $0x2a8] sm:$0xff]
      %v678 = vld [vmem:[%s446 + $0x2b0] sm:$0xff]
      %v679 = vld [vmem:[%s446 + $0x2b8] sm:$0xff]
      %v680 = vld [vmem:[%s446 + $0x2c0] sm:$0xff]
      %v681 = vld [vmem:[%s446 + $0x2c8] sm:$0xff]
      %v682 = vld [vmem:[%s446 + $0x2d0] sm:$0xff]
      %v683 = vld [vmem:[%s446 + $0x2d8] sm:$0xff]
      %v684 = vld [vmem:[%s446 + $0x2e0] sm:$0xff]
      %v685 = vld [vmem:[%s446 + $0x2e8] sm:$0xff]
      %v686 = vld [vmem:[%s446 + $0x2f0] sm:$0xff]
      %v687 = vld [vmem:[%s446 + $0x2f8] sm:$0xff]
      %v688 = vld [vmem:[%s446 + $0x300] sm:$0xff]
      %v689 = vld [vmem:[%s446 + $0x308] sm:$0xff]
      %v690 = vld [vmem:[%s446 + $0x310] sm:$0xff]
      %v691 = vld [vmem:[%s446 + $0x318] sm:$0xff]
      %v692 = vld [vmem:[%s446 + $0x320] sm:$0xff]
      %v693 = vld [vmem:[%s446 + $0x328] sm:$0xff]
      %v694 = vld [vmem:[%s446 + $0x330] sm:$0xff]
      %v695 = vld [vmem:[%s446 + $0x338] sm:$0xff]
      %v696 = vld [vmem:[%s446 + $0x340] sm:$0xff]
      %v697 = vld [vmem:[%s446 + $0x348] sm:$0xff]
      %v698 = vld [vmem:[%s446 + $0x350] sm:$0xff]
      %v699 = vld [vmem:[%s446 + $0x358] sm:$0xff]
      %v700 = vld [vmem:[%s446 + $0x360] sm:$0xff]
      %v701 = vld [vmem:[%s446 + $0x368] sm:$0xff]
      %v702 = vld [vmem:[%s446 + $0x370] sm:$0xff]
      %v703 = vld [vmem:[%s446 + $0x378] sm:$0xff]
      %v704 = vld [vmem:[%s446 + $0x380] sm:$0xff]
      %v705 = vld [vmem:[%s446 + $0x388] sm:$0xff]
      %v706 = vld [vmem:[%s446 + $0x390] sm:$0xff]
      %v707 = vld [vmem:[%s446 + $0x398] sm:$0xff]
      %v708 = vld [vmem:[%s446 + $0x3a0] sm:$0xff]
      %v709 = vld [vmem:[%s446 + $0x3a8] sm:$0xff]
      %v710 = vld [vmem:[%s446 + $0x3b0] sm:$0xff]
      %v711 = vld [vmem:[%s446 + $0x3b8] sm:$0xff]
      %v712 = vld [vmem:[%s446 + $0x3c0] sm:$0xff]
      %v713 = vld [vmem:[%s446 + $0x3c8] sm:$0xff]
      %v714 = vld [vmem:[%s446 + $0x3d0] sm:$0xff]
      %v715 = vld [vmem:[%s446 + $0x3d8] sm:$0xff]
      %v716 = vld [vmem:[%s446 + $0x3e0] sm:$0xff]
      %v717 = vld [vmem:[%s446 + $0x3e8] sm:$0xff]
      %v718 = vld [vmem:[%s446 + $0x3f0] sm:$0xff]
      %v719 = vld [vmem:[%s446 + $0x3f8] sm:$0xff]
      %v720 = vld [vmem:[%s446 + $0x400] sm:$0xff]
      %v721 = vld [vmem:[%s446 + $0x408] sm:$0xff]
      %v722 = vld [vmem:[%s446 + $0x410] sm:$0xff]
      %v723 = vld [vmem:[%s446 + $0x418] sm:$0xff]
      %v724 = vld [vmem:[%s446 + $0x420] sm:$0xff]
      %v725 = vld [vmem:[%s446 + $0x428] sm:$0xff]
      %v726 = vld [vmem:[%s446 + $0x430] sm:$0xff]
      %v727 = vld [vmem:[%s446 + $0x438] sm:$0xff]
      %v728 = vld [vmem:[%s446 + $0x440] sm:$0xff]
      %v729 = vld [vmem:[%s446 + $0x448] sm:$0xff]
      %v730 = vld [vmem:[%s446 + $0x450] sm:$0xff]
      %v731 = vld [vmem:[%s446 + $0x458] sm:$0xff]
      %v732 = vld [vmem:[%s446 + $0x460] sm:$0xff]
      %v733 = vld [vmem:[%s446 + $0x468] sm:$0xff]
      %v734 = vld [vmem:[%s446 + $0x470] sm:$0xff]
      %v735 = vld [vmem:[%s446 + $0x478] sm:$0xff]
      %v736 = vld [vmem:[%s453] sm:$0xff]
      %v737 = vld [vmem:[%s453 + $0x8] sm:$0xff]
      %v738 = vld [vmem:[%s453 + $0x10] sm:$0xff]
      %v739 = vld [vmem:[%s453 + $0x18] sm:$0xff]
      %v740 = vld [vmem:[%s453 + $0x20] sm:$0xff]
      %v741 = vld [vmem:[%s453 + $0x28] sm:$0xff]
      %v742 = vld [vmem:[%s453 + $0x30] sm:$0xff]
      %v743 = vld [vmem:[%s453 + $0x38] sm:$0xff]
      %v744 = vld [vmem:[%s453 + $0x40] sm:$0xff]
      %v745 = vld [vmem:[%s453 + $0x48] sm:$0xff]
      %v746 = vld [vmem:[%s453 + $0x50] sm:$0xff]
      %v747 = vld [vmem:[%s453 + $0x58] sm:$0xff]
      %v748 = vld [vmem:[%s453 + $0x60] sm:$0xff]
      %v749 = vld [vmem:[%s453 + $0x68] sm:$0xff]
      %v750 = vld [vmem:[%s453 + $0x70] sm:$0xff]
      %v751 = vld [vmem:[%s453 + $0x78] sm:$0xff]
      %v752 = vld [vmem:[%s453 + $0x80] sm:$0xff]
      %v753 = vld [vmem:[%s453 + $0x88] sm:$0xff]
      %v754 = vld [vmem:[%s453 + $0x90] sm:$0xff]
      %v755 = vld [vmem:[%s453 + $0x98] sm:$0xff]
      %v756 = vld [vmem:[%s453 + $0xa0] sm:$0xff]
      %v757 = vld [vmem:[%s453 + $0xa8] sm:$0xff]
      %v758 = vld [vmem:[%s453 + $0xb0] sm:$0xff]
      %v759 = vld [vmem:[%s453 + $0xb8] sm:$0xff]
      %v760 = vld [vmem:[%s453 + $0xc0] sm:$0xff]
      %v761 = vld [vmem:[%s453 + $0xc8] sm:$0xff]
      %v762 = vld [vmem:[%s453 + $0xd0] sm:$0xff]
      %v763 = vld [vmem:[%s453 + $0xd8] sm:$0xff]
      %v764 = vld [vmem:[%s453 + $0xe0] sm:$0xff]
      %v765 = vld [vmem:[%s453 + $0xe8] sm:$0xff]
      %v766 = vld [vmem:[%s453 + $0xf0] sm:$0xff]
      %v767 = vld [vmem:[%s453 + $0xf8] sm:$0xff]
      %v768 = vld [vmem:[%s453 + $0x100] sm:$0xff]
      %v769 = vld [vmem:[%s453 + $0x108] sm:$0xff]
      %v770 = vld [vmem:[%s453 + $0x110] sm:$0xff]
      %v771 = vld [vmem:[%s453 + $0x118] sm:$0xff]
      %v772 = vld [vmem:[%s453 + $0x120] sm:$0xff]
      %v773 = vld [vmem:[%s453 + $0x128] sm:$0xff]
      %v774 = vld [vmem:[%s453 + $0x130] sm:$0xff]
      %v775 = vld [vmem:[%s453 + $0x138] sm:$0xff]
      %v776 = vld [vmem:[%s453 + $0x140] sm:$0xff]
      %v777 = vld [vmem:[%s453 + $0x148] sm:$0xff]
      %v778 = vld [vmem:[%s453 + $0x150] sm:$0xff]
      %v779 = vld [vmem:[%s453 + $0x158] sm:$0xff]
      %v780 = vld [vmem:[%s453 + $0x160] sm:$0xff]
      %v781 = vld [vmem:[%s453 + $0x168] sm:$0xff]
      %v782 = vld [vmem:[%s453 + $0x170] sm:$0xff]
      %v783 = vld [vmem:[%s453 + $0x178] sm:$0xff]
      %v784 = vld [vmem:[%s453 + $0x180] sm:$0xff]
      %v785 = vld [vmem:[%s453 + $0x188] sm:$0xff]
      %v786 = vld [vmem:[%s453 + $0x190] sm:$0xff]
      %v787 = vld [vmem:[%s453 + $0x198] sm:$0xff]
      %v788 = vld [vmem:[%s453 + $0x1a0] sm:$0xff]
      %v789 = vld [vmem:[%s453 + $0x1a8] sm:$0xff]
      %v790 = vld [vmem:[%s453 + $0x1b0] sm:$0xff]
      %v791 = vld [vmem:[%s453 + $0x1b8] sm:$0xff]
      %v792 = vld [vmem:[%s453 + $0x1c0] sm:$0xff]
      %v793 = vld [vmem:[%s453 + $0x1c8] sm:$0xff]
      %v794 = vld [vmem:[%s453 + $0x1d0] sm:$0xff]
      %v795 = vld [vmem:[%s453 + $0x1d8] sm:$0xff]
      %v796 = vld [vmem:[%s453 + $0x1e0] sm:$0xff]
      %v797 = vld [vmem:[%s453 + $0x1e8] sm:$0xff]
      %v798 = vld [vmem:[%s453 + $0x1f0] sm:$0xff]
      %v799 = vld [vmem:[%s453 + $0x1f8] sm:$0xff]
      %v800 = vld [vmem:[%s453 + $0x200] sm:$0xff]
      %v801 = vld [vmem:[%s453 + $0x208] sm:$0xff]
      %v802 = vld [vmem:[%s453 + $0x210] sm:$0xff]
      %v803 = vld [vmem:[%s453 + $0x218] sm:$0xff]
      %v804 = vld [vmem:[%s453 + $0x220] sm:$0xff]
      %v805 = vld [vmem:[%s453 + $0x228] sm:$0xff]
      %v806 = vld [vmem:[%s453 + $0x230] sm:$0xff]
      %v807 = vld [vmem:[%s453 + $0x238] sm:$0xff]
      %v808 = vld [vmem:[%s453 + $0x240] sm:$0xff]
      %v809 = vld [vmem:[%s453 + $0x248] sm:$0xff]
      %v810 = vld [vmem:[%s453 + $0x250] sm:$0xff]
      %v811 = vld [vmem:[%s453 + $0x258] sm:$0xff]
      %v812 = vld [vmem:[%s453 + $0x260] sm:$0xff]
      %v813 = vld [vmem:[%s453 + $0x268] sm:$0xff]
      %v814 = vld [vmem:[%s453 + $0x270] sm:$0xff]
      %v815 = vld [vmem:[%s453 + $0x278] sm:$0xff]
      %v816 = vld [vmem:[%s453 + $0x280] sm:$0xff]
      %v817 = vld [vmem:[%s453 + $0x288] sm:$0xff]
      %v818 = vld [vmem:[%s453 + $0x290] sm:$0xff]
      %v819 = vld [vmem:[%s453 + $0x298] sm:$0xff]
      %v820 = vld [vmem:[%s453 + $0x2a0] sm:$0xff]
      %v821 = vld [vmem:[%s453 + $0x2a8] sm:$0xff]
      %v822 = vld [vmem:[%s453 + $0x2b0] sm:$0xff]
      %v823 = vld [vmem:[%s453 + $0x2b8] sm:$0xff]
      %v824 = vld [vmem:[%s453 + $0x2c0] sm:$0xff]
      %v825 = vld [vmem:[%s453 + $0x2c8] sm:$0xff]
      %v826 = vld [vmem:[%s453 + $0x2d0] sm:$0xff]
      %v827 = vld [vmem:[%s453 + $0x2d8] sm:$0xff]
      %v828 = vld [vmem:[%s453 + $0x2e0] sm:$0xff]
      %v829 = vld [vmem:[%s453 + $0x2e8] sm:$0xff]
      %v830 = vld [vmem:[%s453 + $0x2f0] sm:$0xff]
      %v831 = vld [vmem:[%s453 + $0x2f8] sm:$0xff]
      %v832 = vpack.c.bf16 %v737, %v736
      %v833 = vpack.c.bf16 %v739, %v738
      %v834 = vpack.c.bf16 %v741, %v740
      %v835 = vpack.c.bf16 %v743, %v742
      %v836 = vpack.c.bf16 %v745, %v744
      %v837 = vpack.c.bf16 %v747, %v746
      %v838 = vpack.c.bf16 %v749, %v748
      %v839 = vpack.c.bf16 %v751, %v750
      %v840 = vpack.c.bf16 %v753, %v752
      %v841 = vpack.c.bf16 %v755, %v754
      %v842 = vpack.c.bf16 %v757, %v756
      %v843 = vpack.c.bf16 %v759, %v758
      %v844 = vpack.c.bf16 %v761, %v760
      %v845 = vpack.c.bf16 %v763, %v762
      %v846 = vpack.c.bf16 %v765, %v764
      %v847 = vpack.c.bf16 %v767, %v766
      %v848 = vpack.c.bf16 %v769, %v768
      %v849 = vpack.c.bf16 %v771, %v770
      %v850 = vpack.c.bf16 %v773, %v772
      %v851 = vpack.c.bf16 %v775, %v774
      %v852 = vpack.c.bf16 %v777, %v776
      %v853 = vpack.c.bf16 %v779, %v778
      %v854 = vpack.c.bf16 %v781, %v780
      %v855 = vpack.c.bf16 %v783, %v782
      %v856 = vpack.c.bf16 %v785, %v784
      %v857 = vpack.c.bf16 %v787, %v786
      %v858 = vpack.c.bf16 %v789, %v788
      %v859 = vpack.c.bf16 %v791, %v790
      %v860 = vpack.c.bf16 %v793, %v792
      %v861 = vpack.c.bf16 %v795, %v794
      %v862 = vpack.c.bf16 %v797, %v796
      %v863 = vpack.c.bf16 %v799, %v798
      %v864 = vpack.c.bf16 %v801, %v800
      %v865 = vpack.c.bf16 %v803, %v802
      %v866 = vpack.c.bf16 %v805, %v804
      %v867 = vpack.c.bf16 %v807, %v806
      %v868 = vpack.c.bf16 %v809, %v808
      %v869 = vpack.c.bf16 %v811, %v810
      %v870 = vpack.c.bf16 %v813, %v812
      %v871 = vpack.c.bf16 %v815, %v814
      %v872 = vpack.c.bf16 %v817, %v816
      %v873 = vpack.c.bf16 %v819, %v818
      %v874 = vpack.c.bf16 %v821, %v820
      %v875 = vpack.c.bf16 %v823, %v822
      %v876 = vpack.c.bf16 %v825, %v824
      %v877 = vpack.c.bf16 %v827, %v826
      %v878 = vpack.c.bf16 %v829, %v828
      %v879 = vpack.c.bf16 %v831, %v830
      %v1024 = vunpack.c.l.b16 %v592
      %v1025 = vunpack.c.h.b16 %v592
      %v1026 = vunpack.c.l.b16 %v593
      %v1027 = vunpack.c.h.b16 %v593
      %v1028 = vunpack.c.l.b16 %v594
      %v1029 = vunpack.c.h.b16 %v594
      %v1030 = vunpack.c.l.b16 %v595
      %v1031 = vunpack.c.h.b16 %v595
      %v1032 = vunpack.c.l.b16 %v596
      %v1033 = vunpack.c.h.b16 %v596
      %v1034 = vunpack.c.l.b16 %v597
      %v1035 = vunpack.c.h.b16 %v597
      %v1036 = vunpack.c.l.b16 %v598
      %v1037 = vunpack.c.h.b16 %v598
      %v1038 = vunpack.c.l.b16 %v599
      %v1039 = vunpack.c.h.b16 %v599
      %v1040 = vunpack.c.l.b16 %v600
      %v1041 = vunpack.c.h.b16 %v600
      %v1042 = vunpack.c.l.b16 %v601
      %v1043 = vunpack.c.h.b16 %v601
      %v1044 = vunpack.c.l.b16 %v602
      %v1045 = vunpack.c.h.b16 %v602
      %v1046 = vunpack.c.l.b16 %v603
      %v1047 = vunpack.c.h.b16 %v603
      %v1048 = vunpack.c.l.b16 %v604
      %v1049 = vunpack.c.h.b16 %v604
      %v1050 = vunpack.c.l.b16 %v605
      %v1051 = vunpack.c.h.b16 %v605
      %v1052 = vunpack.c.l.b16 %v606
      %v1053 = vunpack.c.h.b16 %v606
      %v1054 = vunpack.c.l.b16 %v607
      %v1055 = vunpack.c.h.b16 %v607
      %v1056 = vunpack.c.l.b16 %v608
      %v1057 = vunpack.c.h.b16 %v608
      %v1058 = vunpack.c.l.b16 %v609
      %v1059 = vunpack.c.h.b16 %v609
      %v1060 = vunpack.c.l.b16 %v610
      %v1061 = vunpack.c.h.b16 %v610
      %v1062 = vunpack.c.l.b16 %v611
      %v1063 = vunpack.c.h.b16 %v611
      %v1064 = vunpack.c.l.b16 %v612
      %v1065 = vunpack.c.h.b16 %v612
      %v1066 = vunpack.c.l.b16 %v613
      %v1067 = vunpack.c.h.b16 %v613
      %v1068 = vunpack.c.l.b16 %v614
      %v1069 = vunpack.c.h.b16 %v614
      %v1070 = vunpack.c.l.b16 %v615
      %v1071 = vunpack.c.h.b16 %v615
      %v1072 = vunpack.c.l.b16 %v616
      %v1073 = vunpack.c.h.b16 %v616
      %v1074 = vunpack.c.l.b16 %v617
      %v1075 = vunpack.c.h.b16 %v617
      %v1076 = vunpack.c.l.b16 %v618
      %v1077 = vunpack.c.h.b16 %v618
      %v1078 = vunpack.c.l.b16 %v619
      %v1079 = vunpack.c.h.b16 %v619
      %v1080 = vunpack.c.l.b16 %v620
      %v1081 = vunpack.c.h.b16 %v620
      %v1082 = vunpack.c.l.b16 %v621
      %v1083 = vunpack.c.h.b16 %v621
      %v1084 = vunpack.c.l.b16 %v622
      %v1085 = vunpack.c.h.b16 %v622
      %v1086 = vunpack.c.l.b16 %v623
      %v1087 = vunpack.c.h.b16 %v623
      %v1088 = vunpack.c.l.b16 %v624
      %v1089 = vunpack.c.h.b16 %v624
      %v1090 = vunpack.c.l.b16 %v625
      %v1091 = vunpack.c.h.b16 %v625
      %v1092 = vunpack.c.l.b16 %v626
      %v1093 = vunpack.c.h.b16 %v626
      %v1094 = vunpack.c.l.b16 %v627
      %v1095 = vunpack.c.h.b16 %v627
      %v1096 = vunpack.c.l.b16 %v628
      %v1097 = vunpack.c.h.b16 %v628
      %v1098 = vunpack.c.l.b16 %v629
      %v1099 = vunpack.c.h.b16 %v629
      %v1100 = vunpack.c.l.b16 %v630
      %v1101 = vunpack.c.h.b16 %v630
      %v1102 = vunpack.c.l.b16 %v631
      %v1103 = vunpack.c.h.b16 %v631
      %v1104 = vunpack.c.l.b16 %v632
      %v1105 = vunpack.c.h.b16 %v632
      %v1106 = vunpack.c.l.b16 %v633
      %v1107 = vunpack.c.h.b16 %v633
      %v1108 = vunpack.c.l.b16 %v634
      %v1109 = vunpack.c.h.b16 %v634
      %v1110 = vunpack.c.l.b16 %v635
      %v1111 = vunpack.c.h.b16 %v635
      %v1112 = vunpack.c.l.b16 %v636
      %v1113 = vunpack.c.h.b16 %v636
      %v1114 = vunpack.c.l.b16 %v637
      %v1115 = vunpack.c.h.b16 %v637
      %v1116 = vunpack.c.l.b16 %v638
      %v1117 = vunpack.c.h.b16 %v638
      %v1118 = vunpack.c.l.b16 %v639
      %v1119 = vunpack.c.h.b16 %v639
      %v1120 = vunpack.c.l.b16 %v640
      %v1121 = vunpack.c.h.b16 %v640
      %v1122 = vunpack.c.l.b16 %v641
      %v1123 = vunpack.c.h.b16 %v641
      %v1124 = vunpack.c.l.b16 %v642
      %v1125 = vunpack.c.h.b16 %v642
      %v1126 = vunpack.c.l.b16 %v643
      %v1127 = vunpack.c.h.b16 %v643
      %v1128 = vunpack.c.l.b16 %v644
      %v1129 = vunpack.c.h.b16 %v644
      %v1130 = vunpack.c.l.b16 %v645
      %v1131 = vunpack.c.h.b16 %v645
      %v1132 = vunpack.c.l.b16 %v646
      %v1133 = vunpack.c.h.b16 %v646
      %v1134 = vunpack.c.l.b16 %v647
      %v1135 = vunpack.c.h.b16 %v647
      %v1136 = vunpack.c.l.b16 %v648
      %v1137 = vunpack.c.h.b16 %v648
      %v1138 = vunpack.c.l.b16 %v649
      %v1139 = vunpack.c.h.b16 %v649
      %v1140 = vunpack.c.l.b16 %v650
      %v1141 = vunpack.c.h.b16 %v650
      %v1142 = vunpack.c.l.b16 %v651
      %v1143 = vunpack.c.h.b16 %v651
      %v1144 = vunpack.c.l.b16 %v652
      %v1145 = vunpack.c.h.b16 %v652
      %v1146 = vunpack.c.l.b16 %v653
      %v1147 = vunpack.c.h.b16 %v653
      %v1148 = vunpack.c.l.b16 %v654
      %v1149 = vunpack.c.h.b16 %v654
      %v1150 = vunpack.c.l.b16 %v655
      %v1151 = vunpack.c.h.b16 %v655
      %v1152 = vunpack.c.l.b16 %v656
      %v1153 = vunpack.c.h.b16 %v656
      %v1154 = vunpack.c.l.b16 %v657
      %v1155 = vunpack.c.h.b16 %v657
      %v1156 = vunpack.c.l.b16 %v658
      %v1157 = vunpack.c.h.b16 %v658
      %v1158 = vunpack.c.l.b16 %v659
      %v1159 = vunpack.c.h.b16 %v659
      %v1160 = vunpack.c.l.b16 %v660
      %v1161 = vunpack.c.h.b16 %v660
      %v1162 = vunpack.c.l.b16 %v661
      %v1163 = vunpack.c.h.b16 %v661
      %v1164 = vunpack.c.l.b16 %v662
      %v1165 = vunpack.c.h.b16 %v662
      %v1166 = vunpack.c.l.b16 %v663
      %v1167 = vunpack.c.h.b16 %v663
      %v1168 = vunpack.c.l.b16 %v664
      %v1169 = vunpack.c.h.b16 %v664
      %v1170 = vunpack.c.l.b16 %v665
      %v1171 = vunpack.c.h.b16 %v665
      %v1172 = vunpack.c.l.b16 %v666
      %v1173 = vunpack.c.h.b16 %v666
      %v1174 = vunpack.c.l.b16 %v667
      %v1175 = vunpack.c.h.b16 %v667
      %v1176 = vunpack.c.l.b16 %v668
      %v1177 = vunpack.c.h.b16 %v668
      %v1178 = vunpack.c.l.b16 %v669
      %v1179 = vunpack.c.h.b16 %v669
      %v1180 = vunpack.c.l.b16 %v670
      %v1181 = vunpack.c.h.b16 %v670
      %v1182 = vunpack.c.l.b16 %v671
      %v1183 = vunpack.c.h.b16 %v671
      %v1184 = vunpack.c.l.b16 %v672
      %v1185 = vunpack.c.h.b16 %v672
      %v1186 = vunpack.c.l.b16 %v673
      %v1187 = vunpack.c.h.b16 %v673
      %v1188 = vunpack.c.l.b16 %v674
      %v1189 = vunpack.c.h.b16 %v674
      %v1190 = vunpack.c.l.b16 %v675
      %v1191 = vunpack.c.h.b16 %v675
      %v1192 = vunpack.c.l.b16 %v676
      %v1193 = vunpack.c.h.b16 %v676
      %v1194 = vunpack.c.l.b16 %v677
      %v1195 = vunpack.c.h.b16 %v677
      %v1196 = vunpack.c.l.b16 %v678
      %v1197 = vunpack.c.h.b16 %v678
      %v1198 = vunpack.c.l.b16 %v679
      %v1199 = vunpack.c.h.b16 %v679
      %v1200 = vunpack.c.l.b16 %v680
      %v1201 = vunpack.c.h.b16 %v680
      %v1202 = vunpack.c.l.b16 %v681
      %v1203 = vunpack.c.h.b16 %v681
      %v1204 = vunpack.c.l.b16 %v682
      %v1205 = vunpack.c.h.b16 %v682
      %v1206 = vunpack.c.l.b16 %v683
      %v1207 = vunpack.c.h.b16 %v683
      %v1208 = vunpack.c.l.b16 %v684
      %v1209 = vunpack.c.h.b16 %v684
      %v1210 = vunpack.c.l.b16 %v685
      %v1211 = vunpack.c.h.b16 %v685
      %v1212 = vunpack.c.l.b16 %v686
      %v1213 = vunpack.c.h.b16 %v686
      %v1214 = vunpack.c.l.b16 %v687
      %v1215 = vunpack.c.h.b16 %v687
      %v1216 = vunpack.c.l.b16 %v688
      %v1217 = vunpack.c.h.b16 %v688
      %v1218 = vunpack.c.l.b16 %v689
      %v1219 = vunpack.c.h.b16 %v689
      %v1220 = vunpack.c.l.b16 %v690
      %v1221 = vunpack.c.h.b16 %v690
      %v1222 = vunpack.c.l.b16 %v691
      %v1223 = vunpack.c.h.b16 %v691
      %v1224 = vunpack.c.l.b16 %v692
      %v1225 = vunpack.c.h.b16 %v692
      %v1226 = vunpack.c.l.b16 %v693
      %v1227 = vunpack.c.h.b16 %v693
      %v1228 = vunpack.c.l.b16 %v694
      %v1229 = vunpack.c.h.b16 %v694
      %v1230 = vunpack.c.l.b16 %v695
      %v1231 = vunpack.c.h.b16 %v695
      %v1232 = vunpack.c.l.b16 %v696
      %v1233 = vunpack.c.h.b16 %v696
      %v1234 = vunpack.c.l.b16 %v697
      %v1235 = vunpack.c.h.b16 %v697
      %v1236 = vunpack.c.l.b16 %v698
      %v1237 = vunpack.c.h.b16 %v698
      %v1238 = vunpack.c.l.b16 %v699
      %v1239 = vunpack.c.h.b16 %v699
      %v1240 = vunpack.c.l.b16 %v700
      %v1241 = vunpack.c.h.b16 %v700
      %v1242 = vunpack.c.l.b16 %v701
      %v1243 = vunpack.c.h.b16 %v701
      %v1244 = vunpack.c.l.b16 %v702
      %v1245 = vunpack.c.h.b16 %v702
      %v1246 = vunpack.c.l.b16 %v703
      %v1247 = vunpack.c.h.b16 %v703
      %v1248 = vunpack.c.l.b16 %v704
      %v1249 = vunpack.c.h.b16 %v704
      %v1250 = vunpack.c.l.b16 %v705
      %v1251 = vunpack.c.h.b16 %v705
      %v1252 = vunpack.c.l.b16 %v706
      %v1253 = vunpack.c.h.b16 %v706
      %v1254 = vunpack.c.l.b16 %v707
      %v1255 = vunpack.c.h.b16 %v707
      %v1256 = vunpack.c.l.b16 %v708
      %v1257 = vunpack.c.h.b16 %v708
      %v1258 = vunpack.c.l.b16 %v709
      %v1259 = vunpack.c.h.b16 %v709
      %v1260 = vunpack.c.l.b16 %v710
      %v1261 = vunpack.c.h.b16 %v710
      %v1262 = vunpack.c.l.b16 %v711
      %v1263 = vunpack.c.h.b16 %v711
      %v1264 = vunpack.c.l.b16 %v712
      %v1265 = vunpack.c.h.b16 %v712
      %v1266 = vunpack.c.l.b16 %v713
      %v1267 = vunpack.c.h.b16 %v713
      %v1268 = vunpack.c.l.b16 %v714
      %v1269 = vunpack.c.h.b16 %v714
      %v1270 = vunpack.c.l.b16 %v715
      %v1271 = vunpack.c.h.b16 %v715
      %v1272 = vunpack.c.l.b16 %v716
      %v1273 = vunpack.c.h.b16 %v716
      %v1274 = vunpack.c.l.b16 %v717
      %v1275 = vunpack.c.h.b16 %v717
      %v1276 = vunpack.c.l.b16 %v718
      %v1277 = vunpack.c.h.b16 %v718
      %v1278 = vunpack.c.l.b16 %v719
      %v1279 = vunpack.c.h.b16 %v719
      %v1280 = vunpack.c.l.b16 %v720
      %v1281 = vunpack.c.h.b16 %v720
      %v1282 = vunpack.c.l.b16 %v721
      %v1283 = vunpack.c.h.b16 %v721
      %v1284 = vunpack.c.l.b16 %v722
      %v1285 = vunpack.c.h.b16 %v722
      %v1286 = vunpack.c.l.b16 %v723
      %v1287 = vunpack.c.h.b16 %v723
      %v1288 = vunpack.c.l.b16 %v724
      %v1289 = vunpack.c.h.b16 %v724
      %v1290 = vunpack.c.l.b16 %v725
      %v1291 = vunpack.c.h.b16 %v725
      %v1292 = vunpack.c.l.b16 %v726
      %v1293 = vunpack.c.h.b16 %v726
      %v1294 = vunpack.c.l.b16 %v727
      %v1295 = vunpack.c.h.b16 %v727
      %v1296 = vunpack.c.l.b16 %v728
      %v1297 = vunpack.c.h.b16 %v728
      %v1298 = vunpack.c.l.b16 %v729
      %v1299 = vunpack.c.h.b16 %v729
      %v1300 = vunpack.c.l.b16 %v730
      %v1301 = vunpack.c.h.b16 %v730
      %v1302 = vunpack.c.l.b16 %v731
      %v1303 = vunpack.c.h.b16 %v731
      %v1304 = vunpack.c.l.b16 %v732
      %v1305 = vunpack.c.h.b16 %v732
      %v1306 = vunpack.c.l.b16 %v733
      %v1307 = vunpack.c.h.b16 %v733
      %v1308 = vunpack.c.l.b16 %v734
      %v1309 = vunpack.c.h.b16 %v734
      %v1310 = vunpack.c.l.b16 %v735
      %v1311 = vunpack.c.h.b16 %v735
      %v1312 = vpack.c.b16 %v1030, %v1024
      %v1313 = vpack.c.b16 %v1031, %v1025
      %v1314 = vpack.c.b16 %v1032, %v1026
      %v1315 = vpack.c.b16 %v1033, %v1027
      %v1316 = vpack.c.b16 %v1034, %v1028
      %v1317 = vpack.c.b16 %v1035, %v1029
      %v1318 = vpack.c.b16 %v1042, %v1036
      %v1319 = vpack.c.b16 %v1043, %v1037
      %v1320 = vpack.c.b16 %v1044, %v1038
      %v1321 = vpack.c.b16 %v1045, %v1039
      %v1322 = vpack.c.b16 %v1046, %v1040
      %v1323 = vpack.c.b16 %v1047, %v1041
      %v1324 = vpack.c.b16 %v1054, %v1048
      %v1325 = vpack.c.b16 %v1055, %v1049
      %v1326 = vpack.c.b16 %v1056, %v1050
      %v1327 = vpack.c.b16 %v1057, %v1051
      %v1328 = vpack.c.b16 %v1058, %v1052
      %v1329 = vpack.c.b16 %v1059, %v1053
      %v1330 = vpack.c.b16 %v1066, %v1060
      %v1331 = vpack.c.b16 %v1067, %v1061
      %v1332 = vpack.c.b16 %v1068, %v1062
      %v1333 = vpack.c.b16 %v1069, %v1063
      %v1334 = vpack.c.b16 %v1070, %v1064
      %v1335 = vpack.c.b16 %v1071, %v1065
      %v1336 = vpack.c.b16 %v1078, %v1072
      %v1337 = vpack.c.b16 %v1079, %v1073
      %v1338 = vpack.c.b16 %v1080, %v1074
      %v1339 = vpack.c.b16 %v1081, %v1075
      %v1340 = vpack.c.b16 %v1082, %v1076
      %v1341 = vpack.c.b16 %v1083, %v1077
      %v1342 = vpack.c.b16 %v1090, %v1084
      %v1343 = vpack.c.b16 %v1091, %v1085
      %v1344 = vpack.c.b16 %v1092, %v1086
      %v1345 = vpack.c.b16 %v1093, %v1087
      %v1346 = vpack.c.b16 %v1094, %v1088
      %v1347 = vpack.c.b16 %v1095, %v1089
      %v1348 = vpack.c.b16 %v1102, %v1096
      %v1349 = vpack.c.b16 %v1103, %v1097
      %v1350 = vpack.c.b16 %v1104, %v1098
      %v1351 = vpack.c.b16 %v1105, %v1099
      %v1352 = vpack.c.b16 %v1106, %v1100
      %v1353 = vpack.c.b16 %v1107, %v1101
      %v1354 = vpack.c.b16 %v1114, %v1108
      %v1355 = vpack.c.b16 %v1115, %v1109
      %v1356 = vpack.c.b16 %v1116, %v1110
      %v1357 = vpack.c.b16 %v1117, %v1111
      %v1358 = vpack.c.b16 %v1118, %v1112
      %v1359 = vpack.c.b16 %v1119, %v1113
      %v1360 = vpack.c.b16 %v1126, %v1120
      %v1361 = vpack.c.b16 %v1127, %v1121
      %v1362 = vpack.c.b16 %v1128, %v1122
      %v1363 = vpack.c.b16 %v1129, %v1123
      %v1364 = vpack.c.b16 %v1130, %v1124
      %v1365 = vpack.c.b16 %v1131, %v1125
      %v1366 = vpack.c.b16 %v1138, %v1132
      %v1367 = vpack.c.b16 %v1139, %v1133
      %v1368 = vpack.c.b16 %v1140, %v1134
      %v1369 = vpack.c.b16 %v1141, %v1135
      %v1370 = vpack.c.b16 %v1142, %v1136
      %v1371 = vpack.c.b16 %v1143, %v1137
      %v1372 = vpack.c.b16 %v1150, %v1144
      %v1373 = vpack.c.b16 %v1151, %v1145
      %v1374 = vpack.c.b16 %v1152, %v1146
      %v1375 = vpack.c.b16 %v1153, %v1147
      %v1376 = vpack.c.b16 %v1154, %v1148
      %v1377 = vpack.c.b16 %v1155, %v1149
      %v1378 = vpack.c.b16 %v1162, %v1156
      %v1379 = vpack.c.b16 %v1163, %v1157
      %v1380 = vpack.c.b16 %v1164, %v1158
      %v1381 = vpack.c.b16 %v1165, %v1159
      %v1382 = vpack.c.b16 %v1166, %v1160
      %v1383 = vpack.c.b16 %v1167, %v1161
      %v1384 = vpack.c.b16 %v1174, %v1168
      %v1385 = vpack.c.b16 %v1175, %v1169
      %v1386 = vpack.c.b16 %v1176, %v1170
      %v1387 = vpack.c.b16 %v1177, %v1171
      %v1388 = vpack.c.b16 %v1178, %v1172
      %v1389 = vpack.c.b16 %v1179, %v1173
      %v1390 = vpack.c.b16 %v1186, %v1180
      %v1391 = vpack.c.b16 %v1187, %v1181
      %v1392 = vpack.c.b16 %v1188, %v1182
      %v1393 = vpack.c.b16 %v1189, %v1183
      %v1394 = vpack.c.b16 %v1190, %v1184
      %v1395 = vpack.c.b16 %v1191, %v1185
      %v1396 = vpack.c.b16 %v1198, %v1192
      %v1397 = vpack.c.b16 %v1199, %v1193
      %v1398 = vpack.c.b16 %v1200, %v1194
      %v1399 = vpack.c.b16 %v1201, %v1195
      %v1400 = vpack.c.b16 %v1202, %v1196
      %v1401 = vpack.c.b16 %v1203, %v1197
      %v1402 = vpack.c.b16 %v1210, %v1204
      %v1403 = vpack.c.b16 %v1211, %v1205
      %v1404 = vpack.c.b16 %v1212, %v1206
      %v1405 = vpack.c.b16 %v1213, %v1207
      %v1406 = vpack.c.b16 %v1214, %v1208
      %v1407 = vpack.c.b16 %v1215, %v1209
      %v1408 = vpack.c.b16 %v1222, %v1216
      %v1409 = vpack.c.b16 %v1223, %v1217
      %v1410 = vpack.c.b16 %v1224, %v1218
      %v1411 = vpack.c.b16 %v1225, %v1219
      %v1412 = vpack.c.b16 %v1226, %v1220
      %v1413 = vpack.c.b16 %v1227, %v1221
      %v1414 = vpack.c.b16 %v1234, %v1228
      %v1415 = vpack.c.b16 %v1235, %v1229
      %v1416 = vpack.c.b16 %v1236, %v1230
      %v1417 = vpack.c.b16 %v1237, %v1231
      %v1418 = vpack.c.b16 %v1238, %v1232
      %v1419 = vpack.c.b16 %v1239, %v1233
      %v1420 = vpack.c.b16 %v1246, %v1240
      %v1421 = vpack.c.b16 %v1247, %v1241
      %v1422 = vpack.c.b16 %v1248, %v1242
      %v1423 = vpack.c.b16 %v1249, %v1243
      %v1424 = vpack.c.b16 %v1250, %v1244
      %v1425 = vpack.c.b16 %v1251, %v1245
      %v1426 = vpack.c.b16 %v1258, %v1252
      %v1427 = vpack.c.b16 %v1259, %v1253
      %v1428 = vpack.c.b16 %v1260, %v1254
      %v1429 = vpack.c.b16 %v1261, %v1255
      %v1430 = vpack.c.b16 %v1262, %v1256
      %v1431 = vpack.c.b16 %v1263, %v1257
      %v1432 = vpack.c.b16 %v1270, %v1264
      %v1433 = vpack.c.b16 %v1271, %v1265
      %v1434 = vpack.c.b16 %v1272, %v1266
      %v1435 = vpack.c.b16 %v1273, %v1267
      %v1436 = vpack.c.b16 %v1274, %v1268
      %v1437 = vpack.c.b16 %v1275, %v1269
      %v1438 = vpack.c.b16 %v1282, %v1276
      %v1439 = vpack.c.b16 %v1283, %v1277
      %v1440 = vpack.c.b16 %v1284, %v1278
      %v1441 = vpack.c.b16 %v1285, %v1279
      %v1442 = vpack.c.b16 %v1286, %v1280
      %v1443 = vpack.c.b16 %v1287, %v1281
      %v1444 = vpack.c.b16 %v1294, %v1288
      %v1445 = vpack.c.b16 %v1295, %v1289
      %v1446 = vpack.c.b16 %v1296, %v1290
      %v1447 = vpack.c.b16 %v1297, %v1291
      %v1448 = vpack.c.b16 %v1298, %v1292
      %v1449 = vpack.c.b16 %v1299, %v1293
      %v1450 = vpack.c.b16 %v1306, %v1300
      %v1451 = vpack.c.b16 %v1307, %v1301
      %v1452 = vpack.c.b16 %v1308, %v1302
      %v1453 = vpack.c.b16 %v1309, %v1303
      %v1454 = vpack.c.b16 %v1310, %v1304
      %v1455 = vpack.c.b16 %v1311, %v1305
      %1600 = vmatpush.bf16.msra.mxu0 %v839
      %1601 = vmatpush.bf16.msra.mxu0 %v838
      %1602 = vmatpush.bf16.msra.mxu0 %v837
      %1603 = vmatpush.bf16.msra.mxu0 %v836
      %1604 = vmatpush.bf16.msra.mxu0 %v835
      %1605 = vmatpush.bf16.msra.mxu0 %v834
      %1606 = vmatpush.bf16.msra.mxu0 %v833
      %1607 = vmatpush.bf16.msra.mxu0 %v832
      %1608 = vmatmul.bf16.gmra.mxu0 %v1312
      %v1609 = vpop.f32.mrf.mxu0
      %v1610 = vadd.f32 0.0, %v1609
      %v1611 = vpop.f32.mrf.mxu0
      %v1612 = vadd.f32 0.0, %v1611
      %1613 = vmatmul.bf16.gmra.mxu0 %v1318
      %v1614 = vpop.f32.mrf.mxu0
      %v1615 = vadd.f32 0.0, %v1614
      %v1616 = vpop.f32.mrf.mxu0
      %v1617 = vadd.f32 0.0, %v1616
      %1618 = vmatmul.bf16.gmra.mxu0 %v1324
      %v1619 = vpop.f32.mrf.mxu0
      %v1620 = vadd.f32 0.0, %v1619
      %v1621 = vpop.f32.mrf.mxu0
      %v1622 = vadd.f32 0.0, %v1621
      %1623 = vmatmul.bf16.gmra.mxu0 %v1330
      %v1624 = vpop.f32.mrf.mxu0
      %v1625 = vadd.f32 0.0, %v1624
      %v1626 = vpop.f32.mrf.mxu0
      %v1627 = vadd.f32 0.0, %v1626
      %1628 = vmatmul.bf16.gmra.mxu0 %v1336
      %v1629 = vpop.f32.mrf.mxu0
      %v1630 = vadd.f32 0.0, %v1629
      %v1631 = vpop.f32.mrf.mxu0
      %v1632 = vadd.f32 0.0, %v1631
      %1633 = vmatmul.bf16.gmra.mxu0 %v1342
      %v1634 = vpop.f32.mrf.mxu0
      %v1635 = vadd.f32 0.0, %v1634
      %v1636 = vpop.f32.mrf.mxu0
      %v1637 = vadd.f32 0.0, %v1636
      %1638 = vmatmul.bf16.gmra.mxu0 %v1348
      %v1639 = vpop.f32.mrf.mxu0
      %v1640 = vadd.f32 0.0, %v1639
      %v1641 = vpop.f32.mrf.mxu0
      %v1642 = vadd.f32 0.0, %v1641
      %1643 = vmatmul.bf16.gmra.mxu0 %v1354
      %v1644 = vpop.f32.mrf.mxu0
      %v1645 = vadd.f32 0.0, %v1644
      %v1646 = vpop.f32.mrf.mxu0
      %v1647 = vadd.f32 0.0, %v1646
      %1648 = vmatmul.bf16.gmra.mxu0 %v1360
      %v1649 = vpop.f32.mrf.mxu0
      %v1650 = vadd.f32 0.0, %v1649
      %v1651 = vpop.f32.mrf.mxu0
      %v1652 = vadd.f32 0.0, %v1651
      %1653 = vmatmul.bf16.gmra.mxu0 %v1366
      %v1654 = vpop.f32.mrf.mxu0
      %v1655 = vadd.f32 0.0, %v1654
      %v1656 = vpop.f32.mrf.mxu0
      %v1657 = vadd.f32 0.0, %v1656
      %1658 = vmatmul.bf16.gmra.mxu0 %v1372
      %v1659 = vpop.f32.mrf.mxu0
      %v1660 = vadd.f32 0.0, %v1659
      %v1661 = vpop.f32.mrf.mxu0
      %v1662 = vadd.f32 0.0, %v1661
      %1663 = vmatmul.bf16.gmra.mxu0 %v1378
      %v1664 = vpop.f32.mrf.mxu0
      %v1665 = vadd.f32 0.0, %v1664
      %v1666 = vpop.f32.mrf.mxu0
      %v1667 = vadd.f32 0.0, %v1666
      %1668 = vmatmul.bf16.gmra.mxu0 %v1384
      %v1669 = vpop.f32.mrf.mxu0
      %v1670 = vadd.f32 0.0, %v1669
      %v1671 = vpop.f32.mrf.mxu0
      %v1672 = vadd.f32 0.0, %v1671
      %1673 = vmatmul.bf16.gmra.mxu0 %v1390
      %v1674 = vpop.f32.mrf.mxu0
      %v1675 = vadd.f32 0.0, %v1674
      %v1676 = vpop.f32.mrf.mxu0
      %v1677 = vadd.f32 0.0, %v1676
      %1678 = vmatmul.bf16.gmra.mxu0 %v1396
      %v1679 = vpop.f32.mrf.mxu0
      %v1680 = vadd.f32 0.0, %v1679
      %v1681 = vpop.f32.mrf.mxu0
      %v1682 = vadd.f32 0.0, %v1681
      %1683 = vmatmul.bf16.gmra.mxu0 %v1402
      %v1684 = vpop.f32.mrf.mxu0
      %v1685 = vadd.f32 0.0, %v1684
      %v1686 = vpop.f32.mrf.mxu0
      %v1687 = vadd.f32 0.0, %v1686
      %1688 = vmatmul.bf16.gmra.mxu0 %v1408
      %v1689 = vpop.f32.mrf.mxu0
      %v1690 = vadd.f32 0.0, %v1689
      %v1691 = vpop.f32.mrf.mxu0
      %v1692 = vadd.f32 0.0, %v1691
      %1693 = vmatmul.bf16.gmra.mxu0 %v1414
      %v1694 = vpop.f32.mrf.mxu0
      %v1695 = vadd.f32 0.0, %v1694
      %v1696 = vpop.f32.mrf.mxu0
      %v1697 = vadd.f32 0.0, %v1696
      %1698 = vmatmul.bf16.gmra.mxu0 %v1420
      %v1699 = vpop.f32.mrf.mxu0
      %v1700 = vadd.f32 0.0, %v1699
      %v1701 = vpop.f32.mrf.mxu0
      %v1702 = vadd.f32 0.0, %v1701
      %1703 = vmatmul.bf16.gmra.mxu0 %v1426
      %v1704 = vpop.f32.mrf.mxu0
      %v1705 = vadd.f32 0.0, %v1704
      %v1706 = vpop.f32.mrf.mxu0
      %v1707 = vadd.f32 0.0, %v1706
      %1708 = vmatmul.bf16.gmra.mxu0 %v1432
      %v1709 = vpop.f32.mrf.mxu0
      %v1710 = vadd.f32 0.0, %v1709
      %v1711 = vpop.f32.mrf.mxu0
      %v1712 = vadd.f32 0.0, %v1711
      %1713 = vmatmul.bf16.gmra.mxu0 %v1438
      %v1714 = vpop.f32.mrf.mxu0
      %v1715 = vadd.f32 0.0, %v1714
      %v1716 = vpop.f32.mrf.mxu0
      %v1717 = vadd.f32 0.0, %v1716
      %1718 = vmatmul.bf16.gmra.mxu0 %v1444
      %v1719 = vpop.f32.mrf.mxu0
      %v1720 = vadd.f32 0.0, %v1719
      %v1721 = vpop.f32.mrf.mxu0
      %v1722 = vadd.f32 0.0, %v1721
      %1723 = vmatmul.bf16.gmra.mxu0 %v1450
      %v1724 = vpop.f32.mrf.mxu0
      %v1725 = vadd.f32 0.0, %v1724
      %v1726 = vpop.f32.mrf.mxu0
      %v1727 = vadd.f32 0.0, %v1726
      %1728 = vdwg.mxu0
      %1729 = vmatpush.bf16.msra.mxu0 %v847
      %1730 = vmatpush.bf16.msra.mxu0 %v846
      %1731 = vmatpush.bf16.msra.mxu0 %v845
      %1732 = vmatpush.bf16.msra.mxu0 %v844
      %1733 = vmatpush.bf16.msra.mxu0 %v843
      %1734 = vmatpush.bf16.msra.mxu0 %v842
      %1735 = vmatpush.bf16.msra.mxu0 %v841
      %1736 = vmatpush.bf16.msra.mxu0 %v840
      %1737 = vmatmul.bf16.gmra.mxu0 %v1313
      %v1738 = vpop.f32.mrf.mxu0
      %v1739 = vadd.f32 %v1610, %v1738
      %v1740 = vpop.f32.mrf.mxu0
      %v1741 = vadd.f32 %v1612, %v1740
      %1742 = vmatmul.bf16.gmra.mxu0 %v1319
      %v1743 = vpop.f32.mrf.mxu0
      %v1744 = vadd.f32 %v1615, %v1743
      %v1745 = vpop.f32.mrf.mxu0
      %v1746 = vadd.f32 %v1617, %v1745
      %1747 = vmatmul.bf16.gmra.mxu0 %v1325
      %v1748 = vpop.f32.mrf.mxu0
      %v1749 = vadd.f32 %v1620, %v1748
      %v1750 = vpop.f32.mrf.mxu0
      %v1751 = vadd.f32 %v1622, %v1750
      %1752 = vmatmul.bf16.gmra.mxu0 %v1331
      %v1753 = vpop.f32.mrf.mxu0
      %v1754 = vadd.f32 %v1625, %v1753
      %v1755 = vpop.f32.mrf.mxu0
      %v1756 = vadd.f32 %v1627, %v1755
      %1757 = vmatmul.bf16.gmra.mxu0 %v1337
      %v1758 = vpop.f32.mrf.mxu0
      %v1759 = vadd.f32 %v1630, %v1758
      %v1760 = vpop.f32.mrf.mxu0
      %v1761 = vadd.f32 %v1632, %v1760
      %1762 = vmatmul.bf16.gmra.mxu0 %v1343
      %v1763 = vpop.f32.mrf.mxu0
      %v1764 = vadd.f32 %v1635, %v1763
      %v1765 = vpop.f32.mrf.mxu0
      %v1766 = vadd.f32 %v1637, %v1765
      %1767 = vmatmul.bf16.gmra.mxu0 %v1349
      %v1768 = vpop.f32.mrf.mxu0
      %v1769 = vadd.f32 %v1640, %v1768
      %v1770 = vpop.f32.mrf.mxu0
      %v1771 = vadd.f32 %v1642, %v1770
      %1772 = vmatmul.bf16.gmra.mxu0 %v1355
      %v1773 = vpop.f32.mrf.mxu0
      %v1774 = vadd.f32 %v1645, %v1773
      %v1775 = vpop.f32.mrf.mxu0
      %v1776 = vadd.f32 %v1647, %v1775
      %1777 = vmatmul.bf16.gmra.mxu0 %v1361
      %v1778 = vpop.f32.mrf.mxu0
      %v1779 = vadd.f32 %v1650, %v1778
      %v1780 = vpop.f32.mrf.mxu0
      %v1781 = vadd.f32 %v1652, %v1780
      %1782 = vmatmul.bf16.gmra.mxu0 %v1367
      %v1783 = vpop.f32.mrf.mxu0
      %v1784 = vadd.f32 %v1655, %v1783
      %v1785 = vpop.f32.mrf.mxu0
      %v1786 = vadd.f32 %v1657, %v1785
      %1787 = vmatmul.bf16.gmra.mxu0 %v1373
      %v1788 = vpop.f32.mrf.mxu0
      %v1789 = vadd.f32 %v1660, %v1788
      %v1790 = vpop.f32.mrf.mxu0
      %v1791 = vadd.f32 %v1662, %v1790
      %1792 = vmatmul.bf16.gmra.mxu0 %v1379
      %v1793 = vpop.f32.mrf.mxu0
      %v1794 = vadd.f32 %v1665, %v1793
      %v1795 = vpop.f32.mrf.mxu0
      %v1796 = vadd.f32 %v1667, %v1795
      %1797 = vmatmul.bf16.gmra.mxu0 %v1385
      %v1798 = vpop.f32.mrf.mxu0
      %v1799 = vadd.f32 %v1670, %v1798
      %v1800 = vpop.f32.mrf.mxu0
      %v1801 = vadd.f32 %v1672, %v1800
      %1802 = vmatmul.bf16.gmra.mxu0 %v1391
      %v1803 = vpop.f32.mrf.mxu0
      %v1804 = vadd.f32 %v1675, %v1803
      %v1805 = vpop.f32.mrf.mxu0
      %v1806 = vadd.f32 %v1677, %v1805
      %1807 = vmatmul.bf16.gmra.mxu0 %v1397
      %v1808 = vpop.f32.mrf.mxu0
      %v1809 = vadd.f32 %v1680, %v1808
      %v1810 = vpop.f32.mrf.mxu0
      %v1811 = vadd.f32 %v1682, %v1810
      %1812 = vmatmul.bf16.gmra.mxu0 %v1403
      %v1813 = vpop.f32.mrf.mxu0
      %v1814 = vadd.f32 %v1685, %v1813
      %v1815 = vpop.f32.mrf.mxu0
      %v1816 = vadd.f32 %v1687, %v1815
      %1817 = vmatmul.bf16.gmra.mxu0 %v1409
      %v1818 = vpop.f32.mrf.mxu0
      %v1819 = vadd.f32 %v1690, %v1818
      %v1820 = vpop.f32.mrf.mxu0
      %v1821 = vadd.f32 %v1692, %v1820
      %1822 = vmatmul.bf16.gmra.mxu0 %v1415
      %v1823 = vpop.f32.mrf.mxu0
      %v1824 = vadd.f32 %v1695, %v1823
      %v1825 = vpop.f32.mrf.mxu0
      %v1826 = vadd.f32 %v1697, %v1825
      %1827 = vmatmul.bf16.gmra.mxu0 %v1421
      %v1828 = vpop.f32.mrf.mxu0
      %v1829 = vadd.f32 %v1700, %v1828
      %v1830 = vpop.f32.mrf.mxu0
      %v1831 = vadd.f32 %v1702, %v1830
      %1832 = vmatmul.bf16.gmra.mxu0 %v1427
      %v1833 = vpop.f32.mrf.mxu0
      %v1834 = vadd.f32 %v1705, %v1833
      %v1835 = vpop.f32.mrf.mxu0
      %v1836 = vadd.f32 %v1707, %v1835
      %1837 = vmatmul.bf16.gmra.mxu0 %v1433
      %v1838 = vpop.f32.mrf.mxu0
      %v1839 = vadd.f32 %v1710, %v1838
      %v1840 = vpop.f32.mrf.mxu0
      %v1841 = vadd.f32 %v1712, %v1840
      %1842 = vmatmul.bf16.gmra.mxu0 %v1439
      %v1843 = vpop.f32.mrf.mxu0
      %v1844 = vadd.f32 %v1715, %v1843
      %v1845 = vpop.f32.mrf.mxu0
      %v1846 = vadd.f32 %v1717, %v1845
      %1847 = vmatmul.bf16.gmra.mxu0 %v1445
      %v1848 = vpop.f32.mrf.mxu0
      %v1849 = vadd.f32 %v1720, %v1848
      %v1850 = vpop.f32.mrf.mxu0
      %v1851 = vadd.f32 %v1722, %v1850
      %1852 = vmatmul.bf16.gmra.mxu0 %v1451
      %v1853 = vpop.f32.mrf.mxu0
      %v1854 = vadd.f32 %v1725, %v1853
      %v1855 = vpop.f32.mrf.mxu0
      %v1856 = vadd.f32 %v1727, %v1855
      %1857 = vdwg.mxu0
      %1858 = vmatpush.bf16.msra.mxu0 %v855
      %1859 = vmatpush.bf16.msra.mxu0 %v854
      %1860 = vmatpush.bf16.msra.mxu0 %v853
      %1861 = vmatpush.bf16.msra.mxu0 %v852
      %1862 = vmatpush.bf16.msra.mxu0 %v851
      %1863 = vmatpush.bf16.msra.mxu0 %v850
      %1864 = vmatpush.bf16.msra.mxu0 %v849
      %1865 = vmatpush.bf16.msra.mxu0 %v848
      %1866 = vmatmul.bf16.gmra.mxu0 %v1314
      %v1867 = vpop.f32.mrf.mxu0
      %v1868 = vadd.f32 %v1739, %v1867
      %v1869 = vpop.f32.mrf.mxu0
      %v1870 = vadd.f32 %v1741, %v1869
      %1871 = vmatmul.bf16.gmra.mxu0 %v1320
      %v1872 = vpop.f32.mrf.mxu0
      %v1873 = vadd.f32 %v1744, %v1872
      %v1874 = vpop.f32.mrf.mxu0
      %v1875 = vadd.f32 %v1746, %v1874
      %1876 = vmatmul.bf16.gmra.mxu0 %v1326
      %v1877 = vpop.f32.mrf.mxu0
      %v1878 = vadd.f32 %v1749, %v1877
      %v1879 = vpop.f32.mrf.mxu0
      %v1880 = vadd.f32 %v1751, %v1879
      %1881 = vmatmul.bf16.gmra.mxu0 %v1332
      %v1882 = vpop.f32.mrf.mxu0
      %v1883 = vadd.f32 %v1754, %v1882
      %v1884 = vpop.f32.mrf.mxu0
      %v1885 = vadd.f32 %v1756, %v1884
      %1886 = vmatmul.bf16.gmra.mxu0 %v1338
      %v1887 = vpop.f32.mrf.mxu0
      %v1888 = vadd.f32 %v1759, %v1887
      %v1889 = vpop.f32.mrf.mxu0
      %v1890 = vadd.f32 %v1761, %v1889
      %1891 = vmatmul.bf16.gmra.mxu0 %v1344
      %v1892 = vpop.f32.mrf.mxu0
      %v1893 = vadd.f32 %v1764, %v1892
      %v1894 = vpop.f32.mrf.mxu0
      %v1895 = vadd.f32 %v1766, %v1894
      %1896 = vmatmul.bf16.gmra.mxu0 %v1350
      %v1897 = vpop.f32.mrf.mxu0
      %v1898 = vadd.f32 %v1769, %v1897
      %v1899 = vpop.f32.mrf.mxu0
      %v1900 = vadd.f32 %v1771, %v1899
      %1901 = vmatmul.bf16.gmra.mxu0 %v1356
      %v1902 = vpop.f32.mrf.mxu0
      %v1903 = vadd.f32 %v1774, %v1902
      %v1904 = vpop.f32.mrf.mxu0
      %v1905 = vadd.f32 %v1776, %v1904
      %1906 = vmatmul.bf16.gmra.mxu0 %v1362
      %v1907 = vpop.f32.mrf.mxu0
      %v1908 = vadd.f32 %v1779, %v1907
      %v1909 = vpop.f32.mrf.mxu0
      %v1910 = vadd.f32 %v1781, %v1909
      %1911 = vmatmul.bf16.gmra.mxu0 %v1368
      %v1912 = vpop.f32.mrf.mxu0
      %v1913 = vadd.f32 %v1784, %v1912
      %v1914 = vpop.f32.mrf.mxu0
      %v1915 = vadd.f32 %v1786, %v1914
      %1916 = vmatmul.bf16.gmra.mxu0 %v1374
      %v1917 = vpop.f32.mrf.mxu0
      %v1918 = vadd.f32 %v1789, %v1917
      %v1919 = vpop.f32.mrf.mxu0
      %v1920 = vadd.f32 %v1791, %v1919
      %1921 = vmatmul.bf16.gmra.mxu0 %v1380
      %v1922 = vpop.f32.mrf.mxu0
      %v1923 = vadd.f32 %v1794, %v1922
      %v1924 = vpop.f32.mrf.mxu0
      %v1925 = vadd.f32 %v1796, %v1924
      %1926 = vmatmul.bf16.gmra.mxu0 %v1386
      %v1927 = vpop.f32.mrf.mxu0
      %v1928 = vadd.f32 %v1799, %v1927
      %v1929 = vpop.f32.mrf.mxu0
      %v1930 = vadd.f32 %v1801, %v1929
      %1931 = vmatmul.bf16.gmra.mxu0 %v1392
      %v1932 = vpop.f32.mrf.mxu0
      %v1933 = vadd.f32 %v1804, %v1932
      %v1934 = vpop.f32.mrf.mxu0
      %v1935 = vadd.f32 %v1806, %v1934
      %1936 = vmatmul.bf16.gmra.mxu0 %v1398
      %v1937 = vpop.f32.mrf.mxu0
      %v1938 = vadd.f32 %v1809, %v1937
      %v1939 = vpop.f32.mrf.mxu0
      %v1940 = vadd.f32 %v1811, %v1939
      %1941 = vmatmul.bf16.gmra.mxu0 %v1404
      %v1942 = vpop.f32.mrf.mxu0
      %v1943 = vadd.f32 %v1814, %v1942
      %v1944 = vpop.f32.mrf.mxu0
      %v1945 = vadd.f32 %v1816, %v1944
      %1946 = vmatmul.bf16.gmra.mxu0 %v1410
      %v1947 = vpop.f32.mrf.mxu0
      %v1948 = vadd.f32 %v1819, %v1947
      %v1949 = vpop.f32.mrf.mxu0
      %v1950 = vadd.f32 %v1821, %v1949
      %1951 = vmatmul.bf16.gmra.mxu0 %v1416
      %v1952 = vpop.f32.mrf.mxu0
      %v1953 = vadd.f32 %v1824, %v1952
      %v1954 = vpop.f32.mrf.mxu0
      %v1955 = vadd.f32 %v1826, %v1954
      %1956 = vmatmul.bf16.gmra.mxu0 %v1422
      %v1957 = vpop.f32.mrf.mxu0
      %v1958 = vadd.f32 %v1829, %v1957
      %v1959 = vpop.f32.mrf.mxu0
      %v1960 = vadd.f32 %v1831, %v1959
      %1961 = vmatmul.bf16.gmra.mxu0 %v1428
      %v1962 = vpop.f32.mrf.mxu0
      %v1963 = vadd.f32 %v1834, %v1962
      %v1964 = vpop.f32.mrf.mxu0
      %v1965 = vadd.f32 %v1836, %v1964
      %1966 = vmatmul.bf16.gmra.mxu0 %v1434
      %v1967 = vpop.f32.mrf.mxu0
      %v1968 = vadd.f32 %v1839, %v1967
      %v1969 = vpop.f32.mrf.mxu0
      %v1970 = vadd.f32 %v1841, %v1969
      %1971 = vmatmul.bf16.gmra.mxu0 %v1440
      %v1972 = vpop.f32.mrf.mxu0
      %v1973 = vadd.f32 %v1844, %v1972
      %v1974 = vpop.f32.mrf.mxu0
      %v1975 = vadd.f32 %v1846, %v1974
      %1976 = vmatmul.bf16.gmra.mxu0 %v1446
      %v1977 = vpop.f32.mrf.mxu0
      %v1978 = vadd.f32 %v1849, %v1977
      %v1979 = vpop.f32.mrf.mxu0
      %v1980 = vadd.f32 %v1851, %v1979
      %1981 = vmatmul.bf16.gmra.mxu0 %v1452
      %v1982 = vpop.f32.mrf.mxu0
      %v1983 = vadd.f32 %v1854, %v1982
      %v1984 = vpop.f32.mrf.mxu0
      %v1985 = vadd.f32 %v1856, %v1984
      %1986 = vdwg.mxu0
      %1987 = vmatpush.bf16.msra.mxu0 %v863
      %1988 = vmatpush.bf16.msra.mxu0 %v862
      %1989 = vmatpush.bf16.msra.mxu0 %v861
      %1990 = vmatpush.bf16.msra.mxu0 %v860
      %1991 = vmatpush.bf16.msra.mxu0 %v859
      %1992 = vmatpush.bf16.msra.mxu0 %v858
      %1993 = vmatpush.bf16.msra.mxu0 %v857
      %1994 = vmatpush.bf16.msra.mxu0 %v856
      %1995 = vmatmul.bf16.gmra.mxu0 %v1315
      %v1996 = vpop.f32.mrf.mxu0
      %v1997 = vadd.f32 %v1868, %v1996
      %v1998 = vpop.f32.mrf.mxu0
      %v1999 = vadd.f32 %v1870, %v1998
      %2000 = vmatmul.bf16.gmra.mxu0 %v1321
      %v2001 = vpop.f32.mrf.mxu0
      %v2002 = vadd.f32 %v1873, %v2001
      %v2003 = vpop.f32.mrf.mxu0
      %v2004 = vadd.f32 %v1875, %v2003
      %2005 = vmatmul.bf16.gmra.mxu0 %v1327
      %v2006 = vpop.f32.mrf.mxu0
      %v2007 = vadd.f32 %v1878, %v2006
      %v2008 = vpop.f32.mrf.mxu0
      %v2009 = vadd.f32 %v1880, %v2008
      %2010 = vmatmul.bf16.gmra.mxu0 %v1333
      %v2011 = vpop.f32.mrf.mxu0
      %v2012 = vadd.f32 %v1883, %v2011
      %v2013 = vpop.f32.mrf.mxu0
      %v2014 = vadd.f32 %v1885, %v2013
      %2015 = vmatmul.bf16.gmra.mxu0 %v1339
      %v2016 = vpop.f32.mrf.mxu0
      %v2017 = vadd.f32 %v1888, %v2016
      %v2018 = vpop.f32.mrf.mxu0
      %v2019 = vadd.f32 %v1890, %v2018
      %2020 = vmatmul.bf16.gmra.mxu0 %v1345
      %v2021 = vpop.f32.mrf.mxu0
      %v2022 = vadd.f32 %v1893, %v2021
      %v2023 = vpop.f32.mrf.mxu0
      %v2024 = vadd.f32 %v1895, %v2023
      %2025 = vmatmul.bf16.gmra.mxu0 %v1351
      %v2026 = vpop.f32.mrf.mxu0
      %v2027 = vadd.f32 %v1898, %v2026
      %v2028 = vpop.f32.mrf.mxu0
      %v2029 = vadd.f32 %v1900, %v2028
      %2030 = vmatmul.bf16.gmra.mxu0 %v1357
      %v2031 = vpop.f32.mrf.mxu0
      %v2032 = vadd.f32 %v1903, %v2031
      %v2033 = vpop.f32.mrf.mxu0
      %v2034 = vadd.f32 %v1905, %v2033
      %2035 = vmatmul.bf16.gmra.mxu0 %v1363
      %v2036 = vpop.f32.mrf.mxu0
      %v2037 = vadd.f32 %v1908, %v2036
      %v2038 = vpop.f32.mrf.mxu0
      %v2039 = vadd.f32 %v1910, %v2038
      %2040 = vmatmul.bf16.gmra.mxu0 %v1369
      %v2041 = vpop.f32.mrf.mxu0
      %v2042 = vadd.f32 %v1913, %v2041
      %v2043 = vpop.f32.mrf.mxu0
      %v2044 = vadd.f32 %v1915, %v2043
      %2045 = vmatmul.bf16.gmra.mxu0 %v1375
      %v2046 = vpop.f32.mrf.mxu0
      %v2047 = vadd.f32 %v1918, %v2046
      %v2048 = vpop.f32.mrf.mxu0
      %v2049 = vadd.f32 %v1920, %v2048
      %2050 = vmatmul.bf16.gmra.mxu0 %v1381
      %v2051 = vpop.f32.mrf.mxu0
      %v2052 = vadd.f32 %v1923, %v2051
      %v2053 = vpop.f32.mrf.mxu0
      %v2054 = vadd.f32 %v1925, %v2053
      %2055 = vmatmul.bf16.gmra.mxu0 %v1387
      %v2056 = vpop.f32.mrf.mxu0
      %v2057 = vadd.f32 %v1928, %v2056
      %v2058 = vpop.f32.mrf.mxu0
      %v2059 = vadd.f32 %v1930, %v2058
      %2060 = vmatmul.bf16.gmra.mxu0 %v1393
      %v2061 = vpop.f32.mrf.mxu0
      %v2062 = vadd.f32 %v1933, %v2061
      %v2063 = vpop.f32.mrf.mxu0
      %v2064 = vadd.f32 %v1935, %v2063
      %2065 = vmatmul.bf16.gmra.mxu0 %v1399
      %v2066 = vpop.f32.mrf.mxu0
      %v2067 = vadd.f32 %v1938, %v2066
      %v2068 = vpop.f32.mrf.mxu0
      %v2069 = vadd.f32 %v1940, %v2068
      %2070 = vmatmul.bf16.gmra.mxu0 %v1405
      %v2071 = vpop.f32.mrf.mxu0
      %v2072 = vadd.f32 %v1943, %v2071
      %v2073 = vpop.f32.mrf.mxu0
      %v2074 = vadd.f32 %v1945, %v2073
      %2075 = vmatmul.bf16.gmra.mxu0 %v1411
      %v2076 = vpop.f32.mrf.mxu0
      %v2077 = vadd.f32 %v1948, %v2076
      %v2078 = vpop.f32.mrf.mxu0
      %v2079 = vadd.f32 %v1950, %v2078
      %2080 = vmatmul.bf16.gmra.mxu0 %v1417
      %v2081 = vpop.f32.mrf.mxu0
      %v2082 = vadd.f32 %v1953, %v2081
      %v2083 = vpop.f32.mrf.mxu0
      %v2084 = vadd.f32 %v1955, %v2083
      %2085 = vmatmul.bf16.gmra.mxu0 %v1423
      %v2086 = vpop.f32.mrf.mxu0
      %v2087 = vadd.f32 %v1958, %v2086
      %v2088 = vpop.f32.mrf.mxu0
      %v2089 = vadd.f32 %v1960, %v2088
      %2090 = vmatmul.bf16.gmra.mxu0 %v1429
      %v2091 = vpop.f32.mrf.mxu0
      %v2092 = vadd.f32 %v1963, %v2091
      %v2093 = vpop.f32.mrf.mxu0
      %v2094 = vadd.f32 %v1965, %v2093
      %2095 = vmatmul.bf16.gmra.mxu0 %v1435
      %v2096 = vpop.f32.mrf.mxu0
      %v2097 = vadd.f32 %v1968, %v2096
      %v2098 = vpop.f32.mrf.mxu0
      %v2099 = vadd.f32 %v1970, %v2098
      %2100 = vmatmul.bf16.gmra.mxu0 %v1441
      %v2101 = vpop.f32.mrf.mxu0
      %v2102 = vadd.f32 %v1973, %v2101
      %v2103 = vpop.f32.mrf.mxu0
      %v2104 = vadd.f32 %v1975, %v2103
      %2105 = vmatmul.bf16.gmra.mxu0 %v1447
      %v2106 = vpop.f32.mrf.mxu0
      %v2107 = vadd.f32 %v1978, %v2106
      %v2108 = vpop.f32.mrf.mxu0
      %v2109 = vadd.f32 %v1980, %v2108
      %2110 = vmatmul.bf16.gmra.mxu0 %v1453
      %v2111 = vpop.f32.mrf.mxu0
      %v2112 = vadd.f32 %v1983, %v2111
      %v2113 = vpop.f32.mrf.mxu0
      %v2114 = vadd.f32 %v1985, %v2113
      %2115 = vdwg.mxu0
      %2116 = vmatpush.bf16.msra.mxu0 %v871
      %2117 = vmatpush.bf16.msra.mxu0 %v870
      %2118 = vmatpush.bf16.msra.mxu0 %v869
      %2119 = vmatpush.bf16.msra.mxu0 %v868
      %2120 = vmatpush.bf16.msra.mxu0 %v867
      %2121 = vmatpush.bf16.msra.mxu0 %v866
      %2122 = vmatpush.bf16.msra.mxu0 %v865
      %2123 = vmatpush.bf16.msra.mxu0 %v864
      %2124 = vmatmul.bf16.gmra.mxu0 %v1316
      %v2125 = vpop.f32.mrf.mxu0
      %v2126 = vadd.f32 %v1997, %v2125
      %v2127 = vpop.f32.mrf.mxu0
      %v2128 = vadd.f32 %v1999, %v2127
      %2129 = vmatmul.bf16.gmra.mxu0 %v1322
      %v2130 = vpop.f32.mrf.mxu0
      %v2131 = vadd.f32 %v2002, %v2130
      %v2132 = vpop.f32.mrf.mxu0
      %v2133 = vadd.f32 %v2004, %v2132
      %2134 = vmatmul.bf16.gmra.mxu0 %v1328
      %v2135 = vpop.f32.mrf.mxu0
      %v2136 = vadd.f32 %v2007, %v2135
      %v2137 = vpop.f32.mrf.mxu0
      %v2138 = vadd.f32 %v2009, %v2137
      %2139 = vmatmul.bf16.gmra.mxu0 %v1334
      %v2140 = vpop.f32.mrf.mxu0
      %v2141 = vadd.f32 %v2012, %v2140
      %v2142 = vpop.f32.mrf.mxu0
      %v2143 = vadd.f32 %v2014, %v2142
      %2144 = vmatmul.bf16.gmra.mxu0 %v1340
      %v2145 = vpop.f32.mrf.mxu0
      %v2146 = vadd.f32 %v2017, %v2145
      %v2147 = vpop.f32.mrf.mxu0
      %v2148 = vadd.f32 %v2019, %v2147
      %2149 = vmatmul.bf16.gmra.mxu0 %v1346
      %v2150 = vpop.f32.mrf.mxu0
      %v2151 = vadd.f32 %v2022, %v2150
      %v2152 = vpop.f32.mrf.mxu0
      %v2153 = vadd.f32 %v2024, %v2152
      %2154 = vmatmul.bf16.gmra.mxu0 %v1352
      %v2155 = vpop.f32.mrf.mxu0
      %v2156 = vadd.f32 %v2027, %v2155
      %v2157 = vpop.f32.mrf.mxu0
      %v2158 = vadd.f32 %v2029, %v2157
      %2159 = vmatmul.bf16.gmra.mxu0 %v1358
      %v2160 = vpop.f32.mrf.mxu0
      %v2161 = vadd.f32 %v2032, %v2160
      %v2162 = vpop.f32.mrf.mxu0
      %v2163 = vadd.f32 %v2034, %v2162
      %2164 = vmatmul.bf16.gmra.mxu0 %v1364
      %v2165 = vpop.f32.mrf.mxu0
      %v2166 = vadd.f32 %v2037, %v2165
      %v2167 = vpop.f32.mrf.mxu0
      %v2168 = vadd.f32 %v2039, %v2167
      %2169 = vmatmul.bf16.gmra.mxu0 %v1370
      %v2170 = vpop.f32.mrf.mxu0
      %v2171 = vadd.f32 %v2042, %v2170
      %v2172 = vpop.f32.mrf.mxu0
      %v2173 = vadd.f32 %v2044, %v2172
      %2174 = vmatmul.bf16.gmra.mxu0 %v1376
      %v2175 = vpop.f32.mrf.mxu0
      %v2176 = vadd.f32 %v2047, %v2175
      %v2177 = vpop.f32.mrf.mxu0
      %v2178 = vadd.f32 %v2049, %v2177
      %2179 = vmatmul.bf16.gmra.mxu0 %v1382
      %v2180 = vpop.f32.mrf.mxu0
      %v2181 = vadd.f32 %v2052, %v2180
      %v2182 = vpop.f32.mrf.mxu0
      %v2183 = vadd.f32 %v2054, %v2182
      %2184 = vmatmul.bf16.gmra.mxu0 %v1388
      %v2185 = vpop.f32.mrf.mxu0
      %v2186 = vadd.f32 %v2057, %v2185
      %v2187 = vpop.f32.mrf.mxu0
      %v2188 = vadd.f32 %v2059, %v2187
      %2189 = vmatmul.bf16.gmra.mxu0 %v1394
      %v2190 = vpop.f32.mrf.mxu0
      %v2191 = vadd.f32 %v2062, %v2190
      %v2192 = vpop.f32.mrf.mxu0
      %v2193 = vadd.f32 %v2064, %v2192
      %2194 = vmatmul.bf16.gmra.mxu0 %v1400
      %v2195 = vpop.f32.mrf.mxu0
      %v2196 = vadd.f32 %v2067, %v2195
      %v2197 = vpop.f32.mrf.mxu0
      %v2198 = vadd.f32 %v2069, %v2197
      %2199 = vmatmul.bf16.gmra.mxu0 %v1406
      %v2200 = vpop.f32.mrf.mxu0
      %v2201 = vadd.f32 %v2072, %v2200
      %v2202 = vpop.f32.mrf.mxu0
      %v2203 = vadd.f32 %v2074, %v2202
      %2204 = vmatmul.bf16.gmra.mxu0 %v1412
      %v2205 = vpop.f32.mrf.mxu0
      %v2206 = vadd.f32 %v2077, %v2205
      %v2207 = vpop.f32.mrf.mxu0
      %v2208 = vadd.f32 %v2079, %v2207
      %2209 = vmatmul.bf16.gmra.mxu0 %v1418
      %v2210 = vpop.f32.mrf.mxu0
      %v2211 = vadd.f32 %v2082, %v2210
      %v2212 = vpop.f32.mrf.mxu0
      %v2213 = vadd.f32 %v2084, %v2212
      %2214 = vmatmul.bf16.gmra.mxu0 %v1424
      %v2215 = vpop.f32.mrf.mxu0
      %v2216 = vadd.f32 %v2087, %v2215
      %v2217 = vpop.f32.mrf.mxu0
      %v2218 = vadd.f32 %v2089, %v2217
      %2219 = vmatmul.bf16.gmra.mxu0 %v1430
      %v2220 = vpop.f32.mrf.mxu0
      %v2221 = vadd.f32 %v2092, %v2220
      %v2222 = vpop.f32.mrf.mxu0
      %v2223 = vadd.f32 %v2094, %v2222
      %2224 = vmatmul.bf16.gmra.mxu0 %v1436
      %v2225 = vpop.f32.mrf.mxu0
      %v2226 = vadd.f32 %v2097, %v2225
      %v2227 = vpop.f32.mrf.mxu0
      %v2228 = vadd.f32 %v2099, %v2227
      %2229 = vmatmul.bf16.gmra.mxu0 %v1442
      %v2230 = vpop.f32.mrf.mxu0
      %v2231 = vadd.f32 %v2102, %v2230
      %v2232 = vpop.f32.mrf.mxu0
      %v2233 = vadd.f32 %v2104, %v2232
      %2234 = vmatmul.bf16.gmra.mxu0 %v1448
      %v2235 = vpop.f32.mrf.mxu0
      %v2236 = vadd.f32 %v2107, %v2235
      %v2237 = vpop.f32.mrf.mxu0
      %v2238 = vadd.f32 %v2109, %v2237
      %2239 = vmatmul.bf16.gmra.mxu0 %v1454
      %v2240 = vpop.f32.mrf.mxu0
      %v2241 = vadd.f32 %v2112, %v2240
      %v2242 = vpop.f32.mrf.mxu0
      %v2243 = vadd.f32 %v2114, %v2242
      %2244 = vdwg.mxu0
      %2245 = vmatpush.bf16.msra.mxu0 %v879
      %2246 = vmatpush.bf16.msra.mxu0 %v878
      %2247 = vmatpush.bf16.msra.mxu0 %v877
      %2248 = vmatpush.bf16.msra.mxu0 %v876
      %2249 = vmatpush.bf16.msra.mxu0 %v875
      %2250 = vmatpush.bf16.msra.mxu0 %v874
      %2251 = vmatpush.bf16.msra.mxu0 %v873
      %2252 = vmatpush.bf16.msra.mxu0 %v872
      %2253 = vmatmul.bf16.gmra.mxu0 %v1317
      %v2254 = vpop.f32.mrf.mxu0
      %v2255 = vadd.f32 %v2126, %v2254
      %v2256 = vpop.f32.mrf.mxu0
      %v2257 = vadd.f32 %v2128, %v2256
      %2258 = vmatmul.bf16.gmra.mxu0 %v1323
      %v2259 = vpop.f32.mrf.mxu0
      %v2260 = vadd.f32 %v2131, %v2259
      %v2261 = vpop.f32.mrf.mxu0
      %v2262 = vadd.f32 %v2133, %v2261
      %2263 = vmatmul.bf16.gmra.mxu0 %v1329
      %v2264 = vpop.f32.mrf.mxu0
      %v2265 = vadd.f32 %v2136, %v2264
      %v2266 = vpop.f32.mrf.mxu0
      %v2267 = vadd.f32 %v2138, %v2266
      %2268 = vmatmul.bf16.gmra.mxu0 %v1335
      %v2269 = vpop.f32.mrf.mxu0
      %v2270 = vadd.f32 %v2141, %v2269
      %v2271 = vpop.f32.mrf.mxu0
      %v2272 = vadd.f32 %v2143, %v2271
      %2273 = vmatmul.bf16.gmra.mxu0 %v1341
      %v2274 = vpop.f32.mrf.mxu0
      %v2275 = vadd.f32 %v2146, %v2274
      %v2276 = vpop.f32.mrf.mxu0
      %v2277 = vadd.f32 %v2148, %v2276
      %2278 = vmatmul.bf16.gmra.mxu0 %v1347
      %v2279 = vpop.f32.mrf.mxu0
      %v2280 = vadd.f32 %v2151, %v2279
      %v2281 = vpop.f32.mrf.mxu0
      %v2282 = vadd.f32 %v2153, %v2281
      %2283 = vmatmul.bf16.gmra.mxu0 %v1353
      %v2284 = vpop.f32.mrf.mxu0
      %v2285 = vadd.f32 %v2156, %v2284
      %v2286 = vpop.f32.mrf.mxu0
      %v2287 = vadd.f32 %v2158, %v2286
      %2288 = vmatmul.bf16.gmra.mxu0 %v1359
      %v2289 = vpop.f32.mrf.mxu0
      %v2290 = vadd.f32 %v2161, %v2289
      %v2291 = vpop.f32.mrf.mxu0
      %v2292 = vadd.f32 %v2163, %v2291
      %2293 = vmatmul.bf16.gmra.mxu0 %v1365
      %v2294 = vpop.f32.mrf.mxu0
      %v2295 = vadd.f32 %v2166, %v2294
      %v2296 = vpop.f32.mrf.mxu0
      %v2297 = vadd.f32 %v2168, %v2296
      %2298 = vmatmul.bf16.gmra.mxu0 %v1371
      %v2299 = vpop.f32.mrf.mxu0
      %v2300 = vadd.f32 %v2171, %v2299
      %v2301 = vpop.f32.mrf.mxu0
      %v2302 = vadd.f32 %v2173, %v2301
      %2303 = vmatmul.bf16.gmra.mxu0 %v1377
      %v2304 = vpop.f32.mrf.mxu0
      %v2305 = vadd.f32 %v2176, %v2304
      %v2306 = vpop.f32.mrf.mxu0
      %v2307 = vadd.f32 %v2178, %v2306
      %2308 = vmatmul.bf16.gmra.mxu0 %v1383
      %v2309 = vpop.f32.mrf.mxu0
      %v2310 = vadd.f32 %v2181, %v2309
      %v2311 = vpop.f32.mrf.mxu0
      %v2312 = vadd.f32 %v2183, %v2311
      %2313 = vmatmul.bf16.gmra.mxu0 %v1389
      %v2314 = vpop.f32.mrf.mxu0
      %v2315 = vadd.f32 %v2186, %v2314
      %v2316 = vpop.f32.mrf.mxu0
      %v2317 = vadd.f32 %v2188, %v2316
      %2318 = vmatmul.bf16.gmra.mxu0 %v1395
      %v2319 = vpop.f32.mrf.mxu0
      %v2320 = vadd.f32 %v2191, %v2319
      %v2321 = vpop.f32.mrf.mxu0
      %v2322 = vadd.f32 %v2193, %v2321
      %2323 = vmatmul.bf16.gmra.mxu0 %v1401
      %v2324 = vpop.f32.mrf.mxu0
      %v2325 = vadd.f32 %v2196, %v2324
      %v2326 = vpop.f32.mrf.mxu0
      %v2327 = vadd.f32 %v2198, %v2326
      %2328 = vmatmul.bf16.gmra.mxu0 %v1407
      %v2329 = vpop.f32.mrf.mxu0
      %v2330 = vadd.f32 %v2201, %v2329
      %v2331 = vpop.f32.mrf.mxu0
      %v2332 = vadd.f32 %v2203, %v2331
      %2333 = vmatmul.bf16.gmra.mxu0 %v1413
      %v2334 = vpop.f32.mrf.mxu0
      %v2335 = vadd.f32 %v2206, %v2334
      %v2336 = vpop.f32.mrf.mxu0
      %v2337 = vadd.f32 %v2208, %v2336
      %2338 = vmatmul.bf16.gmra.mxu0 %v1419
      %v2339 = vpop.f32.mrf.mxu0
      %v2340 = vadd.f32 %v2211, %v2339
      %v2341 = vpop.f32.mrf.mxu0
      %v2342 = vadd.f32 %v2213, %v2341
      %2343 = vmatmul.bf16.gmra.mxu0 %v1425
      %v2344 = vpop.f32.mrf.mxu0
      %v2345 = vadd.f32 %v2216, %v2344
      %v2346 = vpop.f32.mrf.mxu0
      %v2347 = vadd.f32 %v2218, %v2346
      %2348 = vmatmul.bf16.gmra.mxu0 %v1431
      %v2349 = vpop.f32.mrf.mxu0
      %v2350 = vadd.f32 %v2221, %v2349
      %v2351 = vpop.f32.mrf.mxu0
      %v2352 = vadd.f32 %v2223, %v2351
      %2353 = vmatmul.bf16.gmra.mxu0 %v1437
      %v2354 = vpop.f32.mrf.mxu0
      %v2355 = vadd.f32 %v2226, %v2354
      %v2356 = vpop.f32.mrf.mxu0
      %v2357 = vadd.f32 %v2228, %v2356
      %2358 = vmatmul.bf16.gmra.mxu0 %v1443
      %v2359 = vpop.f32.mrf.mxu0
      %v2360 = vadd.f32 %v2231, %v2359
      %v2361 = vpop.f32.mrf.mxu0
      %v2362 = vadd.f32 %v2233, %v2361
      %2363 = vmatmul.bf16.gmra.mxu0 %v1449
      %v2364 = vpop.f32.mrf.mxu0
      %v2365 = vadd.f32 %v2236, %v2364
      %v2366 = vpop.f32.mrf.mxu0
      %v2367 = vadd.f32 %v2238, %v2366
      %2368 = vmatmul.bf16.gmra.mxu0 %v1455
      %v2369 = vpop.f32.mrf.mxu0
      %v2370 = vadd.f32 %v2241, %v2369
      %v2371 = vpop.f32.mrf.mxu0
      %v2372 = vadd.f32 %v2243, %v2371
      %2373 = vdwg.mxu0
      %v2374 = vadd.f32 %v544, %v2255
      %v2375 = vadd.f32 %v545, %v2257
      %v2376 = vadd.f32 %v546, %v2260
      %v2377 = vadd.f32 %v547, %v2262
      %v2378 = vadd.f32 %v548, %v2265
      %v2379 = vadd.f32 %v549, %v2267
      %v2380 = vadd.f32 %v550, %v2270
      %v2381 = vadd.f32 %v551, %v2272
      %v2382 = vadd.f32 %v552, %v2275
      %v2383 = vadd.f32 %v553, %v2277
      %v2384 = vadd.f32 %v554, %v2280
      %v2385 = vadd.f32 %v555, %v2282
      %v2386 = vadd.f32 %v556, %v2285
      %v2387 = vadd.f32 %v557, %v2287
      %v2388 = vadd.f32 %v558, %v2290
      %v2389 = vadd.f32 %v559, %v2292
      %v2390 = vadd.f32 %v560, %v2295
      %v2391 = vadd.f32 %v561, %v2297
      %v2392 = vadd.f32 %v562, %v2300
      %v2393 = vadd.f32 %v563, %v2302
      %v2394 = vadd.f32 %v564, %v2305
      %v2395 = vadd.f32 %v565, %v2307
      %v2396 = vadd.f32 %v566, %v2310
      %v2397 = vadd.f32 %v567, %v2312
      %v2398 = vadd.f32 %v568, %v2315
      %v2399 = vadd.f32 %v569, %v2317
      %v2400 = vadd.f32 %v570, %v2320
      %v2401 = vadd.f32 %v571, %v2322
      %v2402 = vadd.f32 %v572, %v2325
      %v2403 = vadd.f32 %v573, %v2327
      %v2404 = vadd.f32 %v574, %v2330
      %v2405 = vadd.f32 %v575, %v2332
      %v2406 = vadd.f32 %v576, %v2335
      %v2407 = vadd.f32 %v577, %v2337
      %v2408 = vadd.f32 %v578, %v2340
      %v2409 = vadd.f32 %v579, %v2342
      %v2410 = vadd.f32 %v580, %v2345
      %v2411 = vadd.f32 %v581, %v2347
      %v2412 = vadd.f32 %v582, %v2350
      %v2413 = vadd.f32 %v583, %v2352
      %v2414 = vadd.f32 %v584, %v2355
      %v2415 = vadd.f32 %v585, %v2357
      %v2416 = vadd.f32 %v586, %v2360
      %v2417 = vadd.f32 %v587, %v2362
      %v2418 = vadd.f32 %v588, %v2365
      %v2419 = vadd.f32 %v589, %v2367
      %v2420 = vadd.f32 %v590, %v2370
      %v2421 = vadd.f32 %v591, %v2372
      %vm2422 = vcmask 130048
      %2423 = vst.msk [vmem:[%s483] sm:$0xff] %vm2422, %v2374
      %2424 = vst.msk [vmem:[%s483 + $0x8] sm:$0xff] %vm2422, %v2375
      %2425 = vst.msk [vmem:[%s483 + $0x10] sm:$0xff] %vm2422, %v2376
      %2426 = vst.msk [vmem:[%s483 + $0x18] sm:$0xff] %vm2422, %v2377
      %2427 = vst.msk [vmem:[%s483 + $0x20] sm:$0xff] %vm2422, %v2378
      %2428 = vst.msk [vmem:[%s483 + $0x28] sm:$0xff] %vm2422, %v2379
      %2429 = vst.msk [vmem:[%s483 + $0x30] sm:$0xff] %vm2422, %v2380
      %2430 = vst.msk [vmem:[%s483 + $0x38] sm:$0xff] %vm2422, %v2381
      %2431 = vst.msk [vmem:[%s483 + $0x40] sm:$0xff] %vm2422, %v2382
      %2432 = vst.msk [vmem:[%s483 + $0x48] sm:$0xff] %vm2422, %v2383
      %2433 = vst.msk [vmem:[%s483 + $0x50] sm:$0xff] %vm2422, %v2384
      %2434 = vst.msk [vmem:[%s483 + $0x58] sm:$0xff] %vm2422, %v2385
      %2435 = vst.msk [vmem:[%s483 + $0x60] sm:$0xff] %vm2422, %v2386
      %2436 = vst.msk [vmem:[%s483 + $0x68] sm:$0xff] %vm2422, %v2387
      %2437 = vst.msk [vmem:[%s483 + $0x70] sm:$0xff] %vm2422, %v2388
      %2438 = vst.msk [vmem:[%s483 + $0x78] sm:$0xff] %vm2422, %v2389
      %2439 = vst.msk [vmem:[%s483 + $0x80] sm:$0xff] %vm2422, %v2390
      %2440 = vst.msk [vmem:[%s483 + $0x88] sm:$0xff] %vm2422, %v2391
      %2441 = vst.msk [vmem:[%s483 + $0x90] sm:$0xff] %vm2422, %v2392
      %2442 = vst.msk [vmem:[%s483 + $0x98] sm:$0xff] %vm2422, %v2393
      %2443 = vst.msk [vmem:[%s483 + $0xa0] sm:$0xff] %vm2422, %v2394
      %2444 = vst.msk [vmem:[%s483 + $0xa8] sm:$0xff] %vm2422, %v2395
      %2445 = vst.msk [vmem:[%s483 + $0xb0] sm:$0xff] %vm2422, %v2396
      %2446 = vst.msk [vmem:[%s483 + $0xb8] sm:$0xff] %vm2422, %v2397
      %2447 = vst.msk [vmem:[%s483 + $0xc0] sm:$0xff] %vm2422, %v2398
      %2448 = vst.msk [vmem:[%s483 + $0xc8] sm:$0xff] %vm2422, %v2399
      %2449 = vst.msk [vmem:[%s483 + $0xd0] sm:$0xff] %vm2422, %v2400
      %2450 = vst.msk [vmem:[%s483 + $0xd8] sm:$0xff] %vm2422, %v2401
      %2451 = vst.msk [vmem:[%s483 + $0xe0] sm:$0xff] %vm2422, %v2402
      %2452 = vst.msk [vmem:[%s483 + $0xe8] sm:$0xff] %vm2422, %v2403
      %2453 = vst.msk [vmem:[%s483 + $0xf0] sm:$0xff] %vm2422, %v2404
      %2454 = vst.msk [vmem:[%s483 + $0xf8] sm:$0xff] %vm2422, %v2405
      %2455 = vst.msk [vmem:[%s483 + $0x100] sm:$0xff] %vm2422, %v2406
      %2456 = vst.msk [vmem:[%s483 + $0x108] sm:$0xff] %vm2422, %v2407
      %2457 = vst.msk [vmem:[%s483 + $0x110] sm:$0xff] %vm2422, %v2408
      %2458 = vst.msk [vmem:[%s483 + $0x118] sm:$0xff] %vm2422, %v2409
      %2459 = vst.msk [vmem:[%s483 + $0x120] sm:$0xff] %vm2422, %v2410
      %2460 = vst.msk [vmem:[%s483 + $0x128] sm:$0xff] %vm2422, %v2411
      %2461 = vst.msk [vmem:[%s483 + $0x130] sm:$0xff] %vm2422, %v2412
      %2462 = vst.msk [vmem:[%s483 + $0x138] sm:$0xff] %vm2422, %v2413
      %2463 = vst.msk [vmem:[%s483 + $0x140] sm:$0xff] %vm2422, %v2414
      %2464 = vst.msk [vmem:[%s483 + $0x148] sm:$0xff] %vm2422, %v2415
      %2465 = vst.msk [vmem:[%s483 + $0x150] sm:$0xff] %vm2422, %v2416
      %2466 = vst.msk [vmem:[%s483 + $0x158] sm:$0xff] %vm2422, %v2417
      %2467 = vst.msk [vmem:[%s483 + $0x160] sm:$0xff] %vm2422, %v2418
      %2468 = vst.msk [vmem:[%s483 + $0x168] sm:$0xff] %vm2422, %v2419
      %2469 = vst.msk [vmem:[%s483 + $0x170] sm:$0xff] %vm2422, %v2420
      %2470 = vst.msk [vmem:[%s483 + $0x178] sm:$0xff] %vm2422, %v2421
      // Predicated region
      $region57: #{cheb_conv.4} parent=51 // pred_check
        %p2471 = pneg %p491
      $region58: #{cheb_conv.4} parent=51 // pred_check_branch
        %2473 = sbr.rel (%p2471) target = $region60
      $region59: #{cheb_conv.4} parent=51 // pred_region
        %v2474 = vld [vmem:[%s483] sm:$0xff]
        %v2475 = vld [vmem:[%s483 + $0x8] sm:$0xff]
        %v2476 = vld [vmem:[%s483 + $0x10] sm:$0xff]
        %v2477 = vld [vmem:[%s483 + $0x18] sm:$0xff]
        %v2478 = vld [vmem:[%s483 + $0x20] sm:$0xff]
        %v2479 = vld [vmem:[%s483 + $0x28] sm:$0xff]
        %v2480 = vld [vmem:[%s483 + $0x30] sm:$0xff]
        %v2481 = vld [vmem:[%s483 + $0x38] sm:$0xff]
        %v2482 = vld [vmem:[%s483 + $0x40] sm:$0xff]
        %v2483 = vld [vmem:[%s483 + $0x48] sm:$0xff]
        %v2484 = vld [vmem:[%s483 + $0x50] sm:$0xff]
        %v2485 = vld [vmem:[%s483 + $0x58] sm:$0xff]
        %v2486 = vld [vmem:[%s483 + $0x60] sm:$0xff]
        %v2487 = vld [vmem:[%s483 + $0x68] sm:$0xff]
        %v2488 = vld [vmem:[%s483 + $0x70] sm:$0xff]
        %v2489 = vld [vmem:[%s483 + $0x78] sm:$0xff]
        %v2490 = vld [vmem:[%s483 + $0x80] sm:$0xff]
        %v2491 = vld [vmem:[%s483 + $0x88] sm:$0xff]
        %v2492 = vld [vmem:[%s483 + $0x90] sm:$0xff]
        %v2493 = vld [vmem:[%s483 + $0x98] sm:$0xff]
        %v2494 = vld [vmem:[%s483 + $0xa0] sm:$0xff]
        %v2495 = vld [vmem:[%s483 + $0xa8] sm:$0xff]
        %v2496 = vld [vmem:[%s483 + $0xb0] sm:$0xff]
        %v2497 = vld [vmem:[%s483 + $0xb8] sm:$0xff]
        %v2498 = vld [vmem:[%s483 + $0xc0] sm:$0xff]
        %v2499 = vld [vmem:[%s483 + $0xc8] sm:$0xff]
        %v2500 = vld [vmem:[%s483 + $0xd0] sm:$0xff]
        %v2501 = vld [vmem:[%s483 + $0xd8] sm:$0xff]
        %v2502 = vld [vmem:[%s483 + $0xe0] sm:$0xff]
        %v2503 = vld [vmem:[%s483 + $0xe8] sm:$0xff]
        %v2504 = vld [vmem:[%s483 + $0xf0] sm:$0xff]
        %v2505 = vld [vmem:[%s483 + $0xf8] sm:$0xff]
        %v2506 = vld [vmem:[%s483 + $0x100] sm:$0xff]
        %v2507 = vld [vmem:[%s483 + $0x108] sm:$0xff]
        %v2508 = vld [vmem:[%s483 + $0x110] sm:$0xff]
        %v2509 = vld [vmem:[%s483 + $0x118] sm:$0xff]
        %v2510 = vld [vmem:[%s483 + $0x120] sm:$0xff]
        %v2511 = vld [vmem:[%s483 + $0x128] sm:$0xff]
        %v2512 = vld [vmem:[%s483 + $0x130] sm:$0xff]
        %v2513 = vld [vmem:[%s483 + $0x138] sm:$0xff]
        %v2514 = vld [vmem:[%s483 + $0x140] sm:$0xff]
        %v2515 = vld [vmem:[%s483 + $0x148] sm:$0xff]
        %v2516 = vld [vmem:[%s483 + $0x150] sm:$0xff]
        %v2517 = vld [vmem:[%s483 + $0x158] sm:$0xff]
        %v2518 = vld [vmem:[%s483 + $0x160] sm:$0xff]
        %v2519 = vld [vmem:[%s483 + $0x168] sm:$0xff]
        %v2520 = vld [vmem:[%s483 + $0x170] sm:$0xff]
        %v2521 = vld [vmem:[%s483 + $0x178] sm:$0xff]
        %v2522 = vld [vmem:[%s471] sm:$0xff]
        %v2523 = vld [vmem:[%s471 + $0x8] sm:$0xff]
        %v2524 = vld [vmem:[%s471 + $0x10] sm:$0xff]
        %v2525 = vld [vmem:[%s471 + $0x18] sm:$0xff]
        %v2526 = vld [vmem:[%s471 + $0x20] sm:$0xff]
        %v2527 = vld [vmem:[%s471 + $0x28] sm:$0xff]
        %v2528 = vld [vmem:[%s471 + $0x30] sm:$0xff]
        %v2529 = vld [vmem:[%s471 + $0x38] sm:$0xff]
        %v2530 = vld [vmem:[%s471 + $0x40] sm:$0xff]
        %v2531 = vld [vmem:[%s471 + $0x48] sm:$0xff]
        %v2532 = vld [vmem:[%s471 + $0x50] sm:$0xff]
        %v2533 = vld [vmem:[%s471 + $0x58] sm:$0xff]
        %v2534 = vld [vmem:[%s471 + $0x60] sm:$0xff]
        %v2535 = vld [vmem:[%s471 + $0x68] sm:$0xff]
        %v2536 = vld [vmem:[%s471 + $0x70] sm:$0xff]
        %v2537 = vld [vmem:[%s471 + $0x78] sm:$0xff]
        %v2538 = vld [vmem:[%s471 + $0x80] sm:$0xff]
        %v2539 = vld [vmem:[%s471 + $0x88] sm:$0xff]
        %v2540 = vld [vmem:[%s471 + $0x90] sm:$0xff]
        %v2541 = vld [vmem:[%s471 + $0x98] sm:$0xff]
        %v2542 = vld [vmem:[%s471 + $0xa0] sm:$0xff]
        %v2543 = vld [vmem:[%s471 + $0xa8] sm:$0xff]
        %v2544 = vld [vmem:[%s471 + $0xb0] sm:$0xff]
        %v2545 = vld [vmem:[%s471 + $0xb8] sm:$0xff]
        %v2546 = vld [vmem:[%s471 + $0xc0] sm:$0xff]
        %v2547 = vld [vmem:[%s471 + $0xc8] sm:$0xff]
        %v2548 = vld [vmem:[%s471 + $0xd0] sm:$0xff]
        %v2549 = vld [vmem:[%s471 + $0xd8] sm:$0xff]
        %v2550 = vld [vmem:[%s471 + $0xe0] sm:$0xff]
        %v2551 = vld [vmem:[%s471 + $0xe8] sm:$0xff]
        %v2552 = vld [vmem:[%s471 + $0xf0] sm:$0xff]
        %v2553 = vld [vmem:[%s471 + $0xf8] sm:$0xff]
        %v2554 = vld [vmem:[%s471 + $0x100] sm:$0xff]
        %v2555 = vld [vmem:[%s471 + $0x108] sm:$0xff]
        %v2556 = vld [vmem:[%s471 + $0x110] sm:$0xff]
        %v2557 = vld [vmem:[%s471 + $0x118] sm:$0xff]
        %v2558 = vld [vmem:[%s471 + $0x120] sm:$0xff]
        %v2559 = vld [vmem:[%s471 + $0x128] sm:$0xff]
        %v2560 = vld [vmem:[%s471 + $0x130] sm:$0xff]
        %v2561 = vld [vmem:[%s471 + $0x138] sm:$0xff]
        %v2562 = vld [vmem:[%s471 + $0x140] sm:$0xff]
        %v2563 = vld [vmem:[%s471 + $0x148] sm:$0xff]
        %v2564 = vld [vmem:[%s471 + $0x150] sm:$0xff]
        %v2565 = vld [vmem:[%s471 + $0x158] sm:$0xff]
        %v2566 = vld [vmem:[%s471 + $0x160] sm:$0xff]
        %v2567 = vld [vmem:[%s471 + $0x168] sm:$0xff]
        %v2568 = vld [vmem:[%s471 + $0x170] sm:$0xff]
        %v2569 = vld [vmem:[%s471 + $0x178] sm:$0xff]
        %v2570 = vsub.f32 0.0, %v2474
        %v2571 = vsub.f32 0.0, %v2475
        %v2572 = vsub.f32 0.0, %v2476
        %v2573 = vsub.f32 0.0, %v2477
        %v2574 = vsub.f32 0.0, %v2478
        %v2575 = vsub.f32 0.0, %v2479
        %v2576 = vsub.f32 0.0, %v2480
        %v2577 = vsub.f32 0.0, %v2481
        %v2578 = vsub.f32 0.0, %v2482
        %v2579 = vsub.f32 0.0, %v2483
        %v2580 = vsub.f32 0.0, %v2484
        %v2581 = vsub.f32 0.0, %v2485
        %v2582 = vsub.f32 0.0, %v2486
        %v2583 = vsub.f32 0.0, %v2487
        %v2584 = vsub.f32 0.0, %v2488
        %v2585 = vsub.f32 0.0, %v2489
        %v2586 = vsub.f32 0.0, %v2490
        %v2587 = vsub.f32 0.0, %v2491
        %v2588 = vsub.f32 0.0, %v2492
        %v2589 = vsub.f32 0.0, %v2493
        %v2590 = vsub.f32 0.0, %v2494
        %v2591 = vsub.f32 0.0, %v2495
        %v2592 = vsub.f32 0.0, %v2496
        %v2593 = vsub.f32 0.0, %v2497
        %v2594 = vsub.f32 0.0, %v2498
        %v2595 = vsub.f32 0.0, %v2499
        %v2596 = vsub.f32 0.0, %v2500
        %v2597 = vsub.f32 0.0, %v2501
        %v2598 = vsub.f32 0.0, %v2502
        %v2599 = vsub.f32 0.0, %v2503
        %v2600 = vsub.f32 0.0, %v2504
        %v2601 = vsub.f32 0.0, %v2505
        %v2602 = vsub.f32 0.0, %v2506
        %v2603 = vsub.f32 0.0, %v2507
        %v2604 = vsub.f32 0.0, %v2508
        %v2605 = vsub.f32 0.0, %v2509
        %v2606 = vsub.f32 0.0, %v2510
        %v2607 = vsub.f32 0.0, %v2511
        %v2608 = vsub.f32 0.0, %v2512
        %v2609 = vsub.f32 0.0, %v2513
        %v2610 = vsub.f32 0.0, %v2514
        %v2611 = vsub.f32 0.0, %v2515
        %v2612 = vsub.f32 0.0, %v2516
        %v2613 = vsub.f32 0.0, %v2517
        %v2614 = vsub.f32 0.0, %v2518
        %v2615 = vsub.f32 0.0, %v2519
        %v2616 = vsub.f32 0.0, %v2520
        %v2617 = vsub.f32 0.0, %v2521
        %v2618 = vld [vmem:[%s459] sm:$0xff]
        %v2619 = vld [vmem:[%s459 + $0x8] sm:$0xff]
        %v2620 = vld [vmem:[%s459 + $0x10] sm:$0xff]
        %v2621 = vld [vmem:[%s459 + $0x18] sm:$0xff]
        %v2622 = vld [vmem:[%s459 + $0x20] sm:$0xff]
        %v2623 = vld [vmem:[%s459 + $0x28] sm:$0xff]
        %v2624 = vld [vmem:[%s459 + $0x30] sm:$0xff]
        %v2625 = vld [vmem:[%s459 + $0x38] sm:$0xff]
        %v2626 = vld [vmem:[%s459 + $0x40] sm:$0xff]
        %v2627 = vld [vmem:[%s459 + $0x48] sm:$0xff]
        %v2628 = vld [vmem:[%s459 + $0x50] sm:$0xff]
        %v2629 = vld [vmem:[%s459 + $0x58] sm:$0xff]
        %v2630 = vld [vmem:[%s459 + $0x60] sm:$0xff]
        %v2631 = vld [vmem:[%s459 + $0x68] sm:$0xff]
        %v2632 = vld [vmem:[%s459 + $0x70] sm:$0xff]
        %v2633 = vld [vmem:[%s459 + $0x78] sm:$0xff]
        %v2634 = vld [vmem:[%s459 + $0x80] sm:$0xff]
        %v2635 = vld [vmem:[%s459 + $0x88] sm:$0xff]
        %v2636 = vld [vmem:[%s459 + $0x90] sm:$0xff]
        %v2637 = vld [vmem:[%s459 + $0x98] sm:$0xff]
        %v2638 = vld [vmem:[%s459 + $0xa0] sm:$0xff]
        %v2639 = vld [vmem:[%s459 + $0xa8] sm:$0xff]
        %v2640 = vld [vmem:[%s459 + $0xb0] sm:$0xff]
        %v2641 = vld [vmem:[%s459 + $0xb8] sm:$0xff]
        %v2642 = vld [vmem:[%s459 + $0xc0] sm:$0xff]
        %v2643 = vld [vmem:[%s459 + $0xc8] sm:$0xff]
        %v2644 = vld [vmem:[%s459 + $0xd0] sm:$0xff]
        %v2645 = vld [vmem:[%s459 + $0xd8] sm:$0xff]
        %v2646 = vld [vmem:[%s459 + $0xe0] sm:$0xff]
        %v2647 = vld [vmem:[%s459 + $0xe8] sm:$0xff]
        %v2648 = vld [vmem:[%s459 + $0xf0] sm:$0xff]
        %v2649 = vld [vmem:[%s459 + $0xf8] sm:$0xff]
        %v2650 = vld [vmem:[%s459 + $0x100] sm:$0xff]
        %v2651 = vld [vmem:[%s459 + $0x108] sm:$0xff]
        %v2652 = vld [vmem:[%s459 + $0x110] sm:$0xff]
        %v2653 = vld [vmem:[%s459 + $0x118] sm:$0xff]
        %v2654 = vld [vmem:[%s459 + $0x120] sm:$0xff]
        %v2655 = vld [vmem:[%s459 + $0x128] sm:$0xff]
        %v2656 = vld [vmem:[%s459 + $0x130] sm:$0xff]
        %v2657 = vld [vmem:[%s459 + $0x138] sm:$0xff]
        %v2658 = vld [vmem:[%s459 + $0x140] sm:$0xff]
        %v2659 = vld [vmem:[%s459 + $0x148] sm:$0xff]
        %v2660 = vld [vmem:[%s459 + $0x150] sm:$0xff]
        %v2661 = vld [vmem:[%s459 + $0x158] sm:$0xff]
        %v2662 = vld [vmem:[%s459 + $0x160] sm:$0xff]
        %v2663 = vld [vmem:[%s459 + $0x168] sm:$0xff]
        %v2664 = vld [vmem:[%s459 + $0x170] sm:$0xff]
        %v2665 = vld [vmem:[%s459 + $0x178] sm:$0xff]
        %2667 = vset.pattern.permute.xlu0 0
        %2668 = vperm.xlu0 %2667, %v2522
        %v2669 = vpop.permute.xlu0 %2668
        %2672 = vset.pattern.permute.xlu0 0
        %2673 = vperm.xlu0 %2672, %v2523
        %v2674 = vpop.permute.xlu0 %2673
        %2677 = vset.pattern.permute.xlu0 0
        %2678 = vperm.xlu0 %2677, %v2524
        %v2679 = vpop.permute.xlu0 %2678
        %2682 = vset.pattern.permute.xlu0 0
        %2683 = vperm.xlu0 %2682, %v2525
        %v2684 = vpop.permute.xlu0 %2683
        %2687 = vset.pattern.permute.xlu0 0
        %2688 = vperm.xlu0 %2687, %v2526
        %v2689 = vpop.permute.xlu0 %2688
        %2692 = vset.pattern.permute.xlu0 0
        %2693 = vperm.xlu0 %2692, %v2527
        %v2694 = vpop.permute.xlu0 %2693
        %2697 = vset.pattern.permute.xlu0 0
        %2698 = vperm.xlu0 %2697, %v2528
        %v2699 = vpop.permute.xlu0 %2698
        %2702 = vset.pattern.permute.xlu0 0
        %2703 = vperm.xlu0 %2702, %v2529
        %v2704 = vpop.permute.xlu0 %2703
        %2707 = vset.pattern.permute.xlu0 0
        %2708 = vperm.xlu0 %2707, %v2530
        %v2709 = vpop.permute.xlu0 %2708
        %2712 = vset.pattern.permute.xlu0 0
        %2713 = vperm.xlu0 %2712, %v2531
        %v2714 = vpop.permute.xlu0 %2713
        %2717 = vset.pattern.permute.xlu0 0
        %2718 = vperm.xlu0 %2717, %v2532
        %v2719 = vpop.permute.xlu0 %2718
        %2722 = vset.pattern.permute.xlu0 0
        %2723 = vperm.xlu0 %2722, %v2533
        %v2724 = vpop.permute.xlu0 %2723
        %2727 = vset.pattern.permute.xlu0 0
        %2728 = vperm.xlu0 %2727, %v2534
        %v2729 = vpop.permute.xlu0 %2728
        %2732 = vset.pattern.permute.xlu0 0
        %2733 = vperm.xlu0 %2732, %v2535
        %v2734 = vpop.permute.xlu0 %2733
        %2737 = vset.pattern.permute.xlu0 0
        %2738 = vperm.xlu0 %2737, %v2536
        %v2739 = vpop.permute.xlu0 %2738
        %2742 = vset.pattern.permute.xlu0 0
        %2743 = vperm.xlu0 %2742, %v2537
        %v2744 = vpop.permute.xlu0 %2743
        %2747 = vset.pattern.permute.xlu0 0
        %2748 = vperm.xlu0 %2747, %v2538
        %v2749 = vpop.permute.xlu0 %2748
        %2752 = vset.pattern.permute.xlu0 0
        %2753 = vperm.xlu0 %2752, %v2539
        %v2754 = vpop.permute.xlu0 %2753
        %2757 = vset.pattern.permute.xlu0 0
        %2758 = vperm.xlu0 %2757, %v2540
        %v2759 = vpop.permute.xlu0 %2758
        %2762 = vset.pattern.permute.xlu0 0
        %2763 = vperm.xlu0 %2762, %v2541
        %v2764 = vpop.permute.xlu0 %2763
        %2767 = vset.pattern.permute.xlu0 0
        %2768 = vperm.xlu0 %2767, %v2542
        %v2769 = vpop.permute.xlu0 %2768
        %2772 = vset.pattern.permute.xlu0 0
        %2773 = vperm.xlu0 %2772, %v2543
        %v2774 = vpop.permute.xlu0 %2773
        %2777 = vset.pattern.permute.xlu0 0
        %2778 = vperm.xlu0 %2777, %v2544
        %v2779 = vpop.permute.xlu0 %2778
        %2782 = vset.pattern.permute.xlu0 0
        %2783 = vperm.xlu0 %2782, %v2545
        %v2784 = vpop.permute.xlu0 %2783
        %2787 = vset.pattern.permute.xlu0 0
        %2788 = vperm.xlu0 %2787, %v2546
        %v2789 = vpop.permute.xlu0 %2788
        %2792 = vset.pattern.permute.xlu0 0
        %2793 = vperm.xlu0 %2792, %v2547
        %v2794 = vpop.permute.xlu0 %2793
        %2797 = vset.pattern.permute.xlu0 0
        %2798 = vperm.xlu0 %2797, %v2548
        %v2799 = vpop.permute.xlu0 %2798
        %2802 = vset.pattern.permute.xlu0 0
        %2803 = vperm.xlu0 %2802, %v2549
        %v2804 = vpop.permute.xlu0 %2803
        %2807 = vset.pattern.permute.xlu0 0
        %2808 = vperm.xlu0 %2807, %v2550
        %v2809 = vpop.permute.xlu0 %2808
        %2812 = vset.pattern.permute.xlu0 0
        %2813 = vperm.xlu0 %2812, %v2551
        %v2814 = vpop.permute.xlu0 %2813
        %2817 = vset.pattern.permute.xlu0 0
        %2818 = vperm.xlu0 %2817, %v2552
        %v2819 = vpop.permute.xlu0 %2818
        %2822 = vset.pattern.permute.xlu0 0
        %2823 = vperm.xlu0 %2822, %v2553
        %v2824 = vpop.permute.xlu0 %2823
        %2827 = vset.pattern.permute.xlu0 0
        %2828 = vperm.xlu0 %2827, %v2554
        %v2829 = vpop.permute.xlu0 %2828
        %2832 = vset.pattern.permute.xlu0 0
        %2833 = vperm.xlu0 %2832, %v2555
        %v2834 = vpop.permute.xlu0 %2833
        %2837 = vset.pattern.permute.xlu0 0
        %2838 = vperm.xlu0 %2837, %v2556
        %v2839 = vpop.permute.xlu0 %2838
        %2842 = vset.pattern.permute.xlu0 0
        %2843 = vperm.xlu0 %2842, %v2557
        %v2844 = vpop.permute.xlu0 %2843
        %2847 = vset.pattern.permute.xlu0 0
        %2848 = vperm.xlu0 %2847, %v2558
        %v2849 = vpop.permute.xlu0 %2848
        %2852 = vset.pattern.permute.xlu0 0
        %2853 = vperm.xlu0 %2852, %v2559
        %v2854 = vpop.permute.xlu0 %2853
        %2857 = vset.pattern.permute.xlu0 0
        %2858 = vperm.xlu0 %2857, %v2560
        %v2859 = vpop.permute.xlu0 %2858
        %2862 = vset.pattern.permute.xlu0 0
        %2863 = vperm.xlu0 %2862, %v2561
        %v2864 = vpop.permute.xlu0 %2863
        %2867 = vset.pattern.permute.xlu0 0
        %2868 = vperm.xlu0 %2867, %v2562
        %v2869 = vpop.permute.xlu0 %2868
        %2872 = vset.pattern.permute.xlu0 0
        %2873 = vperm.xlu0 %2872, %v2563
        %v2874 = vpop.permute.xlu0 %2873
        %2877 = vset.pattern.permute.xlu0 0
        %2878 = vperm.xlu0 %2877, %v2564
        %v2879 = vpop.permute.xlu0 %2878
        %2882 = vset.pattern.permute.xlu0 0
        %2883 = vperm.xlu0 %2882, %v2565
        %v2884 = vpop.permute.xlu0 %2883
        %2887 = vset.pattern.permute.xlu0 0
        %2888 = vperm.xlu0 %2887, %v2566
        %v2889 = vpop.permute.xlu0 %2888
        %2892 = vset.pattern.permute.xlu0 0
        %2893 = vperm.xlu0 %2892, %v2567
        %v2894 = vpop.permute.xlu0 %2893
        %2897 = vset.pattern.permute.xlu0 0
        %2898 = vperm.xlu0 %2897, %v2568
        %v2899 = vpop.permute.xlu0 %2898
        %2902 = vset.pattern.permute.xlu0 0
        %2903 = vperm.xlu0 %2902, %v2569
        %v2904 = vpop.permute.xlu0 %2903
        %v2906 = vmul.f32 %v2669, %v2618
        %v2907 = vmul.f32 %v2674, %v2619
        %v2908 = vmul.f32 %v2679, %v2620
        %v2909 = vmul.f32 %v2684, %v2621
        %v2910 = vmul.f32 %v2689, %v2622
        %v2911 = vmul.f32 %v2694, %v2623
        %v2912 = vmul.f32 %v2699, %v2624
        %v2913 = vmul.f32 %v2704, %v2625
        %v2914 = vmul.f32 %v2709, %v2626
        %v2915 = vmul.f32 %v2714, %v2627
        %v2916 = vmul.f32 %v2719, %v2628
        %v2917 = vmul.f32 %v2724, %v2629
        %v2918 = vmul.f32 %v2729, %v2630
        %v2919 = vmul.f32 %v2734, %v2631
        %v2920 = vmul.f32 %v2739, %v2632
        %v2921 = vmul.f32 %v2744, %v2633
        %v2922 = vmul.f32 %v2749, %v2634
        %v2923 = vmul.f32 %v2754, %v2635
        %v2924 = vmul.f32 %v2759, %v2636
        %v2925 = vmul.f32 %v2764, %v2637
        %v2926 = vmul.f32 %v2769, %v2638
        %v2927 = vmul.f32 %v2774, %v2639
        %v2928 = vmul.f32 %v2779, %v2640
        %v2929 = vmul.f32 %v2784, %v2641
        %v2930 = vmul.f32 %v2789, %v2642
        %v2931 = vmul.f32 %v2794, %v2643
        %v2932 = vmul.f32 %v2799, %v2644
        %v2933 = vmul.f32 %v2804, %v2645
        %v2934 = vmul.f32 %v2809, %v2646
        %v2935 = vmul.f32 %v2814, %v2647
        %v2936 = vmul.f32 %v2819, %v2648
        %v2937 = vmul.f32 %v2824, %v2649
        %v2938 = vmul.f32 %v2829, %v2650
        %v2939 = vmul.f32 %v2834, %v2651
        %v2940 = vmul.f32 %v2839, %v2652
        %v2941 = vmul.f32 %v2844, %v2653
        %v2942 = vmul.f32 %v2849, %v2654
        %v2943 = vmul.f32 %v2854, %v2655
        %v2944 = vmul.f32 %v2859, %v2656
        %v2945 = vmul.f32 %v2864, %v2657
        %v2946 = vmul.f32 %v2869, %v2658
        %v2947 = vmul.f32 %v2874, %v2659
        %v2948 = vmul.f32 %v2879, %v2660
        %v2949 = vmul.f32 %v2884, %v2661
        %v2950 = vmul.f32 %v2889, %v2662
        %v2951 = vmul.f32 %v2894, %v2663
        %v2952 = vmul.f32 %v2899, %v2664
        %v2953 = vmul.f32 %v2904, %v2665
        %v2954 = vadd.f32 %v2570, %v2906
        %v2955 = vadd.f32 %v2571, %v2907
        %v2956 = vadd.f32 %v2572, %v2908
        %v2957 = vadd.f32 %v2573, %v2909
        %v2958 = vadd.f32 %v2574, %v2910
        %v2959 = vadd.f32 %v2575, %v2911
        %v2960 = vadd.f32 %v2576, %v2912
        %v2961 = vadd.f32 %v2577, %v2913
        %v2962 = vadd.f32 %v2578, %v2914
        %v2963 = vadd.f32 %v2579, %v2915
        %v2964 = vadd.f32 %v2580, %v2916
        %v2965 = vadd.f32 %v2581, %v2917
        %v2966 = vadd.f32 %v2582, %v2918
        %v2967 = vadd.f32 %v2583, %v2919
        %v2968 = vadd.f32 %v2584, %v2920
        %v2969 = vadd.f32 %v2585, %v2921
        %v2970 = vadd.f32 %v2586, %v2922
        %v2971 = vadd.f32 %v2587, %v2923
        %v2972 = vadd.f32 %v2588, %v2924
        %v2973 = vadd.f32 %v2589, %v2925
        %v2974 = vadd.f32 %v2590, %v2926
        %v2975 = vadd.f32 %v2591, %v2927
        %v2976 = vadd.f32 %v2592, %v2928
        %v2977 = vadd.f32 %v2593, %v2929
        %v2978 = vadd.f32 %v2594, %v2930
        %v2979 = vadd.f32 %v2595, %v2931
        %v2980 = vadd.f32 %v2596, %v2932
        %v2981 = vadd.f32 %v2597, %v2933
        %v2982 = vadd.f32 %v2598, %v2934
        %v2983 = vadd.f32 %v2599, %v2935
        %v2984 = vadd.f32 %v2600, %v2936
        %v2985 = vadd.f32 %v2601, %v2937
        %v2986 = vadd.f32 %v2602, %v2938
        %v2987 = vadd.f32 %v2603, %v2939
        %v2988 = vadd.f32 %v2604, %v2940
        %v2989 = vadd.f32 %v2605, %v2941
        %v2990 = vadd.f32 %v2606, %v2942
        %v2991 = vadd.f32 %v2607, %v2943
        %v2992 = vadd.f32 %v2608, %v2944
        %v2993 = vadd.f32 %v2609, %v2945
        %v2994 = vadd.f32 %v2610, %v2946
        %v2995 = vadd.f32 %v2611, %v2947
        %v2996 = vadd.f32 %v2612, %v2948
        %v2997 = vadd.f32 %v2613, %v2949
        %v2998 = vadd.f32 %v2614, %v2950
        %v2999 = vadd.f32 %v2615, %v2951
        %v3000 = vadd.f32 %v2616, %v2952
        %v3001 = vadd.f32 %v2617, %v2953
        %3002 = vst.msk [vmem:[%s483] sm:$0xff] %vm2422, %v2954
        %3003 = vst.msk [vmem:[%s483 + $0x8] sm:$0xff] %vm2422, %v2955
        %3004 = vst.msk [vmem:[%s483 + $0x10] sm:$0xff] %vm2422, %v2956
        %3005 = vst.msk [vmem:[%s483 + $0x18] sm:$0xff] %vm2422, %v2957
        %3006 = vst.msk [vmem:[%s483 + $0x20] sm:$0xff] %vm2422, %v2958
        %3007 = vst.msk [vmem:[%s483 + $0x28] sm:$0xff] %vm2422, %v2959
        %3008 = vst.msk [vmem:[%s483 + $0x30] sm:$0xff] %vm2422, %v2960
        %3009 = vst.msk [vmem:[%s483 + $0x38] sm:$0xff] %vm2422, %v2961
        %3010 = vst.msk [vmem:[%s483 + $0x40] sm:$0xff] %vm2422, %v2962
        %3011 = vst.msk [vmem:[%s483 + $0x48] sm:$0xff] %vm2422, %v2963
        %3012 = vst.msk [vmem:[%s483 + $0x50] sm:$0xff] %vm2422, %v2964
        %3013 = vst.msk [vmem:[%s483 + $0x58] sm:$0xff] %vm2422, %v2965
        %3014 = vst.msk [vmem:[%s483 + $0x60] sm:$0xff] %vm2422, %v2966
        %3015 = vst.msk [vmem:[%s483 + $0x68] sm:$0xff] %vm2422, %v2967
        %3016 = vst.msk [vmem:[%s483 + $0x70] sm:$0xff] %vm2422, %v2968
        %3017 = vst.msk [vmem:[%s483 + $0x78] sm:$0xff] %vm2422, %v2969
        %3018 = vst.msk [vmem:[%s483 + $0x80] sm:$0xff] %vm2422, %v2970
        %3019 = vst.msk [vmem:[%s483 + $0x88] sm:$0xff] %vm2422, %v2971
        %3020 = vst.msk [vmem:[%s483 + $0x90] sm:$0xff] %vm2422, %v2972
        %3021 = vst.msk [vmem:[%s483 + $0x98] sm:$0xff] %vm2422, %v2973
        %3022 = vst.msk [vmem:[%s483 + $0xa0] sm:$0xff] %vm2422, %v2974
        %3023 = vst.msk [vmem:[%s483 + $0xa8] sm:$0xff] %vm2422, %v2975
        %3024 = vst.msk [vmem:[%s483 + $0xb0] sm:$0xff] %vm2422, %v2976
        %3025 = vst.msk [vmem:[%s483 + $0xb8] sm:$0xff] %vm2422, %v2977
        %3026 = vst.msk [vmem:[%s483 + $0xc0] sm:$0xff] %vm2422, %v2978
        %3027 = vst.msk [vmem:[%s483 + $0xc8] sm:$0xff] %vm2422, %v2979
        %3028 = vst.msk [vmem:[%s483 + $0xd0] sm:$0xff] %vm2422, %v2980
        %3029 = vst.msk [vmem:[%s483 + $0xd8] sm:$0xff] %vm2422, %v2981
        %3030 = vst.msk [vmem:[%s483 + $0xe0] sm:$0xff] %vm2422, %v2982
        %3031 = vst.msk [vmem:[%s483 + $0xe8] sm:$0xff] %vm2422, %v2983
        %3032 = vst.msk [vmem:[%s483 + $0xf0] sm:$0xff] %vm2422, %v2984
        %3033 = vst.msk [vmem:[%s483 + $0xf8] sm:$0xff] %vm2422, %v2985
        %3034 = vst.msk [vmem:[%s483 + $0x100] sm:$0xff] %vm2422, %v2986
        %3035 = vst.msk [vmem:[%s483 + $0x108] sm:$0xff] %vm2422, %v2987
        %3036 = vst.msk [vmem:[%s483 + $0x110] sm:$0xff] %vm2422, %v2988
        %3037 = vst.msk [vmem:[%s483 + $0x118] sm:$0xff] %vm2422, %v2989
        %3038 = vst.msk [vmem:[%s483 + $0x120] sm:$0xff] %vm2422, %v2990
        %3039 = vst.msk [vmem:[%s483 + $0x128] sm:$0xff] %vm2422, %v2991
        %3040 = vst.msk [vmem:[%s483 + $0x130] sm:$0xff] %vm2422, %v2992
        %3041 = vst.msk [vmem:[%s483 + $0x138] sm:$0xff] %vm2422, %v2993
        %3042 = vst.msk [vmem:[%s483 + $0x140] sm:$0xff] %vm2422, %v2994
        %3043 = vst.msk [vmem:[%s483 + $0x148] sm:$0xff] %vm2422, %v2995
        %3044 = vst.msk [vmem:[%s483 + $0x150] sm:$0xff] %vm2422, %v2996
        %3045 = vst.msk [vmem:[%s483 + $0x158] sm:$0xff] %vm2422, %v2997
        %3046 = vst.msk [vmem:[%s483 + $0x160] sm:$0xff] %vm2422, %v2998
        %3047 = vst.msk [vmem:[%s483 + $0x168] sm:$0xff] %vm2422, %v2999
        %3048 = vst.msk [vmem:[%s483 + $0x170] sm:$0xff] %vm2422, %v3000
        %3049 = vst.msk [vmem:[%s483 + $0x178] sm:$0xff] %vm2422, %v3001
        %v3050 = vld [vmem:[%s477] sm:$0xff]
        %v3051 = vld [vmem:[%s477 + $0x8] sm:$0xff]
        %v3052 = vld [vmem:[%s477 + $0x10] sm:$0xff]
        %v3053 = vld [vmem:[%s477 + $0x18] sm:$0xff]
        %v3054 = vld [vmem:[%s477 + $0x20] sm:$0xff]
        %v3055 = vld [vmem:[%s477 + $0x28] sm:$0xff]
        %v3056 = vld [vmem:[%s477 + $0x30] sm:$0xff]
        %v3057 = vld [vmem:[%s477 + $0x38] sm:$0xff]
        %v3058 = vld [vmem:[%s477 + $0x40] sm:$0xff]
        %v3059 = vld [vmem:[%s477 + $0x48] sm:$0xff]
        %v3060 = vld [vmem:[%s477 + $0x50] sm:$0xff]
        %v3061 = vld [vmem:[%s477 + $0x58] sm:$0xff]
        %v3062 = vld [vmem:[%s477 + $0x60] sm:$0xff]
        %v3063 = vld [vmem:[%s477 + $0x68] sm:$0xff]
        %v3064 = vld [vmem:[%s477 + $0x70] sm:$0xff]
        %v3065 = vld [vmem:[%s477 + $0x78] sm:$0xff]
        %v3066 = vld [vmem:[%s477 + $0x80] sm:$0xff]
        %v3067 = vld [vmem:[%s477 + $0x88] sm:$0xff]
        %v3068 = vld [vmem:[%s477 + $0x90] sm:$0xff]
        %v3069 = vld [vmem:[%s477 + $0x98] sm:$0xff]
        %v3070 = vld [vmem:[%s477 + $0xa0] sm:$0xff]
        %v3071 = vld [vmem:[%s477 + $0xa8] sm:$0xff]
        %v3072 = vld [vmem:[%s477 + $0xb0] sm:$0xff]
        %v3073 = vld [vmem:[%s477 + $0xb8] sm:$0xff]
        %v3074 = vld [vmem:[%s477 + $0xc0] sm:$0xff]
        %v3075 = vld [vmem:[%s477 + $0xc8] sm:$0xff]
        %v3076 = vld [vmem:[%s477 + $0xd0] sm:$0xff]
        %v3077 = vld [vmem:[%s477 + $0xd8] sm:$0xff]
        %v3078 = vld [vmem:[%s477 + $0xe0] sm:$0xff]
        %v3079 = vld [vmem:[%s477 + $0xe8] sm:$0xff]
        %v3080 = vld [vmem:[%s477 + $0xf0] sm:$0xff]
        %v3081 = vld [vmem:[%s477 + $0xf8] sm:$0xff]
        %v3082 = vld [vmem:[%s477 + $0x100] sm:$0xff]
        %v3083 = vld [vmem:[%s477 + $0x108] sm:$0xff]
        %v3084 = vld [vmem:[%s477 + $0x110] sm:$0xff]
        %v3085 = vld [vmem:[%s477 + $0x118] sm:$0xff]
        %v3086 = vld [vmem:[%s477 + $0x120] sm:$0xff]
        %v3087 = vld [vmem:[%s477 + $0x128] sm:$0xff]
        %v3088 = vld [vmem:[%s477 + $0x130] sm:$0xff]
        %v3089 = vld [vmem:[%s477 + $0x138] sm:$0xff]
        %v3090 = vld [vmem:[%s477 + $0x140] sm:$0xff]
        %v3091 = vld [vmem:[%s477 + $0x148] sm:$0xff]
        %v3092 = vld [vmem:[%s477 + $0x150] sm:$0xff]
        %v3093 = vld [vmem:[%s477 + $0x158] sm:$0xff]
        %v3094 = vld [vmem:[%s477 + $0x160] sm:$0xff]
        %v3095 = vld [vmem:[%s477 + $0x168] sm:$0xff]
        %v3096 = vld [vmem:[%s477 + $0x170] sm:$0xff]
        %v3097 = vld [vmem:[%s477 + $0x178] sm:$0xff]
        %v3098 = vld [vmem:[%s5] sm:$0xff]
        %v3099 = vld [vmem:[%s5 + $0x8] sm:$0xff]
        %v3101 = vsel %vm2422, %v2954, 0
        %v3104 = vsel %vm2422, %v2955, 0
        %v3107 = vsel %vm2422, %v2956, 0
        %v3110 = vsel %vm2422, %v2957, 0
        %v3113 = vsel %vm2422, %v2958, 0
        %v3116 = vsel %vm2422, %v2959, 0
        %v3119 = vsel %vm2422, %v2960, 0
        %v3122 = vsel %vm2422, %v2961, 0
        %v3125 = vsel %vm2422, %v2962, 0
        %v3128 = vsel %vm2422, %v2963, 0
        %v3131 = vsel %vm2422, %v2964, 0
        %v3134 = vsel %vm2422, %v2965, 0
        %v3137 = vsel %vm2422, %v2966, 0
        %v3140 = vsel %vm2422, %v2967, 0
        %v3143 = vsel %vm2422, %v2968, 0
        %v3146 = vsel %vm2422, %v2969, 0
        %v3149 = vsel %vm2422, %v2970, 0
        %v3152 = vsel %vm2422, %v2971, 0
        %v3155 = vsel %vm2422, %v2972, 0
        %v3158 = vsel %vm2422, %v2973, 0
        %v3161 = vsel %vm2422, %v2974, 0
        %v3164 = vsel %vm2422, %v2975, 0
        %v3167 = vsel %vm2422, %v2976, 0
        %v3170 = vsel %vm2422, %v2977, 0
        %v3173 = vsel %vm2422, %v2978, 0
        %v3176 = vsel %vm2422, %v2979, 0
        %v3179 = vsel %vm2422, %v2980, 0
        %v3182 = vsel %vm2422, %v2981, 0
        %v3185 = vsel %vm2422, %v2982, 0
        %v3188 = vsel %vm2422, %v2983, 0
        %v3191 = vsel %vm2422, %v2984, 0
        %v3194 = vsel %vm2422, %v2985, 0
        %v3197 = vsel %vm2422, %v2986, 0
        %v3200 = vsel %vm2422, %v2987, 0
        %v3203 = vsel %vm2422, %v2988, 0
        %v3206 = vsel %vm2422, %v2989, 0
        %v3209 = vsel %vm2422, %v2990, 0
        %v3212 = vsel %vm2422, %v2991, 0
        %v3215 = vsel %vm2422, %v2992, 0
        %v3218 = vsel %vm2422, %v2993, 0
        %v3221 = vsel %vm2422, %v2994, 0
        %v3224 = vsel %vm2422, %v2995, 0
        %v3227 = vsel %vm2422, %v2996, 0
        %v3230 = vsel %vm2422, %v2997, 0
        %v3233 = vsel %vm2422, %v2998, 0
        %v3236 = vsel %vm2422, %v2999, 0
        %v3239 = vsel %vm2422, %v3000, 0
        %v3242 = vsel %vm2422, %v3001, 0
        %3244 = vmatpush.msra.mxu0 0.0
        %3245 = vmatpush.msra.mxu0 0.0
        %3246 = vmatpush.msra.mxu0 0.0
        %3247 = vmatpush.msra.mxu0 0.0
        %3248 = vmatpush.msra.mxu0 0.0
        %3249 = vmatpush.msra.mxu0 0.0
        %3250 = vmatpush.msra.mxu0 0.0
        %3251 = vmatpush.msra.mxu0 0.0
        %3252 = vmatpush.msra.mxu0 0.0
        %3253 = vmatpush.msra.mxu0 0.0
        %3254 = vmatpush.msra.mxu0 0.0
        %3255 = vmatpush.msra.mxu0 0.0
        %3256 = vmatpush.msra.mxu0 0.0
        %3257 = vmatpush.msra.mxu0 0.0
        %3258 = vmatpush.msra.mxu0 %v3099
        %3259 = vmatpush.msra.mxu0 %v3098
        %3260 = vmatmul.f32.gmra.mxu0 %v3101
        %v3261 = vpop.f32.mrf.mxu0
        %v3262 = vadd.f32 0.0, %v3261
        %3263 = vmatmul.f32.gmra.mxu0 %v3104
        %v3264 = vpop.f32.mrf.mxu0
        %v3265 = vadd.f32 0.0, %v3264
        %3266 = vmatmul.f32.gmra.mxu0 %v3107
        %v3267 = vpop.f32.mrf.mxu0
        %v3268 = vadd.f32 0.0, %v3267
        %3269 = vmatmul.f32.gmra.mxu0 %v3110
        %v3270 = vpop.f32.mrf.mxu0
        %v3271 = vadd.f32 0.0, %v3270
        %3272 = vmatmul.f32.gmra.mxu0 %v3113
        %v3273 = vpop.f32.mrf.mxu0
        %v3274 = vadd.f32 0.0, %v3273
        %3275 = vmatmul.f32.gmra.mxu0 %v3116
        %v3276 = vpop.f32.mrf.mxu0
        %v3277 = vadd.f32 0.0, %v3276
        %3278 = vmatmul.f32.gmra.mxu0 %v3119
        %v3279 = vpop.f32.mrf.mxu0
        %v3280 = vadd.f32 0.0, %v3279
        %3281 = vmatmul.f32.gmra.mxu0 %v3122
        %v3282 = vpop.f32.mrf.mxu0
        %v3283 = vadd.f32 0.0, %v3282
        %3284 = vmatmul.f32.gmra.mxu0 %v3125
        %v3285 = vpop.f32.mrf.mxu0
        %v3286 = vadd.f32 0.0, %v3285
        %3287 = vmatmul.f32.gmra.mxu0 %v3128
        %v3288 = vpop.f32.mrf.mxu0
        %v3289 = vadd.f32 0.0, %v3288
        %3290 = vmatmul.f32.gmra.mxu0 %v3131
        %v3291 = vpop.f32.mrf.mxu0
        %v3292 = vadd.f32 0.0, %v3291
        %3293 = vmatmul.f32.gmra.mxu0 %v3134
        %v3294 = vpop.f32.mrf.mxu0
        %v3295 = vadd.f32 0.0, %v3294
        %3296 = vmatmul.f32.gmra.mxu0 %v3137
        %v3297 = vpop.f32.mrf.mxu0
        %v3298 = vadd.f32 0.0, %v3297
        %3299 = vmatmul.f32.gmra.mxu0 %v3140
        %v3300 = vpop.f32.mrf.mxu0
        %v3301 = vadd.f32 0.0, %v3300
        %3302 = vmatmul.f32.gmra.mxu0 %v3143
        %v3303 = vpop.f32.mrf.mxu0
        %v3304 = vadd.f32 0.0, %v3303
        %3305 = vmatmul.f32.gmra.mxu0 %v3146
        %v3306 = vpop.f32.mrf.mxu0
        %v3307 = vadd.f32 0.0, %v3306
        %3308 = vmatmul.f32.gmra.mxu0 %v3149
        %v3309 = vpop.f32.mrf.mxu0
        %v3310 = vadd.f32 0.0, %v3309
        %3311 = vmatmul.f32.gmra.mxu0 %v3152
        %v3312 = vpop.f32.mrf.mxu0
        %v3313 = vadd.f32 0.0, %v3312
        %3314 = vmatmul.f32.gmra.mxu0 %v3155
        %v3315 = vpop.f32.mrf.mxu0
        %v3316 = vadd.f32 0.0, %v3315
        %3317 = vmatmul.f32.gmra.mxu0 %v3158
        %v3318 = vpop.f32.mrf.mxu0
        %v3319 = vadd.f32 0.0, %v3318
        %3320 = vmatmul.f32.gmra.mxu0 %v3161
        %v3321 = vpop.f32.mrf.mxu0
        %v3322 = vadd.f32 0.0, %v3321
        %3323 = vmatmul.f32.gmra.mxu0 %v3164
        %v3324 = vpop.f32.mrf.mxu0
        %v3325 = vadd.f32 0.0, %v3324
        %3326 = vmatmul.f32.gmra.mxu0 %v3167
        %v3327 = vpop.f32.mrf.mxu0
        %v3328 = vadd.f32 0.0, %v3327
        %3329 = vmatmul.f32.gmra.mxu0 %v3170
        %v3330 = vpop.f32.mrf.mxu0
        %v3331 = vadd.f32 0.0, %v3330
        %3332 = vmatmul.f32.gmra.mxu0 %v3173
        %v3333 = vpop.f32.mrf.mxu0
        %v3334 = vadd.f32 0.0, %v3333
        %3335 = vmatmul.f32.gmra.mxu0 %v3176
        %v3336 = vpop.f32.mrf.mxu0
        %v3337 = vadd.f32 0.0, %v3336
        %3338 = vmatmul.f32.gmra.mxu0 %v3179
        %v3339 = vpop.f32.mrf.mxu0
        %v3340 = vadd.f32 0.0, %v3339
        %3341 = vmatmul.f32.gmra.mxu0 %v3182
        %v3342 = vpop.f32.mrf.mxu0
        %v3343 = vadd.f32 0.0, %v3342
        %3344 = vmatmul.f32.gmra.mxu0 %v3185
        %v3345 = vpop.f32.mrf.mxu0
        %v3346 = vadd.f32 0.0, %v3345
        %3347 = vmatmul.f32.gmra.mxu0 %v3188
        %v3348 = vpop.f32.mrf.mxu0
        %v3349 = vadd.f32 0.0, %v3348
        %3350 = vmatmul.f32.gmra.mxu0 %v3191
        %v3351 = vpop.f32.mrf.mxu0
        %v3352 = vadd.f32 0.0, %v3351
        %3353 = vmatmul.f32.gmra.mxu0 %v3194
        %v3354 = vpop.f32.mrf.mxu0
        %v3355 = vadd.f32 0.0, %v3354
        %3356 = vmatmul.f32.gmra.mxu0 %v3197
        %v3357 = vpop.f32.mrf.mxu0
        %v3358 = vadd.f32 0.0, %v3357
        %3359 = vmatmul.f32.gmra.mxu0 %v3200
        %v3360 = vpop.f32.mrf.mxu0
        %v3361 = vadd.f32 0.0, %v3360
        %3362 = vmatmul.f32.gmra.mxu0 %v3203
        %v3363 = vpop.f32.mrf.mxu0
        %v3364 = vadd.f32 0.0, %v3363
        %3365 = vmatmul.f32.gmra.mxu0 %v3206
        %v3366 = vpop.f32.mrf.mxu0
        %v3367 = vadd.f32 0.0, %v3366
        %3368 = vmatmul.f32.gmra.mxu0 %v3209
        %v3369 = vpop.f32.mrf.mxu0
        %v3370 = vadd.f32 0.0, %v3369
        %3371 = vmatmul.f32.gmra.mxu0 %v3212
        %v3372 = vpop.f32.mrf.mxu0
        %v3373 = vadd.f32 0.0, %v3372
        %3374 = vmatmul.f32.gmra.mxu0 %v3215
        %v3375 = vpop.f32.mrf.mxu0
        %v3376 = vadd.f32 0.0, %v3375
        %3377 = vmatmul.f32.gmra.mxu0 %v3218
        %v3378 = vpop.f32.mrf.mxu0
        %v3379 = vadd.f32 0.0, %v3378
        %3380 = vmatmul.f32.gmra.mxu0 %v3221
        %v3381 = vpop.f32.mrf.mxu0
        %v3382 = vadd.f32 0.0, %v3381
        %3383 = vmatmul.f32.gmra.mxu0 %v3224
        %v3384 = vpop.f32.mrf.mxu0
        %v3385 = vadd.f32 0.0, %v3384
        %3386 = vmatmul.f32.gmra.mxu0 %v3227
        %v3387 = vpop.f32.mrf.mxu0
        %v3388 = vadd.f32 0.0, %v3387
        %3389 = vmatmul.f32.gmra.mxu0 %v3230
        %v3390 = vpop.f32.mrf.mxu0
        %v3391 = vadd.f32 0.0, %v3390
        %3392 = vmatmul.f32.gmra.mxu0 %v3233
        %v3393 = vpop.f32.mrf.mxu0
        %v3394 = vadd.f32 0.0, %v3393
        %3395 = vmatmul.f32.gmra.mxu0 %v3236
        %v3396 = vpop.f32.mrf.mxu0
        %v3397 = vadd.f32 0.0, %v3396
        %3398 = vmatmul.f32.gmra.mxu0 %v3239
        %v3399 = vpop.f32.mrf.mxu0
        %v3400 = vadd.f32 0.0, %v3399
        %3401 = vmatmul.f32.gmra.mxu0 %v3242
        %v3402 = vpop.f32.mrf.mxu0
        %v3403 = vadd.f32 0.0, %v3402
        %3404 = vdwg.mxu0
        %v3405 = vadd.f32 %v3050, %v3262
        %v3406 = vadd.f32 %v3051, %v3265
        %v3407 = vadd.f32 %v3052, %v3268
        %v3408 = vadd.f32 %v3053, %v3271
        %v3409 = vadd.f32 %v3054, %v3274
        %v3410 = vadd.f32 %v3055, %v3277
        %v3411 = vadd.f32 %v3056, %v3280
        %v3412 = vadd.f32 %v3057, %v3283
        %v3413 = vadd.f32 %v3058, %v3286
        %v3414 = vadd.f32 %v3059, %v3289
        %v3415 = vadd.f32 %v3060, %v3292
        %v3416 = vadd.f32 %v3061, %v3295
        %v3417 = vadd.f32 %v3062, %v3298
        %v3418 = vadd.f32 %v3063, %v3301
        %v3419 = vadd.f32 %v3064, %v3304
        %v3420 = vadd.f32 %v3065, %v3307
        %v3421 = vadd.f32 %v3066, %v3310
        %v3422 = vadd.f32 %v3067, %v3313
        %v3423 = vadd.f32 %v3068, %v3316
        %v3424 = vadd.f32 %v3069, %v3319
        %v3425 = vadd.f32 %v3070, %v3322
        %v3426 = vadd.f32 %v3071, %v3325
        %v3427 = vadd.f32 %v3072, %v3328
        %v3428 = vadd.f32 %v3073, %v3331
        %v3429 = vadd.f32 %v3074, %v3334
        %v3430 = vadd.f32 %v3075, %v3337
        %v3431 = vadd.f32 %v3076, %v3340
        %v3432 = vadd.f32 %v3077, %v3343
        %v3433 = vadd.f32 %v3078, %v3346
        %v3434 = vadd.f32 %v3079, %v3349
        %v3435 = vadd.f32 %v3080, %v3352
        %v3436 = vadd.f32 %v3081, %v3355
        %v3437 = vadd.f32 %v3082, %v3358
        %v3438 = vadd.f32 %v3083, %v3361
        %v3439 = vadd.f32 %v3084, %v3364
        %v3440 = vadd.f32 %v3085, %v3367
        %v3441 = vadd.f32 %v3086, %v3370
        %v3442 = vadd.f32 %v3087, %v3373
        %v3443 = vadd.f32 %v3088, %v3376
        %v3444 = vadd.f32 %v3089, %v3379
        %v3445 = vadd.f32 %v3090, %v3382
        %v3446 = vadd.f32 %v3091, %v3385
        %v3447 = vadd.f32 %v3092, %v3388
        %v3448 = vadd.f32 %v3093, %v3391
        %v3449 = vadd.f32 %v3094, %v3394
        %v3450 = vadd.f32 %v3095, %v3397
        %v3451 = vadd.f32 %v3096, %v3400
        %v3452 = vadd.f32 %v3097, %v3403
        %3453 = vst [vmem:[%s489] sm:$0xff] %v3405
        %3454 = vst [vmem:[%s489 + $0x8] sm:$0xff] %v3406
        %3455 = vst [vmem:[%s489 + $0x10] sm:$0xff] %v3407
        %3456 = vst [vmem:[%s489 + $0x18] sm:$0xff] %v3408
        %3457 = vst [vmem:[%s489 + $0x20] sm:$0xff] %v3409
        %3458 = vst [vmem:[%s489 + $0x28] sm:$0xff] %v3410
        %3459 = vst [vmem:[%s489 + $0x30] sm:$0xff] %v3411
        %3460 = vst [vmem:[%s489 + $0x38] sm:$0xff] %v3412
        %3461 = vst [vmem:[%s489 + $0x40] sm:$0xff] %v3413
        %3462 = vst [vmem:[%s489 + $0x48] sm:$0xff] %v3414
        %3463 = vst [vmem:[%s489 + $0x50] sm:$0xff] %v3415
        %3464 = vst [vmem:[%s489 + $0x58] sm:$0xff] %v3416
        %3465 = vst [vmem:[%s489 + $0x60] sm:$0xff] %v3417
        %3466 = vst [vmem:[%s489 + $0x68] sm:$0xff] %v3418
        %3467 = vst [vmem:[%s489 + $0x70] sm:$0xff] %v3419
        %3468 = vst [vmem:[%s489 + $0x78] sm:$0xff] %v3420
        %3469 = vst [vmem:[%s489 + $0x80] sm:$0xff] %v3421
        %3470 = vst [vmem:[%s489 + $0x88] sm:$0xff] %v3422
        %3471 = vst [vmem:[%s489 + $0x90] sm:$0xff] %v3423
        %3472 = vst [vmem:[%s489 + $0x98] sm:$0xff] %v3424
        %3473 = vst [vmem:[%s489 + $0xa0] sm:$0xff] %v3425
        %3474 = vst [vmem:[%s489 + $0xa8] sm:$0xff] %v3426
        %3475 = vst [vmem:[%s489 + $0xb0] sm:$0xff] %v3427
        %3476 = vst [vmem:[%s489 + $0xb8] sm:$0xff] %v3428
        %3477 = vst [vmem:[%s489 + $0xc0] sm:$0xff] %v3429
        %3478 = vst [vmem:[%s489 + $0xc8] sm:$0xff] %v3430
        %3479 = vst [vmem:[%s489 + $0xd0] sm:$0xff] %v3431
        %3480 = vst [vmem:[%s489 + $0xd8] sm:$0xff] %v3432
        %3481 = vst [vmem:[%s489 + $0xe0] sm:$0xff] %v3433
        %3482 = vst [vmem:[%s489 + $0xe8] sm:$0xff] %v3434
        %3483 = vst [vmem:[%s489 + $0xf0] sm:$0xff] %v3435
        %3484 = vst [vmem:[%s489 + $0xf8] sm:$0xff] %v3436
        %3485 = vst [vmem:[%s489 + $0x100] sm:$0xff] %v3437
        %3486 = vst [vmem:[%s489 + $0x108] sm:$0xff] %v3438
        %3487 = vst [vmem:[%s489 + $0x110] sm:$0xff] %v3439
        %3488 = vst [vmem:[%s489 + $0x118] sm:$0xff] %v3440
        %3489 = vst [vmem:[%s489 + $0x120] sm:$0xff] %v3441
        %3490 = vst [vmem:[%s489 + $0x128] sm:$0xff] %v3442
        %3491 = vst [vmem:[%s489 + $0x130] sm:$0xff] %v3443
        %3492 = vst [vmem:[%s489 + $0x138] sm:$0xff] %v3444
        %3493 = vst [vmem:[%s489 + $0x140] sm:$0xff] %v3445
        %3494 = vst [vmem:[%s489 + $0x148] sm:$0xff] %v3446
        %3495 = vst [vmem:[%s489 + $0x150] sm:$0xff] %v3447
        %3496 = vst [vmem:[%s489 + $0x158] sm:$0xff] %v3448
        %3497 = vst [vmem:[%s489 + $0x160] sm:$0xff] %v3449
        %3498 = vst [vmem:[%s489 + $0x168] sm:$0xff] %v3450
        %3499 = vst [vmem:[%s489 + $0x170] sm:$0xff] %v3451
        %3500 = vst [vmem:[%s489 + $0x178] sm:$0xff] %v3452
      $region60: #{cheb_conv.4} parent=51 // pred_fallthru
        _
      %s3501 = smul.u32 48, %s25
      %p3502 = scmp.lt.s32.totalorder %s3501, 95
      %s3503 = scalar_select %p3502, %s3501, 95
      %s3504 = smul.addr %s3503, 8
      %s3505 = scalar_lea.vmem %s8, %s3504
      %s3506 = smul.u32 48, %s25
      %p3507 = scmp.lt.s32.totalorder %s3506, 95
      %s3508 = scalar_select %p3507, %s3506, 95
      %s3509 = smul.addr %s3508, 8
      %s3510 = scalar_lea.vmem %s9, %s3509
      // Predicated region
      $region61: #{cheb_conv.4} parent=51 // pred_check
        %p3511 = pneg %p251
      $region62: #{cheb_conv.4} parent=51 // pred_check_branch
        %3513 = sbr.rel (%p3511) target = $region64
      $region63: #{cheb_conv.4} parent=51 // pred_region
        %s3514 = smul.u32 48, %s25
      $region64: #{cheb_conv.4} parent=51 // pred_fallthru
        _
      // Predicated region
      $region65: #{cheb_conv.4} parent=51 // pred_check
        %p3515 = pneg %p277
      $region66: #{cheb_conv.4} parent=51 // pred_check_branch
        %3517 = sbr.rel (%p3515) target = $region68
      $region67: #{cheb_conv.4} parent=51 // pred_region
        %s3518 = smul.u32 48, %s25
      $region68: #{cheb_conv.4} parent=51 // pred_fallthru
        _
    $region52: #{cheb_conv.4} parent=5 // pred_fallthru
      _
    %p3519 = scmp.le.s32.totalorder 2, %s16
    // Predicated region
    $region69: #{cheb_conv.4} parent=5 // pred_check
      %p3520 = pneg %p3519
    $region70: #{cheb_conv.4} parent=5 // pred_check_branch
      %3522 = sbr.rel (%p3520) target = $region72
    $region71: #{cheb_conv.4} parent=5 // pred_region
      %s3523 = ssub.s32 %s16, 2
      // Predicated region
      $region73: #{cheb_conv.4} parent=71 // pred_check
        %p3524 = pneg %p257
      $region74: #{cheb_conv.4} parent=71 // pred_check_branch
        %3526 = sbr.rel (%p3524) target = $region76
      $region75: #{cheb_conv.4} parent=71 // pred_region
        %s3527 = smul.u32 48, %s27
        %p3528 = scmp.lt.s32.totalorder %s3527, 95
        %s3529 = scalar_select %p3528, %s3527, 95
        %s3530 = smul.addr %s3529, 8
        %s3531 = scalar_lea.vmem %s8, %s3530
      $region76: #{cheb_conv.4} parent=71 // pred_fallthru
        _
      // Predicated region
      $region77: #{cheb_conv.4} parent=71 // pred_check
        %p3532 = pneg %p283
      $region78: #{cheb_conv.4} parent=71 // pred_check_branch
        %3534 = sbr.rel (%p3532) target = $region80
      $region79: #{cheb_conv.4} parent=71 // pred_region
        %s3535 = smul.u32 48, %s27
        %p3536 = scmp.lt.s32.totalorder %s3535, 95
        %s3537 = scalar_select %p3536, %s3535, 95
        %s3538 = smul.addr %s3537, 8
        %s3539 = scalar_lea.vmem %s9, %s3538
      $region80: #{cheb_conv.4} parent=71 // pred_fallthru
        _
    $region72: #{cheb_conv.4} parent=5 // pred_fallthru
      _
  $region6: #{cheb_conv.4} parent=0 // loop_footer
    %s20 = sadd.s32 1, %s16
  $region7: #{cheb_conv.4} parent=0 // loop_footer_branch
    %15 = sbr.rel target = $region3
  $region8: #{cheb_conv.4} parent=0 // loop_exit
    _

// kernel: cheb_conv.5
$region0: #{cheb_conv.5}
  #allocation0 [shape = 'u32[]', space=smem, size = 0x4, offset = 0x4, fixed_abs, tag = 'smem constant byte address 0x4 - core index']
  #allocation1 [shape = 'u32[72,128]{1,0:T(1,128)}', space=vmem, size = 0x9000, scoped, tag = 'internal scratch']
  %s0 = inlined_call_operand.vmem [shape: bf16[768,768], index: 0, kind: input, shape index: {}]
  %s1 = inlined_call_operand.vmem [shape: f32[768,16], index: 1, kind: input, shape index: {}, may-alias: {1,2}]
  %s2 = inlined_call_operand.vmem [shape: f32[768,16], index: 2, kind: input, shape index: {}, may-alias: {1,2}]
  %s3 = inlined_call_operand.vmem [shape: f32[768,16], index: 3, kind: input, shape index: {}]
  %s4 = inlined_call_operand.vmem [shape: f32[768,1], index: 4, kind: input, shape index: {}]
  %s5 = inlined_call_operand.vmem [shape: f32[16,128], index: 5, kind: input, shape index: {}]
  %s6 = inlined_call_operand.vmem [shape: f32[1,128], index: 6, kind: input, shape index: {}]
  %s7 = inlined_call_operand.vmem [shape: f32[768,128], index: 7, kind: input, shape index: {}, may-alias: {7,9}]
  %s8 = inlined_call_operand.hbm [shape: f32[768,16], index: 8, kind: output, shape index: {0}]
  %s9 = inlined_call_operand.vmem [shape: f32[768,128], index: 9, kind: output, shape index: {1}, may-alias: {7,9}]
  %10 = xla_tuple %s8, %s9
  %s11 = sld [smem:[#allocation0]]
  $region81: #{cheb_conv.5} parent=0
    _
  %s13 = ssub.s32 1, %s11
  %s14 = scalar_select 0, %s13, %s11
  $region1: #{cheb_conv.5} parent=0
    #allocation2 [shape = 'u8[393216]{0}', space=vmem, size = 0x60000, scoped, tag = 'output window, operand 0']
    #allocation3 [shape = 's32[2]{0}', space=sflag, size = 0x8, scoped, tag = 'scoped memory for cheb_conv.5']
    %15 = vsyncpa [#allocation3], 0
    %s16 = scalar_lea.sflag [#allocation3], 1
    %17 = vsyncpa %s16, 0
    loop: start=0, step=1, limit=4
    $region2: #{cheb_conv.5} parent=1 // loop_pre_header
      _
    $region3: #{cheb_conv.5} parent=1 // loop_header
      %s19 = sphi 0, %s23
      %p20 = scmp.ge.s32.totalorder %s19, 4
      %s26 = sphi 0, %s38
      %s27 = sphi 0, %s34
      %s28 = sphi 0, %s26
      %s29 = sphi 0, %s27
      %s30 = sphi 0, %s28
      %s31 = sphi 0, %s29
      %s43 = sphi 0, %s45
      %s46 = sphi 0, %s43
      %s47 = sphi 0, %s46
      %s63 = sphi 0, %s47
      %s69 = sphi 0, %s71
      %s72 = sphi 0, %s69
      %s73 = sphi 0, %s72
      %s89 = sphi 0, %s73
      %s95 = sphi 0, %s97
      %s98 = sphi 0, %s95
      %s99 = sphi 0, %s98
      %s115 = sphi 0, %s99
      %s121 = sphi 0, %s123
      %s124 = sphi 0, %s121
      %s125 = sphi 0, %s124
      %s141 = sphi 0, %s125
      %s147 = sphi 0, %s149
      %s150 = sphi 0, %s147
      %s151 = sphi 0, %s150
      %s167 = sphi 0, %s151
      %s171 = sphi 0, %s171
      %s173 = sphi 0, %s171
      %s174 = sphi 0, %s173
      %s188 = sphi 0, %s174
      %s192 = sphi 0, %s192
      %s194 = sphi 0, %s192
      %s195 = sphi 0, %s194
      %s209 = sphi 0, %s195
      %s215 = sphi 0, %s217
      %s218 = sphi 0, %s215
      %s219 = sphi 0, %s218
      %s235 = sphi 0, %s219
      %s241 = sphi 0, %s243
      %s244 = sphi 0, %s241
      %s245 = sphi 0, %s244
      %s261 = sphi 0, %s245
      %s267 = sphi 0, %s269
      %s270 = sphi 0, %s267
      %s271 = sphi 0, %s270
      %s287 = sphi 0, %s271
    $region4: #{cheb_conv.5} parent=1 // loop_header_branch
      %22 = sbr.rel (%p20) target = $region8
    $region5: #{cheb_conv.5} parent=1 // loop_body
      %s24 = ssub.s32 %s19, 1
      %s25 = ssub.s32 %s19, 2
      %s32 = sadd.s32 1, %s27
      %p33 = scmp.ge.s32.totalorder %s32, 1
      %s34 = scalar_select %p33, 0, %s32
      %s35 = sadd.s32 1, %s26
      %s36 = scalar_select %p33, %s35, %s26
      %p37 = scmp.ge.s32.totalorder %s36, 2
      %s38 = scalar_select %p37, 0, %s36
      %s39 = ssub.s32 %s26, %s38
      %s40 = ssub.s32 %s27, %s34
      %s41 = sor.u32 %s39, %s40
      %p42 = scmp.eq.s32.totalorder %s41, 0
      %s44 = sadd.s32 %s43, 1
      %s45 = scalar_select %p42, %s43, %s44
      %p48 = pneg %p42
      %p49 = scmp.eq.s32.totalorder %s19, 1
      %p50 = por %p48, %p49
      %p51 = scmp.ne.s32.totalorder %s43, %s46
      %p52 = scmp.eq.s32.totalorder %s19, 0
      %p53 = por %p51, %p52
      %p54 = scmp.ne.s32.totalorder %s43, %s46
      %p55 = scmp.eq.s32.totalorder %s24, 1
      %p56 = por %p54, %p55
      %p57 = scmp.ne.s32.totalorder %s46, %s47
      %p58 = scmp.eq.s32.totalorder %s24, 0
      %p59 = por %p57, %p58
      %p60 = scmp.ne.s32.totalorder %s46, %s47
      %p61 = scmp.eq.s32.totalorder %s25, 1
      %p62 = por %p60, %p61
      %p64 = scmp.ne.s32.totalorder %s47, %s63
      %p65 = scmp.eq.s32.totalorder %s25, 0
      %p66 = por %p64, %p65
      %s67 = ssub.s32 %s27, %s34
      %p68 = scmp.eq.s32.totalorder %s67, 0
      %s70 = sadd.s32 %s69, 1
      %s71 = scalar_select %p68, %s69, %s70
      %p74 = pneg %p68
      %p75 = scmp.eq.s32.totalorder %s19, 1
      %p76 = por %p74, %p75
      %p77 = scmp.ne.s32.totalorder %s69, %s72
      %p78 = scmp.eq.s32.totalorder %s19, 0
      %p79 = por %p77, %p78
      %p80 = scmp.ne.s32.totalorder %s69, %s72
      %p81 = scmp.eq.s32.totalorder %s24, 1
      %p82 = por %p80, %p81
      %p83 = scmp.ne.s32.totalorder %s72, %s73
      %p84 = scmp.eq.s32.totalorder %s24, 0
      %p85 = por %p83, %p84
      %p86 = scmp.ne.s32.totalorder %s72, %s73
      %p87 = scmp.eq.s32.totalorder %s25, 1
      %p88 = por %p86, %p87
      %p90 = scmp.ne.s32.totalorder %s73, %s89
      %p91 = scmp.eq.s32.totalorder %s25, 0
      %p92 = por %p90, %p91
      %s93 = ssub.s32 %s26, %s38
      %p94 = scmp.eq.s32.totalorder %s93, 0
      %s96 = sadd.s32 %s95, 1
      %s97 = scalar_select %p94, %s95, %s96
      %p100 = pneg %p94
      %p101 = scmp.eq.s32.totalorder %s19, 1
      %p102 = por %p100, %p101
      %p103 = scmp.ne.s32.totalorder %s95, %s98
      %p104 = scmp.eq.s32.totalorder %s19, 0
      %p105 = por %p103, %p104
      %p106 = scmp.ne.s32.totalorder %s95, %s98
      %p107 = scmp.eq.s32.totalorder %s24, 1
      %p108 = por %p106, %p107
      %p109 = scmp.ne.s32.totalorder %s98, %s99
      %p110 = scmp.eq.s32.totalorder %s24, 0
      %p111 = por %p109, %p110
      %p112 = scmp.ne.s32.totalorder %s98, %s99
      %p113 = scmp.eq.s32.totalorder %s25, 1
      %p114 = por %p112, %p113
      %p116 = scmp.ne.s32.totalorder %s99, %s115
      %p117 = scmp.eq.s32.totalorder %s25, 0
      %p118 = por %p116, %p117
      %s119 = ssub.s32 %s26, %s38
      %p120 = scmp.eq.s32.totalorder %s119, 0
      %s122 = sadd.s32 %s121, 1
      %s123 = scalar_select %p120, %s121, %s122
      %p126 = pneg %p120
      %p127 = scmp.eq.s32.totalorder %s19, 1
      %p128 = por %p126, %p127
      %p129 = scmp.ne.s32.totalorder %s121, %s124
      %p130 = scmp.eq.s32.totalorder %s19, 0
      %p131 = por %p129, %p130
      %p132 = scmp.ne.s32.totalorder %s121, %s124
      %p133 = scmp.eq.s32.totalorder %s24, 1
      %p134 = por %p132, %p133
      %p135 = scmp.ne.s32.totalorder %s124, %s125
      %p136 = scmp.eq.s32.totalorder %s24, 0
      %p137 = por %p135, %p136
      %p138 = scmp.ne.s32.totalorder %s124, %s125
      %p139 = scmp.eq.s32.totalorder %s25, 1
      %p140 = por %p138, %p139
      %p142 = scmp.ne.s32.totalorder %s125, %s141
      %p143 = scmp.eq.s32.totalorder %s25, 0
      %p144 = por %p142, %p143
      %s145 = ssub.s32 %s26, %s38
      %p146 = scmp.eq.s32.totalorder %s145, 0
      %s148 = sadd.s32 %s147, 1
      %s149 = scalar_select %p146, %s147, %s148
      %p152 = pneg %p146
      %p153 = scmp.eq.s32.totalorder %s19, 1
      %p154 = por %p152, %p153
      %p155 = scmp.ne.s32.totalorder %s147, %s150
      %p156 = scmp.eq.s32.totalorder %s19, 0
      %p157 = por %p155, %p156
      %p158 = scmp.ne.s32.totalorder %s147, %s150
      %p159 = scmp.eq.s32.totalorder %s24, 1
      %p160 = por %p158, %p159
      %p161 = scmp.ne.s32.totalorder %s150, %s151
      %p162 = scmp.eq.s32.totalorder %s24, 0
      %p163 = por %p161, %p162
      %p164 = scmp.ne.s32.totalorder %s150, %s151
      %p165 = scmp.eq.s32.totalorder %s25, 1
      %p166 = por %p164, %p165
      %p168 = scmp.ne.s32.totalorder %s151, %s167
      %p169 = scmp.eq.s32.totalorder %s25, 0
      %p170 = por %p168, %p169
      %s172 = sadd.s32 %s171, 1
      %p175 = scmp.eq.s32.totalorder %s19, 1
      %p176 = scmp.ne.s32.totalorder %s171, %s173
      %p177 = scmp.eq.s32.totalorder %s19, 0
      %p178 = por %p176, %p177
      %p179 = scmp.ne.s32.totalorder %s171, %s173
      %p180 = scmp.eq.s32.totalorder %s24, 1
      %p181 = por %p179, %p180
      %p182 = scmp.ne.s32.totalorder %s173, %s174
      %p183 = scmp.eq.s32.totalorder %s24, 0
      %p184 = por %p182, %p183
      %p185 = scmp.ne.s32.totalorder %s173, %s174
      %p186 = scmp.eq.s32.totalorder %s25, 1
      %p187 = por %p185, %p186
      %p189 = scmp.ne.s32.totalorder %s174, %s188
      %p190 = scmp.eq.s32.totalorder %s25, 0
      %p191 = por %p189, %p190
      %s193 = sadd.s32 %s192, 1
      %p196 = scmp.eq.s32.totalorder %s19, 1
      %p197 = scmp.ne.s32.totalorder %s192, %s194
      %p198 = scmp.eq.s32.totalorder %s19, 0
      %p199 = por %p197, %p198
      %p200 = scmp.ne.s32.totalorder %s192, %s194
      %p201 = scmp.eq.s32.totalorder %s24, 1
      %p202 = por %p200, %p201
      %p203 = scmp.ne.s32.totalorder %s194, %s195
      %p204 = scmp.eq.s32.totalorder %s24, 0
      %p205 = por %p203, %p204
      %p206 = scmp.ne.s32.totalorder %s194, %s195
      %p207 = scmp.eq.s32.totalorder %s25, 1
      %p208 = por %p206, %p207
      %p210 = scmp.ne.s32.totalorder %s195, %s209
      %p211 = scmp.eq.s32.totalorder %s25, 0
      %p212 = por %p210, %p211
      %s213 = ssub.s32 %s26, %s38
      %p214 = scmp.eq.s32.totalorder %s213, 0
      %s216 = sadd.s32 %s215, 1
      %s217 = scalar_select %p214, %s215, %s216
      %p220 = pneg %p214
      %p221 = scmp.eq.s32.totalorder %s19, 1
      %p222 = por %p220, %p221
      %p223 = scmp.ne.s32.totalorder %s215, %s218
      %p224 = scmp.eq.s32.totalorder %s19, 0
      %p225 = por %p223, %p224
      %p226 = scmp.ne.s32.totalorder %s215, %s218
      %p227 = scmp.eq.s32.totalorder %s24, 1
      %p228 = por %p226, %p227
      %p229 = scmp.ne.s32.totalorder %s218, %s219
      %p230 = scmp.eq.s32.totalorder %s24, 0
      %p231 = por %p229, %p230
      %p232 = scmp.ne.s32.totalorder %s218, %s219
      %p233 = scmp.eq.s32.totalorder %s25, 1
      %p234 = por %p232, %p233
      %p236 = scmp.ne.s32.totalorder %s219, %s235
      %p237 = scmp.eq.s32.totalorder %s25, 0
      %p238 = por %p236, %p237
      %s239 = ssub.s32 %s26, %s38
      %p240 = scmp.eq.s32.totalorder %s239, 0
      %s242 = sadd.s32 %s241, 1
      %s243 = scalar_select %p240, %s241, %s242
      %p246 = pneg %p240
      %p247 = scmp.eq.s32.totalorder %s19, 1
      %p248 = por %p246, %p247
      %p249 = scmp.ne.s32.totalorder %s241, %s244
      %p250 = scmp.eq.s32.totalorder %s19, 0
      %p251 = por %p249, %p250
      %p252 = scmp.ne.s32.totalorder %s241, %s244
      %p253 = scmp.eq.s32.totalorder %s24, 1
      %p254 = por %p252, %p253
      %p255 = scmp.ne.s32.totalorder %s244, %s245
      %p256 = scmp.eq.s32.totalorder %s24, 0
      %p257 = por %p255, %p256
      %p258 = scmp.ne.s32.totalorder %s244, %s245
      %p259 = scmp.eq.s32.totalorder %s25, 1
      %p260 = por %p258, %p259
      %p262 = scmp.ne.s32.totalorder %s245, %s261
      %p263 = scmp.eq.s32.totalorder %s25, 0
      %p264 = por %p262, %p263
      %s265 = ssub.s32 %s26, %s38
      %p266 = scmp.eq.s32.totalorder %s265, 0
      %s268 = sadd.s32 %s267, 1
      %s269 = scalar_select %p266, %s267, %s268
      %p272 = pneg %p266
      %p273 = scmp.eq.s32.totalorder %s19, 1
      %p274 = por %p272, %p273
      %p275 = scmp.ne.s32.totalorder %s267, %s270
      %p276 = scmp.eq.s32.totalorder %s19, 0
      %p277 = por %p275, %p276
      %p278 = scmp.ne.s32.totalorder %s267, %s270
      %p279 = scmp.eq.s32.totalorder %s24, 1
      %p280 = por %p278, %p279
      %p281 = scmp.ne.s32.totalorder %s270, %s271
      %p282 = scmp.eq.s32.totalorder %s24, 0
      %p283 = por %p281, %p282
      %p284 = scmp.ne.s32.totalorder %s270, %s271
      %p285 = scmp.eq.s32.totalorder %s25, 1
      %p286 = por %p284, %p285
      %p288 = scmp.ne.s32.totalorder %s271, %s287
      %p289 = scmp.eq.s32.totalorder %s25, 0
      %p290 = por %p288, %p289
      %p291 = scmp.le.s32.totalorder 1, %s19
      %p292 = scmp.lt.s32.totalorder %s19, 3
      %p293 = pnand %p291, %p292
      %p294 = pneg %p293
      // Predicated region
      $region9: #{cheb_conv.5} parent=5 // pred_check
        _
      $region10: #{cheb_conv.5} parent=5 // pred_check_branch
        %296 = sbr.rel (%p293) target = $region12
      $region11: #{cheb_conv.5} parent=5 // pred_region
        %s297 = ssub.s32 %s19, 1
        // Predicated region
        $region13: #{cheb_conv.5} parent=11 // pred_check
          %p298 = pneg %p85
        $region14: #{cheb_conv.5} parent=11 // pred_check_branch
          %300 = sbr.rel (%p298) target = $region16
        $region15: #{cheb_conv.5} parent=11 // pred_region
          %s301 = smul.u32 96, %s29
          %p302 = scmp.lt.s32.totalorder %s301, 95
          %s303 = scalar_select %p302, %s301, 95
          %s304 = smul.addr %s303, 8
          %s305 = scalar_lea.vmem %s1, %s304
          %s306 = smul.u32 96, %s29
        $region16: #{cheb_conv.5} parent=11 // pred_fallthru
          _
        // Predicated region
        $region17: #{cheb_conv.5} parent=11 // pred_check
          %p307 = pneg %p184
        $region18: #{cheb_conv.5} parent=11 // pred_check_branch
          %309 = sbr.rel (%p307) target = $region20
        $region19: #{cheb_conv.5} parent=11 // pred_region
          _
        $region20: #{cheb_conv.5} parent=11 // pred_fallthru
          _
        // Predicated region
        $region21: #{cheb_conv.5} parent=11 // pred_check
          %p310 = pneg %p205
        $region22: #{cheb_conv.5} parent=11 // pred_check_branch
          %312 = sbr.rel (%p310) target = $region24
        $region23: #{cheb_conv.5} parent=11 // pred_region
          _
        $region24: #{cheb_conv.5} parent=11 // pred_fallthru
          _
      $region12: #{cheb_conv.5} parent=5 // pred_fallthru
        _
      %p313 = scmp.lt.s32.totalorder %s19, 2
      // Predicated region
      $region25: #{cheb_conv.5} parent=5 // pred_check
        %p314 = pneg %p313
      $region26: #{cheb_conv.5} parent=5 // pred_check_branch
        %316 = sbr.rel (%p314) target = $region28
      $region27: #{cheb_conv.5} parent=5 // pred_region
        // Predicated region
        $region29: #{cheb_conv.5} parent=27 // pred_check
          %p317 = pneg %p53
        $region30: #{cheb_conv.5} parent=27 // pred_check_branch
          %319 = sbr.rel (%p317) target = $region32
        $region31: #{cheb_conv.5} parent=27 // pred_region
          %s320 = smul.u32 48, %s26
          %s321 = smul.u32 6, %s27
          %p322 = scmp.lt.s32.totalorder %s320, 95
          %s323 = scalar_select %p322, %s320, 95
          %p324 = scmp.lt.s32.totalorder %s321, 5
          %s325 = scalar_select %p324, %s321, 5
          %s326 = smul.addr %s323, 6
          %s327 = sadd.s32 %s325, %s326
          %s328 = smul.addr %s327, 4
          %s329 = scalar_lea.vmem %s0, %s328
          %s330 = smul.u32 48, %s26
          %s331 = smul.u32 6, %s27
        $region32: #{cheb_conv.5} parent=27 // pred_fallthru
          _
        // Predicated region
        $region33: #{cheb_conv.5} parent=27 // pred_check
          %p332 = pneg %p105
        $region34: #{cheb_conv.5} parent=27 // pred_check_branch
          %334 = sbr.rel (%p332) target = $region36
        $region35: #{cheb_conv.5} parent=27 // pred_region
          %s335 = smul.u32 48, %s26
          %p336 = scmp.lt.s32.totalorder %s335, 95
          %s337 = scalar_select %p336, %s335, 95
          %s338 = smul.addr %s337, 8
          %s339 = scalar_lea.vmem %s2, %s338
          %s340 = smul.u32 48, %s26
        $region36: #{cheb_conv.5} parent=27 // pred_fallthru
          _
        // Predicated region
        $region37: #{cheb_conv.5} parent=27 // pred_check
          %p341 = pneg %p131
        $region38: #{cheb_conv.5} parent=27 // pred_check_branch
          %343 = sbr.rel (%p341) target = $region40
        $region39: #{cheb_conv.5} parent=27 // pred_region
          %s344 = smul.u32 48, %s26
          %p345 = scmp.lt.s32.totalorder %s344, 95
          %s346 = scalar_select %p345, %s344, 95
          %s347 = smul.addr %s346, 8
          %s348 = scalar_lea.vmem %s3, %s347
          %s349 = smul.u32 48, %s26
        $region40: #{cheb_conv.5} parent=27 // pred_fallthru
          _
        // Predicated region
        $region41: #{cheb_conv.5} parent=27 // pred_check
          %p350 = pneg %p157
        $region42: #{cheb_conv.5} parent=27 // pred_check_branch
          %352 = sbr.rel (%p350) target = $region44
        $region43: #{cheb_conv.5} parent=27 // pred_region
          %s353 = smul.u32 48, %s26
          %p354 = scmp.lt.s32.totalorder %s353, 95
          %s355 = scalar_select %p354, %s353, 95
          %s356 = smul.addr %s355, 8
          %s357 = scalar_lea.vmem %s4, %s356
          %s358 = smul.u32 48, %s26
        $region44: #{cheb_conv.5} parent=27 // pred_fallthru
          _
        // Predicated region
        $region45: #{cheb_conv.5} parent=27 // pred_check
          %p359 = pneg %p225
        $region46: #{cheb_conv.5} parent=27 // pred_check_branch
          %361 = sbr.rel (%p359) target = $region48
        $region47: #{cheb_conv.5} parent=27 // pred_region
          %s362 = smul.u32 48, %s26
          %p363 = scmp.lt.s32.totalorder %s362, 95
          %s364 = scalar_select %p363, %s362, 95
          %s365 = smul.addr %s364, 8
          %s366 = scalar_lea.vmem %s7, %s365
          %s367 = smul.u32 48, %s26
        $region48: #{cheb_conv.5} parent=27 // pred_fallthru
          _
      $region28: #{cheb_conv.5} parent=5 // pred_fallthru
        _
      %p368 = scmp.le.s32.totalorder 1, %s19
      %p369 = scmp.lt.s32.totalorder %s19, 3
      %p370 = pnand %p368, %p369
      %p371 = pneg %p370
      // Predicated region
      $region49: #{cheb_conv.5} parent=5 // pred_check
        _
      $region50: #{cheb_conv.5} parent=5 // pred_check_branch
        %373 = sbr.rel (%p370) target = $region52
      $region51: #{cheb_conv.5} parent=5 // pred_region
        %s374 = ssub.s32 %s19, 1
        %s375 = smul.u32 48, %s28
        %s376 = smul.u32 6, %s29
        %p377 = scmp.lt.s32.totalorder %s375, 95
        %s378 = scalar_select %p377, %s375, 95
        %p379 = scmp.lt.s32.totalorder %s376, 5
        %s380 = scalar_select %p379, %s376, 5
        %s381 = smul.addr %s378, 6
        %s382 = sadd.s32 %s380, %s381
        %s383 = smul.addr %s382, 4
        %s384 = scalar_lea.vmem %s0, %s383
        %p385 = pneg %p59
        %p386 = pneg %p56
        %s387 = smul.u32 96, %s29
        %p388 = scmp.lt.s32.totalorder %s387, 95
        %s389 = scalar_select %p388, %s387, 95
        %s390 = smul.addr %s389, 8
        %s391 = scalar_lea.vmem %s1, %s390
        %p392 = pneg %p85
        %p393 = pneg %p82
        %s394 = smul.u32 48, %s28
        %p395 = scmp.lt.s32.totalorder %s394, 95
        %s396 = scalar_select %p395, %s394, 95
        %s397 = smul.addr %s396, 8
        %s398 = scalar_lea.vmem %s2, %s397
        %p399 = pneg %p111
        %p400 = pneg %p108
        %s401 = smul.u32 48, %s28
        %p402 = scmp.lt.s32.totalorder %s401, 95
        %s403 = scalar_select %p402, %s401, 95
        %s404 = smul.addr %s403, 8
        %s405 = scalar_lea.vmem %s3, %s404
        %p406 = pneg %p137
        %p407 = pneg %p134
        %s408 = smul.u32 48, %s28
        %p409 = scmp.lt.s32.totalorder %s408, 95
        %s410 = scalar_select %p409, %s408, 95
        %s411 = smul.addr %s410, 8
        %s412 = scalar_lea.vmem %s4, %s411
        %p413 = pneg %p163
        %p414 = pneg %p160
        %p415 = pneg %p184
        %p416 = pneg %p181
        %p417 = pneg %p205
        %p418 = pneg %p202
        %s419 = smul.u32 48, %s28
        %p420 = scmp.lt.s32.totalorder %s419, 95
        %s421 = scalar_select %p420, %s419, 95
        %s422 = smul.addr %s421, 8
        %s423 = scalar_lea.vmem %s7, %s422
        %p424 = pneg %p231
        %p425 = pneg %p228
        %p426 = pneg %p257
        %p427 = pneg %p254
        %s428 = sand.u32 %s244, 1
        %s429 = scalar_lea.sflag [#allocation3], %s428
        %s430 = sand.u32 %s244, 1
        %s431 = smul.addr %s430, 384
        %s432 = scalar_lea.vmem [#allocation2], %s431
        %p433 = pneg %p283
        %p434 = pneg %p280
        %s435 = smul.u32 48, %s28
        %p436 = scmp.lt.s32.totalorder %s435, 95
        %s437 = scalar_select %p436, %s435, 95
        %s438 = smul.addr %s437, 8
        %s439 = scalar_lea.vmem %s9, %s438
        %s440 = smul.u32 48, %s28
        %s441 = smul.u32 6, %s29
        %p442 = scmp.lt.s32.totalorder %s440, 95
        %s443 = scalar_select %p442, %s440, 95
        %p444 = scmp.lt.s32.totalorder %s441, 5
        %s445 = scalar_select %p444, %s441, 5
        %s446 = smul.addr %s443, 6
        %s447 = sadd.s32 %s445, %s446
        %s448 = smul.addr %s447, 4
        %s449 = scalar_lea.vmem %s0, %s448
        %s450 = smul.u32 48, %s28
        %s451 = smul.u32 6, %s29
        %s452 = smul.u32 96, %s29
        %p453 = scmp.lt.s32.totalorder %s452, 95
        %s454 = scalar_select %p453, %s452, 95
        %s455 = smul.addr %s454, 8
        %s456 = scalar_lea.vmem %s1, %s455
        %s457 = smul.u32 96, %s29
        %s458 = smul.u32 48, %s28
        %p459 = scmp.lt.s32.totalorder %s458, 95
        %s460 = scalar_select %p459, %s458, 95
        %s461 = smul.addr %s460, 8
        %s462 = scalar_lea.vmem %s2, %s461
        %s463 = smul.u32 48, %s28
        %s464 = smul.u32 48, %s28
        %p465 = scmp.lt.s32.totalorder %s464, 95
        %s466 = scalar_select %p465, %s464, 95
        %s467 = smul.addr %s466, 8
        %s468 = scalar_lea.vmem %s3, %s467
        %s469 = smul.u32 48, %s28
        %s470 = smul.u32 48, %s28
        %p471 = scmp.lt.s32.totalorder %s470, 95
        %s472 = scalar_select %p471, %s470, 95
        %s473 = smul.addr %s472, 8
        %s474 = scalar_lea.vmem %s4, %s473
        %s475 = smul.u32 48, %s28
        %s476 = smul.u32 48, %s28
        %p477 = scmp.lt.s32.totalorder %s476, 95
        %s478 = scalar_select %p477, %s476, 95
        %s479 = smul.addr %s478, 8
        %s480 = scalar_lea.vmem %s7, %s479
        %s481 = smul.u32 48, %s28
        %s482 = smul.u32 48, %s28
        %s483 = smul.u32 48, %s28
        %p484 = scmp.lt.s32.totalorder %s483, 95
        %s485 = scalar_select %p484, %s483, 95
        %s486 = smul.addr %s485, 8
        %s487 = scalar_lea.vmem %s9, %s486
        %s488 = smul.u32 48, %s28
        %p489 = scmp.eq.s32.totalorder %s29, 0
        // Predicated region
        $region53: #{cheb_conv.5} parent=51 // pred_check
          %p490 = pneg %p489
        $region54: #{cheb_conv.5} parent=51 // pred_check_branch
          %492 = sbr.rel (%p490) target = $region56
        $region55: #{cheb_conv.5} parent=51 // pred_region
          %vm493 = vcmask 130048
          %494 = vst.msk [vmem:[%s432] sm:$0xff] %vm493, 0.0
          %495 = vst.msk [vmem:[%s432 + $0x8] sm:$0xff] %vm493, 0.0
          %496 = vst.msk [vmem:[%s432 + $0x10] sm:$0xff] %vm493, 0.0
          %497 = vst.msk [vmem:[%s432 + $0x18] sm:$0xff] %vm493, 0.0
          %498 = vst.msk [vmem:[%s432 + $0x20] sm:$0xff] %vm493, 0.0
          %499 = vst.msk [vmem:[%s432 + $0x28] sm:$0xff] %vm493, 0.0
          %500 = vst.msk [vmem:[%s432 + $0x30] sm:$0xff] %vm493, 0.0
          %501 = vst.msk [vmem:[%s432 + $0x38] sm:$0xff] %vm493, 0.0
          %502 = vst.msk [vmem:[%s432 + $0x40] sm:$0xff] %vm493, 0.0
          %503 = vst.msk [vmem:[%s432 + $0x48] sm:$0xff] %vm493, 0.0
          %504 = vst.msk [vmem:[%s432 + $0x50] sm:$0xff] %vm493, 0.0
          %505 = vst.msk [vmem:[%s432 + $0x58] sm:$0xff] %vm493, 0.0
          %506 = vst.msk [vmem:[%s432 + $0x60] sm:$0xff] %vm493, 0.0
          %507 = vst.msk [vmem:[%s432 + $0x68] sm:$0xff] %vm493, 0.0
          %508 = vst.msk [vmem:[%s432 + $0x70] sm:$0xff] %vm493, 0.0
          %509 = vst.msk [vmem:[%s432 + $0x78] sm:$0xff] %vm493, 0.0
          %510 = vst.msk [vmem:[%s432 + $0x80] sm:$0xff] %vm493, 0.0
          %511 = vst.msk [vmem:[%s432 + $0x88] sm:$0xff] %vm493, 0.0
          %512 = vst.msk [vmem:[%s432 + $0x90] sm:$0xff] %vm493, 0.0
          %513 = vst.msk [vmem:[%s432 + $0x98] sm:$0xff] %vm493, 0.0
          %514 = vst.msk [vmem:[%s432 + $0xa0] sm:$0xff] %vm493, 0.0
          %515 = vst.msk [vmem:[%s432 + $0xa8] sm:$0xff] %vm493, 0.0
          %516 = vst.msk [vmem:[%s432 + $0xb0] sm:$0xff] %vm493, 0.0
          %517 = vst.msk [vmem:[%s432 + $0xb8] sm:$0xff] %vm493, 0.0
          %518 = vst.msk [vmem:[%s432 + $0xc0] sm:$0xff] %vm493, 0.0
          %519 = vst.msk [vmem:[%s432 + $0xc8] sm:$0xff] %vm493, 0.0
          %520 = vst.msk [vmem:[%s432 + $0xd0] sm:$0xff] %vm493, 0.0
          %521 = vst.msk [vmem:[%s432 + $0xd8] sm:$0xff] %vm493, 0.0
          %522 = vst.msk [vmem:[%s432 + $0xe0] sm:$0xff] %vm493, 0.0
          %523 = vst.msk [vmem:[%s432 + $0xe8] sm:$0xff] %vm493, 0.0
          %524 = vst.msk [vmem:[%s432 + $0xf0] sm:$0xff] %vm493, 0.0
          %525 = vst.msk [vmem:[%s432 + $0xf8] sm:$0xff] %vm493, 0.0
          %526 = vst.msk [vmem:[%s432 + $0x100] sm:$0xff] %vm493, 0.0
          %527 = vst.msk [vmem:[%s432 + $0x108] sm:$0xff] %vm493, 0.0
          %528 = vst.msk [vmem:[%s432 + $0x110] sm:$0xff] %vm493, 0.0
          %529 = vst.msk [vmem:[%s432 + $0x118] sm:$0xff] %vm493, 0.0
          %530 = vst.msk [vmem:[%s432 + $0x120] sm:$0xff] %vm493, 0.0
          %531 = vst.msk [vmem:[%s432 + $0x128] sm:$0xff] %vm493, 0.0
          %532 = vst.msk [vmem:[%s432 + $0x130] sm:$0xff] %vm493, 0.0
          %533 = vst.msk [vmem:[%s432 + $0x138] sm:$0xff] %vm493, 0.0
          %534 = vst.msk [vmem:[%s432 + $0x140] sm:$0xff] %vm493, 0.0
          %535 = vst.msk [vmem:[%s432 + $0x148] sm:$0xff] %vm493, 0.0
          %536 = vst.msk [vmem:[%s432 + $0x150] sm:$0xff] %vm493, 0.0
          %537 = vst.msk [vmem:[%s432 + $0x158] sm:$0xff] %vm493, 0.0
          %538 = vst.msk [vmem:[%s432 + $0x160] sm:$0xff] %vm493, 0.0
          %539 = vst.msk [vmem:[%s432 + $0x168] sm:$0xff] %vm493, 0.0
          %540 = vst.msk [vmem:[%s432 + $0x170] sm:$0xff] %vm493, 0.0
          %541 = vst.msk [vmem:[%s432 + $0x178] sm:$0xff] %vm493, 0.0
        $region56: #{cheb_conv.5} parent=51 // pred_fallthru
          _
        %v542 = vld [vmem:[%s432] sm:$0xff]
        %v543 = vld [vmem:[%s432 + $0x8] sm:$0xff]
        %v544 = vld [vmem:[%s432 + $0x10] sm:$0xff]
        %v545 = vld [vmem:[%s432 + $0x18] sm:$0xff]
        %v546 = vld [vmem:[%s432 + $0x20] sm:$0xff]
        %v547 = vld [vmem:[%s432 + $0x28] sm:$0xff]
        %v548 = vld [vmem:[%s432 + $0x30] sm:$0xff]
        %v549 = vld [vmem:[%s432 + $0x38] sm:$0xff]
        %v550 = vld [vmem:[%s432 + $0x40] sm:$0xff]
        %v551 = vld [vmem:[%s432 + $0x48] sm:$0xff]
        %v552 = vld [vmem:[%s432 + $0x50] sm:$0xff]
        %v553 = vld [vmem:[%s432 + $0x58] sm:$0xff]
        %v554 = vld [vmem:[%s432 + $0x60] sm:$0xff]
        %v555 = vld [vmem:[%s432 + $0x68] sm:$0xff]
        %v556 = vld [vmem:[%s432 + $0x70] sm:$0xff]
        %v557 = vld [vmem:[%s432 + $0x78] sm:$0xff]
        %v558 = vld [vmem:[%s432 + $0x80] sm:$0xff]
        %v559 = vld [vmem:[%s432 + $0x88] sm:$0xff]
        %v560 = vld [vmem:[%s432 + $0x90] sm:$0xff]
        %v561 = vld [vmem:[%s432 + $0x98] sm:$0xff]
        %v562 = vld [vmem:[%s432 + $0xa0] sm:$0xff]
        %v563 = vld [vmem:[%s432 + $0xa8] sm:$0xff]
        %v564 = vld [vmem:[%s432 + $0xb0] sm:$0xff]
        %v565 = vld [vmem:[%s432 + $0xb8] sm:$0xff]
        %v566 = vld [vmem:[%s432 + $0xc0] sm:$0xff]
        %v567 = vld [vmem:[%s432 + $0xc8] sm:$0xff]
        %v568 = vld [vmem:[%s432 + $0xd0] sm:$0xff]
        %v569 = vld [vmem:[%s432 + $0xd8] sm:$0xff]
        %v570 = vld [vmem:[%s432 + $0xe0] sm:$0xff]
        %v571 = vld [vmem:[%s432 + $0xe8] sm:$0xff]
        %v572 = vld [vmem:[%s432 + $0xf0] sm:$0xff]
        %v573 = vld [vmem:[%s432 + $0xf8] sm:$0xff]
        %v574 = vld [vmem:[%s432 + $0x100] sm:$0xff]
        %v575 = vld [vmem:[%s432 + $0x108] sm:$0xff]
        %v576 = vld [vmem:[%s432 + $0x110] sm:$0xff]
        %v577 = vld [vmem:[%s432 + $0x118] sm:$0xff]
        %v578 = vld [vmem:[%s432 + $0x120] sm:$0xff]
        %v579 = vld [vmem:[%s432 + $0x128] sm:$0xff]
        %v580 = vld [vmem:[%s432 + $0x130] sm:$0xff]
        %v581 = vld [vmem:[%s432 + $0x138] sm:$0xff]
        %v582 = vld [vmem:[%s432 + $0x140] sm:$0xff]
        %v583 = vld [vmem:[%s432 + $0x148] sm:$0xff]
        %v584 = vld [vmem:[%s432 + $0x150] sm:$0xff]
        %v585 = vld [vmem:[%s432 + $0x158] sm:$0xff]
        %v586 = vld [vmem:[%s432 + $0x160] sm:$0xff]
        %v587 = vld [vmem:[%s432 + $0x168] sm:$0xff]
        %v588 = vld [vmem:[%s432 + $0x170] sm:$0xff]
        %v589 = vld [vmem:[%s432 + $0x178] sm:$0xff]
        %v590 = vld [vmem:[%s449] sm:$0xff]
        %v591 = vld [vmem:[%s449 + $0x8] sm:$0xff]
        %v592 = vld [vmem:[%s449 + $0x10] sm:$0xff]
        %v593 = vld [vmem:[%s449 + $0x18] sm:$0xff]
        %v594 = vld [vmem:[%s449 + $0x20] sm:$0xff]
        %v595 = vld [vmem:[%s449 + $0x28] sm:$0xff]
        %v596 = vld [vmem:[%s449 + $0x30] sm:$0xff]
        %v597 = vld [vmem:[%s449 + $0x38] sm:$0xff]
        %v598 = vld [vmem:[%s449 + $0x40] sm:$0xff]
        %v599 = vld [vmem:[%s449 + $0x48] sm:$0xff]
        %v600 = vld [vmem:[%s449 + $0x50] sm:$0xff]
        %v601 = vld [vmem:[%s449 + $0x58] sm:$0xff]
        %v602 = vld [vmem:[%s449 + $0x60] sm:$0xff]
        %v603 = vld [vmem:[%s449 + $0x68] sm:$0xff]
        %v604 = vld [vmem:[%s449 + $0x70] sm:$0xff]
        %v605 = vld [vmem:[%s449 + $0x78] sm:$0xff]
        %v606 = vld [vmem:[%s449 + $0x80] sm:$0xff]
        %v607 = vld [vmem:[%s449 + $0x88] sm:$0xff]
        %v608 = vld [vmem:[%s449 + $0x90] sm:$0xff]
        %v609 = vld [vmem:[%s449 + $0x98] sm:$0xff]
        %v610 = vld [vmem:[%s449 + $0xa0] sm:$0xff]
        %v611 = vld [vmem:[%s449 + $0xa8] sm:$0xff]
        %v612 = vld [vmem:[%s449 + $0xb0] sm:$0xff]
        %v613 = vld [vmem:[%s449 + $0xb8] sm:$0xff]
        %v614 = vld [vmem:[%s449 + $0xc0] sm:$0xff]
        %v615 = vld [vmem:[%s449 + $0xc8] sm:$0xff]
        %v616 = vld [vmem:[%s449 + $0xd0] sm:$0xff]
        %v617 = vld [vmem:[%s449 + $0xd8] sm:$0xff]
        %v618 = vld [vmem:[%s449 + $0xe0] sm:$0xff]
        %v619 = vld [vmem:[%s449 + $0xe8] sm:$0xff]
        %v620 = vld [vmem:[%s449 + $0xf0] sm:$0xff]
        %v621 = vld [vmem:[%s449 + $0xf8] sm:$0xff]
        %v622 = vld [vmem:[%s449 + $0x100] sm:$0xff]
        %v623 = vld [vmem:[%s449 + $0x108] sm:$0xff]
        %v624 = vld [vmem:[%s449 + $0x110] sm:$0xff]
        %v625 = vld [vmem:[%s449 + $0x118] sm:$0xff]
        %v626 = vld [vmem:[%s449 + $0x120] sm:$0xff]
        %v627 = vld [vmem:[%s449 + $0x128] sm:$0xff]
        %v628 = vld [vmem:[%s449 + $0x130] sm:$0xff]
        %v629 = vld [vmem:[%s449 + $0x138] sm:$0xff]
        %v630 = vld [vmem:[%s449 + $0x140] sm:$0xff]
        %v631 = vld [vmem:[%s449 + $0x148] sm:$0xff]
        %v632 = vld [vmem:[%s449 + $0x150] sm:$0xff]
        %v633 = vld [vmem:[%s449 + $0x158] sm:$0xff]
        %v634 = vld [vmem:[%s449 + $0x160] sm:$0xff]
        %v635 = vld [vmem:[%s449 + $0x168] sm:$0xff]
        %v636 = vld [vmem:[%s449 + $0x170] sm:$0xff]
        %v637 = vld [vmem:[%s449 + $0x178] sm:$0xff]
        %v638 = vld [vmem:[%s449 + $0x180] sm:$0xff]
        %v639 = vld [vmem:[%s449 + $0x188] sm:$0xff]
        %v640 = vld [vmem:[%s449 + $0x190] sm:$0xff]
        %v641 = vld [vmem:[%s449 + $0x198] sm:$0xff]
        %v642 = vld [vmem:[%s449 + $0x1a0] sm:$0xff]
        %v643 = vld [vmem:[%s449 + $0x1a8] sm:$0xff]
        %v644 = vld [vmem:[%s449 + $0x1b0] sm:$0xff]
        %v645 = vld [vmem:[%s449 + $0x1b8] sm:$0xff]
        %v646 = vld [vmem:[%s449 + $0x1c0] sm:$0xff]
        %v647 = vld [vmem:[%s449 + $0x1c8] sm:$0xff]
        %v648 = vld [vmem:[%s449 + $0x1d0] sm:$0xff]
        %v649 = vld [vmem:[%s449 + $0x1d8] sm:$0xff]
        %v650 = vld [vmem:[%s449 + $0x1e0] sm:$0xff]
        %v651 = vld [vmem:[%s449 + $0x1e8] sm:$0xff]
        %v652 = vld [vmem:[%s449 + $0x1f0] sm:$0xff]
        %v653 = vld [vmem:[%s449 + $0x1f8] sm:$0xff]
        %v654 = vld [vmem:[%s449 + $0x200] sm:$0xff]
        %v655 = vld [vmem:[%s449 + $0x208] sm:$0xff]
        %v656 = vld [vmem:[%s449 + $0x210] sm:$0xff]
        %v657 = vld [vmem:[%s449 + $0x218] sm:$0xff]
        %v658 = vld [vmem:[%s449 + $0x220] sm:$0xff]
        %v659 = vld [vmem:[%s449 + $0x228] sm:$0xff]
        %v660 = vld [vmem:[%s449 + $0x230] sm:$0xff]
        %v661 = vld [vmem:[%s449 + $0x238] sm:$0xff]
        %v662 = vld [vmem:[%s449 + $0x240] sm:$0xff]
        %v663 = vld [vmem:[%s449 + $0x248] sm:$0xff]
        %v664 = vld [vmem:[%s449 + $0x250] sm:$0xff]
        %v665 = vld [vmem:[%s449 + $0x258] sm:$0xff]
        %v666 = vld [vmem:[%s449 + $0x260] sm:$0xff]
        %v667 = vld [vmem:[%s449 + $0x268] sm:$0xff]
        %v668 = vld [vmem:[%s449 + $0x270] sm:$0xff]
        %v669 = vld [vmem:[%s449 + $0x278] sm:$0xff]
        %v670 = vld [vmem:[%s449 + $0x280] sm:$0xff]
        %v671 = vld [vmem:[%s449 + $0x288] sm:$0xff]
        %v672 = vld [vmem:[%s449 + $0x290] sm:$0xff]
        %v673 = vld [vmem:[%s449 + $0x298] sm:$0xff]
        %v674 = vld [vmem:[%s449 + $0x2a0] sm:$0xff]
        %v675 = vld [vmem:[%s449 + $0x2a8] sm:$0xff]
        %v676 = vld [vmem:[%s449 + $0x2b0] sm:$0xff]
        %v677 = vld [vmem:[%s449 + $0x2b8] sm:$0xff]
        %v678 = vld [vmem:[%s449 + $0x2c0] sm:$0xff]
        %v679 = vld [vmem:[%s449 + $0x2c8] sm:$0xff]
        %v680 = vld [vmem:[%s449 + $0x2d0] sm:$0xff]
        %v681 = vld [vmem:[%s449 + $0x2d8] sm:$0xff]
        %v682 = vld [vmem:[%s449 + $0x2e0] sm:$0xff]
        %v683 = vld [vmem:[%s449 + $0x2e8] sm:$0xff]
        %v684 = vld [vmem:[%s449 + $0x2f0] sm:$0xff]
        %v685 = vld [vmem:[%s449 + $0x2f8] sm:$0xff]
        %v686 = vld [vmem:[%s449 + $0x300] sm:$0xff]
        %v687 = vld [vmem:[%s449 + $0x308] sm:$0xff]
        %v688 = vld [vmem:[%s449 + $0x310] sm:$0xff]
        %v689 = vld [vmem:[%s449 + $0x318] sm:$0xff]
        %v690 = vld [vmem:[%s449 + $0x320] sm:$0xff]
        %v691 = vld [vmem:[%s449 + $0x328] sm:$0xff]
        %v692 = vld [vmem:[%s449 + $0x330] sm:$0xff]
        %v693 = vld [vmem:[%s449 + $0x338] sm:$0xff]
        %v694 = vld [vmem:[%s449 + $0x340] sm:$0xff]
        %v695 = vld [vmem:[%s449 + $0x348] sm:$0xff]
        %v696 = vld [vmem:[%s449 + $0x350] sm:$0xff]
        %v697 = vld [vmem:[%s449 + $0x358] sm:$0xff]
        %v698 = vld [vmem:[%s449 + $0x360] sm:$0xff]
        %v699 = vld [vmem:[%s449 + $0x368] sm:$0xff]
        %v700 = vld [vmem:[%s449 + $0x370] sm:$0xff]
        %v701 = vld [vmem:[%s449 + $0x378] sm:$0xff]
        %v702 = vld [vmem:[%s449 + $0x380] sm:$0xff]
        %v703 = vld [vmem:[%s449 + $0x388] sm:$0xff]
        %v704 = vld [vmem:[%s449 + $0x390] sm:$0xff]
        %v705 = vld [vmem:[%s449 + $0x398] sm:$0xff]
        %v706 = vld [vmem:[%s449 + $0x3a0] sm:$0xff]
        %v707 = vld [vmem:[%s449 + $0x3a8] sm:$0xff]
        %v708 = vld [vmem:[%s449 + $0x3b0] sm:$0xff]
        %v709 = vld [vmem:[%s449 + $0x3b8] sm:$0xff]
        %v710 = vld [vmem:[%s449 + $0x3c0] sm:$0xff]
        %v711 = vld [vmem:[%s449 + $0x3c8] sm:$0xff]
        %v712 = vld [vmem:[%s449 + $0x3d0] sm:$0xff]
        %v713 = vld [vmem:[%s449 + $0x3d8] sm:$0xff]
        %v714 = vld [vmem:[%s449 + $0x3e0] sm:$0xff]
        %v715 = vld [vmem:[%s449 + $0x3e8] sm:$0xff]
        %v716 = vld [vmem:[%s449 + $0x3f0] sm:$0xff]
        %v717 = vld [vmem:[%s449 + $0x3f8] sm:$0xff]
        %v718 = vld [vmem:[%s449 + $0x400] sm:$0xff]
        %v719 = vld [vmem:[%s449 + $0x408] sm:$0xff]
        %v720 = vld [vmem:[%s449 + $0x410] sm:$0xff]
        %v721 = vld [vmem:[%s449 + $0x418] sm:$0xff]
        %v722 = vld [vmem:[%s449 + $0x420] sm:$0xff]
        %v723 = vld [vmem:[%s449 + $0x428] sm:$0xff]
        %v724 = vld [vmem:[%s449 + $0x430] sm:$0xff]
        %v725 = vld [vmem:[%s449 + $0x438] sm:$0xff]
        %v726 = vld [vmem:[%s449 + $0x440] sm:$0xff]
        %v727 = vld [vmem:[%s449 + $0x448] sm:$0xff]
        %v728 = vld [vmem:[%s449 + $0x450] sm:$0xff]
        %v729 = vld [vmem:[%s449 + $0x458] sm:$0xff]
        %v730 = vld [vmem:[%s449 + $0x460] sm:$0xff]
        %v731 = vld [vmem:[%s449 + $0x468] sm:$0xff]
        %v732 = vld [vmem:[%s449 + $0x470] sm:$0xff]
        %v733 = vld [vmem:[%s449 + $0x478] sm:$0xff]
        %v734 = vld [vmem:[%s456] sm:$0xff]
        %v735 = vld [vmem:[%s456 + $0x8] sm:$0xff]
        %v736 = vld [vmem:[%s456 + $0x10] sm:$0xff]
        %v737 = vld [vmem:[%s456 + $0x18] sm:$0xff]
        %v738 = vld [vmem:[%s456 + $0x20] sm:$0xff]
        %v739 = vld [vmem:[%s456 + $0x28] sm:$0xff]
        %v740 = vld [vmem:[%s456 + $0x30] sm:$0xff]
        %v741 = vld [vmem:[%s456 + $0x38] sm:$0xff]
        %v742 = vld [vmem:[%s456 + $0x40] sm:$0xff]
        %v743 = vld [vmem:[%s456 + $0x48] sm:$0xff]
        %v744 = vld [vmem:[%s456 + $0x50] sm:$0xff]
        %v745 = vld [vmem:[%s456 + $0x58] sm:$0xff]
        %v746 = vld [vmem:[%s456 + $0x60] sm:$0xff]
        %v747 = vld [vmem:[%s456 + $0x68] sm:$0xff]
        %v748 = vld [vmem:[%s456 + $0x70] sm:$0xff]
        %v749 = vld [vmem:[%s456 + $0x78] sm:$0xff]
        %v750 = vld [vmem:[%s456 + $0x80] sm:$0xff]
        %v751 = vld [vmem:[%s456 + $0x88] sm:$0xff]
        %v752 = vld [vmem:[%s456 + $0x90] sm:$0xff]
        %v753 = vld [vmem:[%s456 + $0x98] sm:$0xff]
        %v754 = vld [vmem:[%s456 + $0xa0] sm:$0xff]
        %v755 = vld [vmem:[%s456 + $0xa8] sm:$0xff]
        %v756 = vld [vmem:[%s456 + $0xb0] sm:$0xff]
        %v757 = vld [vmem:[%s456 + $0xb8] sm:$0xff]
        %v758 = vld [vmem:[%s456 + $0xc0] sm:$0xff]
        %v759 = vld [vmem:[%s456 + $0xc8] sm:$0xff]
        %v760 = vld [vmem:[%s456 + $0xd0] sm:$0xff]
        %v761 = vld [vmem:[%s456 + $0xd8] sm:$0xff]
        %v762 = vld [vmem:[%s456 + $0xe0] sm:$0xff]
        %v763 = vld [vmem:[%s456 + $0xe8] sm:$0xff]
        %v764 = vld [vmem:[%s456 + $0xf0] sm:$0xff]
        %v765 = vld [vmem:[%s456 + $0xf8] sm:$0xff]
        %v766 = vld [vmem:[%s456 + $0x100] sm:$0xff]
        %v767 = vld [vmem:[%s456 + $0x108] sm:$0xff]
        %v768 = vld [vmem:[%s456 + $0x110] sm:$0xff]
        %v769 = vld [vmem:[%s456 + $0x118] sm:$0xff]
        %v770 = vld [vmem:[%s456 + $0x120] sm:$0xff]
        %v771 = vld [vmem:[%s456 + $0x128] sm:$0xff]
        %v772 = vld [vmem:[%s456 + $0x130] sm:$0xff]
        %v773 = vld [vmem:[%s456 + $0x138] sm:$0xff]
        %v774 = vld [vmem:[%s456 + $0x140] sm:$0xff]
        %v775 = vld [vmem:[%s456 + $0x148] sm:$0xff]
        %v776 = vld [vmem:[%s456 + $0x150] sm:$0xff]
        %v777 = vld [vmem:[%s456 + $0x158] sm:$0xff]
        %v778 = vld [vmem:[%s456 + $0x160] sm:$0xff]
        %v779 = vld [vmem:[%s456 + $0x168] sm:$0xff]
        %v780 = vld [vmem:[%s456 + $0x170] sm:$0xff]
        %v781 = vld [vmem:[%s456 + $0x178] sm:$0xff]
        %v782 = vld [vmem:[%s456 + $0x180] sm:$0xff]
        %v783 = vld [vmem:[%s456 + $0x188] sm:$0xff]
        %v784 = vld [vmem:[%s456 + $0x190] sm:$0xff]
        %v785 = vld [vmem:[%s456 + $0x198] sm:$0xff]
        %v786 = vld [vmem:[%s456 + $0x1a0] sm:$0xff]
        %v787 = vld [vmem:[%s456 + $0x1a8] sm:$0xff]
        %v788 = vld [vmem:[%s456 + $0x1b0] sm:$0xff]
        %v789 = vld [vmem:[%s456 + $0x1b8] sm:$0xff]
        %v790 = vld [vmem:[%s456 + $0x1c0] sm:$0xff]
        %v791 = vld [vmem:[%s456 + $0x1c8] sm:$0xff]
        %v792 = vld [vmem:[%s456 + $0x1d0] sm:$0xff]
        %v793 = vld [vmem:[%s456 + $0x1d8] sm:$0xff]
        %v794 = vld [vmem:[%s456 + $0x1e0] sm:$0xff]
        %v795 = vld [vmem:[%s456 + $0x1e8] sm:$0xff]
        %v796 = vld [vmem:[%s456 + $0x1f0] sm:$0xff]
        %v797 = vld [vmem:[%s456 + $0x1f8] sm:$0xff]
        %v798 = vld [vmem:[%s456 + $0x200] sm:$0xff]
        %v799 = vld [vmem:[%s456 + $0x208] sm:$0xff]
        %v800 = vld [vmem:[%s456 + $0x210] sm:$0xff]
        %v801 = vld [vmem:[%s456 + $0x218] sm:$0xff]
        %v802 = vld [vmem:[%s456 + $0x220] sm:$0xff]
        %v803 = vld [vmem:[%s456 + $0x228] sm:$0xff]
        %v804 = vld [vmem:[%s456 + $0x230] sm:$0xff]
        %v805 = vld [vmem:[%s456 + $0x238] sm:$0xff]
        %v806 = vld [vmem:[%s456 + $0x240] sm:$0xff]
        %v807 = vld [vmem:[%s456 + $0x248] sm:$0xff]
        %v808 = vld [vmem:[%s456 + $0x250] sm:$0xff]
        %v809 = vld [vmem:[%s456 + $0x258] sm:$0xff]
        %v810 = vld [vmem:[%s456 + $0x260] sm:$0xff]
        %v811 = vld [vmem:[%s456 + $0x268] sm:$0xff]
        %v812 = vld [vmem:[%s456 + $0x270] sm:$0xff]
        %v813 = vld [vmem:[%s456 + $0x278] sm:$0xff]
        %v814 = vld [vmem:[%s456 + $0x280] sm:$0xff]
        %v815 = vld [vmem:[%s456 + $0x288] sm:$0xff]
        %v816 = vld [vmem:[%s456 + $0x290] sm:$0xff]
        %v817 = vld [vmem:[%s456 + $0x298] sm:$0xff]
        %v818 = vld [vmem:[%s456 + $0x2a0] sm:$0xff]
        %v819 = vld [vmem:[%s456 + $0x2a8] sm:$0xff]
        %v820 = vld [vmem:[%s456 + $0x2b0] sm:$0xff]
        %v821 = vld [vmem:[%s456 + $0x2b8] sm:$0xff]
        %v822 = vld [vmem:[%s456 + $0x2c0] sm:$0xff]
        %v823 = vld [vmem:[%s456 + $0x2c8] sm:$0xff]
        %v824 = vld [vmem:[%s456 + $0x2d0] sm:$0xff]
        %v825 = vld [vmem:[%s456 + $0x2d8] sm:$0xff]
        %v826 = vld [vmem:[%s456 + $0x2e0] sm:$0xff]
        %v827 = vld [vmem:[%s456 + $0x2e8] sm:$0xff]
        %v828 = vld [vmem:[%s456 + $0x2f0] sm:$0xff]
        %v829 = vld [vmem:[%s456 + $0x2f8] sm:$0xff]
        %v830 = vpack.c.bf16 %v735, %v734
        %v831 = vpack.c.bf16 %v737, %v736
        %v832 = vpack.c.bf16 %v739, %v738
        %v833 = vpack.c.bf16 %v741, %v740
        %v834 = vpack.c.bf16 %v743, %v742
        %v835 = vpack.c.bf16 %v745, %v744
        %v836 = vpack.c.bf16 %v747, %v746
        %v837 = vpack.c.bf16 %v749, %v748
        %v838 = vpack.c.bf16 %v751, %v750
        %v839 = vpack.c.bf16 %v753, %v752
        %v840 = vpack.c.bf16 %v755, %v754
        %v841 = vpack.c.bf16 %v757, %v756
        %v842 = vpack.c.bf16 %v759, %v758
        %v843 = vpack.c.bf16 %v761, %v760
        %v844 = vpack.c.bf16 %v763, %v762
        %v845 = vpack.c.bf16 %v765, %v764
        %v846 = vpack.c.bf16 %v767, %v766
        %v847 = vpack.c.bf16 %v769, %v768
        %v848 = vpack.c.bf16 %v771, %v770
        %v849 = vpack.c.bf16 %v773, %v772
        %v850 = vpack.c.bf16 %v775, %v774
        %v851 = vpack.c.bf16 %v777, %v776
        %v852 = vpack.c.bf16 %v779, %v778
        %v853 = vpack.c.bf16 %v781, %v780
        %v854 = vpack.c.bf16 %v783, %v782
        %v855 = vpack.c.bf16 %v785, %v784
        %v856 = vpack.c.bf16 %v787, %v786
        %v857 = vpack.c.bf16 %v789, %v788
        %v858 = vpack.c.bf16 %v791, %v790
        %v859 = vpack.c.bf16 %v793, %v792
        %v860 = vpack.c.bf16 %v795, %v794
        %v861 = vpack.c.bf16 %v797, %v796
        %v862 = vpack.c.bf16 %v799, %v798
        %v863 = vpack.c.bf16 %v801, %v800
        %v864 = vpack.c.bf16 %v803, %v802
        %v865 = vpack.c.bf16 %v805, %v804
        %v866 = vpack.c.bf16 %v807, %v806
        %v867 = vpack.c.bf16 %v809, %v808
        %v868 = vpack.c.bf16 %v811, %v810
        %v869 = vpack.c.bf16 %v813, %v812
        %v870 = vpack.c.bf16 %v815, %v814
        %v871 = vpack.c.bf16 %v817, %v816
        %v872 = vpack.c.bf16 %v819, %v818
        %v873 = vpack.c.bf16 %v821, %v820
        %v874 = vpack.c.bf16 %v823, %v822
        %v875 = vpack.c.bf16 %v825, %v824
        %v876 = vpack.c.bf16 %v827, %v826
        %v877 = vpack.c.bf16 %v829, %v828
        %v1022 = vunpack.c.l.b16 %v590
        %v1023 = vunpack.c.h.b16 %v590
        %v1024 = vunpack.c.l.b16 %v591
        %v1025 = vunpack.c.h.b16 %v591
        %v1026 = vunpack.c.l.b16 %v592
        %v1027 = vunpack.c.h.b16 %v592
        %v1028 = vunpack.c.l.b16 %v593
        %v1029 = vunpack.c.h.b16 %v593
        %v1030 = vunpack.c.l.b16 %v594
        %v1031 = vunpack.c.h.b16 %v594
        %v1032 = vunpack.c.l.b16 %v595
        %v1033 = vunpack.c.h.b16 %v595
        %v1034 = vunpack.c.l.b16 %v596
        %v1035 = vunpack.c.h.b16 %v596
        %v1036 = vunpack.c.l.b16 %v597
        %v1037 = vunpack.c.h.b16 %v597
        %v1038 = vunpack.c.l.b16 %v598
        %v1039 = vunpack.c.h.b16 %v598
        %v1040 = vunpack.c.l.b16 %v599
        %v1041 = vunpack.c.h.b16 %v599
        %v1042 = vunpack.c.l.b16 %v600
        %v1043 = vunpack.c.h.b16 %v600
        %v1044 = vunpack.c.l.b16 %v601
        %v1045 = vunpack.c.h.b16 %v601
        %v1046 = vunpack.c.l.b16 %v602
        %v1047 = vunpack.c.h.b16 %v602
        %v1048 = vunpack.c.l.b16 %v603
        %v1049 = vunpack.c.h.b16 %v603
        %v1050 = vunpack.c.l.b16 %v604
        %v1051 = vunpack.c.h.b16 %v604
        %v1052 = vunpack.c.l.b16 %v605
        %v1053 = vunpack.c.h.b16 %v605
        %v1054 = vunpack.c.l.b16 %v606
        %v1055 = vunpack.c.h.b16 %v606
        %v1056 = vunpack.c.l.b16 %v607
        %v1057 = vunpack.c.h.b16 %v607
        %v1058 = vunpack.c.l.b16 %v608
        %v1059 = vunpack.c.h.b16 %v608
        %v1060 = vunpack.c.l.b16 %v609
        %v1061 = vunpack.c.h.b16 %v609
        %v1062 = vunpack.c.l.b16 %v610
        %v1063 = vunpack.c.h.b16 %v610
        %v1064 = vunpack.c.l.b16 %v611
        %v1065 = vunpack.c.h.b16 %v611
        %v1066 = vunpack.c.l.b16 %v612
        %v1067 = vunpack.c.h.b16 %v612
        %v1068 = vunpack.c.l.b16 %v613
        %v1069 = vunpack.c.h.b16 %v613
        %v1070 = vunpack.c.l.b16 %v614
        %v1071 = vunpack.c.h.b16 %v614
        %v1072 = vunpack.c.l.b16 %v615
        %v1073 = vunpack.c.h.b16 %v615
        %v1074 = vunpack.c.l.b16 %v616
        %v1075 = vunpack.c.h.b16 %v616
        %v1076 = vunpack.c.l.b16 %v617
        %v1077 = vunpack.c.h.b16 %v617
        %v1078 = vunpack.c.l.b16 %v618
        %v1079 = vunpack.c.h.b16 %v618
        %v1080 = vunpack.c.l.b16 %v619
        %v1081 = vunpack.c.h.b16 %v619
        %v1082 = vunpack.c.l.b16 %v620
        %v1083 = vunpack.c.h.b16 %v620
        %v1084 = vunpack.c.l.b16 %v621
        %v1085 = vunpack.c.h.b16 %v621
        %v1086 = vunpack.c.l.b16 %v622
        %v1087 = vunpack.c.h.b16 %v622
        %v1088 = vunpack.c.l.b16 %v623
        %v1089 = vunpack.c.h.b16 %v623
        %v1090 = vunpack.c.l.b16 %v624
        %v1091 = vunpack.c.h.b16 %v624
        %v1092 = vunpack.c.l.b16 %v625
        %v1093 = vunpack.c.h.b16 %v625
        %v1094 = vunpack.c.l.b16 %v626
        %v1095 = vunpack.c.h.b16 %v626
        %v1096 = vunpack.c.l.b16 %v627
        %v1097 = vunpack.c.h.b16 %v627
        %v1098 = vunpack.c.l.b16 %v628
        %v1099 = vunpack.c.h.b16 %v628
        %v1100 = vunpack.c.l.b16 %v629
        %v1101 = vunpack.c.h.b16 %v629
        %v1102 = vunpack.c.l.b16 %v630
        %v1103 = vunpack.c.h.b16 %v630
        %v1104 = vunpack.c.l.b16 %v631
        %v1105 = vunpack.c.h.b16 %v631
        %v1106 = vunpack.c.l.b16 %v632
        %v1107 = vunpack.c.h.b16 %v632
        %v1108 = vunpack.c.l.b16 %v633
        %v1109 = vunpack.c.h.b16 %v633
        %v1110 = vunpack.c.l.b16 %v634
        %v1111 = vunpack.c.h.b16 %v634
        %v1112 = vunpack.c.l.b16 %v635
        %v1113 = vunpack.c.h.b16 %v635
        %v1114 = vunpack.c.l.b16 %v636
        %v1115 = vunpack.c.h.b16 %v636
        %v1116 = vunpack.c.l.b16 %v637
        %v1117 = vunpack.c.h.b16 %v637
        %v1118 = vunpack.c.l.b16 %v638
        %v1119 = vunpack.c.h.b16 %v638
        %v1120 = vunpack.c.l.b16 %v639
        %v1121 = vunpack.c.h.b16 %v639
        %v1122 = vunpack.c.l.b16 %v640
        %v1123 = vunpack.c.h.b16 %v640
        %v1124 = vunpack.c.l.b16 %v641
        %v1125 = vunpack.c.h.b16 %v641
        %v1126 = vunpack.c.l.b16 %v642
        %v1127 = vunpack.c.h.b16 %v642
        %v1128 = vunpack.c.l.b16 %v643
        %v1129 = vunpack.c.h.b16 %v643
        %v1130 = vunpack.c.l.b16 %v644
        %v1131 = vunpack.c.h.b16 %v644
        %v1132 = vunpack.c.l.b16 %v645
        %v1133 = vunpack.c.h.b16 %v645
        %v1134 = vunpack.c.l.b16 %v646
        %v1135 = vunpack.c.h.b16 %v646
        %v1136 = vunpack.c.l.b16 %v647
        %v1137 = vunpack.c.h.b16 %v647
        %v1138 = vunpack.c.l.b16 %v648
        %v1139 = vunpack.c.h.b16 %v648
        %v1140 = vunpack.c.l.b16 %v649
        %v1141 = vunpack.c.h.b16 %v649
        %v1142 = vunpack.c.l.b16 %v650
        %v1143 = vunpack.c.h.b16 %v650
        %v1144 = vunpack.c.l.b16 %v651
        %v1145 = vunpack.c.h.b16 %v651
        %v1146 = vunpack.c.l.b16 %v652
        %v1147 = vunpack.c.h.b16 %v652
        %v1148 = vunpack.c.l.b16 %v653
        %v1149 = vunpack.c.h.b16 %v653
        %v1150 = vunpack.c.l.b16 %v654
        %v1151 = vunpack.c.h.b16 %v654
        %v1152 = vunpack.c.l.b16 %v655
        %v1153 = vunpack.c.h.b16 %v655
        %v1154 = vunpack.c.l.b16 %v656
        %v1155 = vunpack.c.h.b16 %v656
        %v1156 = vunpack.c.l.b16 %v657
        %v1157 = vunpack.c.h.b16 %v657
        %v1158 = vunpack.c.l.b16 %v658
        %v1159 = vunpack.c.h.b16 %v658
        %v1160 = vunpack.c.l.b16 %v659
        %v1161 = vunpack.c.h.b16 %v659
        %v1162 = vunpack.c.l.b16 %v660
        %v1163 = vunpack.c.h.b16 %v660
        %v1164 = vunpack.c.l.b16 %v661
        %v1165 = vunpack.c.h.b16 %v661
        %v1166 = vunpack.c.l.b16 %v662
        %v1167 = vunpack.c.h.b16 %v662
        %v1168 = vunpack.c.l.b16 %v663
        %v1169 = vunpack.c.h.b16 %v663
        %v1170 = vunpack.c.l.b16 %v664
        %v1171 = vunpack.c.h.b16 %v664
        %v1172 = vunpack.c.l.b16 %v665
        %v1173 = vunpack.c.h.b16 %v665
        %v1174 = vunpack.c.l.b16 %v666
        %v1175 = vunpack.c.h.b16 %v666
        %v1176 = vunpack.c.l.b16 %v667
        %v1177 = vunpack.c.h.b16 %v667
        %v1178 = vunpack.c.l.b16 %v668
        %v1179 = vunpack.c.h.b16 %v668
        %v1180 = vunpack.c.l.b16 %v669
        %v1181 = vunpack.c.h.b16 %v669
        %v1182 = vunpack.c.l.b16 %v670
        %v1183 = vunpack.c.h.b16 %v670
        %v1184 = vunpack.c.l.b16 %v671
        %v1185 = vunpack.c.h.b16 %v671
        %v1186 = vunpack.c.l.b16 %v672
        %v1187 = vunpack.c.h.b16 %v672
        %v1188 = vunpack.c.l.b16 %v673
        %v1189 = vunpack.c.h.b16 %v673
        %v1190 = vunpack.c.l.b16 %v674
        %v1191 = vunpack.c.h.b16 %v674
        %v1192 = vunpack.c.l.b16 %v675
        %v1193 = vunpack.c.h.b16 %v675
        %v1194 = vunpack.c.l.b16 %v676
        %v1195 = vunpack.c.h.b16 %v676
        %v1196 = vunpack.c.l.b16 %v677
        %v1197 = vunpack.c.h.b16 %v677
        %v1198 = vunpack.c.l.b16 %v678
        %v1199 = vunpack.c.h.b16 %v678
        %v1200 = vunpack.c.l.b16 %v679
        %v1201 = vunpack.c.h.b16 %v679
        %v1202 = vunpack.c.l.b16 %v680
        %v1203 = vunpack.c.h.b16 %v680
        %v1204 = vunpack.c.l.b16 %v681
        %v1205 = vunpack.c.h.b16 %v681
        %v1206 = vunpack.c.l.b16 %v682
        %v1207 = vunpack.c.h.b16 %v682
        %v1208 = vunpack.c.l.b16 %v683
        %v1209 = vunpack.c.h.b16 %v683
        %v1210 = vunpack.c.l.b16 %v684
        %v1211 = vunpack.c.h.b16 %v684
        %v1212 = vunpack.c.l.b16 %v685
        %v1213 = vunpack.c.h.b16 %v685
        %v1214 = vunpack.c.l.b16 %v686
        %v1215 = vunpack.c.h.b16 %v686
        %v1216 = vunpack.c.l.b16 %v687
        %v1217 = vunpack.c.h.b16 %v687
        %v1218 = vunpack.c.l.b16 %v688
        %v1219 = vunpack.c.h.b16 %v688
        %v1220 = vunpack.c.l.b16 %v689
        %v1221 = vunpack.c.h.b16 %v689
        %v1222 = vunpack.c.l.b16 %v690
        %v1223 = vunpack.c.h.b16 %v690
        %v1224 = vunpack.c.l.b16 %v691
        %v1225 = vunpack.c.h.b16 %v691
        %v1226 = vunpack.c.l.b16 %v692
        %v1227 = vunpack.c.h.b16 %v692
        %v1228 = vunpack.c.l.b16 %v693
        %v1229 = vunpack.c.h.b16 %v693
        %v1230 = vunpack.c.l.b16 %v694
        %v1231 = vunpack.c.h.b16 %v694
        %v1232 = vunpack.c.l.b16 %v695
        %v1233 = vunpack.c.h.b16 %v695
        %v1234 = vunpack.c.l.b16 %v696
        %v1235 = vunpack.c.h.b16 %v696
        %v1236 = vunpack.c.l.b16 %v697
        %v1237 = vunpack.c.h.b16 %v697
        %v1238 = vunpack.c.l.b16 %v698
        %v1239 = vunpack.c.h.b16 %v698
        %v1240 = vunpack.c.l.b16 %v699
        %v1241 = vunpack.c.h.b16 %v699
        %v1242 = vunpack.c.l.b16 %v700
        %v1243 = vunpack.c.h.b16 %v700
        %v1244 = vunpack.c.l.b16 %v701
        %v1245 = vunpack.c.h.b16 %v701
        %v1246 = vunpack.c.l.b16 %v702
        %v1247 = vunpack.c.h.b16 %v702
        %v1248 = vunpack.c.l.b16 %v703
        %v1249 = vunpack.c.h.b16 %v703
        %v1250 = vunpack.c.l.b16 %v704
        %v1251 = vunpack.c.h.b16 %v704
        %v1252 = vunpack.c.l.b16 %v705
        %v1253 = vunpack.c.h.b16 %v705
        %v1254 = vunpack.c.l.b16 %v706
        %v1255 = vunpack.c.h.b16 %v706
        %v1256 = vunpack.c.l.b16 %v707
        %v1257 = vunpack.c.h.b16 %v707
        %v1258 = vunpack.c.l.b16 %v708
        %v1259 = vunpack.c.h.b16 %v708
        %v1260 = vunpack.c.l.b16 %v709
        %v1261 = vunpack.c.h.b16 %v709
        %v1262 = vunpack.c.l.b16 %v710
        %v1263 = vunpack.c.h.b16 %v710
        %v1264 = vunpack.c.l.b16 %v711
        %v1265 = vunpack.c.h.b16 %v711
        %v1266 = vunpack.c.l.b16 %v712
        %v1267 = vunpack.c.h.b16 %v712
        %v1268 = vunpack.c.l.b16 %v713
        %v1269 = vunpack.c.h.b16 %v713
        %v1270 = vunpack.c.l.b16 %v714
        %v1271 = vunpack.c.h.b16 %v714
        %v1272 = vunpack.c.l.b16 %v715
        %v1273 = vunpack.c.h.b16 %v715
        %v1274 = vunpack.c.l.b16 %v716
        %v1275 = vunpack.c.h.b16 %v716
        %v1276 = vunpack.c.l.b16 %v717
        %v1277 = vunpack.c.h.b16 %v717
        %v1278 = vunpack.c.l.b16 %v718
        %v1279 = vunpack.c.h.b16 %v718
        %v1280 = vunpack.c.l.b16 %v719
        %v1281 = vunpack.c.h.b16 %v719
        %v1282 = vunpack.c.l.b16 %v720
        %v1283 = vunpack.c.h.b16 %v720
        %v1284 = vunpack.c.l.b16 %v721
        %v1285 = vunpack.c.h.b16 %v721
        %v1286 = vunpack.c.l.b16 %v722
        %v1287 = vunpack.c.h.b16 %v722
        %v1288 = vunpack.c.l.b16 %v723
        %v1289 = vunpack.c.h.b16 %v723
        %v1290 = vunpack.c.l.b16 %v724
        %v1291 = vunpack.c.h.b16 %v724
        %v1292 = vunpack.c.l.b16 %v725
        %v1293 = vunpack.c.h.b16 %v725
        %v1294 = vunpack.c.l.b16 %v726
        %v1295 = vunpack.c.h.b16 %v726
        %v1296 = vunpack.c.l.b16 %v727
        %v1297 = vunpack.c.h.b16 %v727
        %v1298 = vunpack.c.l.b16 %v728
        %v1299 = vunpack.c.h.b16 %v728
        %v1300 = vunpack.c.l.b16 %v729
        %v1301 = vunpack.c.h.b16 %v729
        %v1302 = vunpack.c.l.b16 %v730
        %v1303 = vunpack.c.h.b16 %v730
        %v1304 = vunpack.c.l.b16 %v731
        %v1305 = vunpack.c.h.b16 %v731
        %v1306 = vunpack.c.l.b16 %v732
        %v1307 = vunpack.c.h.b16 %v732
        %v1308 = vunpack.c.l.b16 %v733
        %v1309 = vunpack.c.h.b16 %v733
        %v1310 = vpack.c.b16 %v1028, %v1022
        %v1311 = vpack.c.b16 %v1029, %v1023
        %v1312 = vpack.c.b16 %v1030, %v1024
        %v1313 = vpack.c.b16 %v1031, %v1025
        %v1314 = vpack.c.b16 %v1032, %v1026
        %v1315 = vpack.c.b16 %v1033, %v1027
        %v1316 = vpack.c.b16 %v1040, %v1034
        %v1317 = vpack.c.b16 %v1041, %v1035
        %v1318 = vpack.c.b16 %v1042, %v1036
        %v1319 = vpack.c.b16 %v1043, %v1037
        %v1320 = vpack.c.b16 %v1044, %v1038
        %v1321 = vpack.c.b16 %v1045, %v1039
        %v1322 = vpack.c.b16 %v1052, %v1046
        %v1323 = vpack.c.b16 %v1053, %v1047
        %v1324 = vpack.c.b16 %v1054, %v1048
        %v1325 = vpack.c.b16 %v1055, %v1049
        %v1326 = vpack.c.b16 %v1056, %v1050
        %v1327 = vpack.c.b16 %v1057, %v1051
        %v1328 = vpack.c.b16 %v1064, %v1058
        %v1329 = vpack.c.b16 %v1065, %v1059
        %v1330 = vpack.c.b16 %v1066, %v1060
        %v1331 = vpack.c.b16 %v1067, %v1061
        %v1332 = vpack.c.b16 %v1068, %v1062
        %v1333 = vpack.c.b16 %v1069, %v1063
        %v1334 = vpack.c.b16 %v1076, %v1070
        %v1335 = vpack.c.b16 %v1077, %v1071
        %v1336 = vpack.c.b16 %v1078, %v1072
        %v1337 = vpack.c.b16 %v1079, %v1073
        %v1338 = vpack.c.b16 %v1080, %v1074
        %v1339 = vpack.c.b16 %v1081, %v1075
        %v1340 = vpack.c.b16 %v1088, %v1082
        %v1341 = vpack.c.b16 %v1089, %v1083
        %v1342 = vpack.c.b16 %v1090, %v1084
        %v1343 = vpack.c.b16 %v1091, %v1085
        %v1344 = vpack.c.b16 %v1092, %v1086
        %v1345 = vpack.c.b16 %v1093, %v1087
        %v1346 = vpack.c.b16 %v1100, %v1094
        %v1347 = vpack.c.b16 %v1101, %v1095
        %v1348 = vpack.c.b16 %v1102, %v1096
        %v1349 = vpack.c.b16 %v1103, %v1097
        %v1350 = vpack.c.b16 %v1104, %v1098
        %v1351 = vpack.c.b16 %v1105, %v1099
        %v1352 = vpack.c.b16 %v1112, %v1106
        %v1353 = vpack.c.b16 %v1113, %v1107
        %v1354 = vpack.c.b16 %v1114, %v1108
        %v1355 = vpack.c.b16 %v1115, %v1109
        %v1356 = vpack.c.b16 %v1116, %v1110
        %v1357 = vpack.c.b16 %v1117, %v1111
        %v1358 = vpack.c.b16 %v1124, %v1118
        %v1359 = vpack.c.b16 %v1125, %v1119
        %v1360 = vpack.c.b16 %v1126, %v1120
        %v1361 = vpack.c.b16 %v1127, %v1121
        %v1362 = vpack.c.b16 %v1128, %v1122
        %v1363 = vpack.c.b16 %v1129, %v1123
        %v1364 = vpack.c.b16 %v1136, %v1130
        %v1365 = vpack.c.b16 %v1137, %v1131
        %v1366 = vpack.c.b16 %v1138, %v1132
        %v1367 = vpack.c.b16 %v1139, %v1133
        %v1368 = vpack.c.b16 %v1140, %v1134
        %v1369 = vpack.c.b16 %v1141, %v1135
        %v1370 = vpack.c.b16 %v1148, %v1142
        %v1371 = vpack.c.b16 %v1149, %v1143
        %v1372 = vpack.c.b16 %v1150, %v1144
        %v1373 = vpack.c.b16 %v1151, %v1145
        %v1374 = vpack.c.b16 %v1152, %v1146
        %v1375 = vpack.c.b16 %v1153, %v1147
        %v1376 = vpack.c.b16 %v1160, %v1154
        %v1377 = vpack.c.b16 %v1161, %v1155
        %v1378 = vpack.c.b16 %v1162, %v1156
        %v1379 = vpack.c.b16 %v1163, %v1157
        %v1380 = vpack.c.b16 %v1164, %v1158
        %v1381 = vpack.c.b16 %v1165, %v1159
        %v1382 = vpack.c.b16 %v1172, %v1166
        %v1383 = vpack.c.b16 %v1173, %v1167
        %v1384 = vpack.c.b16 %v1174, %v1168
        %v1385 = vpack.c.b16 %v1175, %v1169
        %v1386 = vpack.c.b16 %v1176, %v1170
        %v1387 = vpack.c.b16 %v1177, %v1171
        %v1388 = vpack.c.b16 %v1184, %v1178
        %v1389 = vpack.c.b16 %v1185, %v1179
        %v1390 = vpack.c.b16 %v1186, %v1180
        %v1391 = vpack.c.b16 %v1187, %v1181
        %v1392 = vpack.c.b16 %v1188, %v1182
        %v1393 = vpack.c.b16 %v1189, %v1183
        %v1394 = vpack.c.b16 %v1196, %v1190
        %v1395 = vpack.c.b16 %v1197, %v1191
        %v1396 = vpack.c.b16 %v1198, %v1192
        %v1397 = vpack.c.b16 %v1199, %v1193
        %v1398 = vpack.c.b16 %v1200, %v1194
        %v1399 = vpack.c.b16 %v1201, %v1195
        %v1400 = vpack.c.b16 %v1208, %v1202
        %v1401 = vpack.c.b16 %v1209, %v1203
        %v1402 = vpack.c.b16 %v1210, %v1204
        %v1403 = vpack.c.b16 %v1211, %v1205
        %v1404 = vpack.c.b16 %v1212, %v1206
        %v1405 = vpack.c.b16 %v1213, %v1207
        %v1406 = vpack.c.b16 %v1220, %v1214
        %v1407 = vpack.c.b16 %v1221, %v1215
        %v1408 = vpack.c.b16 %v1222, %v1216
        %v1409 = vpack.c.b16 %v1223, %v1217
        %v1410 = vpack.c.b16 %v1224, %v1218
        %v1411 = vpack.c.b16 %v1225, %v1219
        %v1412 = vpack.c.b16 %v1232, %v1226
        %v1413 = vpack.c.b16 %v1233, %v1227
        %v1414 = vpack.c.b16 %v1234, %v1228
        %v1415 = vpack.c.b16 %v1235, %v1229
        %v1416 = vpack.c.b16 %v1236, %v1230
        %v1417 = vpack.c.b16 %v1237, %v1231
        %v1418 = vpack.c.b16 %v1244, %v1238
        %v1419 = vpack.c.b16 %v1245, %v1239
        %v1420 = vpack.c.b16 %v1246, %v1240
        %v1421 = vpack.c.b16 %v1247, %v1241
        %v1422 = vpack.c.b16 %v1248, %v1242
        %v1423 = vpack.c.b16 %v1249, %v1243
        %v1424 = vpack.c.b16 %v1256, %v1250
        %v1425 = vpack.c.b16 %v1257, %v1251
        %v1426 = vpack.c.b16 %v1258, %v1252
        %v1427 = vpack.c.b16 %v1259, %v1253
        %v1428 = vpack.c.b16 %v1260, %v1254
        %v1429 = vpack.c.b16 %v1261, %v1255
        %v1430 = vpack.c.b16 %v1268, %v1262
        %v1431 = vpack.c.b16 %v1269, %v1263
        %v1432 = vpack.c.b16 %v1270, %v1264
        %v1433 = vpack.c.b16 %v1271, %v1265
        %v1434 = vpack.c.b16 %v1272, %v1266
        %v1435 = vpack.c.b16 %v1273, %v1267
        %v1436 = vpack.c.b16 %v1280, %v1274
        %v1437 = vpack.c.b16 %v1281, %v1275
        %v1438 = vpack.c.b16 %v1282, %v1276
        %v1439 = vpack.c.b16 %v1283, %v1277
        %v1440 = vpack.c.b16 %v1284, %v1278
        %v1441 = vpack.c.b16 %v1285, %v1279
        %v1442 = vpack.c.b16 %v1292, %v1286
        %v1443 = vpack.c.b16 %v1293, %v1287
        %v1444 = vpack.c.b16 %v1294, %v1288
        %v1445 = vpack.c.b16 %v1295, %v1289
        %v1446 = vpack.c.b16 %v1296, %v1290
        %v1447 = vpack.c.b16 %v1297, %v1291
        %v1448 = vpack.c.b16 %v1304, %v1298
        %v1449 = vpack.c.b16 %v1305, %v1299
        %v1450 = vpack.c.b16 %v1306, %v1300
        %v1451 = vpack.c.b16 %v1307, %v1301
        %v1452 = vpack.c.b16 %v1308, %v1302
        %v1453 = vpack.c.b16 %v1309, %v1303
        %1598 = vmatpush.bf16.msra.mxu0 %v837
        %1599 = vmatpush.bf16.msra.mxu0 %v836
        %1600 = vmatpush.bf16.msra.mxu0 %v835
        %1601 = vmatpush.bf16.msra.mxu0 %v834
        %1602 = vmatpush.bf16.msra.mxu0 %v833
        %1603 = vmatpush.bf16.msra.mxu0 %v832
        %1604 = vmatpush.bf16.msra.mxu0 %v831
        %1605 = vmatpush.bf16.msra.mxu0 %v830
        %1606 = vmatmul.bf16.gmra.mxu0 %v1310
        %v1607 = vpop.f32.mrf.mxu0
        %v1608 = vadd.f32 0.0, %v1607
        %v1609 = vpop.f32.mrf.mxu0
        %v1610 = vadd.f32 0.0, %v1609
        %1611 = vmatmul.bf16.gmra.mxu0 %v1316
        %v1612 = vpop.f32.mrf.mxu0
        %v1613 = vadd.f32 0.0, %v1612
        %v1614 = vpop.f32.mrf.mxu0
        %v1615 = vadd.f32 0.0, %v1614
        %1616 = vmatmul.bf16.gmra.mxu0 %v1322
        %v1617 = vpop.f32.mrf.mxu0
        %v1618 = vadd.f32 0.0, %v1617
        %v1619 = vpop.f32.mrf.mxu0
        %v1620 = vadd.f32 0.0, %v1619
        %1621 = vmatmul.bf16.gmra.mxu0 %v1328
        %v1622 = vpop.f32.mrf.mxu0
        %v1623 = vadd.f32 0.0, %v1622
        %v1624 = vpop.f32.mrf.mxu0
        %v1625 = vadd.f32 0.0, %v1624
        %1626 = vmatmul.bf16.gmra.mxu0 %v1334
        %v1627 = vpop.f32.mrf.mxu0
        %v1628 = vadd.f32 0.0, %v1627
        %v1629 = vpop.f32.mrf.mxu0
        %v1630 = vadd.f32 0.0, %v1629
        %1631 = vmatmul.bf16.gmra.mxu0 %v1340
        %v1632 = vpop.f32.mrf.mxu0
        %v1633 = vadd.f32 0.0, %v1632
        %v1634 = vpop.f32.mrf.mxu0
        %v1635 = vadd.f32 0.0, %v1634
        %1636 = vmatmul.bf16.gmra.mxu0 %v1346
        %v1637 = vpop.f32.mrf.mxu0
        %v1638 = vadd.f32 0.0, %v1637
        %v1639 = vpop.f32.mrf.mxu0
        %v1640 = vadd.f32 0.0, %v1639
        %1641 = vmatmul.bf16.gmra.mxu0 %v1352
        %v1642 = vpop.f32.mrf.mxu0
        %v1643 = vadd.f32 0.0, %v1642
        %v1644 = vpop.f32.mrf.mxu0
        %v1645 = vadd.f32 0.0, %v1644
        %1646 = vmatmul.bf16.gmra.mxu0 %v1358
        %v1647 = vpop.f32.mrf.mxu0
        %v1648 = vadd.f32 0.0, %v1647
        %v1649 = vpop.f32.mrf.mxu0
        %v1650 = vadd.f32 0.0, %v1649
        %1651 = vmatmul.bf16.gmra.mxu0 %v1364
        %v1652 = vpop.f32.mrf.mxu0
        %v1653 = vadd.f32 0.0, %v1652
        %v1654 = vpop.f32.mrf.mxu0
        %v1655 = vadd.f32 0.0, %v1654
        %1656 = vmatmul.bf16.gmra.mxu0 %v1370
        %v1657 = vpop.f32.mrf.mxu0
        %v1658 = vadd.f32 0.0, %v1657
        %v1659 = vpop.f32.mrf.mxu0
        %v1660 = vadd.f32 0.0, %v1659
        %1661 = vmatmul.bf16.gmra.mxu0 %v1376
        %v1662 = vpop.f32.mrf.mxu0
        %v1663 = vadd.f32 0.0, %v1662
        %v1664 = vpop.f32.mrf.mxu0
        %v1665 = vadd.f32 0.0, %v1664
        %1666 = vmatmul.bf16.gmra.mxu0 %v1382
        %v1667 = vpop.f32.mrf.mxu0
        %v1668 = vadd.f32 0.0, %v1667
        %v1669 = vpop.f32.mrf.mxu0
        %v1670 = vadd.f32 0.0, %v1669
        %1671 = vmatmul.bf16.gmra.mxu0 %v1388
        %v1672 = vpop.f32.mrf.mxu0
        %v1673 = vadd.f32 0.0, %v1672
        %v1674 = vpop.f32.mrf.mxu0
        %v1675 = vadd.f32 0.0, %v1674
        %1676 = vmatmul.bf16.gmra.mxu0 %v1394
        %v1677 = vpop.f32.mrf.mxu0
        %v1678 = vadd.f32 0.0, %v1677
        %v1679 = vpop.f32.mrf.mxu0
        %v1680 = vadd.f32 0.0, %v1679
        %1681 = vmatmul.bf16.gmra.mxu0 %v1400
        %v1682 = vpop.f32.mrf.mxu0
        %v1683 = vadd.f32 0.0, %v1682
        %v1684 = vpop.f32.mrf.mxu0
        %v1685 = vadd.f32 0.0, %v1684
        %1686 = vmatmul.bf16.gmra.mxu0 %v1406
        %v1687 = vpop.f32.mrf.mxu0
        %v1688 = vadd.f32 0.0, %v1687
        %v1689 = vpop.f32.mrf.mxu0
        %v1690 = vadd.f32 0.0, %v1689
        %1691 = vmatmul.bf16.gmra.mxu0 %v1412
        %v1692 = vpop.f32.mrf.mxu0
        %v1693 = vadd.f32 0.0, %v1692
        %v1694 = vpop.f32.mrf.mxu0
        %v1695 = vadd.f32 0.0, %v1694
        %1696 = vmatmul.bf16.gmra.mxu0 %v1418
        %v1697 = vpop.f32.mrf.mxu0
        %v1698 = vadd.f32 0.0, %v1697
        %v1699 = vpop.f32.mrf.mxu0
        %v1700 = vadd.f32 0.0, %v1699
        %1701 = vmatmul.bf16.gmra.mxu0 %v1424
        %v1702 = vpop.f32.mrf.mxu0
        %v1703 = vadd.f32 0.0, %v1702
        %v1704 = vpop.f32.mrf.mxu0
        %v1705 = vadd.f32 0.0, %v1704
        %1706 = vmatmul.bf16.gmra.mxu0 %v1430
        %v1707 = vpop.f32.mrf.mxu0
        %v1708 = vadd.f32 0.0, %v1707
        %v1709 = vpop.f32.mrf.mxu0
        %v1710 = vadd.f32 0.0, %v1709
        %1711 = vmatmul.bf16.gmra.mxu0 %v1436
        %v1712 = vpop.f32.mrf.mxu0
        %v1713 = vadd.f32 0.0, %v1712
        %v1714 = vpop.f32.mrf.mxu0
        %v1715 = vadd.f32 0.0, %v1714
        %1716 = vmatmul.bf16.gmra.mxu0 %v1442
        %v1717 = vpop.f32.mrf.mxu0
        %v1718 = vadd.f32 0.0, %v1717
        %v1719 = vpop.f32.mrf.mxu0
        %v1720 = vadd.f32 0.0, %v1719
        %1721 = vmatmul.bf16.gmra.mxu0 %v1448
        %v1722 = vpop.f32.mrf.mxu0
        %v1723 = vadd.f32 0.0, %v1722
        %v1724 = vpop.f32.mrf.mxu0
        %v1725 = vadd.f32 0.0, %v1724
        %1726 = vdwg.mxu0
        %1727 = vmatpush.bf16.msra.mxu0 %v845
        %1728 = vmatpush.bf16.msra.mxu0 %v844
        %1729 = vmatpush.bf16.msra.mxu0 %v843
        %1730 = vmatpush.bf16.msra.mxu0 %v842
        %1731 = vmatpush.bf16.msra.mxu0 %v841
        %1732 = vmatpush.bf16.msra.mxu0 %v840
        %1733 = vmatpush.bf16.msra.mxu0 %v839
        %1734 = vmatpush.bf16.msra.mxu0 %v838
        %1735 = vmatmul.bf16.gmra.mxu0 %v1311
        %v1736 = vpop.f32.mrf.mxu0
        %v1737 = vadd.f32 %v1608, %v1736
        %v1738 = vpop.f32.mrf.mxu0
        %v1739 = vadd.f32 %v1610, %v1738
        %1740 = vmatmul.bf16.gmra.mxu0 %v1317
        %v1741 = vpop.f32.mrf.mxu0
        %v1742 = vadd.f32 %v1613, %v1741
        %v1743 = vpop.f32.mrf.mxu0
        %v1744 = vadd.f32 %v1615, %v1743
        %1745 = vmatmul.bf16.gmra.mxu0 %v1323
        %v1746 = vpop.f32.mrf.mxu0
        %v1747 = vadd.f32 %v1618, %v1746
        %v1748 = vpop.f32.mrf.mxu0
        %v1749 = vadd.f32 %v1620, %v1748
        %1750 = vmatmul.bf16.gmra.mxu0 %v1329
        %v1751 = vpop.f32.mrf.mxu0
        %v1752 = vadd.f32 %v1623, %v1751
        %v1753 = vpop.f32.mrf.mxu0
        %v1754 = vadd.f32 %v1625, %v1753
        %1755 = vmatmul.bf16.gmra.mxu0 %v1335
        %v1756 = vpop.f32.mrf.mxu0
        %v1757 = vadd.f32 %v1628, %v1756
        %v1758 = vpop.f32.mrf.mxu0
        %v1759 = vadd.f32 %v1630, %v1758
        %1760 = vmatmul.bf16.gmra.mxu0 %v1341
        %v1761 = vpop.f32.mrf.mxu0
        %v1762 = vadd.f32 %v1633, %v1761
        %v1763 = vpop.f32.mrf.mxu0
        %v1764 = vadd.f32 %v1635, %v1763
        %1765 = vmatmul.bf16.gmra.mxu0 %v1347
        %v1766 = vpop.f32.mrf.mxu0
        %v1767 = vadd.f32 %v1638, %v1766
        %v1768 = vpop.f32.mrf.mxu0
        %v1769 = vadd.f32 %v1640, %v1768
        %1770 = vmatmul.bf16.gmra.mxu0 %v1353
        %v1771 = vpop.f32.mrf.mxu0
        %v1772 = vadd.f32 %v1643, %v1771
        %v1773 = vpop.f32.mrf.mxu0
        %v1774 = vadd.f32 %v1645, %v1773
        %1775 = vmatmul.bf16.gmra.mxu0 %v1359
        %v1776 = vpop.f32.mrf.mxu0
        %v1777 = vadd.f32 %v1648, %v1776
        %v1778 = vpop.f32.mrf.mxu0
        %v1779 = vadd.f32 %v1650, %v1778
        %1780 = vmatmul.bf16.gmra.mxu0 %v1365
        %v1781 = vpop.f32.mrf.mxu0
        %v1782 = vadd.f32 %v1653, %v1781
        %v1783 = vpop.f32.mrf.mxu0
        %v1784 = vadd.f32 %v1655, %v1783
        %1785 = vmatmul.bf16.gmra.mxu0 %v1371
        %v1786 = vpop.f32.mrf.mxu0
        %v1787 = vadd.f32 %v1658, %v1786
        %v1788 = vpop.f32.mrf.mxu0
        %v1789 = vadd.f32 %v1660, %v1788
        %1790 = vmatmul.bf16.gmra.mxu0 %v1377
        %v1791 = vpop.f32.mrf.mxu0
        %v1792 = vadd.f32 %v1663, %v1791
        %v1793 = vpop.f32.mrf.mxu0
        %v1794 = vadd.f32 %v1665, %v1793
        %1795 = vmatmul.bf16.gmra.mxu0 %v1383
        %v1796 = vpop.f32.mrf.mxu0
        %v1797 = vadd.f32 %v1668, %v1796
        %v1798 = vpop.f32.mrf.mxu0
        %v1799 = vadd.f32 %v1670, %v1798
        %1800 = vmatmul.bf16.gmra.mxu0 %v1389
        %v1801 = vpop.f32.mrf.mxu0
        %v1802 = vadd.f32 %v1673, %v1801
        %v1803 = vpop.f32.mrf.mxu0
        %v1804 = vadd.f32 %v1675, %v1803
        %1805 = vmatmul.bf16.gmra.mxu0 %v1395
        %v1806 = vpop.f32.mrf.mxu0
        %v1807 = vadd.f32 %v1678, %v1806
        %v1808 = vpop.f32.mrf.mxu0
        %v1809 = vadd.f32 %v1680, %v1808
        %1810 = vmatmul.bf16.gmra.mxu0 %v1401
        %v1811 = vpop.f32.mrf.mxu0
        %v1812 = vadd.f32 %v1683, %v1811
        %v1813 = vpop.f32.mrf.mxu0
        %v1814 = vadd.f32 %v1685, %v1813
        %1815 = vmatmul.bf16.gmra.mxu0 %v1407
        %v1816 = vpop.f32.mrf.mxu0
        %v1817 = vadd.f32 %v1688, %v1816
        %v1818 = vpop.f32.mrf.mxu0
        %v1819 = vadd.f32 %v1690, %v1818
        %1820 = vmatmul.bf16.gmra.mxu0 %v1413
        %v1821 = vpop.f32.mrf.mxu0
        %v1822 = vadd.f32 %v1693, %v1821
        %v1823 = vpop.f32.mrf.mxu0
        %v1824 = vadd.f32 %v1695, %v1823
        %1825 = vmatmul.bf16.gmra.mxu0 %v1419
        %v1826 = vpop.f32.mrf.mxu0
        %v1827 = vadd.f32 %v1698, %v1826
        %v1828 = vpop.f32.mrf.mxu0
        %v1829 = vadd.f32 %v1700, %v1828
        %1830 = vmatmul.bf16.gmra.mxu0 %v1425
        %v1831 = vpop.f32.mrf.mxu0
        %v1832 = vadd.f32 %v1703, %v1831
        %v1833 = vpop.f32.mrf.mxu0
        %v1834 = vadd.f32 %v1705, %v1833
        %1835 = vmatmul.bf16.gmra.mxu0 %v1431
        %v1836 = vpop.f32.mrf.mxu0
        %v1837 = vadd.f32 %v1708, %v1836
        %v1838 = vpop.f32.mrf.mxu0
        %v1839 = vadd.f32 %v1710, %v1838
        %1840 = vmatmul.bf16.gmra.mxu0 %v1437
        %v1841 = vpop.f32.mrf.mxu0
        %v1842 = vadd.f32 %v1713, %v1841
        %v1843 = vpop.f32.mrf.mxu0
        %v1844 = vadd.f32 %v1715, %v1843
        %1845 = vmatmul.bf16.gmra.mxu0 %v1443
        %v1846 = vpop.f32.mrf.mxu0
        %v1847 = vadd.f32 %v1718, %v1846
        %v1848 = vpop.f32.mrf.mxu0
        %v1849 = vadd.f32 %v1720, %v1848
        %1850 = vmatmul.bf16.gmra.mxu0 %v1449
        %v1851 = vpop.f32.mrf.mxu0
        %v1852 = vadd.f32 %v1723, %v1851
        %v1853 = vpop.f32.mrf.mxu0
        %v1854 = vadd.f32 %v1725, %v1853
        %1855 = vdwg.mxu0
        %1856 = vmatpush.bf16.msra.mxu0 %v853
        %1857 = vmatpush.bf16.msra.mxu0 %v852
        %1858 = vmatpush.bf16.msra.mxu0 %v851
        %1859 = vmatpush.bf16.msra.mxu0 %v850
        %1860 = vmatpush.bf16.msra.mxu0 %v849
        %1861 = vmatpush.bf16.msra.mxu0 %v848
        %1862 = vmatpush.bf16.msra.mxu0 %v847
        %1863 = vmatpush.bf16.msra.mxu0 %v846
        %1864 = vmatmul.bf16.gmra.mxu0 %v1312
        %v1865 = vpop.f32.mrf.mxu0
        %v1866 = vadd.f32 %v1737, %v1865
        %v1867 = vpop.f32.mrf.mxu0
        %v1868 = vadd.f32 %v1739, %v1867
        %1869 = vmatmul.bf16.gmra.mxu0 %v1318
        %v1870 = vpop.f32.mrf.mxu0
        %v1871 = vadd.f32 %v1742, %v1870
        %v1872 = vpop.f32.mrf.mxu0
        %v1873 = vadd.f32 %v1744, %v1872
        %1874 = vmatmul.bf16.gmra.mxu0 %v1324
        %v1875 = vpop.f32.mrf.mxu0
        %v1876 = vadd.f32 %v1747, %v1875
        %v1877 = vpop.f32.mrf.mxu0
        %v1878 = vadd.f32 %v1749, %v1877
        %1879 = vmatmul.bf16.gmra.mxu0 %v1330
        %v1880 = vpop.f32.mrf.mxu0
        %v1881 = vadd.f32 %v1752, %v1880
        %v1882 = vpop.f32.mrf.mxu0
        %v1883 = vadd.f32 %v1754, %v1882
        %1884 = vmatmul.bf16.gmra.mxu0 %v1336
        %v1885 = vpop.f32.mrf.mxu0
        %v1886 = vadd.f32 %v1757, %v1885
        %v1887 = vpop.f32.mrf.mxu0
        %v1888 = vadd.f32 %v1759, %v1887
        %1889 = vmatmul.bf16.gmra.mxu0 %v1342
        %v1890 = vpop.f32.mrf.mxu0
        %v1891 = vadd.f32 %v1762, %v1890
        %v1892 = vpop.f32.mrf.mxu0
        %v1893 = vadd.f32 %v1764, %v1892
        %1894 = vmatmul.bf16.gmra.mxu0 %v1348
        %v1895 = vpop.f32.mrf.mxu0
        %v1896 = vadd.f32 %v1767, %v1895
        %v1897 = vpop.f32.mrf.mxu0
        %v1898 = vadd.f32 %v1769, %v1897
        %1899 = vmatmul.bf16.gmra.mxu0 %v1354
        %v1900 = vpop.f32.mrf.mxu0
        %v1901 = vadd.f32 %v1772, %v1900
        %v1902 = vpop.f32.mrf.mxu0
        %v1903 = vadd.f32 %v1774, %v1902
        %1904 = vmatmul.bf16.gmra.mxu0 %v1360
        %v1905 = vpop.f32.mrf.mxu0
        %v1906 = vadd.f32 %v1777, %v1905
        %v1907 = vpop.f32.mrf.mxu0
        %v1908 = vadd.f32 %v1779, %v1907
        %1909 = vmatmul.bf16.gmra.mxu0 %v1366
        %v1910 = vpop.f32.mrf.mxu0
        %v1911 = vadd.f32 %v1782, %v1910
        %v1912 = vpop.f32.mrf.mxu0
        %v1913 = vadd.f32 %v1784, %v1912
        %1914 = vmatmul.bf16.gmra.mxu0 %v1372
        %v1915 = vpop.f32.mrf.mxu0
        %v1916 = vadd.f32 %v1787, %v1915
        %v1917 = vpop.f32.mrf.mxu0
        %v1918 = vadd.f32 %v1789, %v1917
        %1919 = vmatmul.bf16.gmra.mxu0 %v1378
        %v1920 = vpop.f32.mrf.mxu0
        %v1921 = vadd.f32 %v1792, %v1920
        %v1922 = vpop.f32.mrf.mxu0
        %v1923 = vadd.f32 %v1794, %v1922
        %1924 = vmatmul.bf16.gmra.mxu0 %v1384
        %v1925 = vpop.f32.mrf.mxu0
        %v1926 = vadd.f32 %v1797, %v1925
        %v1927 = vpop.f32.mrf.mxu0
        %v1928 = vadd.f32 %v1799, %v1927
        %1929 = vmatmul.bf16.gmra.mxu0 %v1390
        %v1930 = vpop.f32.mrf.mxu0
        %v1931 = vadd.f32 %v1802, %v1930
        %v1932 = vpop.f32.mrf.mxu0
        %v1933 = vadd.f32 %v1804, %v1932
        %1934 = vmatmul.bf16.gmra.mxu0 %v1396
        %v1935 = vpop.f32.mrf.mxu0
        %v1936 = vadd.f32 %v1807, %v1935
        %v1937 = vpop.f32.mrf.mxu0
        %v1938 = vadd.f32 %v1809, %v1937
        %1939 = vmatmul.bf16.gmra.mxu0 %v1402
        %v1940 = vpop.f32.mrf.mxu0
        %v1941 = vadd.f32 %v1812, %v1940
        %v1942 = vpop.f32.mrf.mxu0
        %v1943 = vadd.f32 %v1814, %v1942
        %1944 = vmatmul.bf16.gmra.mxu0 %v1408
        %v1945 = vpop.f32.mrf.mxu0
        %v1946 = vadd.f32 %v1817, %v1945
        %v1947 = vpop.f32.mrf.mxu0
        %v1948 = vadd.f32 %v1819, %v1947
        %1949 = vmatmul.bf16.gmra.mxu0 %v1414
        %v1950 = vpop.f32.mrf.mxu0
        %v1951 = vadd.f32 %v1822, %v1950
        %v1952 = vpop.f32.mrf.mxu0
        %v1953 = vadd.f32 %v1824, %v1952
        %1954 = vmatmul.bf16.gmra.mxu0 %v1420
        %v1955 = vpop.f32.mrf.mxu0
        %v1956 = vadd.f32 %v1827, %v1955
        %v1957 = vpop.f32.mrf.mxu0
        %v1958 = vadd.f32 %v1829, %v1957
        %1959 = vmatmul.bf16.gmra.mxu0 %v1426
        %v1960 = vpop.f32.mrf.mxu0
        %v1961 = vadd.f32 %v1832, %v1960
        %v1962 = vpop.f32.mrf.mxu0
        %v1963 = vadd.f32 %v1834, %v1962
        %1964 = vmatmul.bf16.gmra.mxu0 %v1432
        %v1965 = vpop.f32.mrf.mxu0
        %v1966 = vadd.f32 %v1837, %v1965
        %v1967 = vpop.f32.mrf.mxu0
        %v1968 = vadd.f32 %v1839, %v1967
        %1969 = vmatmul.bf16.gmra.mxu0 %v1438
        %v1970 = vpop.f32.mrf.mxu0
        %v1971 = vadd.f32 %v1842, %v1970
        %v1972 = vpop.f32.mrf.mxu0
        %v1973 = vadd.f32 %v1844, %v1972
        %1974 = vmatmul.bf16.gmra.mxu0 %v1444
        %v1975 = vpop.f32.mrf.mxu0
        %v1976 = vadd.f32 %v1847, %v1975
        %v1977 = vpop.f32.mrf.mxu0
        %v1978 = vadd.f32 %v1849, %v1977
        %1979 = vmatmul.bf16.gmra.mxu0 %v1450
        %v1980 = vpop.f32.mrf.mxu0
        %v1981 = vadd.f32 %v1852, %v1980
        %v1982 = vpop.f32.mrf.mxu0
        %v1983 = vadd.f32 %v1854, %v1982
        %1984 = vdwg.mxu0
        %1985 = vmatpush.bf16.msra.mxu0 %v861
        %1986 = vmatpush.bf16.msra.mxu0 %v860
        %1987 = vmatpush.bf16.msra.mxu0 %v859
        %1988 = vmatpush.bf16.msra.mxu0 %v858
        %1989 = vmatpush.bf16.msra.mxu0 %v857
        %1990 = vmatpush.bf16.msra.mxu0 %v856
        %1991 = vmatpush.bf16.msra.mxu0 %v855
        %1992 = vmatpush.bf16.msra.mxu0 %v854
        %1993 = vmatmul.bf16.gmra.mxu0 %v1313
        %v1994 = vpop.f32.mrf.mxu0
        %v1995 = vadd.f32 %v1866, %v1994
        %v1996 = vpop.f32.mrf.mxu0
        %v1997 = vadd.f32 %v1868, %v1996
        %1998 = vmatmul.bf16.gmra.mxu0 %v1319
        %v1999 = vpop.f32.mrf.mxu0
        %v2000 = vadd.f32 %v1871, %v1999
        %v2001 = vpop.f32.mrf.mxu0
        %v2002 = vadd.f32 %v1873, %v2001
        %2003 = vmatmul.bf16.gmra.mxu0 %v1325
        %v2004 = vpop.f32.mrf.mxu0
        %v2005 = vadd.f32 %v1876, %v2004
        %v2006 = vpop.f32.mrf.mxu0
        %v2007 = vadd.f32 %v1878, %v2006
        %2008 = vmatmul.bf16.gmra.mxu0 %v1331
        %v2009 = vpop.f32.mrf.mxu0
        %v2010 = vadd.f32 %v1881, %v2009
        %v2011 = vpop.f32.mrf.mxu0
        %v2012 = vadd.f32 %v1883, %v2011
        %2013 = vmatmul.bf16.gmra.mxu0 %v1337
        %v2014 = vpop.f32.mrf.mxu0
        %v2015 = vadd.f32 %v1886, %v2014
        %v2016 = vpop.f32.mrf.mxu0
        %v2017 = vadd.f32 %v1888, %v2016
        %2018 = vmatmul.bf16.gmra.mxu0 %v1343
        %v2019 = vpop.f32.mrf.mxu0
        %v2020 = vadd.f32 %v1891, %v2019
        %v2021 = vpop.f32.mrf.mxu0
        %v2022 = vadd.f32 %v1893, %v2021
        %2023 = vmatmul.bf16.gmra.mxu0 %v1349
        %v2024 = vpop.f32.mrf.mxu0
        %v2025 = vadd.f32 %v1896, %v2024
        %v2026 = vpop.f32.mrf.mxu0
        %v2027 = vadd.f32 %v1898, %v2026
        %2028 = vmatmul.bf16.gmra.mxu0 %v1355
        %v2029 = vpop.f32.mrf.mxu0
        %v2030 = vadd.f32 %v1901, %v2029
        %v2031 = vpop.f32.mrf.mxu0
        %v2032 = vadd.f32 %v1903, %v2031
        %2033 = vmatmul.bf16.gmra.mxu0 %v1361
        %v2034 = vpop.f32.mrf.mxu0
        %v2035 = vadd.f32 %v1906, %v2034
        %v2036 = vpop.f32.mrf.mxu0
        %v2037 = vadd.f32 %v1908, %v2036
        %2038 = vmatmul.bf16.gmra.mxu0 %v1367
        %v2039 = vpop.f32.mrf.mxu0
        %v2040 = vadd.f32 %v1911, %v2039
        %v2041 = vpop.f32.mrf.mxu0
        %v2042 = vadd.f32 %v1913, %v2041
        %2043 = vmatmul.bf16.gmra.mxu0 %v1373
        %v2044 = vpop.f32.mrf.mxu0
        %v2045 = vadd.f32 %v1916, %v2044
        %v2046 = vpop.f32.mrf.mxu0
        %v2047 = vadd.f32 %v1918, %v2046
        %2048 = vmatmul.bf16.gmra.mxu0 %v1379
        %v2049 = vpop.f32.mrf.mxu0
        %v2050 = vadd.f32 %v1921, %v2049
        %v2051 = vpop.f32.mrf.mxu0
        %v2052 = vadd.f32 %v1923, %v2051
        %2053 = vmatmul.bf16.gmra.mxu0 %v1385
        %v2054 = vpop.f32.mrf.mxu0
        %v2055 = vadd.f32 %v1926, %v2054
        %v2056 = vpop.f32.mrf.mxu0
        %v2057 = vadd.f32 %v1928, %v2056
        %2058 = vmatmul.bf16.gmra.mxu0 %v1391
        %v2059 = vpop.f32.mrf.mxu0
        %v2060 = vadd.f32 %v1931, %v2059
        %v2061 = vpop.f32.mrf.mxu0
        %v2062 = vadd.f32 %v1933, %v2061
        %2063 = vmatmul.bf16.gmra.mxu0 %v1397
        %v2064 = vpop.f32.mrf.mxu0
        %v2065 = vadd.f32 %v1936, %v2064
        %v2066 = vpop.f32.mrf.mxu0
        %v2067 = vadd.f32 %v1938, %v2066
        %2068 = vmatmul.bf16.gmra.mxu0 %v1403
        %v2069 = vpop.f32.mrf.mxu0
        %v2070 = vadd.f32 %v1941, %v2069
        %v2071 = vpop.f32.mrf.mxu0
        %v2072 = vadd.f32 %v1943, %v2071
        %2073 = vmatmul.bf16.gmra.mxu0 %v1409
        %v2074 = vpop.f32.mrf.mxu0
        %v2075 = vadd.f32 %v1946, %v2074
        %v2076 = vpop.f32.mrf.mxu0
        %v2077 = vadd.f32 %v1948, %v2076
        %2078 = vmatmul.bf16.gmra.mxu0 %v1415
        %v2079 = vpop.f32.mrf.mxu0
        %v2080 = vadd.f32 %v1951, %v2079
        %v2081 = vpop.f32.mrf.mxu0
        %v2082 = vadd.f32 %v1953, %v2081
        %2083 = vmatmul.bf16.gmra.mxu0 %v1421
        %v2084 = vpop.f32.mrf.mxu0
        %v2085 = vadd.f32 %v1956, %v2084
        %v2086 = vpop.f32.mrf.mxu0
        %v2087 = vadd.f32 %v1958, %v2086
        %2088 = vmatmul.bf16.gmra.mxu0 %v1427
        %v2089 = vpop.f32.mrf.mxu0
        %v2090 = vadd.f32 %v1961, %v2089
        %v2091 = vpop.f32.mrf.mxu0
        %v2092 = vadd.f32 %v1963, %v2091
        %2093 = vmatmul.bf16.gmra.mxu0 %v1433
        %v2094 = vpop.f32.mrf.mxu0
        %v2095 = vadd.f32 %v1966, %v2094
        %v2096 = vpop.f32.mrf.mxu0
        %v2097 = vadd.f32 %v1968, %v2096
        %2098 = vmatmul.bf16.gmra.mxu0 %v1439
        %v2099 = vpop.f32.mrf.mxu0
        %v2100 = vadd.f32 %v1971, %v2099
        %v2101 = vpop.f32.mrf.mxu0
        %v2102 = vadd.f32 %v1973, %v2101
        %2103 = vmatmul.bf16.gmra.mxu0 %v1445
        %v2104 = vpop.f32.mrf.mxu0
        %v2105 = vadd.f32 %v1976, %v2104
        %v2106 = vpop.f32.mrf.mxu0
        %v2107 = vadd.f32 %v1978, %v2106
        %2108 = vmatmul.bf16.gmra.mxu0 %v1451
        %v2109 = vpop.f32.mrf.mxu0
        %v2110 = vadd.f32 %v1981, %v2109
        %v2111 = vpop.f32.mrf.mxu0
        %v2112 = vadd.f32 %v1983, %v2111
        %2113 = vdwg.mxu0
        %2114 = vmatpush.bf16.msra.mxu0 %v869
        %2115 = vmatpush.bf16.msra.mxu0 %v868
        %2116 = vmatpush.bf16.msra.mxu0 %v867
        %2117 = vmatpush.bf16.msra.mxu0 %v866
        %2118 = vmatpush.bf16.msra.mxu0 %v865
        %2119 = vmatpush.bf16.msra.mxu0 %v864
        %2120 = vmatpush.bf16.msra.mxu0 %v863
        %2121 = vmatpush.bf16.msra.mxu0 %v862
        %2122 = vmatmul.bf16.gmra.mxu0 %v1314
        %v2123 = vpop.f32.mrf.mxu0
        %v2124 = vadd.f32 %v1995, %v2123
        %v2125 = vpop.f32.mrf.mxu0
        %v2126 = vadd.f32 %v1997, %v2125
        %2127 = vmatmul.bf16.gmra.mxu0 %v1320
        %v2128 = vpop.f32.mrf.mxu0
        %v2129 = vadd.f32 %v2000, %v2128
        %v2130 = vpop.f32.mrf.mxu0
        %v2131 = vadd.f32 %v2002, %v2130
        %2132 = vmatmul.bf16.gmra.mxu0 %v1326
        %v2133 = vpop.f32.mrf.mxu0
        %v2134 = vadd.f32 %v2005, %v2133
        %v2135 = vpop.f32.mrf.mxu0
        %v2136 = vadd.f32 %v2007, %v2135
        %2137 = vmatmul.bf16.gmra.mxu0 %v1332
        %v2138 = vpop.f32.mrf.mxu0
        %v2139 = vadd.f32 %v2010, %v2138
        %v2140 = vpop.f32.mrf.mxu0
        %v2141 = vadd.f32 %v2012, %v2140
        %2142 = vmatmul.bf16.gmra.mxu0 %v1338
        %v2143 = vpop.f32.mrf.mxu0
        %v2144 = vadd.f32 %v2015, %v2143
        %v2145 = vpop.f32.mrf.mxu0
        %v2146 = vadd.f32 %v2017, %v2145
        %2147 = vmatmul.bf16.gmra.mxu0 %v1344
        %v2148 = vpop.f32.mrf.mxu0
        %v2149 = vadd.f32 %v2020, %v2148
        %v2150 = vpop.f32.mrf.mxu0
        %v2151 = vadd.f32 %v2022, %v2150
        %2152 = vmatmul.bf16.gmra.mxu0 %v1350
        %v2153 = vpop.f32.mrf.mxu0
        %v2154 = vadd.f32 %v2025, %v2153
        %v2155 = vpop.f32.mrf.mxu0
        %v2156 = vadd.f32 %v2027, %v2155
        %2157 = vmatmul.bf16.gmra.mxu0 %v1356
        %v2158 = vpop.f32.mrf.mxu0
        %v2159 = vadd.f32 %v2030, %v2158
        %v2160 = vpop.f32.mrf.mxu0
        %v2161 = vadd.f32 %v2032, %v2160
        %2162 = vmatmul.bf16.gmra.mxu0 %v1362
        %v2163 = vpop.f32.mrf.mxu0
        %v2164 = vadd.f32 %v2035, %v2163
        %v2165 = vpop.f32.mrf.mxu0
        %v2166 = vadd.f32 %v2037, %v2165
        %2167 = vmatmul.bf16.gmra.mxu0 %v1368
        %v2168 = vpop.f32.mrf.mxu0
        %v2169 = vadd.f32 %v2040, %v2168
        %v2170 = vpop.f32.mrf.mxu0
        %v2171 = vadd.f32 %v2042, %v2170
        %2172 = vmatmul.bf16.gmra.mxu0 %v1374
        %v2173 = vpop.f32.mrf.mxu0
        %v2174 = vadd.f32 %v2045, %v2173
        %v2175 = vpop.f32.mrf.mxu0
        %v2176 = vadd.f32 %v2047, %v2175
        %2177 = vmatmul.bf16.gmra.mxu0 %v1380
        %v2178 = vpop.f32.mrf.mxu0
        %v2179 = vadd.f32 %v2050, %v2178
        %v2180 = vpop.f32.mrf.mxu0
        %v2181 = vadd.f32 %v2052, %v2180
        %2182 = vmatmul.bf16.gmra.mxu0 %v1386
        %v2183 = vpop.f32.mrf.mxu0
        %v2184 = vadd.f32 %v2055, %v2183
        %v2185 = vpop.f32.mrf.mxu0
        %v2186 = vadd.f32 %v2057, %v2185
        %2187 = vmatmul.bf16.gmra.mxu0 %v1392
        %v2188 = vpop.f32.mrf.mxu0
        %v2189 = vadd.f32 %v2060, %v2188
        %v2190 = vpop.f32.mrf.mxu0
        %v2191 = vadd.f32 %v2062, %v2190
        %2192 = vmatmul.bf16.gmra.mxu0 %v1398
        %v2193 = vpop.f32.mrf.mxu0
        %v2194 = vadd.f32 %v2065, %v2193
        %v2195 = vpop.f32.mrf.mxu0
        %v2196 = vadd.f32 %v2067, %v2195
        %2197 = vmatmul.bf16.gmra.mxu0 %v1404
        %v2198 = vpop.f32.mrf.mxu0
        %v2199 = vadd.f32 %v2070, %v2198
        %v2200 = vpop.f32.mrf.mxu0
        %v2201 = vadd.f32 %v2072, %v2200
        %2202 = vmatmul.bf16.gmra.mxu0 %v1410
        %v2203 = vpop.f32.mrf.mxu0
        %v2204 = vadd.f32 %v2075, %v2203
        %v2205 = vpop.f32.mrf.mxu0
        %v2206 = vadd.f32 %v2077, %v2205
        %2207 = vmatmul.bf16.gmra.mxu0 %v1416
        %v2208 = vpop.f32.mrf.mxu0
        %v2209 = vadd.f32 %v2080, %v2208
        %v2210 = vpop.f32.mrf.mxu0
        %v2211 = vadd.f32 %v2082, %v2210
        %2212 = vmatmul.bf16.gmra.mxu0 %v1422
        %v2213 = vpop.f32.mrf.mxu0
        %v2214 = vadd.f32 %v2085, %v2213
        %v2215 = vpop.f32.mrf.mxu0
        %v2216 = vadd.f32 %v2087, %v2215
        %2217 = vmatmul.bf16.gmra.mxu0 %v1428
        %v2218 = vpop.f32.mrf.mxu0
        %v2219 = vadd.f32 %v2090, %v2218
        %v2220 = vpop.f32.mrf.mxu0
        %v2221 = vadd.f32 %v2092, %v2220
        %2222 = vmatmul.bf16.gmra.mxu0 %v1434
        %v2223 = vpop.f32.mrf.mxu0
        %v2224 = vadd.f32 %v2095, %v2223
        %v2225 = vpop.f32.mrf.mxu0
        %v2226 = vadd.f32 %v2097, %v2225
        %2227 = vmatmul.bf16.gmra.mxu0 %v1440
        %v2228 = vpop.f32.mrf.mxu0
        %v2229 = vadd.f32 %v2100, %v2228
        %v2230 = vpop.f32.mrf.mxu0
        %v2231 = vadd.f32 %v2102, %v2230
        %2232 = vmatmul.bf16.gmra.mxu0 %v1446
        %v2233 = vpop.f32.mrf.mxu0
        %v2234 = vadd.f32 %v2105, %v2233
        %v2235 = vpop.f32.mrf.mxu0
        %v2236 = vadd.f32 %v2107, %v2235
        %2237 = vmatmul.bf16.gmra.mxu0 %v1452
        %v2238 = vpop.f32.mrf.mxu0
        %v2239 = vadd.f32 %v2110, %v2238
        %v2240 = vpop.f32.mrf.mxu0
        %v2241 = vadd.f32 %v2112, %v2240
        %2242 = vdwg.mxu0
        %2243 = vmatpush.bf16.msra.mxu0 %v877
        %2244 = vmatpush.bf16.msra.mxu0 %v876
        %2245 = vmatpush.bf16.msra.mxu0 %v875
        %2246 = vmatpush.bf16.msra.mxu0 %v874
        %2247 = vmatpush.bf16.msra.mxu0 %v873
        %2248 = vmatpush.bf16.msra.mxu0 %v872
        %2249 = vmatpush.bf16.msra.mxu0 %v871
        %2250 = vmatpush.bf16.msra.mxu0 %v870
        %2251 = vmatmul.bf16.gmra.mxu0 %v1315
        %v2252 = vpop.f32.mrf.mxu0
        %v2253 = vadd.f32 %v2124, %v2252
        %v2254 = vpop.f32.mrf.mxu0
        %v2255 = vadd.f32 %v2126, %v2254
        %2256 = vmatmul.bf16.gmra.mxu0 %v1321
        %v2257 = vpop.f32.mrf.mxu0
        %v2258 = vadd.f32 %v2129, %v2257
        %v2259 = vpop.f32.mrf.mxu0
        %v2260 = vadd.f32 %v2131, %v2259
        %2261 = vmatmul.bf16.gmra.mxu0 %v1327
        %v2262 = vpop.f32.mrf.mxu0
        %v2263 = vadd.f32 %v2134, %v2262
        %v2264 = vpop.f32.mrf.mxu0
        %v2265 = vadd.f32 %v2136, %v2264
        %2266 = vmatmul.bf16.gmra.mxu0 %v1333
        %v2267 = vpop.f32.mrf.mxu0
        %v2268 = vadd.f32 %v2139, %v2267
        %v2269 = vpop.f32.mrf.mxu0
        %v2270 = vadd.f32 %v2141, %v2269
        %2271 = vmatmul.bf16.gmra.mxu0 %v1339
        %v2272 = vpop.f32.mrf.mxu0
        %v2273 = vadd.f32 %v2144, %v2272
        %v2274 = vpop.f32.mrf.mxu0
        %v2275 = vadd.f32 %v2146, %v2274
        %2276 = vmatmul.bf16.gmra.mxu0 %v1345
        %v2277 = vpop.f32.mrf.mxu0
        %v2278 = vadd.f32 %v2149, %v2277
        %v2279 = vpop.f32.mrf.mxu0
        %v2280 = vadd.f32 %v2151, %v2279
        %2281 = vmatmul.bf16.gmra.mxu0 %v1351
        %v2282 = vpop.f32.mrf.mxu0
        %v2283 = vadd.f32 %v2154, %v2282
        %v2284 = vpop.f32.mrf.mxu0
        %v2285 = vadd.f32 %v2156, %v2284
        %2286 = vmatmul.bf16.gmra.mxu0 %v1357
        %v2287 = vpop.f32.mrf.mxu0
        %v2288 = vadd.f32 %v2159, %v2287
        %v2289 = vpop.f32.mrf.mxu0
        %v2290 = vadd.f32 %v2161, %v2289
        %2291 = vmatmul.bf16.gmra.mxu0 %v1363
        %v2292 = vpop.f32.mrf.mxu0
        %v2293 = vadd.f32 %v2164, %v2292
        %v2294 = vpop.f32.mrf.mxu0
        %v2295 = vadd.f32 %v2166, %v2294
        %2296 = vmatmul.bf16.gmra.mxu0 %v1369
        %v2297 = vpop.f32.mrf.mxu0
        %v2298 = vadd.f32 %v2169, %v2297
        %v2299 = vpop.f32.mrf.mxu0
        %v2300 = vadd.f32 %v2171, %v2299
        %2301 = vmatmul.bf16.gmra.mxu0 %v1375
        %v2302 = vpop.f32.mrf.mxu0
        %v2303 = vadd.f32 %v2174, %v2302
        %v2304 = vpop.f32.mrf.mxu0
        %v2305 = vadd.f32 %v2176, %v2304
        %2306 = vmatmul.bf16.gmra.mxu0 %v1381
        %v2307 = vpop.f32.mrf.mxu0
        %v2308 = vadd.f32 %v2179, %v2307
        %v2309 = vpop.f32.mrf.mxu0
        %v2310 = vadd.f32 %v2181, %v2309
        %2311 = vmatmul.bf16.gmra.mxu0 %v1387
        %v2312 = vpop.f32.mrf.mxu0
        %v2313 = vadd.f32 %v2184, %v2312
        %v2314 = vpop.f32.mrf.mxu0
        %v2315 = vadd.f32 %v2186, %v2314
        %2316 = vmatmul.bf16.gmra.mxu0 %v1393
        %v2317 = vpop.f32.mrf.mxu0
        %v2318 = vadd.f32 %v2189, %v2317
        %v2319 = vpop.f32.mrf.mxu0
        %v2320 = vadd.f32 %v2191, %v2319
        %2321 = vmatmul.bf16.gmra.mxu0 %v1399
        %v2322 = vpop.f32.mrf.mxu0
        %v2323 = vadd.f32 %v2194, %v2322
        %v2324 = vpop.f32.mrf.mxu0
        %v2325 = vadd.f32 %v2196, %v2324
        %2326 = vmatmul.bf16.gmra.mxu0 %v1405
        %v2327 = vpop.f32.mrf.mxu0
        %v2328 = vadd.f32 %v2199, %v2327
        %v2329 = vpop.f32.mrf.mxu0
        %v2330 = vadd.f32 %v2201, %v2329
        %2331 = vmatmul.bf16.gmra.mxu0 %v1411
        %v2332 = vpop.f32.mrf.mxu0
        %v2333 = vadd.f32 %v2204, %v2332
        %v2334 = vpop.f32.mrf.mxu0
        %v2335 = vadd.f32 %v2206, %v2334
        %2336 = vmatmul.bf16.gmra.mxu0 %v1417
        %v2337 = vpop.f32.mrf.mxu0
        %v2338 = vadd.f32 %v2209, %v2337
        %v2339 = vpop.f32.mrf.mxu0
        %v2340 = vadd.f32 %v2211, %v2339
        %2341 = vmatmul.bf16.gmra.mxu0 %v1423
        %v2342 = vpop.f32.mrf.mxu0
        %v2343 = vadd.f32 %v2214, %v2342
        %v2344 = vpop.f32.mrf.mxu0
        %v2345 = vadd.f32 %v2216, %v2344
        %2346 = vmatmul.bf16.gmra.mxu0 %v1429
        %v2347 = vpop.f32.mrf.mxu0
        %v2348 = vadd.f32 %v2219, %v2347
        %v2349 = vpop.f32.mrf.mxu0
        %v2350 = vadd.f32 %v2221, %v2349
        %2351 = vmatmul.bf16.gmra.mxu0 %v1435
        %v2352 = vpop.f32.mrf.mxu0
        %v2353 = vadd.f32 %v2224, %v2352
        %v2354 = vpop.f32.mrf.mxu0
        %v2355 = vadd.f32 %v2226, %v2354
        %2356 = vmatmul.bf16.gmra.mxu0 %v1441
        %v2357 = vpop.f32.mrf.mxu0
        %v2358 = vadd.f32 %v2229, %v2357
        %v2359 = vpop.f32.mrf.mxu0
        %v2360 = vadd.f32 %v2231, %v2359
        %2361 = vmatmul.bf16.gmra.mxu0 %v1447
        %v2362 = vpop.f32.mrf.mxu0
        %v2363 = vadd.f32 %v2234, %v2362
        %v2364 = vpop.f32.mrf.mxu0
        %v2365 = vadd.f32 %v2236, %v2364
        %2366 = vmatmul.bf16.gmra.mxu0 %v1453
        %v2367 = vpop.f32.mrf.mxu0
        %v2368 = vadd.f32 %v2239, %v2367
        %v2369 = vpop.f32.mrf.mxu0
        %v2370 = vadd.f32 %v2241, %v2369
        %2371 = vdwg.mxu0
        %v2372 = vadd.f32 %v542, %v2253
        %v2373 = vadd.f32 %v543, %v2255
        %v2374 = vadd.f32 %v544, %v2258
        %v2375 = vadd.f32 %v545, %v2260
        %v2376 = vadd.f32 %v546, %v2263
        %v2377 = vadd.f32 %v547, %v2265
        %v2378 = vadd.f32 %v548, %v2268
        %v2379 = vadd.f32 %v549, %v2270
        %v2380 = vadd.f32 %v550, %v2273
        %v2381 = vadd.f32 %v551, %v2275
        %v2382 = vadd.f32 %v552, %v2278
        %v2383 = vadd.f32 %v553, %v2280
        %v2384 = vadd.f32 %v554, %v2283
        %v2385 = vadd.f32 %v555, %v2285
        %v2386 = vadd.f32 %v556, %v2288
        %v2387 = vadd.f32 %v557, %v2290
        %v2388 = vadd.f32 %v558, %v2293
        %v2389 = vadd.f32 %v559, %v2295
        %v2390 = vadd.f32 %v560, %v2298
        %v2391 = vadd.f32 %v561, %v2300
        %v2392 = vadd.f32 %v562, %v2303
        %v2393 = vadd.f32 %v563, %v2305
        %v2394 = vadd.f32 %v564, %v2308
        %v2395 = vadd.f32 %v565, %v2310
        %v2396 = vadd.f32 %v566, %v2313
        %v2397 = vadd.f32 %v567, %v2315
        %v2398 = vadd.f32 %v568, %v2318
        %v2399 = vadd.f32 %v569, %v2320
        %v2400 = vadd.f32 %v570, %v2323
        %v2401 = vadd.f32 %v571, %v2325
        %v2402 = vadd.f32 %v572, %v2328
        %v2403 = vadd.f32 %v573, %v2330
        %v2404 = vadd.f32 %v574, %v2333
        %v2405 = vadd.f32 %v575, %v2335
        %v2406 = vadd.f32 %v576, %v2338
        %v2407 = vadd.f32 %v577, %v2340
        %v2408 = vadd.f32 %v578, %v2343
        %v2409 = vadd.f32 %v579, %v2345
        %v2410 = vadd.f32 %v580, %v2348
        %v2411 = vadd.f32 %v581, %v2350
        %v2412 = vadd.f32 %v582, %v2353
        %v2413 = vadd.f32 %v583, %v2355
        %v2414 = vadd.f32 %v584, %v2358
        %v2415 = vadd.f32 %v585, %v2360
        %v2416 = vadd.f32 %v586, %v2363
        %v2417 = vadd.f32 %v587, %v2365
        %v2418 = vadd.f32 %v588, %v2368
        %v2419 = vadd.f32 %v589, %v2370
        %vm2420 = vcmask 130048
        %2421 = vst.msk [vmem:[%s432] sm:$0xff] %vm2420, %v2372
        %2422 = vst.msk [vmem:[%s432 + $0x8] sm:$0xff] %vm2420, %v2373
        %2423 = vst.msk [vmem:[%s432 + $0x10] sm:$0xff] %vm2420, %v2374
        %2424 = vst.msk [vmem:[%s432 + $0x18] sm:$0xff] %vm2420, %v2375
        %2425 = vst.msk [vmem:[%s432 + $0x20] sm:$0xff] %vm2420, %v2376
        %2426 = vst.msk [vmem:[%s432 + $0x28] sm:$0xff] %vm2420, %v2377
        %2427 = vst.msk [vmem:[%s432 + $0x30] sm:$0xff] %vm2420, %v2378
        %2428 = vst.msk [vmem:[%s432 + $0x38] sm:$0xff] %vm2420, %v2379
        %2429 = vst.msk [vmem:[%s432 + $0x40] sm:$0xff] %vm2420, %v2380
        %2430 = vst.msk [vmem:[%s432 + $0x48] sm:$0xff] %vm2420, %v2381
        %2431 = vst.msk [vmem:[%s432 + $0x50] sm:$0xff] %vm2420, %v2382
        %2432 = vst.msk [vmem:[%s432 + $0x58] sm:$0xff] %vm2420, %v2383
        %2433 = vst.msk [vmem:[%s432 + $0x60] sm:$0xff] %vm2420, %v2384
        %2434 = vst.msk [vmem:[%s432 + $0x68] sm:$0xff] %vm2420, %v2385
        %2435 = vst.msk [vmem:[%s432 + $0x70] sm:$0xff] %vm2420, %v2386
        %2436 = vst.msk [vmem:[%s432 + $0x78] sm:$0xff] %vm2420, %v2387
        %2437 = vst.msk [vmem:[%s432 + $0x80] sm:$0xff] %vm2420, %v2388
        %2438 = vst.msk [vmem:[%s432 + $0x88] sm:$0xff] %vm2420, %v2389
        %2439 = vst.msk [vmem:[%s432 + $0x90] sm:$0xff] %vm2420, %v2390
        %2440 = vst.msk [vmem:[%s432 + $0x98] sm:$0xff] %vm2420, %v2391
        %2441 = vst.msk [vmem:[%s432 + $0xa0] sm:$0xff] %vm2420, %v2392
        %2442 = vst.msk [vmem:[%s432 + $0xa8] sm:$0xff] %vm2420, %v2393
        %2443 = vst.msk [vmem:[%s432 + $0xb0] sm:$0xff] %vm2420, %v2394
        %2444 = vst.msk [vmem:[%s432 + $0xb8] sm:$0xff] %vm2420, %v2395
        %2445 = vst.msk [vmem:[%s432 + $0xc0] sm:$0xff] %vm2420, %v2396
        %2446 = vst.msk [vmem:[%s432 + $0xc8] sm:$0xff] %vm2420, %v2397
        %2447 = vst.msk [vmem:[%s432 + $0xd0] sm:$0xff] %vm2420, %v2398
        %2448 = vst.msk [vmem:[%s432 + $0xd8] sm:$0xff] %vm2420, %v2399
        %2449 = vst.msk [vmem:[%s432 + $0xe0] sm:$0xff] %vm2420, %v2400
        %2450 = vst.msk [vmem:[%s432 + $0xe8] sm:$0xff] %vm2420, %v2401
        %2451 = vst.msk [vmem:[%s432 + $0xf0] sm:$0xff] %vm2420, %v2402
        %2452 = vst.msk [vmem:[%s432 + $0xf8] sm:$0xff] %vm2420, %v2403
        %2453 = vst.msk [vmem:[%s432 + $0x100] sm:$0xff] %vm2420, %v2404
        %2454 = vst.msk [vmem:[%s432 + $0x108] sm:$0xff] %vm2420, %v2405
        %2455 = vst.msk [vmem:[%s432 + $0x110] sm:$0xff] %vm2420, %v2406
        %2456 = vst.msk [vmem:[%s432 + $0x118] sm:$0xff] %vm2420, %v2407
        %2457 = vst.msk [vmem:[%s432 + $0x120] sm:$0xff] %vm2420, %v2408
        %2458 = vst.msk [vmem:[%s432 + $0x128] sm:$0xff] %vm2420, %v2409
        %2459 = vst.msk [vmem:[%s432 + $0x130] sm:$0xff] %vm2420, %v2410
        %2460 = vst.msk [vmem:[%s432 + $0x138] sm:$0xff] %vm2420, %v2411
        %2461 = vst.msk [vmem:[%s432 + $0x140] sm:$0xff] %vm2420, %v2412
        %2462 = vst.msk [vmem:[%s432 + $0x148] sm:$0xff] %vm2420, %v2413
        %2463 = vst.msk [vmem:[%s432 + $0x150] sm:$0xff] %vm2420, %v2414
        %2464 = vst.msk [vmem:[%s432 + $0x158] sm:$0xff] %vm2420, %v2415
        %2465 = vst.msk [vmem:[%s432 + $0x160] sm:$0xff] %vm2420, %v2416
        %2466 = vst.msk [vmem:[%s432 + $0x168] sm:$0xff] %vm2420, %v2417
        %2467 = vst.msk [vmem:[%s432 + $0x170] sm:$0xff] %vm2420, %v2418
        %2468 = vst.msk [vmem:[%s432 + $0x178] sm:$0xff] %vm2420, %v2419
        // Predicated region
        $region57: #{cheb_conv.5} parent=51 // pred_check
          %p2469 = pneg %p489
        $region58: #{cheb_conv.5} parent=51 // pred_check_branch
          %2471 = sbr.rel (%p2469) target = $region60
        $region59: #{cheb_conv.5} parent=51 // pred_region
          %v2472 = vld [vmem:[%s432] sm:$0xff]
          %v2473 = vld [vmem:[%s432 + $0x8] sm:$0xff]
          %v2474 = vld [vmem:[%s432 + $0x10] sm:$0xff]
          %v2475 = vld [vmem:[%s432 + $0x18] sm:$0xff]
          %v2476 = vld [vmem:[%s432 + $0x20] sm:$0xff]
          %v2477 = vld [vmem:[%s432 + $0x28] sm:$0xff]
          %v2478 = vld [vmem:[%s432 + $0x30] sm:$0xff]
          %v2479 = vld [vmem:[%s432 + $0x38] sm:$0xff]
          %v2480 = vld [vmem:[%s432 + $0x40] sm:$0xff]
          %v2481 = vld [vmem:[%s432 + $0x48] sm:$0xff]
          %v2482 = vld [vmem:[%s432 + $0x50] sm:$0xff]
          %v2483 = vld [vmem:[%s432 + $0x58] sm:$0xff]
          %v2484 = vld [vmem:[%s432 + $0x60] sm:$0xff]
          %v2485 = vld [vmem:[%s432 + $0x68] sm:$0xff]
          %v2486 = vld [vmem:[%s432 + $0x70] sm:$0xff]
          %v2487 = vld [vmem:[%s432 + $0x78] sm:$0xff]
          %v2488 = vld [vmem:[%s432 + $0x80] sm:$0xff]
          %v2489 = vld [vmem:[%s432 + $0x88] sm:$0xff]
          %v2490 = vld [vmem:[%s432 + $0x90] sm:$0xff]
          %v2491 = vld [vmem:[%s432 + $0x98] sm:$0xff]
          %v2492 = vld [vmem:[%s432 + $0xa0] sm:$0xff]
          %v2493 = vld [vmem:[%s432 + $0xa8] sm:$0xff]
          %v2494 = vld [vmem:[%s432 + $0xb0] sm:$0xff]
          %v2495 = vld [vmem:[%s432 + $0xb8] sm:$0xff]
          %v2496 = vld [vmem:[%s432 + $0xc0] sm:$0xff]
          %v2497 = vld [vmem:[%s432 + $0xc8] sm:$0xff]
          %v2498 = vld [vmem:[%s432 + $0xd0] sm:$0xff]
          %v2499 = vld [vmem:[%s432 + $0xd8] sm:$0xff]
          %v2500 = vld [vmem:[%s432 + $0xe0] sm:$0xff]
          %v2501 = vld [vmem:[%s432 + $0xe8] sm:$0xff]
          %v2502 = vld [vmem:[%s432 + $0xf0] sm:$0xff]
          %v2503 = vld [vmem:[%s432 + $0xf8] sm:$0xff]
          %v2504 = vld [vmem:[%s432 + $0x100] sm:$0xff]
          %v2505 = vld [vmem:[%s432 + $0x108] sm:$0xff]
          %v2506 = vld [vmem:[%s432 + $0x110] sm:$0xff]
          %v2507 = vld [vmem:[%s432 + $0x118] sm:$0xff]
          %v2508 = vld [vmem:[%s432 + $0x120] sm:$0xff]
          %v2509 = vld [vmem:[%s432 + $0x128] sm:$0xff]
          %v2510 = vld [vmem:[%s432 + $0x130] sm:$0xff]
          %v2511 = vld [vmem:[%s432 + $0x138] sm:$0xff]
          %v2512 = vld [vmem:[%s432 + $0x140] sm:$0xff]
          %v2513 = vld [vmem:[%s432 + $0x148] sm:$0xff]
          %v2514 = vld [vmem:[%s432 + $0x150] sm:$0xff]
          %v2515 = vld [vmem:[%s432 + $0x158] sm:$0xff]
          %v2516 = vld [vmem:[%s432 + $0x160] sm:$0xff]
          %v2517 = vld [vmem:[%s432 + $0x168] sm:$0xff]
          %v2518 = vld [vmem:[%s432 + $0x170] sm:$0xff]
          %v2519 = vld [vmem:[%s432 + $0x178] sm:$0xff]
          %v2520 = vld [vmem:[%s474] sm:$0xff]
          %v2521 = vld [vmem:[%s474 + $0x8] sm:$0xff]
          %v2522 = vld [vmem:[%s474 + $0x10] sm:$0xff]
          %v2523 = vld [vmem:[%s474 + $0x18] sm:$0xff]
          %v2524 = vld [vmem:[%s474 + $0x20] sm:$0xff]
          %v2525 = vld [vmem:[%s474 + $0x28] sm:$0xff]
          %v2526 = vld [vmem:[%s474 + $0x30] sm:$0xff]
          %v2527 = vld [vmem:[%s474 + $0x38] sm:$0xff]
          %v2528 = vld [vmem:[%s474 + $0x40] sm:$0xff]
          %v2529 = vld [vmem:[%s474 + $0x48] sm:$0xff]
          %v2530 = vld [vmem:[%s474 + $0x50] sm:$0xff]
          %v2531 = vld [vmem:[%s474 + $0x58] sm:$0xff]
          %v2532 = vld [vmem:[%s474 + $0x60] sm:$0xff]
          %v2533 = vld [vmem:[%s474 + $0x68] sm:$0xff]
          %v2534 = vld [vmem:[%s474 + $0x70] sm:$0xff]
          %v2535 = vld [vmem:[%s474 + $0x78] sm:$0xff]
          %v2536 = vld [vmem:[%s474 + $0x80] sm:$0xff]
          %v2537 = vld [vmem:[%s474 + $0x88] sm:$0xff]
          %v2538 = vld [vmem:[%s474 + $0x90] sm:$0xff]
          %v2539 = vld [vmem:[%s474 + $0x98] sm:$0xff]
          %v2540 = vld [vmem:[%s474 + $0xa0] sm:$0xff]
          %v2541 = vld [vmem:[%s474 + $0xa8] sm:$0xff]
          %v2542 = vld [vmem:[%s474 + $0xb0] sm:$0xff]
          %v2543 = vld [vmem:[%s474 + $0xb8] sm:$0xff]
          %v2544 = vld [vmem:[%s474 + $0xc0] sm:$0xff]
          %v2545 = vld [vmem:[%s474 + $0xc8] sm:$0xff]
          %v2546 = vld [vmem:[%s474 + $0xd0] sm:$0xff]
          %v2547 = vld [vmem:[%s474 + $0xd8] sm:$0xff]
          %v2548 = vld [vmem:[%s474 + $0xe0] sm:$0xff]
          %v2549 = vld [vmem:[%s474 + $0xe8] sm:$0xff]
          %v2550 = vld [vmem:[%s474 + $0xf0] sm:$0xff]
          %v2551 = vld [vmem:[%s474 + $0xf8] sm:$0xff]
          %v2552 = vld [vmem:[%s474 + $0x100] sm:$0xff]
          %v2553 = vld [vmem:[%s474 + $0x108] sm:$0xff]
          %v2554 = vld [vmem:[%s474 + $0x110] sm:$0xff]
          %v2555 = vld [vmem:[%s474 + $0x118] sm:$0xff]
          %v2556 = vld [vmem:[%s474 + $0x120] sm:$0xff]
          %v2557 = vld [vmem:[%s474 + $0x128] sm:$0xff]
          %v2558 = vld [vmem:[%s474 + $0x130] sm:$0xff]
          %v2559 = vld [vmem:[%s474 + $0x138] sm:$0xff]
          %v2560 = vld [vmem:[%s474 + $0x140] sm:$0xff]
          %v2561 = vld [vmem:[%s474 + $0x148] sm:$0xff]
          %v2562 = vld [vmem:[%s474 + $0x150] sm:$0xff]
          %v2563 = vld [vmem:[%s474 + $0x158] sm:$0xff]
          %v2564 = vld [vmem:[%s474 + $0x160] sm:$0xff]
          %v2565 = vld [vmem:[%s474 + $0x168] sm:$0xff]
          %v2566 = vld [vmem:[%s474 + $0x170] sm:$0xff]
          %v2567 = vld [vmem:[%s474 + $0x178] sm:$0xff]
          %v2568 = vmul.f32 %v2472, -2.0
          %v2569 = vmul.f32 %v2473, -2.0
          %v2570 = vmul.f32 %v2474, -2.0
          %v2571 = vmul.f32 %v2475, -2.0
          %v2572 = vmul.f32 %v2476, -2.0
          %v2573 = vmul.f32 %v2477, -2.0
          %v2574 = vmul.f32 %v2478, -2.0
          %v2575 = vmul.f32 %v2479, -2.0
          %v2576 = vmul.f32 %v2480, -2.0
          %v2577 = vmul.f32 %v2481, -2.0
          %v2578 = vmul.f32 %v2482, -2.0
          %v2579 = vmul.f32 %v2483, -2.0
          %v2580 = vmul.f32 %v2484, -2.0
          %v2581 = vmul.f32 %v2485, -2.0
          %v2582 = vmul.f32 %v2486, -2.0
          %v2583 = vmul.f32 %v2487, -2.0
          %v2584 = vmul.f32 %v2488, -2.0
          %v2585 = vmul.f32 %v2489, -2.0
          %v2586 = vmul.f32 %v2490, -2.0
          %v2587 = vmul.f32 %v2491, -2.0
          %v2588 = vmul.f32 %v2492, -2.0
          %v2589 = vmul.f32 %v2493, -2.0
          %v2590 = vmul.f32 %v2494, -2.0
          %v2591 = vmul.f32 %v2495, -2.0
          %v2592 = vmul.f32 %v2496, -2.0
          %v2593 = vmul.f32 %v2497, -2.0
          %v2594 = vmul.f32 %v2498, -2.0
          %v2595 = vmul.f32 %v2499, -2.0
          %v2596 = vmul.f32 %v2500, -2.0
          %v2597 = vmul.f32 %v2501, -2.0
          %v2598 = vmul.f32 %v2502, -2.0
          %v2599 = vmul.f32 %v2503, -2.0
          %v2600 = vmul.f32 %v2504, -2.0
          %v2601 = vmul.f32 %v2505, -2.0
          %v2602 = vmul.f32 %v2506, -2.0
          %v2603 = vmul.f32 %v2507, -2.0
          %v2604 = vmul.f32 %v2508, -2.0
          %v2605 = vmul.f32 %v2509, -2.0
          %v2606 = vmul.f32 %v2510, -2.0
          %v2607 = vmul.f32 %v2511, -2.0
          %v2608 = vmul.f32 %v2512, -2.0
          %v2609 = vmul.f32 %v2513, -2.0
          %v2610 = vmul.f32 %v2514, -2.0
          %v2611 = vmul.f32 %v2515, -2.0
          %v2612 = vmul.f32 %v2516, -2.0
          %v2613 = vmul.f32 %v2517, -2.0
          %v2614 = vmul.f32 %v2518, -2.0
          %v2615 = vmul.f32 %v2519, -2.0
          %v2616 = vld [vmem:[%s462] sm:$0xff]
          %v2617 = vld [vmem:[%s462 + $0x8] sm:$0xff]
          %v2618 = vld [vmem:[%s462 + $0x10] sm:$0xff]
          %v2619 = vld [vmem:[%s462 + $0x18] sm:$0xff]
          %v2620 = vld [vmem:[%s462 + $0x20] sm:$0xff]
          %v2621 = vld [vmem:[%s462 + $0x28] sm:$0xff]
          %v2622 = vld [vmem:[%s462 + $0x30] sm:$0xff]
          %v2623 = vld [vmem:[%s462 + $0x38] sm:$0xff]
          %v2624 = vld [vmem:[%s462 + $0x40] sm:$0xff]
          %v2625 = vld [vmem:[%s462 + $0x48] sm:$0xff]
          %v2626 = vld [vmem:[%s462 + $0x50] sm:$0xff]
          %v2627 = vld [vmem:[%s462 + $0x58] sm:$0xff]
          %v2628 = vld [vmem:[%s462 + $0x60] sm:$0xff]
          %v2629 = vld [vmem:[%s462 + $0x68] sm:$0xff]
          %v2630 = vld [vmem:[%s462 + $0x70] sm:$0xff]
          %v2631 = vld [vmem:[%s462 + $0x78] sm:$0xff]
          %v2632 = vld [vmem:[%s462 + $0x80] sm:$0xff]
          %v2633 = vld [vmem:[%s462 + $0x88] sm:$0xff]
          %v2634 = vld [vmem:[%s462 + $0x90] sm:$0xff]
          %v2635 = vld [vmem:[%s462 + $0x98] sm:$0xff]
          %v2636 = vld [vmem:[%s462 + $0xa0] sm:$0xff]
          %v2637 = vld [vmem:[%s462 + $0xa8] sm:$0xff]
          %v2638 = vld [vmem:[%s462 + $0xb0] sm:$0xff]
          %v2639 = vld [vmem:[%s462 + $0xb8] sm:$0xff]
          %v2640 = vld [vmem:[%s462 + $0xc0] sm:$0xff]
          %v2641 = vld [vmem:[%s462 + $0xc8] sm:$0xff]
          %v2642 = vld [vmem:[%s462 + $0xd0] sm:$0xff]
          %v2643 = vld [vmem:[%s462 + $0xd8] sm:$0xff]
          %v2644 = vld [vmem:[%s462 + $0xe0] sm:$0xff]
          %v2645 = vld [vmem:[%s462 + $0xe8] sm:$0xff]
          %v2646 = vld [vmem:[%s462 + $0xf0] sm:$0xff]
          %v2647 = vld [vmem:[%s462 + $0xf8] sm:$0xff]
          %v2648 = vld [vmem:[%s462 + $0x100] sm:$0xff]
          %v2649 = vld [vmem:[%s462 + $0x108] sm:$0xff]
          %v2650 = vld [vmem:[%s462 + $0x110] sm:$0xff]
          %v2651 = vld [vmem:[%s462 + $0x118] sm:$0xff]
          %v2652 = vld [vmem:[%s462 + $0x120] sm:$0xff]
          %v2653 = vld [vmem:[%s462 + $0x128] sm:$0xff]
          %v2654 = vld [vmem:[%s462 + $0x130] sm:$0xff]
          %v2655 = vld [vmem:[%s462 + $0x138] sm:$0xff]
          %v2656 = vld [vmem:[%s462 + $0x140] sm:$0xff]
          %v2657 = vld [vmem:[%s462 + $0x148] sm:$0xff]
          %v2658 = vld [vmem:[%s462 + $0x150] sm:$0xff]
          %v2659 = vld [vmem:[%s462 + $0x158] sm:$0xff]
          %v2660 = vld [vmem:[%s462 + $0x160] sm:$0xff]
          %v2661 = vld [vmem:[%s462 + $0x168] sm:$0xff]
          %v2662 = vld [vmem:[%s462 + $0x170] sm:$0xff]
          %v2663 = vld [vmem:[%s462 + $0x178] sm:$0xff]
          %2665 = vset.pattern.permute.xlu0 0
          %2666 = vperm.xlu0 %2665, %v2520
          %v2667 = vpop.permute.xlu0 %2666
          %2670 = vset.pattern.permute.xlu0 0
          %2671 = vperm.xlu0 %2670, %v2521
          %v2672 = vpop.permute.xlu0 %2671
          %2675 = vset.pattern.permute.xlu0 0
          %2676 = vperm.xlu0 %2675, %v2522
          %v2677 = vpop.permute.xlu0 %2676
          %2680 = vset.pattern.permute.xlu0 0
          %2681 = vperm.xlu0 %2680, %v2523
          %v2682 = vpop.permute.xlu0 %2681
          %2685 = vset.pattern.permute.xlu0 0
          %2686 = vperm.xlu0 %2685, %v2524
          %v2687 = vpop.permute.xlu0 %2686
          %2690 = vset.pattern.permute.xlu0 0
          %2691 = vperm.xlu0 %2690, %v2525
          %v2692 = vpop.permute.xlu0 %2691
          %2695 = vset.pattern.permute.xlu0 0
          %2696 = vperm.xlu0 %2695, %v2526
          %v2697 = vpop.permute.xlu0 %2696
          %2700 = vset.pattern.permute.xlu0 0
          %2701 = vperm.xlu0 %2700, %v2527
          %v2702 = vpop.permute.xlu0 %2701
          %2705 = vset.pattern.permute.xlu0 0
          %2706 = vperm.xlu0 %2705, %v2528
          %v2707 = vpop.permute.xlu0 %2706
          %2710 = vset.pattern.permute.xlu0 0
          %2711 = vperm.xlu0 %2710, %v2529
          %v2712 = vpop.permute.xlu0 %2711
          %2715 = vset.pattern.permute.xlu0 0
          %2716 = vperm.xlu0 %2715, %v2530
          %v2717 = vpop.permute.xlu0 %2716
          %2720 = vset.pattern.permute.xlu0 0
          %2721 = vperm.xlu0 %2720, %v2531
          %v2722 = vpop.permute.xlu0 %2721
          %2725 = vset.pattern.permute.xlu0 0
          %2726 = vperm.xlu0 %2725, %v2532
          %v2727 = vpop.permute.xlu0 %2726
          %2730 = vset.pattern.permute.xlu0 0
          %2731 = vperm.xlu0 %2730, %v2533
          %v2732 = vpop.permute.xlu0 %2731
          %2735 = vset.pattern.permute.xlu0 0
          %2736 = vperm.xlu0 %2735, %v2534
          %v2737 = vpop.permute.xlu0 %2736
          %2740 = vset.pattern.permute.xlu0 0
          %2741 = vperm.xlu0 %2740, %v2535
          %v2742 = vpop.permute.xlu0 %2741
          %2745 = vset.pattern.permute.xlu0 0
          %2746 = vperm.xlu0 %2745, %v2536
          %v2747 = vpop.permute.xlu0 %2746
          %2750 = vset.pattern.permute.xlu0 0
          %2751 = vperm.xlu0 %2750, %v2537
          %v2752 = vpop.permute.xlu0 %2751
          %2755 = vset.pattern.permute.xlu0 0
          %2756 = vperm.xlu0 %2755, %v2538
          %v2757 = vpop.permute.xlu0 %2756
          %2760 = vset.pattern.permute.xlu0 0
          %2761 = vperm.xlu0 %2760, %v2539
          %v2762 = vpop.permute.xlu0 %2761
          %2765 = vset.pattern.permute.xlu0 0
          %2766 = vperm.xlu0 %2765, %v2540
          %v2767 = vpop.permute.xlu0 %2766
          %2770 = vset.pattern.permute.xlu0 0
          %2771 = vperm.xlu0 %2770, %v2541
          %v2772 = vpop.permute.xlu0 %2771
          %2775 = vset.pattern.permute.xlu0 0
          %2776 = vperm.xlu0 %2775, %v2542
          %v2777 = vpop.permute.xlu0 %2776
          %2780 = vset.pattern.permute.xlu0 0
          %2781 = vperm.xlu0 %2780, %v2543
          %v2782 = vpop.permute.xlu0 %2781
          %2785 = vset.pattern.permute.xlu0 0
          %2786 = vperm.xlu0 %2785, %v2544
          %v2787 = vpop.permute.xlu0 %2786
          %2790 = vset.pattern.permute.xlu0 0
          %2791 = vperm.xlu0 %2790, %v2545
          %v2792 = vpop.permute.xlu0 %2791
          %2795 = vset.pattern.permute.xlu0 0
          %2796 = vperm.xlu0 %2795, %v2546
          %v2797 = vpop.permute.xlu0 %2796
          %2800 = vset.pattern.permute.xlu0 0
          %2801 = vperm.xlu0 %2800, %v2547
          %v2802 = vpop.permute.xlu0 %2801
          %2805 = vset.pattern.permute.xlu0 0
          %2806 = vperm.xlu0 %2805, %v2548
          %v2807 = vpop.permute.xlu0 %2806
          %2810 = vset.pattern.permute.xlu0 0
          %2811 = vperm.xlu0 %2810, %v2549
          %v2812 = vpop.permute.xlu0 %2811
          %2815 = vset.pattern.permute.xlu0 0
          %2816 = vperm.xlu0 %2815, %v2550
          %v2817 = vpop.permute.xlu0 %2816
          %2820 = vset.pattern.permute.xlu0 0
          %2821 = vperm.xlu0 %2820, %v2551
          %v2822 = vpop.permute.xlu0 %2821
          %2825 = vset.pattern.permute.xlu0 0
          %2826 = vperm.xlu0 %2825, %v2552
          %v2827 = vpop.permute.xlu0 %2826
          %2830 = vset.pattern.permute.xlu0 0
          %2831 = vperm.xlu0 %2830, %v2553
          %v2832 = vpop.permute.xlu0 %2831
          %2835 = vset.pattern.permute.xlu0 0
          %2836 = vperm.xlu0 %2835, %v2554
          %v2837 = vpop.permute.xlu0 %2836
          %2840 = vset.pattern.permute.xlu0 0
          %2841 = vperm.xlu0 %2840, %v2555
          %v2842 = vpop.permute.xlu0 %2841
          %2845 = vset.pattern.permute.xlu0 0
          %2846 = vperm.xlu0 %2845, %v2556
          %v2847 = vpop.permute.xlu0 %2846
          %2850 = vset.pattern.permute.xlu0 0
          %2851 = vperm.xlu0 %2850, %v2557
          %v2852 = vpop.permute.xlu0 %2851
          %2855 = vset.pattern.permute.xlu0 0
          %2856 = vperm.xlu0 %2855, %v2558
          %v2857 = vpop.permute.xlu0 %2856
          %2860 = vset.pattern.permute.xlu0 0
          %2861 = vperm.xlu0 %2860, %v2559
          %v2862 = vpop.permute.xlu0 %2861
          %2865 = vset.pattern.permute.xlu0 0
          %2866 = vperm.xlu0 %2865, %v2560
          %v2867 = vpop.permute.xlu0 %2866
          %2870 = vset.pattern.permute.xlu0 0
          %2871 = vperm.xlu0 %2870, %v2561
          %v2872 = vpop.permute.xlu0 %2871
          %2875 = vset.pattern.permute.xlu0 0
          %2876 = vperm.xlu0 %2875, %v2562
          %v2877 = vpop.permute.xlu0 %2876
          %2880 = vset.pattern.permute.xlu0 0
          %2881 = vperm.xlu0 %2880, %v2563
          %v2882 = vpop.permute.xlu0 %2881
          %2885 = vset.pattern.permute.xlu0 0
          %2886 = vperm.xlu0 %2885, %v2564
          %v2887 = vpop.permute.xlu0 %2886
          %2890 = vset.pattern.permute.xlu0 0
          %2891 = vperm.xlu0 %2890, %v2565
          %v2892 = vpop.permute.xlu0 %2891
          %2895 = vset.pattern.permute.xlu0 0
          %2896 = vperm.xlu0 %2895, %v2566
          %v2897 = vpop.permute.xlu0 %2896
          %2900 = vset.pattern.permute.xlu0 0
          %2901 = vperm.xlu0 %2900, %v2567
          %v2902 = vpop.permute.xlu0 %2901
          %v2904 = vmul.f32 %v2667, %v2616
          %v2905 = vmul.f32 %v2672, %v2617
          %v2906 = vmul.f32 %v2677, %v2618
          %v2907 = vmul.f32 %v2682, %v2619
          %v2908 = vmul.f32 %v2687, %v2620
          %v2909 = vmul.f32 %v2692, %v2621
          %v2910 = vmul.f32 %v2697, %v2622
          %v2911 = vmul.f32 %v2702, %v2623
          %v2912 = vmul.f32 %v2707, %v2624
          %v2913 = vmul.f32 %v2712, %v2625
          %v2914 = vmul.f32 %v2717, %v2626
          %v2915 = vmul.f32 %v2722, %v2627
          %v2916 = vmul.f32 %v2727, %v2628
          %v2917 = vmul.f32 %v2732, %v2629
          %v2918 = vmul.f32 %v2737, %v2630
          %v2919 = vmul.f32 %v2742, %v2631
          %v2920 = vmul.f32 %v2747, %v2632
          %v2921 = vmul.f32 %v2752, %v2633
          %v2922 = vmul.f32 %v2757, %v2634
          %v2923 = vmul.f32 %v2762, %v2635
          %v2924 = vmul.f32 %v2767, %v2636
          %v2925 = vmul.f32 %v2772, %v2637
          %v2926 = vmul.f32 %v2777, %v2638
          %v2927 = vmul.f32 %v2782, %v2639
          %v2928 = vmul.f32 %v2787, %v2640
          %v2929 = vmul.f32 %v2792, %v2641
          %v2930 = vmul.f32 %v2797, %v2642
          %v2931 = vmul.f32 %v2802, %v2643
          %v2932 = vmul.f32 %v2807, %v2644
          %v2933 = vmul.f32 %v2812, %v2645
          %v2934 = vmul.f32 %v2817, %v2646
          %v2935 = vmul.f32 %v2822, %v2647
          %v2936 = vmul.f32 %v2827, %v2648
          %v2937 = vmul.f32 %v2832, %v2649
          %v2938 = vmul.f32 %v2837, %v2650
          %v2939 = vmul.f32 %v2842, %v2651
          %v2940 = vmul.f32 %v2847, %v2652
          %v2941 = vmul.f32 %v2852, %v2653
          %v2942 = vmul.f32 %v2857, %v2654
          %v2943 = vmul.f32 %v2862, %v2655
          %v2944 = vmul.f32 %v2867, %v2656
          %v2945 = vmul.f32 %v2872, %v2657
          %v2946 = vmul.f32 %v2877, %v2658
          %v2947 = vmul.f32 %v2882, %v2659
          %v2948 = vmul.f32 %v2887, %v2660
          %v2949 = vmul.f32 %v2892, %v2661
          %v2950 = vmul.f32 %v2897, %v2662
          %v2951 = vmul.f32 %v2902, %v2663
          %v2952 = vmul.f32 %v2904, 2.0
          %v2953 = vmul.f32 %v2905, 2.0
          %v2954 = vmul.f32 %v2906, 2.0
          %v2955 = vmul.f32 %v2907, 2.0
          %v2956 = vmul.f32 %v2908, 2.0
          %v2957 = vmul.f32 %v2909, 2.0
          %v2958 = vmul.f32 %v2910, 2.0
          %v2959 = vmul.f32 %v2911, 2.0
          %v2960 = vmul.f32 %v2912, 2.0
          %v2961 = vmul.f32 %v2913, 2.0
          %v2962 = vmul.f32 %v2914, 2.0
          %v2963 = vmul.f32 %v2915, 2.0
          %v2964 = vmul.f32 %v2916, 2.0
          %v2965 = vmul.f32 %v2917, 2.0
          %v2966 = vmul.f32 %v2918, 2.0
          %v2967 = vmul.f32 %v2919, 2.0
          %v2968 = vmul.f32 %v2920, 2.0
          %v2969 = vmul.f32 %v2921, 2.0
          %v2970 = vmul.f32 %v2922, 2.0
          %v2971 = vmul.f32 %v2923, 2.0
          %v2972 = vmul.f32 %v2924, 2.0
          %v2973 = vmul.f32 %v2925, 2.0
          %v2974 = vmul.f32 %v2926, 2.0
          %v2975 = vmul.f32 %v2927, 2.0
          %v2976 = vmul.f32 %v2928, 2.0
          %v2977 = vmul.f32 %v2929, 2.0
          %v2978 = vmul.f32 %v2930, 2.0
          %v2979 = vmul.f32 %v2931, 2.0
          %v2980 = vmul.f32 %v2932, 2.0
          %v2981 = vmul.f32 %v2933, 2.0
          %v2982 = vmul.f32 %v2934, 2.0
          %v2983 = vmul.f32 %v2935, 2.0
          %v2984 = vmul.f32 %v2936, 2.0
          %v2985 = vmul.f32 %v2937, 2.0
          %v2986 = vmul.f32 %v2938, 2.0
          %v2987 = vmul.f32 %v2939, 2.0
          %v2988 = vmul.f32 %v2940, 2.0
          %v2989 = vmul.f32 %v2941, 2.0
          %v2990 = vmul.f32 %v2942, 2.0
          %v2991 = vmul.f32 %v2943, 2.0
          %v2992 = vmul.f32 %v2944, 2.0
          %v2993 = vmul.f32 %v2945, 2.0
          %v2994 = vmul.f32 %v2946, 2.0
          %v2995 = vmul.f32 %v2947, 2.0
          %v2996 = vmul.f32 %v2948, 2.0
          %v2997 = vmul.f32 %v2949, 2.0
          %v2998 = vmul.f32 %v2950, 2.0
          %v2999 = vmul.f32 %v2951, 2.0
          %v3000 = vadd.f32 %v2568, %v2952
          %v3001 = vadd.f32 %v2569, %v2953
          %v3002 = vadd.f32 %v2570, %v2954
          %v3003 = vadd.f32 %v2571, %v2955
          %v3004 = vadd.f32 %v2572, %v2956
          %v3005 = vadd.f32 %v2573, %v2957
          %v3006 = vadd.f32 %v2574, %v2958
          %v3007 = vadd.f32 %v2575, %v2959
          %v3008 = vadd.f32 %v2576, %v2960
          %v3009 = vadd.f32 %v2577, %v2961
          %v3010 = vadd.f32 %v2578, %v2962
          %v3011 = vadd.f32 %v2579, %v2963
          %v3012 = vadd.f32 %v2580, %v2964
          %v3013 = vadd.f32 %v2581, %v2965
          %v3014 = vadd.f32 %v2582, %v2966
          %v3015 = vadd.f32 %v2583, %v2967
          %v3016 = vadd.f32 %v2584, %v2968
          %v3017 = vadd.f32 %v2585, %v2969
          %v3018 = vadd.f32 %v2586, %v2970
          %v3019 = vadd.f32 %v2587, %v2971
          %v3020 = vadd.f32 %v2588, %v2972
          %v3021 = vadd.f32 %v2589, %v2973
          %v3022 = vadd.f32 %v2590, %v2974
          %v3023 = vadd.f32 %v2591, %v2975
          %v3024 = vadd.f32 %v2592, %v2976
          %v3025 = vadd.f32 %v2593, %v2977
          %v3026 = vadd.f32 %v2594, %v2978
          %v3027 = vadd.f32 %v2595, %v2979
          %v3028 = vadd.f32 %v2596, %v2980
          %v3029 = vadd.f32 %v2597, %v2981
          %v3030 = vadd.f32 %v2598, %v2982
          %v3031 = vadd.f32 %v2599, %v2983
          %v3032 = vadd.f32 %v2600, %v2984
          %v3033 = vadd.f32 %v2601, %v2985
          %v3034 = vadd.f32 %v2602, %v2986
          %v3035 = vadd.f32 %v2603, %v2987
          %v3036 = vadd.f32 %v2604, %v2988
          %v3037 = vadd.f32 %v2605, %v2989
          %v3038 = vadd.f32 %v2606, %v2990
          %v3039 = vadd.f32 %v2607, %v2991
          %v3040 = vadd.f32 %v2608, %v2992
          %v3041 = vadd.f32 %v2609, %v2993
          %v3042 = vadd.f32 %v2610, %v2994
          %v3043 = vadd.f32 %v2611, %v2995
          %v3044 = vadd.f32 %v2612, %v2996
          %v3045 = vadd.f32 %v2613, %v2997
          %v3046 = vadd.f32 %v2614, %v2998
          %v3047 = vadd.f32 %v2615, %v2999
          %v3048 = vld [vmem:[%s468] sm:$0xff]
          %v3049 = vld [vmem:[%s468 + $0x8] sm:$0xff]
          %v3050 = vld [vmem:[%s468 + $0x10] sm:$0xff]
          %v3051 = vld [vmem:[%s468 + $0x18] sm:$0xff]
          %v3052 = vld [vmem:[%s468 + $0x20] sm:$0xff]
          %v3053 = vld [vmem:[%s468 + $0x28] sm:$0xff]
          %v3054 = vld [vmem:[%s468 + $0x30] sm:$0xff]
          %v3055 = vld [vmem:[%s468 + $0x38] sm:$0xff]
          %v3056 = vld [vmem:[%s468 + $0x40] sm:$0xff]
          %v3057 = vld [vmem:[%s468 + $0x48] sm:$0xff]
          %v3058 = vld [vmem:[%s468 + $0x50] sm:$0xff]
          %v3059 = vld [vmem:[%s468 + $0x58] sm:$0xff]
          %v3060 = vld [vmem:[%s468 + $0x60] sm:$0xff]
          %v3061 = vld [vmem:[%s468 + $0x68] sm:$0xff]
          %v3062 = vld [vmem:[%s468 + $0x70] sm:$0xff]
          %v3063 = vld [vmem:[%s468 + $0x78] sm:$0xff]
          %v3064 = vld [vmem:[%s468 + $0x80] sm:$0xff]
          %v3065 = vld [vmem:[%s468 + $0x88] sm:$0xff]
          %v3066 = vld [vmem:[%s468 + $0x90] sm:$0xff]
          %v3067 = vld [vmem:[%s468 + $0x98] sm:$0xff]
          %v3068 = vld [vmem:[%s468 + $0xa0] sm:$0xff]
          %v3069 = vld [vmem:[%s468 + $0xa8] sm:$0xff]
          %v3070 = vld [vmem:[%s468 + $0xb0] sm:$0xff]
          %v3071 = vld [vmem:[%s468 + $0xb8] sm:$0xff]
          %v3072 = vld [vmem:[%s468 + $0xc0] sm:$0xff]
          %v3073 = vld [vmem:[%s468 + $0xc8] sm:$0xff]
          %v3074 = vld [vmem:[%s468 + $0xd0] sm:$0xff]
          %v3075 = vld [vmem:[%s468 + $0xd8] sm:$0xff]
          %v3076 = vld [vmem:[%s468 + $0xe0] sm:$0xff]
          %v3077 = vld [vmem:[%s468 + $0xe8] sm:$0xff]
          %v3078 = vld [vmem:[%s468 + $0xf0] sm:$0xff]
          %v3079 = vld [vmem:[%s468 + $0xf8] sm:$0xff]
          %v3080 = vld [vmem:[%s468 + $0x100] sm:$0xff]
          %v3081 = vld [vmem:[%s468 + $0x108] sm:$0xff]
          %v3082 = vld [vmem:[%s468 + $0x110] sm:$0xff]
          %v3083 = vld [vmem:[%s468 + $0x118] sm:$0xff]
          %v3084 = vld [vmem:[%s468 + $0x120] sm:$0xff]
          %v3085 = vld [vmem:[%s468 + $0x128] sm:$0xff]
          %v3086 = vld [vmem:[%s468 + $0x130] sm:$0xff]
          %v3087 = vld [vmem:[%s468 + $0x138] sm:$0xff]
          %v3088 = vld [vmem:[%s468 + $0x140] sm:$0xff]
          %v3089 = vld [vmem:[%s468 + $0x148] sm:$0xff]
          %v3090 = vld [vmem:[%s468 + $0x150] sm:$0xff]
          %v3091 = vld [vmem:[%s468 + $0x158] sm:$0xff]
          %v3092 = vld [vmem:[%s468 + $0x160] sm:$0xff]
          %v3093 = vld [vmem:[%s468 + $0x168] sm:$0xff]
          %v3094 = vld [vmem:[%s468 + $0x170] sm:$0xff]
          %v3095 = vld [vmem:[%s468 + $0x178] sm:$0xff]
          %v3096 = vsub.f32 %v3000, %v3048
          %v3097 = vsub.f32 %v3001, %v3049
          %v3098 = vsub.f32 %v3002, %v3050
          %v3099 = vsub.f32 %v3003, %v3051
          %v3100 = vsub.f32 %v3004, %v3052
          %v3101 = vsub.f32 %v3005, %v3053
          %v3102 = vsub.f32 %v3006, %v3054
          %v3103 = vsub.f32 %v3007, %v3055
          %v3104 = vsub.f32 %v3008, %v3056
          %v3105 = vsub.f32 %v3009, %v3057
          %v3106 = vsub.f32 %v3010, %v3058
          %v3107 = vsub.f32 %v3011, %v3059
          %v3108 = vsub.f32 %v3012, %v3060
          %v3109 = vsub.f32 %v3013, %v3061
          %v3110 = vsub.f32 %v3014, %v3062
          %v3111 = vsub.f32 %v3015, %v3063
          %v3112 = vsub.f32 %v3016, %v3064
          %v3113 = vsub.f32 %v3017, %v3065
          %v3114 = vsub.f32 %v3018, %v3066
          %v3115 = vsub.f32 %v3019, %v3067
          %v3116 = vsub.f32 %v3020, %v3068
          %v3117 = vsub.f32 %v3021, %v3069
          %v3118 = vsub.f32 %v3022, %v3070
          %v3119 = vsub.f32 %v3023, %v3071
          %v3120 = vsub.f32 %v3024, %v3072
          %v3121 = vsub.f32 %v3025, %v3073
          %v3122 = vsub.f32 %v3026, %v3074
          %v3123 = vsub.f32 %v3027, %v3075
          %v3124 = vsub.f32 %v3028, %v3076
          %v3125 = vsub.f32 %v3029, %v3077
          %v3126 = vsub.f32 %v3030, %v3078
          %v3127 = vsub.f32 %v3031, %v3079
          %v3128 = vsub.f32 %v3032, %v3080
          %v3129 = vsub.f32 %v3033, %v3081
          %v3130 = vsub.f32 %v3034, %v3082
          %v3131 = vsub.f32 %v3035, %v3083
          %v3132 = vsub.f32 %v3036, %v3084
          %v3133 = vsub.f32 %v3037, %v3085
          %v3134 = vsub.f32 %v3038, %v3086
          %v3135 = vsub.f32 %v3039, %v3087
          %v3136 = vsub.f32 %v3040, %v3088
          %v3137 = vsub.f32 %v3041, %v3089
          %v3138 = vsub.f32 %v3042, %v3090
          %v3139 = vsub.f32 %v3043, %v3091
          %v3140 = vsub.f32 %v3044, %v3092
          %v3141 = vsub.f32 %v3045, %v3093
          %v3142 = vsub.f32 %v3046, %v3094
          %v3143 = vsub.f32 %v3047, %v3095
          %3144 = vst.msk [vmem:[%s432] sm:$0xff] %vm2420, %v3096
          %3145 = vst.msk [vmem:[%s432 + $0x8] sm:$0xff] %vm2420, %v3097
          %3146 = vst.msk [vmem:[%s432 + $0x10] sm:$0xff] %vm2420, %v3098
          %3147 = vst.msk [vmem:[%s432 + $0x18] sm:$0xff] %vm2420, %v3099
          %3148 = vst.msk [vmem:[%s432 + $0x20] sm:$0xff] %vm2420, %v3100
          %3149 = vst.msk [vmem:[%s432 + $0x28] sm:$0xff] %vm2420, %v3101
          %3150 = vst.msk [vmem:[%s432 + $0x30] sm:$0xff] %vm2420, %v3102
          %3151 = vst.msk [vmem:[%s432 + $0x38] sm:$0xff] %vm2420, %v3103
          %3152 = vst.msk [vmem:[%s432 + $0x40] sm:$0xff] %vm2420, %v3104
          %3153 = vst.msk [vmem:[%s432 + $0x48] sm:$0xff] %vm2420, %v3105
          %3154 = vst.msk [vmem:[%s432 + $0x50] sm:$0xff] %vm2420, %v3106
          %3155 = vst.msk [vmem:[%s432 + $0x58] sm:$0xff] %vm2420, %v3107
          %3156 = vst.msk [vmem:[%s432 + $0x60] sm:$0xff] %vm2420, %v3108
          %3157 = vst.msk [vmem:[%s432 + $0x68] sm:$0xff] %vm2420, %v3109
          %3158 = vst.msk [vmem:[%s432 + $0x70] sm:$0xff] %vm2420, %v3110
          %3159 = vst.msk [vmem:[%s432 + $0x78] sm:$0xff] %vm2420, %v3111
          %3160 = vst.msk [vmem:[%s432 + $0x80] sm:$0xff] %vm2420, %v3112
          %3161 = vst.msk [vmem:[%s432 + $0x88] sm:$0xff] %vm2420, %v3113
          %3162 = vst.msk [vmem:[%s432 + $0x90] sm:$0xff] %vm2420, %v3114
          %3163 = vst.msk [vmem:[%s432 + $0x98] sm:$0xff] %vm2420, %v3115
          %3164 = vst.msk [vmem:[%s432 + $0xa0] sm:$0xff] %vm2420, %v3116
          %3165 = vst.msk [vmem:[%s432 + $0xa8] sm:$0xff] %vm2420, %v3117
          %3166 = vst.msk [vmem:[%s432 + $0xb0] sm:$0xff] %vm2420, %v3118
          %3167 = vst.msk [vmem:[%s432 + $0xb8] sm:$0xff] %vm2420, %v3119
          %3168 = vst.msk [vmem:[%s432 + $0xc0] sm:$0xff] %vm2420, %v3120
          %3169 = vst.msk [vmem:[%s432 + $0xc8] sm:$0xff] %vm2420, %v3121
          %3170 = vst.msk [vmem:[%s432 + $0xd0] sm:$0xff] %vm2420, %v3122
          %3171 = vst.msk [vmem:[%s432 + $0xd8] sm:$0xff] %vm2420, %v3123
          %3172 = vst.msk [vmem:[%s432 + $0xe0] sm:$0xff] %vm2420, %v3124
          %3173 = vst.msk [vmem:[%s432 + $0xe8] sm:$0xff] %vm2420, %v3125
          %3174 = vst.msk [vmem:[%s432 + $0xf0] sm:$0xff] %vm2420, %v3126
          %3175 = vst.msk [vmem:[%s432 + $0xf8] sm:$0xff] %vm2420, %v3127
          %3176 = vst.msk [vmem:[%s432 + $0x100] sm:$0xff] %vm2420, %v3128
          %3177 = vst.msk [vmem:[%s432 + $0x108] sm:$0xff] %vm2420, %v3129
          %3178 = vst.msk [vmem:[%s432 + $0x110] sm:$0xff] %vm2420, %v3130
          %3179 = vst.msk [vmem:[%s432 + $0x118] sm:$0xff] %vm2420, %v3131
          %3180 = vst.msk [vmem:[%s432 + $0x120] sm:$0xff] %vm2420, %v3132
          %3181 = vst.msk [vmem:[%s432 + $0x128] sm:$0xff] %vm2420, %v3133
          %3182 = vst.msk [vmem:[%s432 + $0x130] sm:$0xff] %vm2420, %v3134
          %3183 = vst.msk [vmem:[%s432 + $0x138] sm:$0xff] %vm2420, %v3135
          %3184 = vst.msk [vmem:[%s432 + $0x140] sm:$0xff] %vm2420, %v3136
          %3185 = vst.msk [vmem:[%s432 + $0x148] sm:$0xff] %vm2420, %v3137
          %3186 = vst.msk [vmem:[%s432 + $0x150] sm:$0xff] %vm2420, %v3138
          %3187 = vst.msk [vmem:[%s432 + $0x158] sm:$0xff] %vm2420, %v3139
          %3188 = vst.msk [vmem:[%s432 + $0x160] sm:$0xff] %vm2420, %v3140
          %3189 = vst.msk [vmem:[%s432 + $0x168] sm:$0xff] %vm2420, %v3141
          %3190 = vst.msk [vmem:[%s432 + $0x170] sm:$0xff] %vm2420, %v3142
          %3191 = vst.msk [vmem:[%s432 + $0x178] sm:$0xff] %vm2420, %v3143
          %v3192 = vld [vmem:[%s480] sm:$0xff]
          %v3193 = vld [vmem:[%s480 + $0x8] sm:$0xff]
          %v3194 = vld [vmem:[%s480 + $0x10] sm:$0xff]
          %v3195 = vld [vmem:[%s480 + $0x18] sm:$0xff]
          %v3196 = vld [vmem:[%s480 + $0x20] sm:$0xff]
          %v3197 = vld [vmem:[%s480 + $0x28] sm:$0xff]
          %v3198 = vld [vmem:[%s480 + $0x30] sm:$0xff]
          %v3199 = vld [vmem:[%s480 + $0x38] sm:$0xff]
          %v3200 = vld [vmem:[%s480 + $0x40] sm:$0xff]
          %v3201 = vld [vmem:[%s480 + $0x48] sm:$0xff]
          %v3202 = vld [vmem:[%s480 + $0x50] sm:$0xff]
          %v3203 = vld [vmem:[%s480 + $0x58] sm:$0xff]
          %v3204 = vld [vmem:[%s480 + $0x60] sm:$0xff]
          %v3205 = vld [vmem:[%s480 + $0x68] sm:$0xff]
          %v3206 = vld [vmem:[%s480 + $0x70] sm:$0xff]
          %v3207 = vld [vmem:[%s480 + $0x78] sm:$0xff]
          %v3208 = vld [vmem:[%s480 + $0x80] sm:$0xff]
          %v3209 = vld [vmem:[%s480 + $0x88] sm:$0xff]
          %v3210 = vld [vmem:[%s480 + $0x90] sm:$0xff]
          %v3211 = vld [vmem:[%s480 + $0x98] sm:$0xff]
          %v3212 = vld [vmem:[%s480 + $0xa0] sm:$0xff]
          %v3213 = vld [vmem:[%s480 + $0xa8] sm:$0xff]
          %v3214 = vld [vmem:[%s480 + $0xb0] sm:$0xff]
          %v3215 = vld [vmem:[%s480 + $0xb8] sm:$0xff]
          %v3216 = vld [vmem:[%s480 + $0xc0] sm:$0xff]
          %v3217 = vld [vmem:[%s480 + $0xc8] sm:$0xff]
          %v3218 = vld [vmem:[%s480 + $0xd0] sm:$0xff]
          %v3219 = vld [vmem:[%s480 + $0xd8] sm:$0xff]
          %v3220 = vld [vmem:[%s480 + $0xe0] sm:$0xff]
          %v3221 = vld [vmem:[%s480 + $0xe8] sm:$0xff]
          %v3222 = vld [vmem:[%s480 + $0xf0] sm:$0xff]
          %v3223 = vld [vmem:[%s480 + $0xf8] sm:$0xff]
          %v3224 = vld [vmem:[%s480 + $0x100] sm:$0xff]
          %v3225 = vld [vmem:[%s480 + $0x108] sm:$0xff]
          %v3226 = vld [vmem:[%s480 + $0x110] sm:$0xff]
          %v3227 = vld [vmem:[%s480 + $0x118] sm:$0xff]
          %v3228 = vld [vmem:[%s480 + $0x120] sm:$0xff]
          %v3229 = vld [vmem:[%s480 + $0x128] sm:$0xff]
          %v3230 = vld [vmem:[%s480 + $0x130] sm:$0xff]
          %v3231 = vld [vmem:[%s480 + $0x138] sm:$0xff]
          %v3232 = vld [vmem:[%s480 + $0x140] sm:$0xff]
          %v3233 = vld [vmem:[%s480 + $0x148] sm:$0xff]
          %v3234 = vld [vmem:[%s480 + $0x150] sm:$0xff]
          %v3235 = vld [vmem:[%s480 + $0x158] sm:$0xff]
          %v3236 = vld [vmem:[%s480 + $0x160] sm:$0xff]
          %v3237 = vld [vmem:[%s480 + $0x168] sm:$0xff]
          %v3238 = vld [vmem:[%s480 + $0x170] sm:$0xff]
          %v3239 = vld [vmem:[%s480 + $0x178] sm:$0xff]
          %v3240 = vld [vmem:[%s5] sm:$0xff]
          %v3241 = vld [vmem:[%s5 + $0x8] sm:$0xff]
          %v3243 = vsel %vm2420, %v3096, 0
          %v3246 = vsel %vm2420, %v3097, 0
          %v3249 = vsel %vm2420, %v3098, 0
          %v3252 = vsel %vm2420, %v3099, 0
          %v3255 = vsel %vm2420, %v3100, 0
          %v3258 = vsel %vm2420, %v3101, 0
          %v3261 = vsel %vm2420, %v3102, 0
          %v3264 = vsel %vm2420, %v3103, 0
          %v3267 = vsel %vm2420, %v3104, 0
          %v3270 = vsel %vm2420, %v3105, 0
          %v3273 = vsel %vm2420, %v3106, 0
          %v3276 = vsel %vm2420, %v3107, 0
          %v3279 = vsel %vm2420, %v3108, 0
          %v3282 = vsel %vm2420, %v3109, 0
          %v3285 = vsel %vm2420, %v3110, 0
          %v3288 = vsel %vm2420, %v3111, 0
          %v3291 = vsel %vm2420, %v3112, 0
          %v3294 = vsel %vm2420, %v3113, 0
          %v3297 = vsel %vm2420, %v3114, 0
          %v3300 = vsel %vm2420, %v3115, 0
          %v3303 = vsel %vm2420, %v3116, 0
          %v3306 = vsel %vm2420, %v3117, 0
          %v3309 = vsel %vm2420, %v3118, 0
          %v3312 = vsel %vm2420, %v3119, 0
          %v3315 = vsel %vm2420, %v3120, 0
          %v3318 = vsel %vm2420, %v3121, 0
          %v3321 = vsel %vm2420, %v3122, 0
          %v3324 = vsel %vm2420, %v3123, 0
          %v3327 = vsel %vm2420, %v3124, 0
          %v3330 = vsel %vm2420, %v3125, 0
          %v3333 = vsel %vm2420, %v3126, 0
          %v3336 = vsel %vm2420, %v3127, 0
          %v3339 = vsel %vm2420, %v3128, 0
          %v3342 = vsel %vm2420, %v3129, 0
          %v3345 = vsel %vm2420, %v3130, 0
          %v3348 = vsel %vm2420, %v3131, 0
          %v3351 = vsel %vm2420, %v3132, 0
          %v3354 = vsel %vm2420, %v3133, 0
          %v3357 = vsel %vm2420, %v3134, 0
          %v3360 = vsel %vm2420, %v3135, 0
          %v3363 = vsel %vm2420, %v3136, 0
          %v3366 = vsel %vm2420, %v3137, 0
          %v3369 = vsel %vm2420, %v3138, 0
          %v3372 = vsel %vm2420, %v3139, 0
          %v3375 = vsel %vm2420, %v3140, 0
          %v3378 = vsel %vm2420, %v3141, 0
          %v3381 = vsel %vm2420, %v3142, 0
          %v3384 = vsel %vm2420, %v3143, 0
          %3386 = vmatpush.msra.mxu0 0.0
          %3387 = vmatpush.msra.mxu0 0.0
          %3388 = vmatpush.msra.mxu0 0.0
          %3389 = vmatpush.msra.mxu0 0.0
          %3390 = vmatpush.msra.mxu0 0.0
          %3391 = vmatpush.msra.mxu0 0.0
          %3392 = vmatpush.msra.mxu0 0.0
          %3393 = vmatpush.msra.mxu0 0.0
          %3394 = vmatpush.msra.mxu0 0.0
          %3395 = vmatpush.msra.mxu0 0.0
          %3396 = vmatpush.msra.mxu0 0.0
          %3397 = vmatpush.msra.mxu0 0.0
          %3398 = vmatpush.msra.mxu0 0.0
          %3399 = vmatpush.msra.mxu0 0.0
          %3400 = vmatpush.msra.mxu0 %v3241
          %3401 = vmatpush.msra.mxu0 %v3240
          %3402 = vmatmul.f32.gmra.mxu0 %v3243
          %v3403 = vpop.f32.mrf.mxu0
          %v3404 = vadd.f32 0.0, %v3403
          %3405 = vmatmul.f32.gmra.mxu0 %v3246
          %v3406 = vpop.f32.mrf.mxu0
          %v3407 = vadd.f32 0.0, %v3406
          %3408 = vmatmul.f32.gmra.mxu0 %v3249
          %v3409 = vpop.f32.mrf.mxu0
          %v3410 = vadd.f32 0.0, %v3409
          %3411 = vmatmul.f32.gmra.mxu0 %v3252
          %v3412 = vpop.f32.mrf.mxu0
          %v3413 = vadd.f32 0.0, %v3412
          %3414 = vmatmul.f32.gmra.mxu0 %v3255
          %v3415 = vpop.f32.mrf.mxu0
          %v3416 = vadd.f32 0.0, %v3415
          %3417 = vmatmul.f32.gmra.mxu0 %v3258
          %v3418 = vpop.f32.mrf.mxu0
          %v3419 = vadd.f32 0.0, %v3418
          %3420 = vmatmul.f32.gmra.mxu0 %v3261
          %v3421 = vpop.f32.mrf.mxu0
          %v3422 = vadd.f32 0.0, %v3421
          %3423 = vmatmul.f32.gmra.mxu0 %v3264
          %v3424 = vpop.f32.mrf.mxu0
          %v3425 = vadd.f32 0.0, %v3424
          %3426 = vmatmul.f32.gmra.mxu0 %v3267
          %v3427 = vpop.f32.mrf.mxu0
          %v3428 = vadd.f32 0.0, %v3427
          %3429 = vmatmul.f32.gmra.mxu0 %v3270
          %v3430 = vpop.f32.mrf.mxu0
          %v3431 = vadd.f32 0.0, %v3430
          %3432 = vmatmul.f32.gmra.mxu0 %v3273
          %v3433 = vpop.f32.mrf.mxu0
          %v3434 = vadd.f32 0.0, %v3433
          %3435 = vmatmul.f32.gmra.mxu0 %v3276
          %v3436 = vpop.f32.mrf.mxu0
          %v3437 = vadd.f32 0.0, %v3436
          %3438 = vmatmul.f32.gmra.mxu0 %v3279
          %v3439 = vpop.f32.mrf.mxu0
          %v3440 = vadd.f32 0.0, %v3439
          %3441 = vmatmul.f32.gmra.mxu0 %v3282
          %v3442 = vpop.f32.mrf.mxu0
          %v3443 = vadd.f32 0.0, %v3442
          %3444 = vmatmul.f32.gmra.mxu0 %v3285
          %v3445 = vpop.f32.mrf.mxu0
          %v3446 = vadd.f32 0.0, %v3445
          %3447 = vmatmul.f32.gmra.mxu0 %v3288
          %v3448 = vpop.f32.mrf.mxu0
          %v3449 = vadd.f32 0.0, %v3448
          %3450 = vmatmul.f32.gmra.mxu0 %v3291
          %v3451 = vpop.f32.mrf.mxu0
          %v3452 = vadd.f32 0.0, %v3451
          %3453 = vmatmul.f32.gmra.mxu0 %v3294
          %v3454 = vpop.f32.mrf.mxu0
          %v3455 = vadd.f32 0.0, %v3454
          %3456 = vmatmul.f32.gmra.mxu0 %v3297
          %v3457 = vpop.f32.mrf.mxu0
          %v3458 = vadd.f32 0.0, %v3457
          %3459 = vmatmul.f32.gmra.mxu0 %v3300
          %v3460 = vpop.f32.mrf.mxu0
          %v3461 = vadd.f32 0.0, %v3460
          %3462 = vmatmul.f32.gmra.mxu0 %v3303
          %v3463 = vpop.f32.mrf.mxu0
          %v3464 = vadd.f32 0.0, %v3463
          %3465 = vmatmul.f32.gmra.mxu0 %v3306
          %v3466 = vpop.f32.mrf.mxu0
          %v3467 = vadd.f32 0.0, %v3466
          %3468 = vmatmul.f32.gmra.mxu0 %v3309
          %v3469 = vpop.f32.mrf.mxu0
          %v3470 = vadd.f32 0.0, %v3469
          %3471 = vmatmul.f32.gmra.mxu0 %v3312
          %v3472 = vpop.f32.mrf.mxu0
          %v3473 = vadd.f32 0.0, %v3472
          %3474 = vmatmul.f32.gmra.mxu0 %v3315
          %v3475 = vpop.f32.mrf.mxu0
          %v3476 = vadd.f32 0.0, %v3475
          %3477 = vmatmul.f32.gmra.mxu0 %v3318
          %v3478 = vpop.f32.mrf.mxu0
          %v3479 = vadd.f32 0.0, %v3478
          %3480 = vmatmul.f32.gmra.mxu0 %v3321
          %v3481 = vpop.f32.mrf.mxu0
          %v3482 = vadd.f32 0.0, %v3481
          %3483 = vmatmul.f32.gmra.mxu0 %v3324
          %v3484 = vpop.f32.mrf.mxu0
          %v3485 = vadd.f32 0.0, %v3484
          %3486 = vmatmul.f32.gmra.mxu0 %v3327
          %v3487 = vpop.f32.mrf.mxu0
          %v3488 = vadd.f32 0.0, %v3487
          %3489 = vmatmul.f32.gmra.mxu0 %v3330
          %v3490 = vpop.f32.mrf.mxu0
          %v3491 = vadd.f32 0.0, %v3490
          %3492 = vmatmul.f32.gmra.mxu0 %v3333
          %v3493 = vpop.f32.mrf.mxu0
          %v3494 = vadd.f32 0.0, %v3493
          %3495 = vmatmul.f32.gmra.mxu0 %v3336
          %v3496 = vpop.f32.mrf.mxu0
          %v3497 = vadd.f32 0.0, %v3496
          %3498 = vmatmul.f32.gmra.mxu0 %v3339
          %v3499 = vpop.f32.mrf.mxu0
          %v3500 = vadd.f32 0.0, %v3499
          %3501 = vmatmul.f32.gmra.mxu0 %v3342
          %v3502 = vpop.f32.mrf.mxu0
          %v3503 = vadd.f32 0.0, %v3502
          %3504 = vmatmul.f32.gmra.mxu0 %v3345
          %v3505 = vpop.f32.mrf.mxu0
          %v3506 = vadd.f32 0.0, %v3505
          %3507 = vmatmul.f32.gmra.mxu0 %v3348
          %v3508 = vpop.f32.mrf.mxu0
          %v3509 = vadd.f32 0.0, %v3508
          %3510 = vmatmul.f32.gmra.mxu0 %v3351
          %v3511 = vpop.f32.mrf.mxu0
          %v3512 = vadd.f32 0.0, %v3511
          %3513 = vmatmul.f32.gmra.mxu0 %v3354
          %v3514 = vpop.f32.mrf.mxu0
          %v3515 = vadd.f32 0.0, %v3514
          %3516 = vmatmul.f32.gmra.mxu0 %v3357
          %v3517 = vpop.f32.mrf.mxu0
          %v3518 = vadd.f32 0.0, %v3517
          %3519 = vmatmul.f32.gmra.mxu0 %v3360
          %v3520 = vpop.f32.mrf.mxu0
          %v3521 = vadd.f32 0.0, %v3520
          %3522 = vmatmul.f32.gmra.mxu0 %v3363
          %v3523 = vpop.f32.mrf.mxu0
          %v3524 = vadd.f32 0.0, %v3523
          %3525 = vmatmul.f32.gmra.mxu0 %v3366
          %v3526 = vpop.f32.mrf.mxu0
          %v3527 = vadd.f32 0.0, %v3526
          %3528 = vmatmul.f32.gmra.mxu0 %v3369
          %v3529 = vpop.f32.mrf.mxu0
          %v3530 = vadd.f32 0.0, %v3529
          %3531 = vmatmul.f32.gmra.mxu0 %v3372
          %v3532 = vpop.f32.mrf.mxu0
          %v3533 = vadd.f32 0.0, %v3532
          %3534 = vmatmul.f32.gmra.mxu0 %v3375
          %v3535 = vpop.f32.mrf.mxu0
          %v3536 = vadd.f32 0.0, %v3535
          %3537 = vmatmul.f32.gmra.mxu0 %v3378
          %v3538 = vpop.f32.mrf.mxu0
          %v3539 = vadd.f32 0.0, %v3538
          %3540 = vmatmul.f32.gmra.mxu0 %v3381
          %v3541 = vpop.f32.mrf.mxu0
          %v3542 = vadd.f32 0.0, %v3541
          %3543 = vmatmul.f32.gmra.mxu0 %v3384
          %v3544 = vpop.f32.mrf.mxu0
          %v3545 = vadd.f32 0.0, %v3544
          %3546 = vdwg.mxu0
          %v3547 = vadd.f32 %v3192, %v3404
          %v3548 = vadd.f32 %v3193, %v3407
          %v3549 = vadd.f32 %v3194, %v3410
          %v3550 = vadd.f32 %v3195, %v3413
          %v3551 = vadd.f32 %v3196, %v3416
          %v3552 = vadd.f32 %v3197, %v3419
          %v3553 = vadd.f32 %v3198, %v3422
          %v3554 = vadd.f32 %v3199, %v3425
          %v3555 = vadd.f32 %v3200, %v3428
          %v3556 = vadd.f32 %v3201, %v3431
          %v3557 = vadd.f32 %v3202, %v3434
          %v3558 = vadd.f32 %v3203, %v3437
          %v3559 = vadd.f32 %v3204, %v3440
          %v3560 = vadd.f32 %v3205, %v3443
          %v3561 = vadd.f32 %v3206, %v3446
          %v3562 = vadd.f32 %v3207, %v3449
          %v3563 = vadd.f32 %v3208, %v3452
          %v3564 = vadd.f32 %v3209, %v3455
          %v3565 = vadd.f32 %v3210, %v3458
          %v3566 = vadd.f32 %v3211, %v3461
          %v3567 = vadd.f32 %v3212, %v3464
          %v3568 = vadd.f32 %v3213, %v3467
          %v3569 = vadd.f32 %v3214, %v3470
          %v3570 = vadd.f32 %v3215, %v3473
          %v3571 = vadd.f32 %v3216, %v3476
          %v3572 = vadd.f32 %v3217, %v3479
          %v3573 = vadd.f32 %v3218, %v3482
          %v3574 = vadd.f32 %v3219, %v3485
          %v3575 = vadd.f32 %v3220, %v3488
          %v3576 = vadd.f32 %v3221, %v3491
          %v3577 = vadd.f32 %v3222, %v3494
          %v3578 = vadd.f32 %v3223, %v3497
          %v3579 = vadd.f32 %v3224, %v3500
          %v3580 = vadd.f32 %v3225, %v3503
          %v3581 = vadd.f32 %v3226, %v3506
          %v3582 = vadd.f32 %v3227, %v3509
          %v3583 = vadd.f32 %v3228, %v3512
          %v3584 = vadd.f32 %v3229, %v3515
          %v3585 = vadd.f32 %v3230, %v3518
          %v3586 = vadd.f32 %v3231, %v3521
          %v3587 = vadd.f32 %v3232, %v3524
          %v3588 = vadd.f32 %v3233, %v3527
          %v3589 = vadd.f32 %v3234, %v3530
          %v3590 = vadd.f32 %v3235, %v3533
          %v3591 = vadd.f32 %v3236, %v3536
          %v3592 = vadd.f32 %v3237, %v3539
          %v3593 = vadd.f32 %v3238, %v3542
          %v3594 = vadd.f32 %v3239, %v3545
          %v3595 = vld [vmem:[%s6] sm:$0x1]
          %v3597 = vperm.slane %v3595, 0
          %v3599 = vadd.f32 %v3547, %v3597
          %v3600 = vadd.f32 %v3548, %v3597
          %v3601 = vadd.f32 %v3549, %v3597
          %v3602 = vadd.f32 %v3550, %v3597
          %v3603 = vadd.f32 %v3551, %v3597
          %v3604 = vadd.f32 %v3552, %v3597
          %v3605 = vadd.f32 %v3553, %v3597
          %v3606 = vadd.f32 %v3554, %v3597
          %v3607 = vadd.f32 %v3555, %v3597
          %v3608 = vadd.f32 %v3556, %v3597
          %v3609 = vadd.f32 %v3557, %v3597
          %v3610 = vadd.f32 %v3558, %v3597
          %v3611 = vadd.f32 %v3559, %v3597
          %v3612 = vadd.f32 %v3560, %v3597
          %v3613 = vadd.f32 %v3561, %v3597
          %v3614 = vadd.f32 %v3562, %v3597
          %v3615 = vadd.f32 %v3563, %v3597
          %v3616 = vadd.f32 %v3564, %v3597
          %v3617 = vadd.f32 %v3565, %v3597
          %v3618 = vadd.f32 %v3566, %v3597
          %v3619 = vadd.f32 %v3567, %v3597
          %v3620 = vadd.f32 %v3568, %v3597
          %v3621 = vadd.f32 %v3569, %v3597
          %v3622 = vadd.f32 %v3570, %v3597
          %v3623 = vadd.f32 %v3571, %v3597
          %v3624 = vadd.f32 %v3572, %v3597
          %v3625 = vadd.f32 %v3573, %v3597
          %v3626 = vadd.f32 %v3574, %v3597
          %v3627 = vadd.f32 %v3575, %v3597
          %v3628 = vadd.f32 %v3576, %v3597
          %v3629 = vadd.f32 %v3577, %v3597
          %v3630 = vadd.f32 %v3578, %v3597
          %v3631 = vadd.f32 %v3579, %v3597
          %v3632 = vadd.f32 %v3580, %v3597
          %v3633 = vadd.f32 %v3581, %v3597
          %v3634 = vadd.f32 %v3582, %v3597
          %v3635 = vadd.f32 %v3583, %v3597
          %v3636 = vadd.f32 %v3584, %v3597
          %v3637 = vadd.f32 %v3585, %v3597
          %v3638 = vadd.f32 %v3586, %v3597
          %v3639 = vadd.f32 %v3587, %v3597
          %v3640 = vadd.f32 %v3588, %v3597
          %v3641 = vadd.f32 %v3589, %v3597
          %v3642 = vadd.f32 %v3590, %v3597
          %v3643 = vadd.f32 %v3591, %v3597
          %v3644 = vadd.f32 %v3592, %v3597
          %v3645 = vadd.f32 %v3593, %v3597
          %v3646 = vadd.f32 %v3594, %v3597
          %v3647 = vmax.f32 %v3599, 0.0
          %v3648 = vmax.f32 %v3600, 0.0
          %v3649 = vmax.f32 %v3601, 0.0
          %v3650 = vmax.f32 %v3602, 0.0
          %v3651 = vmax.f32 %v3603, 0.0
          %v3652 = vmax.f32 %v3604, 0.0
          %v3653 = vmax.f32 %v3605, 0.0
          %v3654 = vmax.f32 %v3606, 0.0
          %v3655 = vmax.f32 %v3607, 0.0
          %v3656 = vmax.f32 %v3608, 0.0
          %v3657 = vmax.f32 %v3609, 0.0
          %v3658 = vmax.f32 %v3610, 0.0
          %v3659 = vmax.f32 %v3611, 0.0
          %v3660 = vmax.f32 %v3612, 0.0
          %v3661 = vmax.f32 %v3613, 0.0
          %v3662 = vmax.f32 %v3614, 0.0
          %v3663 = vmax.f32 %v3615, 0.0
          %v3664 = vmax.f32 %v3616, 0.0
          %v3665 = vmax.f32 %v3617, 0.0
          %v3666 = vmax.f32 %v3618, 0.0
          %v3667 = vmax.f32 %v3619, 0.0
          %v3668 = vmax.f32 %v3620, 0.0
          %v3669 = vmax.f32 %v3621, 0.0
          %v3670 = vmax.f32 %v3622, 0.0
          %v3671 = vmax.f32 %v3623, 0.0
          %v3672 = vmax.f32 %v3624, 0.0
          %v3673 = vmax.f32 %v3625, 0.0
          %v3674 = vmax.f32 %v3626, 0.0
          %v3675 = vmax.f32 %v3627, 0.0
          %v3676 = vmax.f32 %v3628, 0.0
          %v3677 = vmax.f32 %v3629, 0.0
          %v3678 = vmax.f32 %v3630, 0.0
          %v3679 = vmax.f32 %v3631, 0.0
          %v3680 = vmax.f32 %v3632, 0.0
          %v3681 = vmax.f32 %v3633, 0.0
          %v3682 = vmax.f32 %v3634, 0.0
          %v3683 = vmax.f32 %v3635, 0.0
          %v3684 = vmax.f32 %v3636, 0.0
          %v3685 = vmax.f32 %v3637, 0.0
          %v3686 = vmax.f32 %v3638, 0.0
          %v3687 = vmax.f32 %v3639, 0.0
          %v3688 = vmax.f32 %v3640, 0.0
          %v3689 = vmax.f32 %v3641, 0.0
          %v3690 = vmax.f32 %v3642, 0.0
          %v3691 = vmax.f32 %v3643, 0.0
          %v3692 = vmax.f32 %v3644, 0.0
          %v3693 = vmax.f32 %v3645, 0.0
          %v3694 = vmax.f32 %v3646, 0.0
          %3695 = vst [vmem:[%s487] sm:$0xff] %v3647
          %3696 = vst [vmem:[%s487 + $0x8] sm:$0xff] %v3648
          %3697 = vst [vmem:[%s487 + $0x10] sm:$0xff] %v3649
          %3698 = vst [vmem:[%s487 + $0x18] sm:$0xff] %v3650
          %3699 = vst [vmem:[%s487 + $0x20] sm:$0xff] %v3651
          %3700 = vst [vmem:[%s487 + $0x28] sm:$0xff] %v3652
          %3701 = vst [vmem:[%s487 + $0x30] sm:$0xff] %v3653
          %3702 = vst [vmem:[%s487 + $0x38] sm:$0xff] %v3654
          %3703 = vst [vmem:[%s487 + $0x40] sm:$0xff] %v3655
          %3704 = vst [vmem:[%s487 + $0x48] sm:$0xff] %v3656
          %3705 = vst [vmem:[%s487 + $0x50] sm:$0xff] %v3657
          %3706 = vst [vmem:[%s487 + $0x58] sm:$0xff] %v3658
          %3707 = vst [vmem:[%s487 + $0x60] sm:$0xff] %v3659
          %3708 = vst [vmem:[%s487 + $0x68] sm:$0xff] %v3660
          %3709 = vst [vmem:[%s487 + $0x70] sm:$0xff] %v3661
          %3710 = vst [vmem:[%s487 + $0x78] sm:$0xff] %v3662
          %3711 = vst [vmem:[%s487 + $0x80] sm:$0xff] %v3663
          %3712 = vst [vmem:[%s487 + $0x88] sm:$0xff] %v3664
          %3713 = vst [vmem:[%s487 + $0x90] sm:$0xff] %v3665
          %3714 = vst [vmem:[%s487 + $0x98] sm:$0xff] %v3666
          %3715 = vst [vmem:[%s487 + $0xa0] sm:$0xff] %v3667
          %3716 = vst [vmem:[%s487 + $0xa8] sm:$0xff] %v3668
          %3717 = vst [vmem:[%s487 + $0xb0] sm:$0xff] %v3669
          %3718 = vst [vmem:[%s487 + $0xb8] sm:$0xff] %v3670
          %3719 = vst [vmem:[%s487 + $0xc0] sm:$0xff] %v3671
          %3720 = vst [vmem:[%s487 + $0xc8] sm:$0xff] %v3672
          %3721 = vst [vmem:[%s487 + $0xd0] sm:$0xff] %v3673
          %3722 = vst [vmem:[%s487 + $0xd8] sm:$0xff] %v3674
          %3723 = vst [vmem:[%s487 + $0xe0] sm:$0xff] %v3675
          %3724 = vst [vmem:[%s487 + $0xe8] sm:$0xff] %v3676
          %3725 = vst [vmem:[%s487 + $0xf0] sm:$0xff] %v3677
          %3726 = vst [vmem:[%s487 + $0xf8] sm:$0xff] %v3678
          %3727 = vst [vmem:[%s487 + $0x100] sm:$0xff] %v3679
          %3728 = vst [vmem:[%s487 + $0x108] sm:$0xff] %v3680
          %3729 = vst [vmem:[%s487 + $0x110] sm:$0xff] %v3681
          %3730 = vst [vmem:[%s487 + $0x118] sm:$0xff] %v3682
          %3731 = vst [vmem:[%s487 + $0x120] sm:$0xff] %v3683
          %3732 = vst [vmem:[%s487 + $0x128] sm:$0xff] %v3684
          %3733 = vst [vmem:[%s487 + $0x130] sm:$0xff] %v3685
          %3734 = vst [vmem:[%s487 + $0x138] sm:$0xff] %v3686
          %3735 = vst [vmem:[%s487 + $0x140] sm:$0xff] %v3687
          %3736 = vst [vmem:[%s487 + $0x148] sm:$0xff] %v3688
          %3737 = vst [vmem:[%s487 + $0x150] sm:$0xff] %v3689
          %3738 = vst [vmem:[%s487 + $0x158] sm:$0xff] %v3690
          %3739 = vst [vmem:[%s487 + $0x160] sm:$0xff] %v3691
          %3740 = vst [vmem:[%s487 + $0x168] sm:$0xff] %v3692
          %3741 = vst [vmem:[%s487 + $0x170] sm:$0xff] %v3693
          %3742 = vst [vmem:[%s487 + $0x178] sm:$0xff] %v3694
        $region60: #{cheb_conv.5} parent=51 // pred_fallthru
          _
        %s3743 = sand.u32 %s244, 1
        %s3744 = scalar_lea.sflag [#allocation3], %s3743
        %s3745 = sand.u32 %s244, 1
        %s3746 = smul.addr %s3745, 384
        %s3747 = scalar_lea.vmem [#allocation2], %s3746
        %s3748 = smul.u32 48, %s28
        %p3749 = scmp.lt.s32.totalorder %s3748, 95
        %s3750 = scalar_select %p3749, %s3748, 95
        %s3751 = smul.addr %s3750, 8
        %s3752 = scalar_lea.vmem %s9, %s3751
        // Predicated region
        $region61: #{cheb_conv.5} parent=51 // pred_check
          %p3753 = pneg %p254
        $region62: #{cheb_conv.5} parent=51 // pred_check_branch
          %3755 = sbr.rel (%p3753) target = $region64
        $region63: #{cheb_conv.5} parent=51 // pred_region
          %s3756 = smul.u32 48, %s28
          %3758 = vsyncadd %s3744, 0
          %s3759 = smul.addr %s3756, 8
          %s3760 = scalar_lea.hbm %s8, %s3759
          %s3761 = sshll.u32 %s3747, 4
          %s3762 = int_to_ptr.vmem [resolvable:$true] %s3761
          %s3763 = sshll.u32 %s3760, 4
          %s3764 = int_to_ptr.hbm [resolvable:$true] %s3763
          %3769 = dma.vmem_to_hbm [thread:$0]  %s3762, 6144, %s3764, %s3744, 128, 128, 8
        $region64: #{cheb_conv.5} parent=51 // pred_fallthru
          _
        // Predicated region
        $region65: #{cheb_conv.5} parent=51 // pred_check
          %p3770 = pneg %p280
        $region66: #{cheb_conv.5} parent=51 // pred_check_branch
          %3772 = sbr.rel (%p3770) target = $region68
        $region67: #{cheb_conv.5} parent=51 // pred_region
          %s3773 = smul.u32 48, %s28
        $region68: #{cheb_conv.5} parent=51 // pred_fallthru
          _
      $region52: #{cheb_conv.5} parent=5 // pred_fallthru
        _
      %p3774 = scmp.le.s32.totalorder 2, %s19
      // Predicated region
      $region69: #{cheb_conv.5} parent=5 // pred_check
        %p3775 = pneg %p3774
      $region70: #{cheb_conv.5} parent=5 // pred_check_branch
        %3777 = sbr.rel (%p3775) target = $region72
      $region71: #{cheb_conv.5} parent=5 // pred_region
        %s3778 = ssub.s32 %s19, 2
        // Predicated region
        $region73: #{cheb_conv.5} parent=71 // pred_check
          %p3779 = pneg %p260
        $region74: #{cheb_conv.5} parent=71 // pred_check_branch
          %3781 = sbr.rel (%p3779) target = $region76
        $region75: #{cheb_conv.5} parent=71 // pred_region
          %s3782 = sand.u32 %s245, 1
          %s3783 = scalar_lea.sflag [#allocation3], %s3782
          %s3784 = sand.u32 %s245, 1
          %s3785 = smul.addr %s3784, 384
          %s3786 = scalar_lea.vmem [#allocation2], %s3785
          %3788 = dma.done %s3783, 6144
        $region76: #{cheb_conv.5} parent=71 // pred_fallthru
          _
        // Predicated region
        $region77: #{cheb_conv.5} parent=71 // pred_check
          %p3789 = pneg %p286
        $region78: #{cheb_conv.5} parent=71 // pred_check_branch
          %3791 = sbr.rel (%p3789) target = $region80
        $region79: #{cheb_conv.5} parent=71 // pred_region
          %s3792 = smul.u32 48, %s30
          %p3793 = scmp.lt.s32.totalorder %s3792, 95
          %s3794 = scalar_select %p3793, %s3792, 95
          %s3795 = smul.addr %s3794, 8
          %s3796 = scalar_lea.vmem %s9, %s3795
        $region80: #{cheb_conv.5} parent=71 // pred_fallthru
          _
      $region72: #{cheb_conv.5} parent=5 // pred_fallthru
        _
    $region6: #{cheb_conv.5} parent=1 // loop_footer
      %s23 = sadd.s32 1, %s19
    $region7: #{cheb_conv.5} parent=1 // loop_footer_branch
      %18 = sbr.rel target = $region3
    $region8: #{cheb_conv.5} parent=1 // loop_exit
      _
    %3797 = vsyncpa [#allocation3], 1
    %s3798 = scalar_lea.sflag [#allocation3], 1
    %3799 = vsyncpa %s3798, 1

</llo_original>
